<compile_context>
chip_gen: v6e
topology: v6e:2x2x1
jax: 0.10.0
libtpu: 0.0.40
codegen_flags: <defaults>
</compile_context>

<pallas_src>
import functools
import math

import jax
import jax.numpy as jnp
from jax.experimental import pallas as pl
from jax.experimental.pallas import tpu as pltpu

_EPS = 1e-5
_HALO = 16                       # halo block rows (matches bf16 (16, 128) sublane packing)


# --------------------------------------------------------------------------------------
# small helpers
# --------------------------------------------------------------------------------------
def _vmem_limit_bytes():
    """Per-generation scoped-VMEM request: large on 128 MiB chips, conservative on v7x."""
    try:
        kind = jax.devices()[0].device_kind.lower()
    except Exception:  # pragma: no cover
        kind = ""
    if "v5" in kind or "v6" in kind:
        return 96 * 1024 * 1024
    return 48 * 1024 * 1024


def _row_stats(y_f32):
    """Per-channel (sum, sum_sq) of a (rows, C) f32 tile -> (1, 2, C)."""
    s0 = jnp.sum(y_f32, axis=0, keepdims=True)
    s1 = jnp.sum(y_f32 * y_f32, axis=0, keepdims=True)
    return jnp.concatenate([s0, s1], axis=0)[None]


def _strided_rows(h, start, count, stride):
    """Rows start, start+stride, ... (count of them) along axis 1 of an (N, L, C) value.
    start must be < stride."""
    if stride == 1:
        return h[:, start:start + count, :]
    n, l, c = h.shape
    g = h.reshape(n, l // stride, stride, c)
    return g[:, :count, start, :]


def _bn_scale_shift(stats, count, gamma, beta):
    """Finalize accumulated (sum, sum_sq) partials into a packed (2, C) [scale; shift]."""
    s = jnp.sum(stats.astype(jnp.float32), axis=0)          # (2, C)
    mean = s[0] / count
    var = jnp.maximum(s[1] / count - mean * mean, 0.0)      # biased batch variance
    scale = gamma.astype(jnp.float32) * jax.lax.rsqrt(var + _EPS)
    shift = beta.astype(jnp.float32) - mean * scale
    return jnp.stack([scale, shift])                        # (2, C)


def _cost(flops, *operands):
    nbytes = sum(math.prod(a.shape) * jnp.dtype(a.dtype).itemsize for a in operands)
    return pl.CostEstimate(flops=int(flops), transcendentals=0, bytes_accessed=int(nbytes))


# --------------------------------------------------------------------------------------
# stage kernels
# --------------------------------------------------------------------------------------
def _stage_a_kernel(*refs, stride, has_shortcut):
    # conv1 (1x1) [+ projection-shortcut conv] + per-channel (sum, sum^2) partials.
    if has_shortcut:
        x_ref, w1_ref, ws_ref, y1_ref, s1_ref, ysc_ref, ssc_ref = refs
    else:
        x_ref, w1_ref, y1_ref, s1_ref = refs

    l = pl.program_id(1)

    @pl.when(l == 0)
    def _init():
        s1_ref[...] = jnp.zeros_like(s1_ref)
        if has_shortcut:
            ssc_ref[...] = jnp.zeros_like(ssc_ref)

    x = x_ref[...]                                          # (TN, TL, Cin) compute dtype
    tn, tl, cin = x.shape
    p = w1_ref.shape[-1]

    y1 = jnp.dot(x.reshape(tn * tl, cin), w1_ref[...],
                 preferred_element_type=jnp.float32)        # MXU, f32 accumulate
    y1_ref[...] = y1.reshape(tn, tl, p).astype(y1_ref.dtype)
    s1_ref[...] += _row_stats(y1)                           # stats on the f32 MXU output

    if has_shortcut:
        cout = ws_ref.shape[-1]
        tlo = tl // stride
        xs = _strided_rows(x, 0, tlo, stride)               # stride BEFORE the matmul
        ysc = jnp.dot(xs.reshape(tn * tlo, cin), ws_ref[...],
                      preferred_element_type=jnp.float32)
        ysc_ref[...] = ysc.reshape(tn, tlo, cout).astype(ysc_ref.dtype)
        ssc_ref[...] += _row_stats(ysc)


def _stage_b_kernel(*refs, stride, num_l_tiles):
    # bn1 + relu fused with conv2 (k=3, padding=1, stride), expressed as three
    # accumulated K=P matmuls (one per tap) -- no (TN, TLo, 3P) operand is materialised.
    # The left conv2 boundary row is carried in a small VMEM scratch across the
    # sequential L axis; a right halo stream is only needed when stride == 1.
    if stride == 1:
        y1_ref, rhalo_ref, w2_ref, ss1_ref, y2_ref, s2_ref, carry_ref = refs
    else:
        y1_ref, w2_ref, ss1_ref, y2_ref, s2_ref, carry_ref = refs

    l = pl.program_id(1)
    tn, tl, p = y1_ref.shape
    tlo = tl // stride
    cdt = y1_ref.dtype
    f32 = jnp.float32

    @pl.when(l == 0)
    def _init():
        s2_ref[...] = jnp.zeros_like(s2_ref)
        carry_ref[...] = jnp.zeros_like(carry_ref)          # conv2's left zero padding

    ss = ss1_ref[...]                                       # (2, P) f32 [scale; shift]
    scale = ss[0].reshape(1, 1, p)
    shift = ss[1].reshape(1, 1, p)

    def bn_relu(v):
        return jnp.maximum(v.astype(f32) * scale + shift, 0.0)

    h1 = bn_relu(y1_ref[...])                               # (TN, TL, P) f32
    left = carry_ref[...]                                   # (TN, 1, P) f32

    # conv2 output position t consumes h1 rows stride*t + {-1, 0, +1}
    if stride == 1:
        right = bn_relu(rhalo_ref[:, 0:1, :]) * (l < num_l_tiles - 1).astype(f32)
        t_m1 = jnp.concatenate([left, h1[:, :tl - 1, :]], axis=1)
        t_0 = h1
        t_p1 = jnp.concatenate([h1[:, 1:, :], right], axis=1)
    else:
        t_m1 = jnp.concatenate(
            [left, _strided_rows(h1, stride - 1, tlo - 1, stride)], axis=1)
        t_0 = _strided_rows(h1, 0, tlo, stride)
        t_p1 = _strided_rows(h1, 1, tlo, stride)            # never crosses the right edge

    # next tile's left boundary (post-bn1-relu value of this tile's last row)
    carry_ref[...] = h1[:, tl - 1:tl, :]

    acc = jnp.dot(t_m1.reshape(tn * tlo, p).astype(cdt), w2_ref[0],
                  preferred_element_type=f32)
    acc += jnp.dot(t_0.reshape(tn * tlo, p).astype(cdt), w2_ref[1],
                   preferred_element_type=f32)
    acc += jnp.dot(t_p1.reshape(tn * tlo, p).astype(cdt), w2_ref[2],
                   preferred_element_type=f32)

    y2_ref[...] = acc.reshape(tn, tlo, p).astype(y2_ref.dtype)
    s2_ref[...] += _row_stats(acc)


def _stage_c_kernel(y2_ref, w3_ref, ss2_ref, y3_ref, s3_ref):
    # bn2 + relu fused with conv3 (1x1) + stats partials.
    l = pl.program_id(1)

    @pl.when(l == 0)
    def _init():
        s3_ref[...] = jnp.zeros_like(s3_ref)

    tn, tlo, p = y2_ref.shape
    cout = w3_ref.shape[-1]
    ss = ss2_ref[...]
    h2 = jnp.maximum(y2_ref[...].astype(jnp.float32) * ss[0].reshape(1, 1, p)
                     + ss[1].reshape(1, 1, p), 0.0)
    y3 = jnp.dot(h2.reshape(tn * tlo, p).astype(y2_ref.dtype), w3_ref[...],
                 preferred_element_type=jnp.float32)
    y3_ref[...] = y3.reshape(tn, tlo, cout).astype(y3_ref.dtype)
    s3_ref[...] += _row_stats(y3)


def _stage_d_kernel(*refs, has_shortcut):
    # bn3 (+ shortcut bn) + residual add + relu.  Purely element-wise -> fully parallel.
    if has_shortcut:
        y3_ref, res_ref, ss3_ref, sss_ref, out_ref = refs
    else:
        y3_ref, res_ref, ss3_ref, out_ref = refs
    c = y3_ref.shape[-1]
    ss3 = ss3_ref[...]
    main = (y3_ref[...].astype(jnp.float32) * ss3[0].reshape(1, 1, c)
            + ss3[1].reshape(1, 1, c))
    res = res_ref[...].astype(jnp.float32)
    if has_shortcut:
        sss = sss_ref[...]
        res = res * sss[0].reshape(1, 1, c) + sss[1].reshape(1, 1, c)
    out_ref[...] = jnp.maximum(main + res, 0.0).astype(out_ref.dtype)


# --------------------------------------------------------------------------------------
# forward wrapper
# --------------------------------------------------------------------------------------
@functools.partial(jax.jit, static_argnames=("stride", "tile_n", "tile_l"))
def bottleneck1d_forward(x, params, *, stride=1, tile_n=None, tile_l=None):
    """x: (N, L, Cin) channels-last (NLC).  Returns (N, L // stride, 4 * planes)."""
    N, L, Cin = x.shape
    P = params["w1"].shape[-1]
    Cout = params["w3"].shape[-1]
    has_shortcut = (stride != 1) or (Cin != Cout)
    cdt = x.dtype                        # matmul-operand / inter-stage activation dtype
    f32 = jnp.float32

    # Lane-dense bottleneck width: pad planes < 128 to 128 so y1/y2 stores are unmasked
    # full-lane vst and the conv2/conv3 MXU K/N dims are full.  Padded channels are
    # exact zeros throughout and never leak into real channels.
    Ppad = 128 if P < 128 else P
    dp = Ppad - P

    # ---- tile selection ----------------------------------------------------------------
    if tile_n is None:
        tile_n = math.gcd(N, 8)
        while N // tile_n < 2 and tile_n > 1:   # keep >= 2 N-tiles for megacore (v7x)
            tile_n //= 2
    if tile_l is None:
        req = max(_HALO, 8 * stride)
        tile_l = L
        for cand in (1024, 512, 256, 128, 64, 32, 16):
            if L % cand == 0 and cand % req == 0:
                tile_l = cand
                break
    assert N % tile_n == 0, (N, tile_n)
    assert L % tile_l == 0 and tile_l % (8 * stride) == 0, (L, tile_l, stride)
    if stride == 1:
        assert tile_l % _HALO == 0, (tile_l, _HALO)

    n_nt, n_lt = N // tile_n, L // tile_l
    Lout, tlo = L // stride, tile_l // stride
    grid = (n_nt, n_lt)

    # ---- weights / BN params (zero-padded to the lane-dense bottleneck width) -----------
    w1 = jnp.pad(params["w1"], ((0, 0), (0, dp))).astype(cdt)             # (Cin, Ppad)
    w2 = jnp.pad(params["w2"], ((0, 0), (0, dp), (0, dp))).astype(cdt)    # (3, Ppad, Ppad)
    w3 = jnp.pad(params["w3"], ((0, dp), (0, 0))).astype(cdt)             # (Ppad, Cout)
    g1 = jnp.pad(params["g1"], (0, dp), constant_values=1.0)
    b1 = jnp.pad(params["b1"], (0, dp))
    g2 = jnp.pad(params["g2"], (0, dp), constant_values=1.0)
    b2 = jnp.pad(params["b2"], (0, dp))

    vmem = _vmem_limit_bytes()
    seq_params = pltpu.CompilerParams(
        dimension_semantics=("parallel", "arbitrary"), vmem_limit_bytes=vmem)
    par_params = pltpu.CompilerParams(
        dimension_semantics=("parallel", "parallel"), vmem_limit_bytes=vmem)

    def full(a):
        nd = a.ndim
        return pl.BlockSpec(a.shape, lambda n, l: (0,) * nd)

    def stats_spec(c):
        return pl.BlockSpec((1, 2, c), lambda n, l: (n, 0, 0))

    def stats_shape(c):
        return jax.ShapeDtypeStruct((n_nt, 2, c), f32)

    # ---- stage A: conv1 (1x1) [+ shortcut conv] + stats ----------------------------------
    a_in_specs = [pl.BlockSpec((tile_n, tile_l, Cin), lambda n, l: (n, l, 0)), full(w1)]
    a_args = [x, w1]
    a_out_shapes = [jax.ShapeDtypeStruct((N, L, Ppad), cdt), stats_shape(Ppad)]
    a_out_specs = [pl.BlockSpec((tile_n, tile_l, Ppad), lambda n, l: (n, l, 0)),
                   stats_spec(Ppad)]
    flops_a = 2 * N * L * Cin * Ppad
    if has_shortcut:
        ws = params["ws"].astype(cdt)                                     # (Cin, Cout)
        a_in_specs.append(full(ws))
        a_args.append(ws)
        a_out_shapes += [jax.ShapeDtypeStruct((N, Lout, Cout), cdt), stats_shape(Cout)]
        a_out_specs += [pl.BlockSpec((tile_n, tlo, Cout), lambda n, l: (n, l, 0)),
                        stats_spec(Cout)]
        flops_a += 2 * N * Lout * Cin * Cout

    a_out = pl.pallas_call(
        functools.partial(_stage_a_kernel, stride=stride, has_shortcut=has_shortcut),
        grid=grid,
        in_specs=a_in_specs,
        out_specs=tuple(a_out_specs),
        out_shape=tuple(a_out_shapes),
        compiler_params=seq_params,
        cost_estimate=_cost(flops_a, *a_args, *a_out_shapes),
    )(*a_args)
    if has_shortcut:
        y1, stats1, ysc, stats_s = a_out
    else:
        y1, stats1 = a_out

    ss1 = _bn_scale_shift(stats1, N * L, g1, b1)                          # (2, Ppad)

    # ---- stage B: bn1 + relu + conv2 (k=3, stride) as 3 accumulated K=P matmuls ----------
    b_in_specs = [pl.BlockSpec((tile_n, tile_l, Ppad), lambda n, l: (n, l, 0))]
    b_args = [y1]
    if stride == 1:
        b_in_specs.append(pl.BlockSpec(
            (tile_n, _HALO, Ppad),
            lambda n, l: (n, jnp.minimum((l + 1) * (tile_l // _HALO), L // _HALO - 1), 0)))
        b_args.append(y1)
    b_in_specs += [full(w2), full(ss1)]
    b_args += [w2, ss1]

    y2_shape = jax.ShapeDtypeStruct((N, Lout, Ppad), cdt)
    y2, stats2 = pl.pallas_call(
        functools.partial(_stage_b_kernel, stride=stride, num_l_tiles=n_lt),
        grid=grid,
        in_specs=b_in_specs,
        out_specs=(pl.BlockSpec((tile_n, tlo, Ppad), lambda n, l: (n, l, 0)),
                   stats_spec(Ppad)),
        out_shape=(y2_shape, stats_shape(Ppad)),
        scratch_shapes=[pltpu.VMEM((tile_n, 1, Ppad), f32)],   # carried left boundary row
        compiler_params=seq_params,
        cost_estimate=_cost(2 * N * Lout * 3 * Ppad * Ppad, y1, w2, y2_shape),
    )(*b_args)

    ss2 = _bn_scale_shift(stats2, N * Lout, g2, b2)

    # ---- stage C: bn2 + relu + conv3 (1x1) ------------------------------------------------
    y3_shape = jax.ShapeDtypeStruct((N, Lout, Cout), cdt)
    y3, stats3 = pl.pallas_call(
        _stage_c_kernel,
        grid=grid,
        in_specs=[pl.BlockSpec((tile_n, tlo, Ppad), lambda n, l: (n, l, 0)),
                  full(w3), full(ss2)],
        out_specs=(pl.BlockSpec((tile_n, tlo, Cout), lambda n, l: (n, l, 0)),
                   stats_spec(Cout)),
        out_shape=(y3_shape, stats_shape(Cout)),
        compiler_params=seq_params,
        cost_estimate=_cost(2 * N * Lout * Ppad * Cout, y2, w3, y3_shape),
    )(y2, w3, ss2)

    ss3 = _bn_scale_shift(stats3, N * Lout, params["g3"], params["b3"])

    # ---- stage D: bn3 (+ shortcut bn) + residual + relu ----------------------------------
    d_in_specs = [pl.BlockSpec((tile_n, tlo, Cout), lambda n, l: (n, l, 0)),
                  pl.BlockSpec((tile_n, tlo, Cout), lambda n, l: (n, l, 0)),
                  full(ss3)]
    if has_shortcut:
        sss = _bn_scale_shift(stats_s, N * Lout, params["gs"], params["bs"])
        d_args = [y3, ysc, ss3, sss]
        d_in_specs.append(full(sss))
    else:
        d_args = [y3, x, ss3]

    out_shape = jax.ShapeDtypeStruct((N, Lout, Cout), x.dtype)
    out = pl.pallas_call(
        functools.partial(_stage_d_kernel, has_shortcut=has_shortcut),
        grid=grid,
        in_specs=d_in_specs,
        out_specs=pl.BlockSpec((tile_n, tlo, Cout), lambda n, l: (n, l, 0)),
        out_shape=out_shape,
        compiler_params=par_params,
        cost_estimate=_cost(4 * N * Lout * Cout, *d_args, out_shape),
    )(*d_args)
    return out


def bottleneck1d_forward_ncl(x_ncl, params, stride=1):
    """Drop-in adapter for PyTorch's (N, C, L) layout.  Prefer the NLC entry point:
    these transposes are exactly the extra HBM round-trips the kernel design avoids."""
    out = bottleneck1d_forward(jnp.transpose(x_ncl, (0, 2, 1)), params, stride=stride)
    return jnp.transpose(out, (0, 2, 1))


# --------------------------------------------------------------------------------------
# pure-JAX reference (independent lax.conv path; mirrors the kernels' precision policy:
# conv operands / stored activations in x.dtype, BN statistics from the f32 conv output,
# normalisation applied to the stored (rounded) activations)
# --------------------------------------------------------------------------------------
def _ref_forward(x_nlc, params, stride):
    cdt = x_nlc.dtype
    f32 = jnp.float32
    x = jnp.transpose(x_nlc, (0, 2, 1))                       # (N, C, L)

    def conv(h_cdt, w_kio, s=1, pad=0):
        w = jnp.transpose(w_kio, (2, 1, 0)).astype(cdt).astype(f32)   # (out, in, k)
        return jax.lax.conv_general_dilated(
            h_cdt.astype(f32), w, window_strides=(s,), padding=[(pad, pad)],
            dimension_numbers=("NCH", "OIH", "NCH"))

    def bn(y_f32, g, b):
        mean = jnp.mean(y_f32, axis=(0, 2))
        var = jnp.maximum(jnp.mean(y_f32 * y_f32, axis=(0, 2)) - mean * mean, 0.0)
        scale = g.astype(f32) * jax.lax.rsqrt(var + _EPS)
        shift = b.astype(f32) - mean * scale
        y_c = y_f32.astype(cdt).astype(f32)                   # stored activation
        return y_c * scale.reshape(1, -1, 1) + shift.reshape(1, -1, 1)

    relu = lambda v: jnp.maximum(v, 0.0)
    h1 = relu(bn(conv(x, params["w1"][None]), params["g1"], params["b1"])).astype(cdt)
    h2 = relu(bn(conv(h1, params["w2"], s=stride, pad=1),
                 params["g2"], params["b2"])).astype(cdt)
    main = bn(conv(h2, params["w3"][None]), params["g3"], params["b3"])
    Cin, Cout = params["w1"].shape[0], params["w3"].shape[-1]
    if stride != 1 or Cin != Cout:
        res = bn(conv(x, params["ws"][None], s=stride), params["gs"], params["bs"])
    else:
        res = x.astype(f32)
    out = relu(main + res).astype(cdt)
    return jnp.transpose(out, (0, 2, 1))                      # back to NLC


# --------------------------------------------------------------------------------------
if __name__ == "__main__":
    key = jax.random.PRNGKey(0)

    def nrm(k, shape, scale=0.1):
        return scale * jax.random.normal(k, shape, dtype=jnp.float32)

    def make_params(k, cin, planes, with_shortcut):
        cout = 4 * planes
        ks = jax.random.split(k, 12)
        p = {
            # conv weights in matmul layout: (in, out) for 1x1, (tap, in, out) for k=3
            "w1": nrm(ks[0], (cin, planes)),
            "g1": 1.0 + nrm(ks[1], (planes,)), "b1": nrm(ks[2], (planes,)),
            "w2": nrm(ks[3], (3, planes, planes)),
            "g2": 1.0 + nrm(ks[4], (planes,)), "b2": nrm(ks[5], (planes,)),
            "w3": nrm(ks[6], (planes, cout)),
            "g3": 1.0 + nrm(ks[7], (cout,)), "b3": nrm(ks[8], (cout,)),
        }
        if with_shortcut:
            p["ws"] = nrm(ks[9], (cin, cout))
            p["gs"] = 1.0 + nrm(ks[10], (cout,))
            p["bs"] = nrm(ks[11], (cout,))
        return p

    N, L, planes = 8, 64, 32
    cases = (("projection shortcut, stride=2", 64, 2),
             ("identity shortcut,   stride=1", 4 * planes, 1))
    for name, cin, stride in cases:
        key, kp, kx = jax.random.split(key, 3)
        cout = 4 * planes
        with_shortcut = (stride != 1) or (cin != cout)
        params = make_params(kp, cin, planes, with_shortcut)
        # bf16 activations -> bf16 MXU operands with f32 accumulation inside the kernels
        x = jax.random.normal(kx, (N, L, cin), dtype=jnp.float32).astype(jnp.bfloat16)

        out = jax.block_until_ready(
            bottleneck1d_forward(x, params, stride=stride, tile_l=32))
        assert out.shape == (N, L // stride, cout), (name, out.shape)

        ref = jax.block_until_ready(_ref_forward(x, params, stride))
        diff = jnp.abs(out.astype(jnp.float32) - ref.astype(jnp.float32))
        max_err = float(jnp.max(diff))
        mean_err = float(jnp.mean(diff))
        assert max_err < 6e-2 and mean_err < 6e-3, (name, max_err, mean_err)

    print("KERNEL_OK")
</pallas_src>

<mosaic_0001>
module attributes {stable_mosaic.version = 11 : i64} {
  func.func @_stage_a_kernel(%arg0: i32, %arg1: i32, %arg2: memref<4x32x64xbf16, #tpu.memory_space<vmem>>, %arg3: memref<64x128xbf16, #tpu.memory_space<vmem>>, %arg4: memref<64x128xbf16, #tpu.memory_space<vmem>>, %arg5: memref<4x32x128xbf16, #tpu.memory_space<vmem>>, %arg6: memref<1x2x128xf32, #tpu.memory_space<vmem>>, %arg7: memref<4x16x128xbf16, #tpu.memory_space<vmem>>, %arg8: memref<1x2x128xf32, #tpu.memory_space<vmem>>) attributes {dimension_semantics = [#tpu.dimension_semantics<parallel>, #tpu.dimension_semantics<arbitrary>], iteration_bounds = array<i64: 2, 2>, scalar_prefetch = 0 : i64, scratch_operands = 0 : i64, tpu.core_type = #tpu.core_type<tc>, window_params = [{transform_indices = @transform_0, window_bounds = array<i64: 4, 32, 64>}, {pipeline_mode = #tpu.pipeline_mode<synchronous>, transform_indices = @transform_1, window_bounds = array<i64: 64, 128>}, {pipeline_mode = #tpu.pipeline_mode<synchronous>, transform_indices = @transform_2, window_bounds = array<i64: 64, 128>}, {transform_indices = @transform_3, window_bounds = array<i64: 4, 32, 128>}, {transform_indices = @transform_4, window_bounds = array<i64: 1, 2, 128>}, {transform_indices = @transform_5, window_bounds = array<i64: 4, 16, 128>}, {transform_indices = @transform_6, window_bounds = array<i64: 1, 2, 128>}]} {
    %c0_i32 = arith.constant 0 : i32
    %0 = arith.cmpi eq, %arg1, %c0_i32 : i32
    %1 = arith.extui %0 : i1 to i32
    %c0_i32_0 = arith.constant 0 : i32
    %2 = arith.cmpi ne, %1, %c0_i32_0 : i32
    scf.if %2 {
      %cst_30 = arith.constant 0.000000e+00 : f32
      %39 = vector.broadcast %cst_30 : f32 to vector<1x2x128xf32>
      %c0_31 = arith.constant 0 : index
      %c0_32 = arith.constant 0 : index
      %c0_33 = arith.constant 0 : index
      %40 = vector.load %arg6[%c0_31, %c0_32, %c0_33] : memref<1x2x128xf32, #tpu.memory_space<vmem>>, vector<1x2x128xf32>
      tpu.vector_store %arg6[%c0_31, %c0_32, %c0_33], %39 {strides = array<i32>} : memref<1x2x128xf32, #tpu.memory_space<vmem>>, vector<1x2x128xf32>,
      %cst_34 = arith.constant 0.000000e+00 : f32
      %41 = vector.broadcast %cst_34 : f32 to vector<1x2x128xf32>
      %c0_35 = arith.constant 0 : index
      %c0_36 = arith.constant 0 : index
      %c0_37 = arith.constant 0 : index
      %42 = vector.load %arg8[%c0_35, %c0_36, %c0_37] : memref<1x2x128xf32, #tpu.memory_space<vmem>>, vector<1x2x128xf32>
      tpu.vector_store %arg8[%c0_35, %c0_36, %c0_37], %41 {strides = array<i32>} : memref<1x2x128xf32, #tpu.memory_space<vmem>>, vector<1x2x128xf32>,
    } else {
    }
    %c0 = arith.constant 0 : index
    %c0_1 = arith.constant 0 : index
    %c0_2 = arith.constant 0 : index
    %3 = vector.load %arg2[%c0, %c0_1, %c0_2] : memref<4x32x64xbf16, #tpu.memory_space<vmem>>, vector<4x32x64xbf16>
    %4 = vector.shape_cast %3 : vector<4x32x64xbf16> to vector<128x64xbf16>
    %c0_3 = arith.constant 0 : index
    %c0_4 = arith.constant 0 : index
    %5 = vector.load %arg3[%c0_3, %c0_4] : memref<64x128xbf16, #tpu.memory_space<vmem>>, vector<64x128xbf16>
    %cst = arith.constant dense<0.000000e+00> : vector<128x128xf32>
    %6 = tpu.matmul %4, %5, %cst {dimension_numbers = #tpu.dot_dimension_numbers<[1], [0], [0], [1], [0, 0, 1, 1], [], []>} : vector<128x64xbf16>, vector<64x128xbf16>, vector<128x128xf32> -> vector<128x128xf32>
    %7 = vector.shape_cast %6 : vector<128x128xf32> to vector<4x32x128xf32>
    %8 = arith.truncf %7 : vector<4x32x128xf32> to vector<4x32x128xbf16>
    %c0_5 = arith.constant 0 : index
    %c0_6 = arith.constant 0 : index
    %c0_7 = arith.constant 0 : index
    %9 = vector.load %arg5[%c0_5, %c0_6, %c0_7] : memref<4x32x128xbf16, #tpu.memory_space<vmem>>, vector<4x32x128xbf16>
    tpu.vector_store %arg5[%c0_5, %c0_6, %c0_7], %8 {strides = array<i32>} : memref<4x32x128xbf16, #tpu.memory_space<vmem>>, vector<4x32x128xbf16>,
    %c0_8 = arith.constant 0 : index
    %c0_9 = arith.constant 0 : index
    %c0_10 = arith.constant 0 : index
    %10 = vector.load %arg6[%c0_8, %c0_9, %c0_10] : memref<1x2x128xf32, #tpu.memory_space<vmem>>, vector<1x2x128xf32>
    %cst_11 = arith.constant dense<0.000000e+00> : vector<128xf32>
    %11 = vector.multi_reduction <add>, %6, %cst_11 [0] : vector<128x128xf32> to vector<128xf32>
    %12 = vector.shape_cast %11 : vector<128xf32> to vector<1x128xf32>
    %13 = arith.mulf %6, %6 : vector<128x128xf32>
    %cst_12 = arith.constant dense<0.000000e+00> : vector<128xf32>
    %14 = vector.multi_reduction <add>, %13, %cst_12 [0] : vector<128x128xf32> to vector<128xf32>
    %15 = vector.shape_cast %14 : vector<128xf32> to vector<1x128xf32>
    %16 = tpu.concatenate %12, %15 in 0 : vector<1x128xf32>, vector<1x128xf32> -> vector<2x128xf32>
    %17 = vector.shape_cast %16 : vector<2x128xf32> to vector<1x2x128xf32>
    %18 = arith.addf %10, %17 : vector<1x2x128xf32>
    %c0_13 = arith.constant 0 : index
    %c0_14 = arith.constant 0 : index
    %c0_15 = arith.constant 0 : index
    %19 = vector.load %arg6[%c0_13, %c0_14, %c0_15] : memref<1x2x128xf32, #tpu.memory_space<vmem>>, vector<1x2x128xf32>
    tpu.vector_store %arg6[%c0_13, %c0_14, %c0_15], %18 {strides = array<i32>} : memref<1x2x128xf32, #tpu.memory_space<vmem>>, vector<1x2x128xf32>,
    %20 = vector.shape_cast %3 : vector<4x32x64xbf16> to vector<4x16x2x64xbf16>
    %21 = vector.extract_strided_slice %20 {offsets = [0, 0, 0, 0], sizes = [4, 16, 1, 64], strides = [1, 1, 1, 1]} : vector<4x16x2x64xbf16> to vector<4x16x1x64xbf16>
    %22 = vector.shape_cast %21 : vector<4x16x1x64xbf16> to vector<4x16x64xbf16>
    %23 = vector.shape_cast %22 : vector<4x16x64xbf16> to vector<64x64xbf16>
    %c0_16 = arith.constant 0 : index
    %c0_17 = arith.constant 0 : index
    %24 = vector.load %arg4[%c0_16, %c0_17] : memref<64x128xbf16, #tpu.memory_space<vmem>>, vector<64x128xbf16>
    %cst_18 = arith.constant dense<0.000000e+00> : vector<64x128xf32>
    %25 = tpu.matmul %23, %24, %cst_18 {dimension_numbers = #tpu.dot_dimension_numbers<[1], [0], [0], [1], [0, 0, 1, 1], [], []>} : vector<64x64xbf16>, vector<64x128xbf16>, vector<64x128xf32> -> vector<64x128xf32>
    %26 = vector.shape_cast %25 : vector<64x128xf32> to vector<4x16x128xf32>
    %27 = arith.truncf %26 : vector<4x16x128xf32> to vector<4x16x128xbf16>
    %c0_19 = arith.constant 0 : index
    %c0_20 = arith.constant 0 : index
    %c0_21 = arith.constant 0 : index
    %28 = vector.load %arg7[%c0_19, %c0_20, %c0_21] : memref<4x16x128xbf16, #tpu.memory_space<vmem>>, vector<4x16x128xbf16>
    tpu.vector_store %arg7[%c0_19, %c0_20, %c0_21], %27 {strides = array<i32>} : memref<4x16x128xbf16, #tpu.memory_space<vmem>>, vector<4x16x128xbf16>,
    %c0_22 = arith.constant 0 : index
    %c0_23 = arith.constant 0 : index
    %c0_24 = arith.constant 0 : index
    %29 = vector.load %arg8[%c0_22, %c0_23, %c0_24] : memref<1x2x128xf32, #tpu.memory_space<vmem>>, vector<1x2x128xf32>
    %cst_25 = arith.constant dense<0.000000e+00> : vector<128xf32>
    %30 = vector.multi_reduction <add>, %25, %cst_25 [0] : vector<64x128xf32> to vector<128xf32>
    %31 = vector.shape_cast %30 : vector<128xf32> to vector<1x128xf32>
    %32 = arith.mulf %25, %25 : vector<64x128xf32>
    %cst_26 = arith.constant dense<0.000000e+00> : vector<128xf32>
    %33 = vector.multi_reduction <add>, %32, %cst_26 [0] : vector<64x128xf32> to vector<128xf32>
    %34 = vector.shape_cast %33 : vector<128xf32> to vector<1x128xf32>
    %35 = tpu.concatenate %31, %34 in 0 : vector<1x128xf32>, vector<1x128xf32> -> vector<2x128xf32>
    %36 = vector.shape_cast %35 : vector<2x128xf32> to vector<1x2x128xf32>
    %37 = arith.addf %29, %36 : vector<1x2x128xf32>
    %c0_27 = arith.constant 0 : index
    %c0_28 = arith.constant 0 : index
    %c0_29 = arith.constant 0 : index
    %38 = vector.load %arg8[%c0_27, %c0_28, %c0_29] : memref<1x2x128xf32, #tpu.memory_space<vmem>>, vector<1x2x128xf32>
    tpu.vector_store %arg8[%c0_27, %c0_28, %c0_29], %37 {strides = array<i32>} : memref<1x2x128xf32, #tpu.memory_space<vmem>>, vector<1x2x128xf32>,
    return
  }
  func.func @transform_0(%arg0: i32, %arg1: i32) -> (i32, i32, i32) {
    %c0_i32 = arith.constant 0 : i32
    %c0_i32_0 = arith.constant 0 : i32
    return %arg0, %arg1, %c0_i32 : i32, i32, i32
  }
  func.func @transform_1(%arg0: i32, %arg1: i32) -> (i32, i32) {
    %c0_i32 = arith.constant 0 : i32
    %c0_i32_0 = arith.constant 0 : i32
    %c0_i32_1 = arith.constant 0 : i32
    return %c0_i32, %c0_i32_0 : i32, i32
  }
  func.func @transform_2(%arg0: i32, %arg1: i32) -> (i32, i32) {
    %c0_i32 = arith.constant 0 : i32
    %c0_i32_0 = arith.constant 0 : i32
    %c0_i32_1 = arith.constant 0 : i32
    return %c0_i32, %c0_i32_0 : i32, i32
  }
  func.func @transform_3(%arg0: i32, %arg1: i32) -> (i32, i32, i32) {
    %c0_i32 = arith.constant 0 : i32
    %c0_i32_0 = arith.constant 0 : i32
    return %arg0, %arg1, %c0_i32 : i32, i32, i32
  }
  func.func @transform_4(%arg0: i32, %arg1: i32) -> (i32, i32, i32) {
    %c0_i32 = arith.constant 0 : i32
    %c0_i32_0 = arith.constant 0 : i32
    %c0_i32_1 = arith.constant 0 : i32
    return %arg0, %c0_i32, %c0_i32_0 : i32, i32, i32
  }
  func.func @transform_5(%arg0: i32, %arg1: i32) -> (i32, i32, i32) {
    %c0_i32 = arith.constant 0 : i32
    %c0_i32_0 = arith.constant 0 : i32
    return %arg0, %arg1, %c0_i32 : i32, i32, i32
  }
  func.func @transform_6(%arg0: i32, %arg1: i32) -> (i32, i32, i32) {
    %c0_i32 = arith.constant 0 : i32
    %c0_i32_0 = arith.constant 0 : i32
    %c0_i32_1 = arith.constant 0 : i32
    return %arg0, %c0_i32, %c0_i32_0 : i32, i32, i32
  }
}

module attributes {stable_mosaic.version = 11 : i64} {
  func.func @_stage_b_kernel(%arg0: i32, %arg1: i32, %arg2: memref<4x32x128xbf16, #tpu.memory_space<vmem>>, %arg3: memref<3x128x128xbf16, #tpu.memory_space<vmem>>, %arg4: memref<2x128xf32, #tpu.memory_space<vmem>>, %arg5: memref<4x16x128xbf16, #tpu.memory_space<vmem>>, %arg6: memref<1x2x128xf32, #tpu.memory_space<vmem>>, %arg7: memref<4x1x128xf32, #tpu.memory_space<vmem>>) attributes {dimension_semantics = [#tpu.dimension_semantics<parallel>, #tpu.dimension_semantics<arbitrary>], iteration_bounds = array<i64: 2, 2>, scalar_prefetch = 0 : i64, scratch_operands = 1 : i64, tpu.core_type = #tpu.core_type<tc>, window_params = [{transform_indices = @transform_0, window_bounds = array<i64: 4, 32, 128>}, {pipeline_mode = #tpu.pipeline_mode<synchronous>, transform_indices = @transform_1, window_bounds = array<i64: 3, 128, 128>}, {pipeline_mode = #tpu.pipeline_mode<synchronous>, transform_indices = @transform_2, window_bounds = array<i64: 2, 128>}, {transform_indices = @transform_3, window_bounds = array<i64: 4, 16, 128>}, {transform_indices = @transform_4, window_bounds = array<i64: 1, 2, 128>}]} {
    %c0_i32 = arith.constant 0 : i32
    %0 = arith.cmpi eq, %arg1, %c0_i32 : i32
    %1 = arith.extui %0 : i1 to i32
    %c0_i32_0 = arith.constant 0 : i32
    %2 = arith.cmpi ne, %1, %c0_i32_0 : i32
    scf.if %2 {
      %cst_32 = arith.constant 0.000000e+00 : f32
      %61 = vector.broadcast %cst_32 : f32 to vector<1x2x128xf32>
      %c0_33 = arith.constant 0 : index
      %c0_34 = arith.constant 0 : index
      %c0_35 = arith.constant 0 : index
      %62 = vector.load %arg6[%c0_33, %c0_34, %c0_35] : memref<1x2x128xf32, #tpu.memory_space<vmem>>, vector<1x2x128xf32>
      tpu.vector_store %arg6[%c0_33, %c0_34, %c0_35], %61 {strides = array<i32>} : memref<1x2x128xf32, #tpu.memory_space<vmem>>, vector<1x2x128xf32>,
      %cst_36 = arith.constant 0.000000e+00 : f32
      %63 = vector.broadcast %cst_36 : f32 to vector<4x1x128xf32>
      %c0_37 = arith.constant 0 : index
      %c0_38 = arith.constant 0 : index
      %c0_39 = arith.constant 0 : index
      %64 = vector.load %arg7[%c0_37, %c0_38, %c0_39] : memref<4x1x128xf32, #tpu.memory_space<vmem>>, vector<4x1x128xf32>
      tpu.vector_store %arg7[%c0_37, %c0_38, %c0_39], %63 {strides = array<i32>} : memref<4x1x128xf32, #tpu.memory_space<vmem>>, vector<4x1x128xf32>,
    } else {
    }
    %c0 = arith.constant 0 : index
    %c0_1 = arith.constant 0 : index
    %3 = vector.load %arg4[%c0, %c0_1] : memref<2x128xf32, #tpu.memory_space<vmem>>, vector<2x128xf32>
    %4 = vector.extract_strided_slice %3 {offsets = [0, 0], sizes = [1, 128], strides = [1, 1]} : vector<2x128xf32> to vector<1x128xf32>
    %5 = vector.shape_cast %4 : vector<1x128xf32> to vector<128xf32>
    %6 = vector.shape_cast %5 : vector<128xf32> to vector<1x1x128xf32>
    %7 = vector.extract_strided_slice %3 {offsets = [1, 0], sizes = [1, 128], strides = [1, 1]} : vector<2x128xf32> to vector<1x128xf32>
    %8 = vector.shape_cast %7 : vector<1x128xf32> to vector<128xf32>
    %9 = vector.shape_cast %8 : vector<128xf32> to vector<1x1x128xf32>
    %c0_2 = arith.constant 0 : index
    %c0_3 = arith.constant 0 : index
    %c0_4 = arith.constant 0 : index
    %10 = vector.load %arg2[%c0_2, %c0_3, %c0_4] : memref<4x32x128xbf16, #tpu.memory_space<vmem>>, vector<4x32x128xbf16>
    %11 = arith.extf %10 : vector<4x32x128xbf16> to vector<4x32x128xf32>
    %12 = vector.broadcast %6 : vector<1x1x128xf32> to vector<4x32x128xf32>
    %13 = arith.mulf %11, %12 : vector<4x32x128xf32>
    %14 = vector.broadcast %9 : vector<1x1x128xf32> to vector<4x32x128xf32>
    %15 = arith.addf %13, %14 : vector<4x32x128xf32>
    %cst = arith.constant 0.000000e+00 : f32
    %16 = vector.broadcast %cst : f32 to vector<4x32x128xf32>
    %17 = arith.maximumf %15, %16 : vector<4x32x128xf32>
    %c0_5 = arith.constant 0 : index
    %c0_6 = arith.constant 0 : index
    %c0_7 = arith.constant 0 : index
    %18 = vector.load %arg7[%c0_5, %c0_6, %c0_7] : memref<4x1x128xf32, #tpu.memory_space<vmem>>, vector<4x1x128xf32>
    %19 = vector.shape_cast %17 : vector<4x32x128xf32> to vector<4x16x2x128xf32>
    %20 = vector.extract_strided_slice %19 {offsets = [0, 0, 1, 0], sizes = [4, 15, 1, 128], strides = [1, 1, 1, 1]} : vector<4x16x2x128xf32> to vector<4x15x1x128xf32>
    %21 = vector.shape_cast %20 : vector<4x15x1x128xf32> to vector<4x15x128xf32>
    %22 = tpu.concatenate %18, %21 in 1 : vector<4x1x128xf32>, vector<4x15x128xf32> -> vector<4x16x128xf32>
    %23 = vector.shape_cast %17 : vector<4x32x128xf32> to vector<4x16x2x128xf32>
    %24 = vector.extract_strided_slice %23 {offsets = [0, 0, 0, 0], sizes = [4, 16, 1, 128], strides = [1, 1, 1, 1]} : vector<4x16x2x128xf32> to vector<4x16x1x128xf32>
    %25 = vector.shape_cast %24 : vector<4x16x1x128xf32> to vector<4x16x128xf32>
    %26 = vector.shape_cast %17 : vector<4x32x128xf32> to vector<4x16x2x128xf32>
    %27 = vector.extract_strided_slice %26 {offsets = [0, 0, 1, 0], sizes = [4, 16, 1, 128], strides = [1, 1, 1, 1]} : vector<4x16x2x128xf32> to vector<4x16x1x128xf32>
    %28 = vector.shape_cast %27 : vector<4x16x1x128xf32> to vector<4x16x128xf32>
    %29 = vector.extract_strided_slice %17 {offsets = [0, 31, 0], sizes = [4, 1, 128], strides = [1, 1, 1]} : vector<4x32x128xf32> to vector<4x1x128xf32>
    %c0_8 = arith.constant 0 : index
    %c0_9 = arith.constant 0 : index
    %c0_10 = arith.constant 0 : index
    %30 = vector.load %arg7[%c0_8, %c0_9, %c0_10] : memref<4x1x128xf32, #tpu.memory_space<vmem>>, vector<4x1x128xf32>
    tpu.vector_store %arg7[%c0_8, %c0_9, %c0_10], %29 {strides = array<i32>} : memref<4x1x128xf32, #tpu.memory_space<vmem>>, vector<4x1x128xf32>,
    %31 = vector.shape_cast %22 : vector<4x16x128xf32> to vector<64x128xf32>
    %32 = arith.truncf %31 : vector<64x128xf32> to vector<64x128xbf16>
    %c0_11 = arith.constant 0 : index
    %c0_12 = arith.constant 0 : index
    %c0_13 = arith.constant 0 : index
    %33 = vector.load %arg3[%c0_11, %c0_12, %c0_13] : memref<3x128x128xbf16, #tpu.memory_space<vmem>>, vector<1x128x128xbf16>
    %34 = vector.shape_cast %33 : vector<1x128x128xbf16> to vector<128x128xbf16>
    %cst_14 = arith.constant dense<0.000000e+00> : vector<64x128xf32>
    %35 = tpu.matmul %32, %34, %cst_14 {dimension_numbers = #tpu.dot_dimension_numbers<[1], [0], [0], [1], [0, 0, 1, 1], [], []>} : vector<64x128xbf16>, vector<128x128xbf16>, vector<64x128xf32> -> vector<64x128xf32>
    %36 = vector.shape_cast %25 : vector<4x16x128xf32> to vector<64x128xf32>
    %37 = arith.truncf %36 : vector<64x128xf32> to vector<64x128xbf16>
    %c1 = arith.constant 1 : index
    %c0_15 = arith.constant 0 : index
    %c0_16 = arith.constant 0 : index
    %38 = vector.load %arg3[%c1, %c0_15, %c0_16] : memref<3x128x128xbf16, #tpu.memory_space<vmem>>, vector<1x128x128xbf16>
    %39 = vector.shape_cast %38 : vector<1x128x128xbf16> to vector<128x128xbf16>
    %cst_17 = arith.constant dense<0.000000e+00> : vector<64x128xf32>
    %40 = tpu.matmul %37, %39, %cst_17 {dimension_numbers = #tpu.dot_dimension_numbers<[1], [0], [0], [1], [0, 0, 1, 1], [], []>} : vector<64x128xbf16>, vector<128x128xbf16>, vector<64x128xf32> -> vector<64x128xf32>
    %41 = arith.addf %35, %40 : vector<64x128xf32>
    %42 = vector.shape_cast %28 : vector<4x16x128xf32> to vector<64x128xf32>
    %43 = arith.truncf %42 : vector<64x128xf32> to vector<64x128xbf16>
    %c2 = arith.constant 2 : index
    %c0_18 = arith.constant 0 : index
    %c0_19 = arith.constant 0 : index
    %44 = vector.load %arg3[%c2, %c0_18, %c0_19] : memref<3x128x128xbf16, #tpu.memory_space<vmem>>, vector<1x128x128xbf16>
    %45 = vector.shape_cast %44 : vector<1x128x128xbf16> to vector<128x128xbf16>
    %cst_20 = arith.constant dense<0.000000e+00> : vector<64x128xf32>
    %46 = tpu.matmul %43, %45, %cst_20 {dimension_numbers = #tpu.dot_dimension_numbers<[1], [0], [0], [1], [0, 0, 1, 1], [], []>} : vector<64x128xbf16>, vector<128x128xbf16>, vector<64x128xf32> -> vector<64x128xf32>
    %47 = arith.addf %41, %46 : vector<64x128xf32>
    %48 = vector.shape_cast %47 : vector<64x128xf32> to vector<4x16x128xf32>
    %49 = arith.truncf %48 : vector<4x16x128xf32> to vector<4x16x128xbf16>
    %c0_21 = arith.constant 0 : index
    %c0_22 = arith.constant 0 : index
    %c0_23 = arith.constant 0 : index
    %50 = vector.load %arg5[%c0_21, %c0_22, %c0_23] : memref<4x16x128xbf16, #tpu.memory_space<vmem>>, vector<4x16x128xbf16>
    tpu.vector_store %arg5[%c0_21, %c0_22, %c0_23], %49 {strides = array<i32>} : memref<4x16x128xbf16, #tpu.memory_space<vmem>>, vector<4x16x128xbf16>,
    %c0_24 = arith.constant 0 : index
    %c0_25 = arith.constant 0 : index
    %c0_26 = arith.constant 0 : index
    %51 = vector.load %arg6[%c0_24, %c0_25, %c0_26] : memref<1x2x128xf32, #tpu.memory_space<vmem>>, vector<1x2x128xf32>
    %cst_27 = arith.constant dense<0.000000e+00> : vector<128xf32>
    %52 = vector.multi_reduction <add>, %47, %cst_27 [0] : vector<64x128xf32> to vector<128xf32>
    %53 = vector.shape_cast %52 : vector<128xf32> to vector<1x128xf32>
    %54 = arith.mulf %47, %47 : vector<64x128xf32>
    %cst_28 = arith.constant dense<0.000000e+00> : vector<128xf32>
    %55 = vector.multi_reduction <add>, %54, %cst_28 [0] : vector<64x128xf32> to vector<128xf32>
    %56 = vector.shape_cast %55 : vector<128xf32> to vector<1x128xf32>
    %57 = tpu.concatenate %53, %56 in 0 : vector<1x128xf32>, vector<1x128xf32> -> vector<2x128xf32>
    %58 = vector.shape_cast %57 : vector<2x128xf32> to vector<1x2x128xf32>
    %59 = arith.addf %51, %58 : vector<1x2x128xf32>
    %c0_29 = arith.constant 0 : index
    %c0_30 = arith.constant 0 : index
    %c0_31 = arith.constant 0 : index
    %60 = vector.load %arg6[%c0_29, %c0_30, %c0_31] : memref<1x2x128xf32, #tpu.memory_space<vmem>>, vector<1x2x128xf32>
    tpu.vector_store %arg6[%c0_29, %c0_30, %c0_31], %59 {strides = array<i32>} : memref<1x2x128xf32, #tpu.memory_space<vmem>>, vector<1x2x128xf32>,
    return
  }
  func.func @transform_0(%arg0: i32, %arg1: i32) -> (i32, i32, i32) {
    %c0_i32 = arith.constant 0 : i32
    %c0_i32_0 = arith.constant 0 : i32
    return %arg0, %arg1, %c0_i32 : i32, i32, i32
  }
  func.func @transform_1(%arg0: i32, %arg1: i32) -> (i32, i32, i32) {
    %c0_i32 = arith.constant 0 : i32
    %c0_i32_0 = arith.constant 0 : i32
    %c0_i32_1 = arith.constant 0 : i32
    %c0_i32_2 = arith.constant 0 : i32
    return %c0_i32, %c0_i32_0, %c0_i32_1 : i32, i32, i32
  }
  func.func @transform_2(%arg0: i32, %arg1: i32) -> (i32, i32) {
    %c0_i32 = arith.constant 0 : i32
    %c0_i32_0 = arith.constant 0 : i32
    %c0_i32_1 = arith.constant 0 : i32
    return %c0_i32, %c0_i32_0 : i32, i32
  }
  func.func @transform_3(%arg0: i32, %arg1: i32) -> (i32, i32, i32) {
    %c0_i32 = arith.constant 0 : i32
    %c0_i32_0 = arith.constant 0 : i32
    return %arg0, %arg1, %c0_i32 : i32, i32, i32
  }
  func.func @transform_4(%arg0: i32, %arg1: i32) -> (i32, i32, i32) {
    %c0_i32 = arith.constant 0 : i32
    %c0_i32_0 = arith.constant 0 : i32
    %c0_i32_1 = arith.constant 0 : i32
    return %arg0, %c0_i32, %c0_i32_0 : i32, i32, i32
  }
}

module attributes {stable_mosaic.version = 11 : i64} {
  func.func @_stage_c_kernel(%arg0: i32, %arg1: i32, %arg2: memref<4x16x128xbf16, #tpu.memory_space<vmem>>, %arg3: memref<128x128xbf16, #tpu.memory_space<vmem>>, %arg4: memref<2x128xf32, #tpu.memory_space<vmem>>, %arg5: memref<4x16x128xbf16, #tpu.memory_space<vmem>>, %arg6: memref<1x2x128xf32, #tpu.memory_space<vmem>>) attributes {dimension_semantics = [#tpu.dimension_semantics<parallel>, #tpu.dimension_semantics<arbitrary>], iteration_bounds = array<i64: 2, 2>, scalar_prefetch = 0 : i64, scratch_operands = 0 : i64, tpu.core_type = #tpu.core_type<tc>, window_params = [{transform_indices = @transform_0, window_bounds = array<i64: 4, 16, 128>}, {pipeline_mode = #tpu.pipeline_mode<synchronous>, transform_indices = @transform_1, window_bounds = array<i64: 128, 128>}, {pipeline_mode = #tpu.pipeline_mode<synchronous>, transform_indices = @transform_2, window_bounds = array<i64: 2, 128>}, {transform_indices = @transform_3, window_bounds = array<i64: 4, 16, 128>}, {transform_indices = @transform_4, window_bounds = array<i64: 1, 2, 128>}]} {
    %c0_i32 = arith.constant 0 : i32
    %0 = arith.cmpi eq, %arg1, %c0_i32 : i32
    %1 = arith.extui %0 : i1 to i32
    %c0_i32_0 = arith.constant 0 : i32
    %2 = arith.cmpi ne, %1, %c0_i32_0 : i32
    scf.if %2 {
      %cst_19 = arith.constant 0.000000e+00 : f32
      %35 = vector.broadcast %cst_19 : f32 to vector<1x2x128xf32>
      %c0_20 = arith.constant 0 : index
      %c0_21 = arith.constant 0 : index
      %c0_22 = arith.constant 0 : index
      %36 = vector.load %arg6[%c0_20, %c0_21, %c0_22] : memref<1x2x128xf32, #tpu.memory_space<vmem>>, vector<1x2x128xf32>
      tpu.vector_store %arg6[%c0_20, %c0_21, %c0_22], %35 {strides = array<i32>} : memref<1x2x128xf32, #tpu.memory_space<vmem>>, vector<1x2x128xf32>,
    } else {
    }
    %c0 = arith.constant 0 : index
    %c0_1 = arith.constant 0 : index
    %3 = vector.load %arg4[%c0, %c0_1] : memref<2x128xf32, #tpu.memory_space<vmem>>, vector<2x128xf32>
    %c0_2 = arith.constant 0 : index
    %c0_3 = arith.constant 0 : index
    %c0_4 = arith.constant 0 : index
    %4 = vector.load %arg2[%c0_2, %c0_3, %c0_4] : memref<4x16x128xbf16, #tpu.memory_space<vmem>>, vector<4x16x128xbf16>
    %5 = arith.extf %4 : vector<4x16x128xbf16> to vector<4x16x128xf32>
    %6 = vector.extract_strided_slice %3 {offsets = [0, 0], sizes = [1, 128], strides = [1, 1]} : vector<2x128xf32> to vector<1x128xf32>
    %7 = vector.shape_cast %6 : vector<1x128xf32> to vector<128xf32>
    %8 = vector.shape_cast %7 : vector<128xf32> to vector<1x1x128xf32>
    %9 = vector.broadcast %8 : vector<1x1x128xf32> to vector<4x16x128xf32>
    %10 = arith.mulf %5, %9 : vector<4x16x128xf32>
    %11 = vector.extract_strided_slice %3 {offsets = [1, 0], sizes = [1, 128], strides = [1, 1]} : vector<2x128xf32> to vector<1x128xf32>
    %12 = vector.shape_cast %11 : vector<1x128xf32> to vector<128xf32>
    %13 = vector.shape_cast %12 : vector<128xf32> to vector<1x1x128xf32>
    %14 = vector.broadcast %13 : vector<1x1x128xf32> to vector<4x16x128xf32>
    %15 = arith.addf %10, %14 : vector<4x16x128xf32>
    %cst = arith.constant 0.000000e+00 : f32
    %16 = vector.broadcast %cst : f32 to vector<4x16x128xf32>
    %17 = arith.maximumf %15, %16 : vector<4x16x128xf32>
    %18 = vector.shape_cast %17 : vector<4x16x128xf32> to vector<64x128xf32>
    %19 = arith.truncf %18 : vector<64x128xf32> to vector<64x128xbf16>
    %c0_5 = arith.constant 0 : index
    %c0_6 = arith.constant 0 : index
    %20 = vector.load %arg3[%c0_5, %c0_6] : memref<128x128xbf16, #tpu.memory_space<vmem>>, vector<128x128xbf16>
    %cst_7 = arith.constant dense<0.000000e+00> : vector<64x128xf32>
    %21 = tpu.matmul %19, %20, %cst_7 {dimension_numbers = #tpu.dot_dimension_numbers<[1], [0], [0], [1], [0, 0, 1, 1], [], []>} : vector<64x128xbf16>, vector<128x128xbf16>, vector<64x128xf32> -> vector<64x128xf32>
    %22 = vector.shape_cast %21 : vector<64x128xf32> to vector<4x16x128xf32>
    %23 = arith.truncf %22 : vector<4x16x128xf32> to vector<4x16x128xbf16>
    %c0_8 = arith.constant 0 : index
    %c0_9 = arith.constant 0 : index
    %c0_10 = arith.constant 0 : index
    %24 = vector.load %arg5[%c0_8, %c0_9, %c0_10] : memref<4x16x128xbf16, #tpu.memory_space<vmem>>, vector<4x16x128xbf16>
    tpu.vector_store %arg5[%c0_8, %c0_9, %c0_10], %23 {strides = array<i32>} : memref<4x16x128xbf16, #tpu.memory_space<vmem>>, vector<4x16x128xbf16>,
    %c0_11 = arith.constant 0 : index
    %c0_12 = arith.constant 0 : index
    %c0_13 = arith.constant 0 : index
    %25 = vector.load %arg6[%c0_11, %c0_12, %c0_13] : memref<1x2x128xf32, #tpu.memory_space<vmem>>, vector<1x2x128xf32>
    %cst_14 = arith.constant dense<0.000000e+00> : vector<128xf32>
    %26 = vector.multi_reduction <add>, %21, %cst_14 [0] : vector<64x128xf32> to vector<128xf32>
    %27 = vector.shape_cast %26 : vector<128xf32> to vector<1x128xf32>
    %28 = arith.mulf %21, %21 : vector<64x128xf32>
    %cst_15 = arith.constant dense<0.000000e+00> : vector<128xf32>
    %29 = vector.multi_reduction <add>, %28, %cst_15 [0] : vector<64x128xf32> to vector<128xf32>
    %30 = vector.shape_cast %29 : vector<128xf32> to vector<1x128xf32>
    %31 = tpu.concatenate %27, %30 in 0 : vector<1x128xf32>, vector<1x128xf32> -> vector<2x128xf32>
    %32 = vector.shape_cast %31 : vector<2x128xf32> to vector<1x2x128xf32>
    %33 = arith.addf %25, %32 : vector<1x2x128xf32>
    %c0_16 = arith.constant 0 : index
    %c0_17 = arith.constant 0 : index
    %c0_18 = arith.constant 0 : index
    %34 = vector.load %arg6[%c0_16, %c0_17, %c0_18] : memref<1x2x128xf32, #tpu.memory_space<vmem>>, vector<1x2x128xf32>
    tpu.vector_store %arg6[%c0_16, %c0_17, %c0_18], %33 {strides = array<i32>} : memref<1x2x128xf32, #tpu.memory_space<vmem>>, vector<1x2x128xf32>,
    return
  }
  func.func @transform_0(%arg0: i32, %arg1: i32) -> (i32, i32, i32) {
    %c0_i32 = arith.constant 0 : i32
    %c0_i32_0 = arith.constant 0 : i32
    return %arg0, %arg1, %c0_i32 : i32, i32, i32
  }
  func.func @transform_1(%arg0: i32, %arg1: i32) -> (i32, i32) {
    %c0_i32 = arith.constant 0 : i32
    %c0_i32_0 = arith.constant 0 : i32
    %c0_i32_1 = arith.constant 0 : i32
    return %c0_i32, %c0_i32_0 : i32, i32
  }
  func.func @transform_2(%arg0: i32, %arg1: i32) -> (i32, i32) {
    %c0_i32 = arith.constant 0 : i32
    %c0_i32_0 = arith.constant 0 : i32
    %c0_i32_1 = arith.constant 0 : i32
    return %c0_i32, %c0_i32_0 : i32, i32
  }
  func.func @transform_3(%arg0: i32, %arg1: i32) -> (i32, i32, i32) {
    %c0_i32 = arith.constant 0 : i32
    %c0_i32_0 = arith.constant 0 : i32
    return %arg0, %arg1, %c0_i32 : i32, i32, i32
  }
  func.func @transform_4(%arg0: i32, %arg1: i32) -> (i32, i32, i32) {
    %c0_i32 = arith.constant 0 : i32
    %c0_i32_0 = arith.constant 0 : i32
    %c0_i32_1 = arith.constant 0 : i32
    return %arg0, %c0_i32, %c0_i32_0 : i32, i32, i32
  }
}

module attributes {stable_mosaic.version = 11 : i64} {
  func.func @_stage_d_kernel(%arg0: i32, %arg1: i32, %arg2: memref<4x16x128xbf16, #tpu.memory_space<vmem>>, %arg3: memref<4x16x128xbf16, #tpu.memory_space<vmem>>, %arg4: memref<2x128xf32, #tpu.memory_space<vmem>>, %arg5: memref<2x128xf32, #tpu.memory_space<vmem>>, %arg6: memref<4x16x128xbf16, #tpu.memory_space<vmem>>) attributes {dimension_semantics = [#tpu.dimension_semantics<parallel>, #tpu.dimension_semantics<parallel>], iteration_bounds = array<i64: 2, 2>, scalar_prefetch = 0 : i64, scratch_operands = 0 : i64, tpu.core_type = #tpu.core_type<tc>, window_params = [{transform_indices = @transform_0, window_bounds = array<i64: 4, 16, 128>}, {transform_indices = @transform_1, window_bounds = array<i64: 4, 16, 128>}, {pipeline_mode = #tpu.pipeline_mode<synchronous>, transform_indices = @transform_2, window_bounds = array<i64: 2, 128>}, {pipeline_mode = #tpu.pipeline_mode<synchronous>, transform_indices = @transform_3, window_bounds = array<i64: 2, 128>}, {transform_indices = @transform_4, window_bounds = array<i64: 4, 16, 128>}]} {
    %c0 = arith.constant 0 : index
    %c0_0 = arith.constant 0 : index
    %0 = vector.load %arg4[%c0, %c0_0] : memref<2x128xf32, #tpu.memory_space<vmem>>, vector<2x128xf32>
    %c0_1 = arith.constant 0 : index
    %c0_2 = arith.constant 0 : index
    %c0_3 = arith.constant 0 : index
    %1 = vector.load %arg2[%c0_1, %c0_2, %c0_3] : memref<4x16x128xbf16, #tpu.memory_space<vmem>>, vector<4x16x128xbf16>
    %2 = arith.extf %1 : vector<4x16x128xbf16> to vector<4x16x128xf32>
    %3 = vector.extract_strided_slice %0 {offsets = [0, 0], sizes = [1, 128], strides = [1, 1]} : vector<2x128xf32> to vector<1x128xf32>
    %4 = vector.shape_cast %3 : vector<1x128xf32> to vector<128xf32>
    %5 = vector.shape_cast %4 : vector<128xf32> to vector<1x1x128xf32>
    %6 = vector.broadcast %5 : vector<1x1x128xf32> to vector<4x16x128xf32>
    %7 = arith.mulf %2, %6 : vector<4x16x128xf32>
    %8 = vector.extract_strided_slice %0 {offsets = [1, 0], sizes = [1, 128], strides = [1, 1]} : vector<2x128xf32> to vector<1x128xf32>
    %9 = vector.shape_cast %8 : vector<1x128xf32> to vector<128xf32>
    %10 = vector.shape_cast %9 : vector<128xf32> to vector<1x1x128xf32>
    %11 = vector.broadcast %10 : vector<1x1x128xf32> to vector<4x16x128xf32>
    %12 = arith.addf %7, %11 : vector<4x16x128xf32>
    %c0_4 = arith.constant 0 : index
    %c0_5 = arith.constant 0 : index
    %c0_6 = arith.constant 0 : index
    %13 = vector.load %arg3[%c0_4, %c0_5, %c0_6] : memref<4x16x128xbf16, #tpu.memory_space<vmem>>, vector<4x16x128xbf16>
    %14 = arith.extf %13 : vector<4x16x128xbf16> to vector<4x16x128xf32>
    %c0_7 = arith.constant 0 : index
    %c0_8 = arith.constant 0 : index
    %15 = vector.load %arg5[%c0_7, %c0_8] : memref<2x128xf32, #tpu.memory_space<vmem>>, vector<2x128xf32>
    %16 = vector.extract_strided_slice %15 {offsets = [0, 0], sizes = [1, 128], strides = [1, 1]} : vector<2x128xf32> to vector<1x128xf32>
    %17 = vector.shape_cast %16 : vector<1x128xf32> to vector<128xf32>
    %18 = vector.shape_cast %17 : vector<128xf32> to vector<1x1x128xf32>
    %19 = vector.broadcast %18 : vector<1x1x128xf32> to vector<4x16x128xf32>
    %20 = arith.mulf %14, %19 : vector<4x16x128xf32>
    %21 = vector.extract_strided_slice %15 {offsets = [1, 0], sizes = [1, 128], strides = [1, 1]} : vector<2x128xf32> to vector<1x128xf32>
    %22 = vector.shape_cast %21 : vector<1x128xf32> to vector<128xf32>
    %23 = vector.shape_cast %22 : vector<128xf32> to vector<1x1x128xf32>
    %24 = vector.broadcast %23 : vector<1x1x128xf32> to vector<4x16x128xf32>
    %25 = arith.addf %20, %24 : vector<4x16x128xf32>
    %26 = arith.addf %12, %25 : vector<4x16x128xf32>
    %cst = arith.constant 0.000000e+00 : f32
    %27 = vector.broadcast %cst : f32 to vector<4x16x128xf32>
    %28 = arith.maximumf %26, %27 : vector<4x16x128xf32>
    %29 = arith.truncf %28 : vector<4x16x128xf32> to vector<4x16x128xbf16>
    %c0_9 = arith.constant 0 : index
    %c0_10 = arith.constant 0 : index
    %c0_11 = arith.constant 0 : index
    %30 = vector.load %arg6[%c0_9, %c0_10, %c0_11] : memref<4x16x128xbf16, #tpu.memory_space<vmem>>, vector<4x16x128xbf16>
    tpu.vector_store %arg6[%c0_9, %c0_10, %c0_11], %29 {strides = array<i32>} : memref<4x16x128xbf16, #tpu.memory_space<vmem>>, vector<4x16x128xbf16>,
    return
  }
  func.func @transform_0(%arg0: i32, %arg1: i32) -> (i32, i32, i32) {
    %c0_i32 = arith.constant 0 : i32
    %c0_i32_0 = arith.constant 0 : i32
    return %arg0, %arg1, %c0_i32 : i32, i32, i32
  }
  func.func @transform_1(%arg0: i32, %arg1: i32) -> (i32, i32, i32) {
    %c0_i32 = arith.constant 0 : i32
    %c0_i32_0 = arith.constant 0 : i32
    return %arg0, %arg1, %c0_i32 : i32, i32, i32
  }
  func.func @transform_2(%arg0: i32, %arg1: i32) -> (i32, i32) {
    %c0_i32 = arith.constant 0 : i32
    %c0_i32_0 = arith.constant 0 : i32
    %c0_i32_1 = arith.constant 0 : i32
    return %c0_i32, %c0_i32_0 : i32, i32
  }
  func.func @transform_3(%arg0: i32, %arg1: i32) -> (i32, i32) {
    %c0_i32 = arith.constant 0 : i32
    %c0_i32_0 = arith.constant 0 : i32
    %c0_i32_1 = arith.constant 0 : i32
    return %c0_i32, %c0_i32_0 : i32, i32
  }
  func.func @transform_4(%arg0: i32, %arg1: i32) -> (i32, i32, i32) {
    %c0_i32 = arith.constant 0 : i32
    %c0_i32_0 = arith.constant 0 : i32
    return %arg0, %arg1, %c0_i32 : i32, i32, i32
  }
}

</mosaic_0001>

<llo_original>
// kernel: bottleneck1d_forward.6
$region0: #{bottleneck1d_forward.6}
  #allocation0 [shape = 'u32[]', space=smem, size = 0x4, offset = 0x4, fixed_abs, tag = 'smem constant byte address 0x4 - core index']
  #allocation1 [shape = 'u32[144,128]{1,0:T(1,128)}', space=vmem, size = 0x12000, scoped, tag = 'internal scratch']
  %s0 = inlined_call_operand.vmem [shape: bf16[8,32,128], index: 0, kind: input, shape index: {}]
  %s1 = inlined_call_operand.vmem [shape: bf16[128,128], index: 1, kind: input, shape index: {}]
  %s2 = inlined_call_operand.vmem [shape: f32[2,128], index: 2, kind: input, shape index: {}]
  %s3 = inlined_call_operand.vmem [shape: bf16[8,32,128], index: 3, kind: output, shape index: {0}]
  %s4 = inlined_call_operand.vmem [shape: f32[2,2,128], index: 4, kind: output, shape index: {1}]
  %5 = xla_tuple %s3, %s4
  %s6 = sld [smem:[#allocation0]]
  $region135: #{bottleneck1d_forward.6} parent=0
    _
  %s8 = ssub.s32 1, %s6
  %s9 = scalar_select 0, %s8, %s6
  $region1: #{bottleneck1d_forward.6} parent=0
    #allocation2 [shape = 'u8[32768]{0}', space=vmem, size = 0x8000, scoped, tag = 'input window, operand 0']
    #allocation3 [shape = 'u8[32768]{0}', space=vmem, size = 0x8000, scoped, tag = 'output window, operand 0']
    loop: start=0, step=1, limit=6
    $region2: #{bottleneck1d_forward.6} parent=1 // loop_pre_header
      _
    $region3: #{bottleneck1d_forward.6} parent=1 // loop_header
      %s11 = sphi 0, %s15
      %p12 = scmp.ge.s32.totalorder %s11, 6
      %s18 = sphi 0, %s30
      %s19 = sphi 0, %s26
      %s20 = sphi 0, %s18
      %s21 = sphi 0, %s19
      %s22 = sphi 0, %s20
      %s23 = sphi 0, %s21
      %s35 = sphi 0, %s37
      %s38 = sphi 0, %s35
      %s39 = sphi 0, %s38
      %s55 = sphi 0, %s39
      %s59 = sphi 0, %s59
      %s61 = sphi 0, %s59
      %s62 = sphi 0, %s61
      %s76 = sphi 0, %s62
      %s80 = sphi 0, %s80
      %s82 = sphi 0, %s80
      %s83 = sphi 0, %s82
      %s97 = sphi 0, %s83
      %s105 = sphi 0, %s107
      %s108 = sphi 0, %s105
      %s109 = sphi 0, %s108
      %s125 = sphi 0, %s109
      %s131 = sphi 0, %s133
      %s134 = sphi 0, %s131
      %s135 = sphi 0, %s134
      %s151 = sphi 0, %s135
    $region4: #{bottleneck1d_forward.6} parent=1 // loop_header_branch
      %14 = sbr.rel (%p12) target = $region8
    $region5: #{bottleneck1d_forward.6} parent=1 // loop_body
      %s16 = ssub.s32 %s11, 1
      %s17 = ssub.s32 %s11, 2
      %s24 = sadd.s32 1, %s19
      %p25 = scmp.ge.s32.totalorder %s24, 2
      %s26 = scalar_select %p25, 0, %s24
      %s27 = sadd.s32 1, %s18
      %s28 = scalar_select %p25, %s27, %s18
      %p29 = scmp.ge.s32.totalorder %s28, 2
      %s30 = scalar_select %p29, 0, %s28
      %s31 = ssub.s32 %s18, %s30
      %s32 = ssub.s32 %s19, %s26
      %s33 = sor.u32 %s31, %s32
      %p34 = scmp.eq.s32.totalorder %s33, 0
      %s36 = sadd.s32 %s35, 1
      %s37 = scalar_select %p34, %s35, %s36
      %p40 = pneg %p34
      %p41 = scmp.eq.s32.totalorder %s11, 3
      %p42 = por %p40, %p41
      %p43 = scmp.ne.s32.totalorder %s35, %s38
      %p44 = scmp.eq.s32.totalorder %s11, 0
      %p45 = por %p43, %p44
      %p46 = scmp.ne.s32.totalorder %s35, %s38
      %p47 = scmp.eq.s32.totalorder %s16, 3
      %p48 = por %p46, %p47
      %p49 = scmp.ne.s32.totalorder %s38, %s39
      %p50 = scmp.eq.s32.totalorder %s16, 0
      %p51 = por %p49, %p50
      %p52 = scmp.ne.s32.totalorder %s38, %s39
      %p53 = scmp.eq.s32.totalorder %s17, 3
      %p54 = por %p52, %p53
      %p56 = scmp.ne.s32.totalorder %s39, %s55
      %p57 = scmp.eq.s32.totalorder %s17, 0
      %p58 = por %p56, %p57
      %s60 = sadd.s32 %s59, 1
      %p63 = scmp.eq.s32.totalorder %s11, 3
      %p64 = scmp.ne.s32.totalorder %s59, %s61
      %p65 = scmp.eq.s32.totalorder %s11, 0
      %p66 = por %p64, %p65
      %p67 = scmp.ne.s32.totalorder %s59, %s61
      %p68 = scmp.eq.s32.totalorder %s16, 3
      %p69 = por %p67, %p68
      %p70 = scmp.ne.s32.totalorder %s61, %s62
      %p71 = scmp.eq.s32.totalorder %s16, 0
      %p72 = por %p70, %p71
      %p73 = scmp.ne.s32.totalorder %s61, %s62
      %p74 = scmp.eq.s32.totalorder %s17, 3
      %p75 = por %p73, %p74
      %p77 = scmp.ne.s32.totalorder %s62, %s76
      %p78 = scmp.eq.s32.totalorder %s17, 0
      %p79 = por %p77, %p78
      %s81 = sadd.s32 %s80, 1
      %p84 = scmp.eq.s32.totalorder %s11, 3
      %p85 = scmp.ne.s32.totalorder %s80, %s82
      %p86 = scmp.eq.s32.totalorder %s11, 0
      %p87 = por %p85, %p86
      %p88 = scmp.ne.s32.totalorder %s80, %s82
      %p89 = scmp.eq.s32.totalorder %s16, 3
      %p90 = por %p88, %p89
      %p91 = scmp.ne.s32.totalorder %s82, %s83
      %p92 = scmp.eq.s32.totalorder %s16, 0
      %p93 = por %p91, %p92
      %p94 = scmp.ne.s32.totalorder %s82, %s83
      %p95 = scmp.eq.s32.totalorder %s17, 3
      %p96 = por %p94, %p95
      %p98 = scmp.ne.s32.totalorder %s83, %s97
      %p99 = scmp.eq.s32.totalorder %s17, 0
      %p100 = por %p98, %p99
      %s101 = ssub.s32 %s18, %s30
      %s102 = ssub.s32 %s19, %s26
      %s103 = sor.u32 %s101, %s102
      %p104 = scmp.eq.s32.totalorder %s103, 0
      %s106 = sadd.s32 %s105, 1
      %s107 = scalar_select %p104, %s105, %s106
      %p110 = pneg %p104
      %p111 = scmp.eq.s32.totalorder %s11, 3
      %p112 = por %p110, %p111
      %p113 = scmp.ne.s32.totalorder %s105, %s108
      %p114 = scmp.eq.s32.totalorder %s11, 0
      %p115 = por %p113, %p114
      %p116 = scmp.ne.s32.totalorder %s105, %s108
      %p117 = scmp.eq.s32.totalorder %s16, 3
      %p118 = por %p116, %p117
      %p119 = scmp.ne.s32.totalorder %s108, %s109
      %p120 = scmp.eq.s32.totalorder %s16, 0
      %p121 = por %p119, %p120
      %p122 = scmp.ne.s32.totalorder %s108, %s109
      %p123 = scmp.eq.s32.totalorder %s17, 3
      %p124 = por %p122, %p123
      %p126 = scmp.ne.s32.totalorder %s109, %s125
      %p127 = scmp.eq.s32.totalorder %s17, 0
      %p128 = por %p126, %p127
      %s129 = ssub.s32 %s18, %s30
      %p130 = scmp.eq.s32.totalorder %s129, 0
      %s132 = sadd.s32 %s131, 1
      %s133 = scalar_select %p130, %s131, %s132
      %p136 = pneg %p130
      %p137 = scmp.eq.s32.totalorder %s11, 3
      %p138 = por %p136, %p137
      %p139 = scmp.ne.s32.totalorder %s131, %s134
      %p140 = scmp.eq.s32.totalorder %s11, 0
      %p141 = por %p139, %p140
      %p142 = scmp.ne.s32.totalorder %s131, %s134
      %p143 = scmp.eq.s32.totalorder %s16, 3
      %p144 = por %p142, %p143
      %p145 = scmp.ne.s32.totalorder %s134, %s135
      %p146 = scmp.eq.s32.totalorder %s16, 0
      %p147 = por %p145, %p146
      %p148 = scmp.ne.s32.totalorder %s134, %s135
      %p149 = scmp.eq.s32.totalorder %s17, 3
      %p150 = por %p148, %p149
      %p152 = scmp.ne.s32.totalorder %s135, %s151
      %p153 = scmp.eq.s32.totalorder %s17, 0
      %p154 = por %p152, %p153
      %p155 = scmp.le.s32.totalorder 1, %s11
      %p156 = scmp.lt.s32.totalorder %s11, 5
      %p157 = pnand %p155, %p156
      %p158 = pneg %p157
      // Predicated region
      $region9: #{bottleneck1d_forward.6} parent=5 // pred_check
        _
      $region10: #{bottleneck1d_forward.6} parent=5 // pred_check_branch
        %160 = sbr.rel (%p157) target = $region12
      $region11: #{bottleneck1d_forward.6} parent=5 // pred_region
        %s161 = ssub.s32 %s11, 1
        // Predicated region
        $region13: #{bottleneck1d_forward.6} parent=11 // pred_check
          %p162 = pneg %p72
        $region14: #{bottleneck1d_forward.6} parent=11 // pred_check_branch
          %164 = sbr.rel (%p162) target = $region16
        $region15: #{bottleneck1d_forward.6} parent=11 // pred_region
          _
        $region16: #{bottleneck1d_forward.6} parent=11 // pred_fallthru
          _
        // Predicated region
        $region17: #{bottleneck1d_forward.6} parent=11 // pred_check
          %p165 = pneg %p93
        $region18: #{bottleneck1d_forward.6} parent=11 // pred_check_branch
          %167 = sbr.rel (%p165) target = $region20
        $region19: #{bottleneck1d_forward.6} parent=11 // pred_region
          _
        $region20: #{bottleneck1d_forward.6} parent=11 // pred_fallthru
          _
      $region12: #{bottleneck1d_forward.6} parent=5 // pred_fallthru
        _
      %p168 = scmp.lt.s32.totalorder %s11, 4
      // Predicated region
      $region21: #{bottleneck1d_forward.6} parent=5 // pred_check
        %p169 = pneg %p168
      $region22: #{bottleneck1d_forward.6} parent=5 // pred_check_branch
        %171 = sbr.rel (%p169) target = $region24
      $region23: #{bottleneck1d_forward.6} parent=5 // pred_region
        // Predicated region
        $region25: #{bottleneck1d_forward.6} parent=23 // pred_check
          %p172 = pneg %p45
        $region26: #{bottleneck1d_forward.6} parent=23 // pred_check_branch
          %174 = sbr.rel (%p172) target = $region28
        $region27: #{bottleneck1d_forward.6} parent=23 // pred_region
          %s175 = sand.u32 %s35, 1
          %s176 = sand.u32 %s35, 1
          %s177 = smul.addr %s176, 32
          %s178 = scalar_lea.vmem [#allocation2], %s177
          %s179 = smul.u32 4, %s18
          %s180 = smul.u32 2, %s19
          %s181 = smul.addr %s179, 4
          %s182 = sadd.s32 %s180, %s181
          %s183 = smul.addr %s182, 4
          %s184 = scalar_lea.vmem %s0, %s183
          // Predicated region
          $region29: #{bottleneck1d_forward.6} parent=27 // pred_check
            _
          $region30: #{bottleneck1d_forward.6} parent=27 // pred_check_branch
            %186 = sbr.rel (0) target = $region32
          $region31: #{bottleneck1d_forward.6} parent=27 // pred_region
            // Predicated region
            $region33: #{bottleneck1d_forward.6} parent=31 // pred_check
              _
            $region34: #{bottleneck1d_forward.6} parent=31 // pred_check_branch
              %188 = sbr.rel target = $region36
            $region35: #{bottleneck1d_forward.6} parent=31 // pred_region
              // Predicated region
              $region48: #{bottleneck1d_forward.6} parent=35 // pred_check
                _
              $region49: #{bottleneck1d_forward.6} parent=35 // pred_check_branch
                %218 = sbr.rel (0) target = $region51
              $region50: #{bottleneck1d_forward.6} parent=35 // pred_region
                loop: start=0, step=1, limit=1
                $region52: #{bottleneck1d_forward.6} parent=50 // loop_pre_header
                  _
                $region53: #{bottleneck1d_forward.6} parent=50 // loop_header
                  %s220 = sphi 0, %s224
                  %p221 = scmp.ge.s32.totalorder %s220, 1
                  %s225 = sphi %s184, %s184
                  %s226 = sphi %s178, %s178
                $region54: #{bottleneck1d_forward.6} parent=50 // loop_header_branch
                  %223 = sbr.rel (%p221) target = $region58
                $region55: #{bottleneck1d_forward.6} parent=50 // loop_body
                  _
                $region56: #{bottleneck1d_forward.6} parent=50 // loop_footer
                  %s224 = sadd.s32 1, %s220
                $region57: #{bottleneck1d_forward.6} parent=50 // loop_footer_branch
                  %219 = sbr.rel target = $region53
                $region58: #{bottleneck1d_forward.6} parent=50 // loop_exit
                  _
                %s228 = ssub.s32 16, 1
                loop: start=0, step=1, limit=1
                $region59: #{bottleneck1d_forward.6} parent=50 // loop_pre_header
                  _
                $region60: #{bottleneck1d_forward.6} parent=50 // loop_header
                  %s230 = sphi 0, %s234
                  %p231 = scmp.ge.s32.totalorder %s230, 1
                  %s235 = sphi %s184, %s184
                  %s236 = sphi %s178, %s178
                $region61: #{bottleneck1d_forward.6} parent=50 // loop_header_branch
                  %233 = sbr.rel (%p231) target = $region65
                $region62: #{bottleneck1d_forward.6} parent=50 // loop_body
                  %v237 = vld [vmem:[%s235] sm:%s228]
                  %238 = vst [vmem:[%s236] sm:%s228] %v237
                  %v239 = vld [vmem:[%s235 + $0x4] sm:%s228]
                  %240 = vst [vmem:[%s236 + $0x4] sm:%s228] %v239
                  %v241 = vld [vmem:[%s235 + $0x10] sm:%s228]
                  %242 = vst [vmem:[%s236 + $0x8] sm:%s228] %v241
                  %v243 = vld [vmem:[%s235 + $0x14] sm:%s228]
                  %244 = vst [vmem:[%s236 + $0xc] sm:%s228] %v243
                  %v245 = vld [vmem:[%s235 + $0x20] sm:%s228]
                  %246 = vst [vmem:[%s236 + $0x10] sm:%s228] %v245
                  %v247 = vld [vmem:[%s235 + $0x24] sm:%s228]
                  %248 = vst [vmem:[%s236 + $0x14] sm:%s228] %v247
                  %v249 = vld [vmem:[%s235 + $0x30] sm:%s228]
                  %250 = vst [vmem:[%s236 + $0x18] sm:%s228] %v249
                  %v251 = vld [vmem:[%s235 + $0x34] sm:%s228]
                  %252 = vst [vmem:[%s236 + $0x1c] sm:%s228] %v251
                $region63: #{bottleneck1d_forward.6} parent=50 // loop_footer
                  %s234 = sadd.s32 1, %s230
                $region64: #{bottleneck1d_forward.6} parent=50 // loop_footer_branch
                  %229 = sbr.rel target = $region60
                $region65: #{bottleneck1d_forward.6} parent=50 // loop_exit
                  _
              $region51: #{bottleneck1d_forward.6} parent=35 // pred_fallthru
                _
            $region36: #{bottleneck1d_forward.6} parent=31 // pred_fallthru
              _
            // Predicated region
            $region37: #{bottleneck1d_forward.6} parent=31 // pred_check
              _
            $region38: #{bottleneck1d_forward.6} parent=31 // pred_check_branch
              %190 = sbr.rel (0) target = $region40
            $region39: #{bottleneck1d_forward.6} parent=31 // pred_region
              %s192 = ssub.s32 16, 1
              loop: start=0, step=1, limit=1
              $region41: #{bottleneck1d_forward.6} parent=39 // loop_pre_header
                _
              $region42: #{bottleneck1d_forward.6} parent=39 // loop_header
                %s194 = sphi 0, %s198
                %p195 = scmp.ge.s32.totalorder %s194, 1
                %s199 = sphi %s184, %s184
                %s200 = sphi %s178, %s178
              $region43: #{bottleneck1d_forward.6} parent=39 // loop_header_branch
                %197 = sbr.rel (%p195) target = $region47
              $region44: #{bottleneck1d_forward.6} parent=39 // loop_body
                %v201 = vld [vmem:[%s199] sm:%s192]
                %202 = vst [vmem:[%s200] sm:%s192] %v201
                %v203 = vld [vmem:[%s199 + $0x4] sm:%s192]
                %204 = vst [vmem:[%s200 + $0x4] sm:%s192] %v203
                %v205 = vld [vmem:[%s199 + $0x10] sm:%s192]
                %206 = vst [vmem:[%s200 + $0x8] sm:%s192] %v205
                %v207 = vld [vmem:[%s199 + $0x14] sm:%s192]
                %208 = vst [vmem:[%s200 + $0xc] sm:%s192] %v207
                %v209 = vld [vmem:[%s199 + $0x20] sm:%s192]
                %210 = vst [vmem:[%s200 + $0x10] sm:%s192] %v209
                %v211 = vld [vmem:[%s199 + $0x24] sm:%s192]
                %212 = vst [vmem:[%s200 + $0x14] sm:%s192] %v211
                %v213 = vld [vmem:[%s199 + $0x30] sm:%s192]
                %214 = vst [vmem:[%s200 + $0x18] sm:%s192] %v213
                %v215 = vld [vmem:[%s199 + $0x34] sm:%s192]
                %216 = vst [vmem:[%s200 + $0x1c] sm:%s192] %v215
              $region45: #{bottleneck1d_forward.6} parent=39 // loop_footer
                %s198 = sadd.s32 1, %s194
              $region46: #{bottleneck1d_forward.6} parent=39 // loop_footer_branch
                %193 = sbr.rel target = $region42
              $region47: #{bottleneck1d_forward.6} parent=39 // loop_exit
                _
            $region40: #{bottleneck1d_forward.6} parent=31 // pred_fallthru
              _
          $region32: #{bottleneck1d_forward.6} parent=27 // pred_fallthru
            _
          %253 = vnop
        $region28: #{bottleneck1d_forward.6} parent=23 // pred_fallthru
          _
      $region24: #{bottleneck1d_forward.6} parent=5 // pred_fallthru
        _
      %p254 = scmp.le.s32.totalorder 1, %s11
      %p255 = scmp.lt.s32.totalorder %s11, 5
      %p256 = pnand %p254, %p255
      %p257 = pneg %p256
      // Predicated region
      $region66: #{bottleneck1d_forward.6} parent=5 // pred_check
        _
      $region67: #{bottleneck1d_forward.6} parent=5 // pred_check_branch
        %259 = sbr.rel (%p256) target = $region69
      $region68: #{bottleneck1d_forward.6} parent=5 // pred_region
        %s260 = ssub.s32 %s11, 1
        %s261 = sand.u32 %s38, 1
        %s262 = sand.u32 %s38, 1
        %s263 = smul.addr %s262, 32
        %s264 = scalar_lea.vmem [#allocation2], %s263
        // Predicated region
        $region70: #{bottleneck1d_forward.6} parent=68 // pred_check
          %p265 = pneg %p51
        $region71: #{bottleneck1d_forward.6} parent=68 // pred_check_branch
          %267 = sbr.rel (%p265) target = $region73
        $region72: #{bottleneck1d_forward.6} parent=68 // pred_region
          _
        $region73: #{bottleneck1d_forward.6} parent=68 // pred_fallthru
          _
        %s268 = sand.u32 %s38, 1
        %s269 = sand.u32 %s38, 1
        %s270 = smul.addr %s269, 32
        %s271 = scalar_lea.vmem [#allocation2], %s270
        %p272 = pneg %p51
        %p273 = pneg %p48
        %p274 = pneg %p72
        %p275 = pneg %p69
        %p276 = pneg %p93
        %p277 = pneg %p90
        %p278 = pneg %p121
        %p279 = pneg %p118
        %s280 = sand.u32 %s108, 1
        %s281 = sand.u32 %s108, 1
        %s282 = smul.addr %s281, 32
        %s283 = scalar_lea.vmem [#allocation3], %s282
        %p284 = pneg %p147
        %p285 = pneg %p144
        %p286 = scmp.lt.s32.totalorder %s20, 1
        %s287 = scalar_select %p286, %s20, 1
        %s288 = smul.addr %s287, 2
        %s289 = scalar_lea.vmem %s4, %s288
        %s290 = smul.u32 4, %s20
        %s291 = smul.u32 2, %s21
        %s292 = smul.u32 4, %s20
        %s293 = smul.u32 2, %s21
        %p294 = scmp.lt.s32.totalorder %s20, 1
        %s295 = scalar_select %p294, %s20, 1
        %s296 = smul.addr %s295, 2
        %s297 = scalar_lea.vmem %s4, %s296
        %p299 = scmp.eq.s32.totalorder %s21, 0
        // Predicated region
        $region74: #{bottleneck1d_forward.6} parent=68 // pred_check
          %p300 = pneg %p299
        $region75: #{bottleneck1d_forward.6} parent=68 // pred_check_branch
          %302 = sbr.rel (%p300) target = $region77
        $region76: #{bottleneck1d_forward.6} parent=68 // pred_region
          %303 = vst [vmem:[%s297] sm:$0x3] 0.0
        $region77: #{bottleneck1d_forward.6} parent=68 // pred_fallthru
          _
        %v304 = vld [vmem:[%s2] sm:$0x3]
        %v305 = vld [vmem:[%s264] sm:$0xf]
        %v306 = vld [vmem:[%s264 + $0x4] sm:$0xf]
        %v307 = vld [vmem:[%s264 + $0x8] sm:$0xf]
        %v308 = vld [vmem:[%s264 + $0xc] sm:$0xf]
        %v309 = vld [vmem:[%s264 + $0x10] sm:$0xf]
        %v310 = vld [vmem:[%s264 + $0x14] sm:$0xf]
        %v311 = vld [vmem:[%s264 + $0x18] sm:$0xf]
        %v312 = vld [vmem:[%s264 + $0x1c] sm:$0xf]
        %v313 = vunpack.c.l.bf16 %v305
        %v314 = vunpack.c.l.bf16 %v306
        %v315 = vunpack.c.l.bf16 %v307
        %v316 = vunpack.c.l.bf16 %v308
        %v317 = vunpack.c.l.bf16 %v309
        %v318 = vunpack.c.l.bf16 %v310
        %v319 = vunpack.c.l.bf16 %v311
        %v320 = vunpack.c.l.bf16 %v312
        %v321 = vlaneseq
        %v322 = vshrl.u32 %v321, 7
        %v323 = vsub.s32 0, %v322
        %v324 = vrot.slane %v304, %v323
        %v325 = vmul.f32 %v313, %v324
        %v326 = vmul.f32 %v314, %v324
        %v327 = vmul.f32 %v315, %v324
        %v328 = vmul.f32 %v316, %v324
        %v329 = vmul.f32 %v317, %v324
        %v330 = vmul.f32 %v318, %v324
        %v331 = vmul.f32 %v319, %v324
        %v332 = vmul.f32 %v320, %v324
        %v333 = vlaneseq
        %v334 = vshrl.u32 %v333, 7
        %v335 = vsub.s32 1, %v334
        %v336 = vrot.slane %v304, %v335
        %v337 = vadd.f32 %v325, %v336
        %v338 = vadd.f32 %v326, %v336
        %v339 = vadd.f32 %v327, %v336
        %v340 = vadd.f32 %v328, %v336
        %v341 = vadd.f32 %v329, %v336
        %v342 = vadd.f32 %v330, %v336
        %v343 = vadd.f32 %v331, %v336
        %v344 = vadd.f32 %v332, %v336
        %v345 = vmax.f32 %v337, 0.0
        %v346 = vmax.f32 %v338, 0.0
        %v347 = vmax.f32 %v339, 0.0
        %v348 = vmax.f32 %v340, 0.0
        %v349 = vmax.f32 %v341, 0.0
        %v350 = vmax.f32 %v342, 0.0
        %v351 = vmax.f32 %v343, 0.0
        %v352 = vmax.f32 %v344, 0.0
        %v353 = vpack.c.bf16 %v346, %v345
        %v354 = vpack.c.bf16 %v348, %v347
        %v355 = vpack.c.bf16 %v350, %v349
        %v356 = vpack.c.bf16 %v352, %v351
        %v357 = vld [vmem:[%s1] sm:$0xf]
        %v358 = vld [vmem:[%s1 + $0x4] sm:$0xf]
        %v359 = vld [vmem:[%s1 + $0x8] sm:$0xf]
        %v360 = vld [vmem:[%s1 + $0xc] sm:$0xf]
        %v361 = vld [vmem:[%s1 + $0x10] sm:$0xf]
        %v362 = vld [vmem:[%s1 + $0x14] sm:$0xf]
        %v363 = vld [vmem:[%s1 + $0x18] sm:$0xf]
        %v364 = vld [vmem:[%s1 + $0x1c] sm:$0xf]
        %v365 = vld [vmem:[%s1 + $0x20] sm:$0xf]
        %v366 = vld [vmem:[%s1 + $0x24] sm:$0xf]
        %v367 = vld [vmem:[%s1 + $0x28] sm:$0xf]
        %v368 = vld [vmem:[%s1 + $0x2c] sm:$0xf]
        %v369 = vld [vmem:[%s1 + $0x30] sm:$0xf]
        %v370 = vld [vmem:[%s1 + $0x34] sm:$0xf]
        %v371 = vld [vmem:[%s1 + $0x38] sm:$0xf]
        %v372 = vld [vmem:[%s1 + $0x3c] sm:$0xf]
        %v389 = vunpack.c.l.b16 %v357
        %v390 = vunpack.c.l.b16 %v358
        %v391 = vunpack.c.l.b16 %v359
        %v392 = vunpack.c.l.b16 %v360
        %v393 = vunpack.c.l.b16 %v361
        %v394 = vunpack.c.l.b16 %v362
        %v395 = vunpack.c.l.b16 %v363
        %v396 = vunpack.c.l.b16 %v364
        %v397 = vunpack.c.l.b16 %v365
        %v398 = vunpack.c.l.b16 %v366
        %v399 = vunpack.c.l.b16 %v367
        %v400 = vunpack.c.l.b16 %v368
        %v401 = vunpack.c.l.b16 %v369
        %v402 = vunpack.c.l.b16 %v370
        %v403 = vunpack.c.l.b16 %v371
        %v404 = vunpack.c.l.b16 %v372
        %v405 = vpack.c.b16 %v390, %v389
        %v406 = vpack.c.b16 %v392, %v391
        %v407 = vpack.c.b16 %v394, %v393
        %v408 = vpack.c.b16 %v396, %v395
        %v409 = vpack.c.b16 %v398, %v397
        %v410 = vpack.c.b16 %v400, %v399
        %v411 = vpack.c.b16 %v402, %v401
        %v412 = vpack.c.b16 %v404, %v403
        %421 = vmatprep.subr.bf16.mxu0 0
        %422 = vmatpush1.bf16.msra.mxu0 %v412
        %423 = vmatprep.subr.bf16.mxu0 0
        %424 = vmatpush1.bf16.msra.mxu0 %v411
        %425 = vmatprep.subr.bf16.mxu0 0
        %426 = vmatpush1.bf16.msra.mxu0 %v410
        %427 = vmatprep.subr.bf16.mxu0 0
        %428 = vmatpush1.bf16.msra.mxu0 %v409
        %429 = vmatprep.subr.bf16.mxu0 0
        %430 = vmatpush1.bf16.msra.mxu0 %v408
        %431 = vmatprep.subr.bf16.mxu0 0
        %432 = vmatpush1.bf16.msra.mxu0 %v407
        %433 = vmatprep.subr.bf16.mxu0 0
        %434 = vmatpush1.bf16.msra.mxu0 %v406
        %435 = vmatprep.subr.bf16.mxu0 0
        %436 = vmatpush1.bf16.msra.mxu0 %v405
        %437 = vmatprep.subr.bf16.mxu0 0
        %438 = vmatpush2.bf16.msra.mxu0 0
        %439 = vmatprep.subr.bf16.mxu0 0
        %440 = vmatpush2.bf16.msra.mxu0 0
        %441 = vmatprep.subr.bf16.mxu0 0
        %442 = vmatpush2.bf16.msra.mxu0 0
        %443 = vmatprep.subr.bf16.mxu0 0
        %444 = vmatpush2.bf16.msra.mxu0 0
        %445 = vmatprep.subr.bf16.mxu0 0
        %446 = vmatpush2.bf16.msra.mxu0 0
        %447 = vmatprep.subr.bf16.mxu0 0
        %448 = vmatpush2.bf16.msra.mxu0 0
        %449 = vmatprep.subr.bf16.mxu0 0
        %450 = vmatpush2.bf16.msra.mxu0 0
        %451 = vmatprep.subr.bf16.mxu0 0
        %452 = vmatpush2.bf16.msra.mxu0 0
        %453 = vmatprep.mubr.bf16.mxu0 0
        %454 = vmatmul.mubr.bf16.gmra.mxu0 %v353
        %v455 = vpop.f32.mrf.mxu0
        %v456 = vadd.f32 0.0, %v455
        %v457 = vpop.f32.mrf.mxu0
        %v458 = vpop.f32.mrf.mxu0
        %v459 = vadd.f32 0.0, %v458
        %v460 = vpop.f32.mrf.mxu0
        %461 = vmatprep.mubr.bf16.mxu0 0
        %462 = vmatmul.mubr.bf16.gmra.mxu0 %v354
        %v463 = vpop.f32.mrf.mxu0
        %v464 = vadd.f32 0.0, %v463
        %v465 = vpop.f32.mrf.mxu0
        %v466 = vpop.f32.mrf.mxu0
        %v467 = vadd.f32 0.0, %v466
        %v468 = vpop.f32.mrf.mxu0
        %469 = vmatprep.mubr.bf16.mxu0 0
        %470 = vmatmul.mubr.bf16.gmra.mxu0 %v355
        %v471 = vpop.f32.mrf.mxu0
        %v472 = vadd.f32 0.0, %v471
        %v473 = vpop.f32.mrf.mxu0
        %v474 = vpop.f32.mrf.mxu0
        %v475 = vadd.f32 0.0, %v474
        %v476 = vpop.f32.mrf.mxu0
        %477 = vmatprep.mubr.bf16.mxu0 0
        %478 = vmatmul.mubr.bf16.gmra.mxu0 %v356
        %v479 = vpop.f32.mrf.mxu0
        %v480 = vadd.f32 0.0, %v479
        %v481 = vpop.f32.mrf.mxu0
        %v482 = vpop.f32.mrf.mxu0
        %v483 = vadd.f32 0.0, %v482
        %v484 = vpop.f32.mrf.mxu0
        %485 = vdwg.mxu0
        %v486 = vpack.c.bf16 %v459, %v456
        %v487 = vpack.c.bf16 %v467, %v464
        %v488 = vpack.c.bf16 %v475, %v472
        %v489 = vpack.c.bf16 %v483, %v480
        %v494 = vunpack.c.l.b16 %v486
        %v495 = vunpack.c.h.b16 %v486
        %v496 = vunpack.c.l.b16 %v487
        %v497 = vunpack.c.h.b16 %v487
        %v498 = vunpack.c.l.b16 %v488
        %v499 = vunpack.c.h.b16 %v488
        %v500 = vunpack.c.l.b16 %v489
        %v501 = vunpack.c.h.b16 %v489
        %v502 = vpack.c.b16 %v494, %v494
        %v503 = vpack.c.b16 %v495, %v495
        %v504 = vpack.c.b16 %v496, %v496
        %v505 = vpack.c.b16 %v497, %v497
        %v506 = vpack.c.b16 %v498, %v498
        %v507 = vpack.c.b16 %v499, %v499
        %v508 = vpack.c.b16 %v500, %v500
        %v509 = vpack.c.b16 %v501, %v501
        %518 = vst [vmem:[%s283] sm:$0xf] %v502
        %519 = vst [vmem:[%s283 + $0x4] sm:$0xf] %v503
        %520 = vst [vmem:[%s283 + $0x8] sm:$0xf] %v504
        %521 = vst [vmem:[%s283 + $0xc] sm:$0xf] %v505
        %522 = vst [vmem:[%s283 + $0x10] sm:$0xf] %v506
        %523 = vst [vmem:[%s283 + $0x14] sm:$0xf] %v507
        %524 = vst [vmem:[%s283 + $0x18] sm:$0xf] %v508
        %525 = vst [vmem:[%s283 + $0x1c] sm:$0xf] %v509
        %v526 = vld [vmem:[%s297] sm:$0x3]
        %v527 = vadd.f32 %v456, %v459
        %v528 = vadd.f32 %v527, %v464
        %v529 = vadd.f32 %v528, %v467
        %v530 = vadd.f32 %v529, %v472
        %v531 = vadd.f32 %v530, %v475
        %v532 = vadd.f32 %v531, %v480
        %v533 = vadd.f32 %v532, %v483
        %v534 = vrot.slane %v533, 4
        %v535 = vadd.f32 %v533, %v534
        %v536 = vrot.slane %v535, 2
        %v537 = vadd.f32 %v535, %v536
        %v538 = vrot.slane %v537, 1
        %v539 = vadd.f32 %v537, %v538
        %v540 = vmul.f32 %v456, %v456
        %v541 = vmul.f32 %v459, %v459
        %v542 = vmul.f32 %v464, %v464
        %v543 = vmul.f32 %v467, %v467
        %v544 = vmul.f32 %v472, %v472
        %v545 = vmul.f32 %v475, %v475
        %v546 = vmul.f32 %v480, %v480
        %v547 = vmul.f32 %v483, %v483
        %v548 = vadd.f32 %v540, %v541
        %v549 = vadd.f32 %v548, %v542
        %v550 = vadd.f32 %v549, %v543
        %v551 = vadd.f32 %v550, %v544
        %v552 = vadd.f32 %v551, %v545
        %v553 = vadd.f32 %v552, %v546
        %v554 = vadd.f32 %v553, %v547
        %v555 = vrot.slane %v554, 4
        %v556 = vadd.f32 %v554, %v555
        %v557 = vrot.slane %v556, 2
        %v558 = vadd.f32 %v556, %v557
        %v559 = vrot.slane %v558, 1
        %v560 = vadd.f32 %v558, %v559
        %vm561 = vcmask 1040384
        %v562 = vsel %vm561, %v539, %v560
        %v563 = vadd.f32 %v526, %v562
        %564 = vst [vmem:[%s297] sm:$0x3] %v563
        %s565 = sand.u32 %s108, 1
        %s566 = sand.u32 %s108, 1
        %s567 = smul.addr %s566, 32
        %s568 = scalar_lea.vmem [#allocation3], %s567
        %p569 = scmp.lt.s32.totalorder %s20, 1
        %s570 = scalar_select %p569, %s20, 1
        %s571 = smul.addr %s570, 2
        %s572 = scalar_lea.vmem %s4, %s571
        // Predicated region
        $region78: #{bottleneck1d_forward.6} parent=68 // pred_check
          %p573 = pneg %p118
        $region79: #{bottleneck1d_forward.6} parent=68 // pred_check_branch
          %575 = sbr.rel (%p573) target = $region81
        $region80: #{bottleneck1d_forward.6} parent=68 // pred_region
          %s576 = smul.u32 4, %s20
          %s577 = smul.u32 2, %s21
          %s578 = smul.addr %s576, 4
          %s579 = sadd.s32 %s577, %s578
          %s580 = smul.addr %s579, 4
          %s581 = scalar_lea.vmem %s3, %s580
          // Predicated region
          $region82: #{bottleneck1d_forward.6} parent=80 // pred_check
            _
          $region83: #{bottleneck1d_forward.6} parent=80 // pred_check_branch
            %583 = sbr.rel (0) target = $region85
          $region84: #{bottleneck1d_forward.6} parent=80 // pred_region
            // Predicated region
            $region86: #{bottleneck1d_forward.6} parent=84 // pred_check
              _
            $region87: #{bottleneck1d_forward.6} parent=84 // pred_check_branch
              %585 = sbr.rel target = $region89
            $region88: #{bottleneck1d_forward.6} parent=84 // pred_region
              // Predicated region
              $region101: #{bottleneck1d_forward.6} parent=88 // pred_check
                _
              $region102: #{bottleneck1d_forward.6} parent=88 // pred_check_branch
                %615 = sbr.rel (0) target = $region104
              $region103: #{bottleneck1d_forward.6} parent=88 // pred_region
                loop: start=0, step=1, limit=1
                $region105: #{bottleneck1d_forward.6} parent=103 // loop_pre_header
                  _
                $region106: #{bottleneck1d_forward.6} parent=103 // loop_header
                  %s617 = sphi 0, %s621
                  %p618 = scmp.ge.s32.totalorder %s617, 1
                  %s622 = sphi %s568, %s568
                  %s623 = sphi %s581, %s581
                $region107: #{bottleneck1d_forward.6} parent=103 // loop_header_branch
                  %620 = sbr.rel (%p618) target = $region111
                $region108: #{bottleneck1d_forward.6} parent=103 // loop_body
                  _
                $region109: #{bottleneck1d_forward.6} parent=103 // loop_footer
                  %s621 = sadd.s32 1, %s617
                $region110: #{bottleneck1d_forward.6} parent=103 // loop_footer_branch
                  %616 = sbr.rel target = $region106
                $region111: #{bottleneck1d_forward.6} parent=103 // loop_exit
                  _
                %s625 = ssub.s32 16, 1
                loop: start=0, step=1, limit=1
                $region112: #{bottleneck1d_forward.6} parent=103 // loop_pre_header
                  _
                $region113: #{bottleneck1d_forward.6} parent=103 // loop_header
                  %s627 = sphi 0, %s631
                  %p628 = scmp.ge.s32.totalorder %s627, 1
                  %s632 = sphi %s568, %s568
                  %s633 = sphi %s581, %s581
                $region114: #{bottleneck1d_forward.6} parent=103 // loop_header_branch
                  %630 = sbr.rel (%p628) target = $region118
                $region115: #{bottleneck1d_forward.6} parent=103 // loop_body
                  %v634 = vld [vmem:[%s632] sm:%s625]
                  %635 = vst [vmem:[%s633] sm:%s625] %v634
                  %v636 = vld [vmem:[%s632 + $0x4] sm:%s625]
                  %637 = vst [vmem:[%s633 + $0x4] sm:%s625] %v636
                  %v638 = vld [vmem:[%s632 + $0x8] sm:%s625]
                  %639 = vst [vmem:[%s633 + $0x10] sm:%s625] %v638
                  %v640 = vld [vmem:[%s632 + $0xc] sm:%s625]
                  %641 = vst [vmem:[%s633 + $0x14] sm:%s625] %v640
                  %v642 = vld [vmem:[%s632 + $0x10] sm:%s625]
                  %643 = vst [vmem:[%s633 + $0x20] sm:%s625] %v642
                  %v644 = vld [vmem:[%s632 + $0x14] sm:%s625]
                  %645 = vst [vmem:[%s633 + $0x24] sm:%s625] %v644
                  %v646 = vld [vmem:[%s632 + $0x18] sm:%s625]
                  %647 = vst [vmem:[%s633 + $0x30] sm:%s625] %v646
                  %v648 = vld [vmem:[%s632 + $0x1c] sm:%s625]
                  %649 = vst [vmem:[%s633 + $0x34] sm:%s625] %v648
                $region116: #{bottleneck1d_forward.6} parent=103 // loop_footer
                  %s631 = sadd.s32 1, %s627
                $region117: #{bottleneck1d_forward.6} parent=103 // loop_footer_branch
                  %626 = sbr.rel target = $region113
                $region118: #{bottleneck1d_forward.6} parent=103 // loop_exit
                  _
              $region104: #{bottleneck1d_forward.6} parent=88 // pred_fallthru
                _
            $region89: #{bottleneck1d_forward.6} parent=84 // pred_fallthru
              _
            // Predicated region
            $region90: #{bottleneck1d_forward.6} parent=84 // pred_check
              _
            $region91: #{bottleneck1d_forward.6} parent=84 // pred_check_branch
              %587 = sbr.rel (0) target = $region93
            $region92: #{bottleneck1d_forward.6} parent=84 // pred_region
              %s589 = ssub.s32 16, 1
              loop: start=0, step=1, limit=1
              $region94: #{bottleneck1d_forward.6} parent=92 // loop_pre_header
                _
              $region95: #{bottleneck1d_forward.6} parent=92 // loop_header
                %s591 = sphi 0, %s595
                %p592 = scmp.ge.s32.totalorder %s591, 1
                %s596 = sphi %s568, %s568
                %s597 = sphi %s581, %s581
              $region96: #{bottleneck1d_forward.6} parent=92 // loop_header_branch
                %594 = sbr.rel (%p592) target = $region100
              $region97: #{bottleneck1d_forward.6} parent=92 // loop_body
                %v598 = vld [vmem:[%s596] sm:%s589]
                %599 = vst [vmem:[%s597] sm:%s589] %v598
                %v600 = vld [vmem:[%s596 + $0x4] sm:%s589]
                %601 = vst [vmem:[%s597 + $0x4] sm:%s589] %v600
                %v602 = vld [vmem:[%s596 + $0x8] sm:%s589]
                %603 = vst [vmem:[%s597 + $0x10] sm:%s589] %v602
                %v604 = vld [vmem:[%s596 + $0xc] sm:%s589]
                %605 = vst [vmem:[%s597 + $0x14] sm:%s589] %v604
                %v606 = vld [vmem:[%s596 + $0x10] sm:%s589]
                %607 = vst [vmem:[%s597 + $0x20] sm:%s589] %v606
                %v608 = vld [vmem:[%s596 + $0x14] sm:%s589]
                %609 = vst [vmem:[%s597 + $0x24] sm:%s589] %v608
                %v610 = vld [vmem:[%s596 + $0x18] sm:%s589]
                %611 = vst [vmem:[%s597 + $0x30] sm:%s589] %v610
                %v612 = vld [vmem:[%s596 + $0x1c] sm:%s589]
                %613 = vst [vmem:[%s597 + $0x34] sm:%s589] %v612
              $region98: #{bottleneck1d_forward.6} parent=92 // loop_footer
                %s595 = sadd.s32 1, %s591
              $region99: #{bottleneck1d_forward.6} parent=92 // loop_footer_branch
                %590 = sbr.rel target = $region95
              $region100: #{bottleneck1d_forward.6} parent=92 // loop_exit
                _
            $region93: #{bottleneck1d_forward.6} parent=84 // pred_fallthru
              _
          $region85: #{bottleneck1d_forward.6} parent=80 // pred_fallthru
            _
          %650 = vnop
        $region81: #{bottleneck1d_forward.6} parent=68 // pred_fallthru
          _
        // Predicated region
        $region119: #{bottleneck1d_forward.6} parent=68 // pred_check
          %p651 = pneg %p144
        $region120: #{bottleneck1d_forward.6} parent=68 // pred_check_branch
          %653 = sbr.rel (%p651) target = $region122
        $region121: #{bottleneck1d_forward.6} parent=68 // pred_region
          _
        $region122: #{bottleneck1d_forward.6} parent=68 // pred_fallthru
          _
      $region69: #{bottleneck1d_forward.6} parent=5 // pred_fallthru
        _
      %p654 = scmp.le.s32.totalorder 2, %s11
      // Predicated region
      $region123: #{bottleneck1d_forward.6} parent=5 // pred_check
        %p655 = pneg %p654
      $region124: #{bottleneck1d_forward.6} parent=5 // pred_check_branch
        %657 = sbr.rel (%p655) target = $region126
      $region125: #{bottleneck1d_forward.6} parent=5 // pred_region
        %s658 = ssub.s32 %s11, 2
        // Predicated region
        $region127: #{bottleneck1d_forward.6} parent=125 // pred_check
          %p659 = pneg %p124
        $region128: #{bottleneck1d_forward.6} parent=125 // pred_check_branch
          %661 = sbr.rel (%p659) target = $region130
        $region129: #{bottleneck1d_forward.6} parent=125 // pred_region
          %s662 = sand.u32 %s109, 1
          %s663 = sand.u32 %s109, 1
          %s664 = smul.addr %s663, 32
          %s665 = scalar_lea.vmem [#allocation3], %s664
        $region130: #{bottleneck1d_forward.6} parent=125 // pred_fallthru
          _
        // Predicated region
        $region131: #{bottleneck1d_forward.6} parent=125 // pred_check
          %p666 = pneg %p150
        $region132: #{bottleneck1d_forward.6} parent=125 // pred_check_branch
          %668 = sbr.rel (%p666) target = $region134
        $region133: #{bottleneck1d_forward.6} parent=125 // pred_region
          %p669 = scmp.lt.s32.totalorder %s22, 1
          %s670 = scalar_select %p669, %s22, 1
          %s671 = smul.addr %s670, 2
          %s672 = scalar_lea.vmem %s4, %s671
        $region134: #{bottleneck1d_forward.6} parent=125 // pred_fallthru
          _
      $region126: #{bottleneck1d_forward.6} parent=5 // pred_fallthru
        _
    $region6: #{bottleneck1d_forward.6} parent=1 // loop_footer
      %s15 = sadd.s32 1, %s11
    $region7: #{bottleneck1d_forward.6} parent=1 // loop_footer_branch
      %10 = sbr.rel target = $region3
    $region8: #{bottleneck1d_forward.6} parent=1 // loop_exit
      _

// kernel: bottleneck1d_forward.7
$region0: #{bottleneck1d_forward.7}
  #allocation0 [shape = 'u32[]', space=smem, size = 0x4, offset = 0x4, fixed_abs, tag = 'smem constant byte address 0x4 - core index']
  #allocation1 [shape = 'u32[144,128]{1,0:T(1,128)}', space=vmem, size = 0x12000, scoped, tag = 'internal scratch']
  #allocation6 [shape = 's32[]', space=sflag, size = 0x4, offset = 0, fixed_abs, tag = 'sflag constant byte address 0x0 - dummy sync flag']
  %s0 = inlined_call_operand.vmem [shape: bf16[8,32,128], index: 0, kind: input, shape index: {}]
  %s1 = inlined_call_operand.vmem [shape: bf16[8,32,128], index: 1, kind: input, shape index: {}]
  %s2 = inlined_call_operand.vmem [shape: f32[2,128], index: 2, kind: input, shape index: {}]
  %s3 = inlined_call_operand.vmem [shape: f32[2,128], index: 3, kind: input, shape index: {}]
  %s4 = inlined_call_operand.hbm [shape: bf16[8,32,128], index: 4, kind: output, shape index: {}]
  %s5 = sld [smem:[#allocation0]]
  $region131: #{bottleneck1d_forward.7} parent=0
    _
  %s7 = ssub.s32 1, %s5
  %s8 = scalar_select 0, %s7, %s5
  $region1: #{bottleneck1d_forward.7} parent=0
    #allocation2 [shape = 'u8[32768]{0}', space=vmem, size = 0x8000, scoped, tag = 'input window, operand 0']
    #allocation3 [shape = 'u8[32768]{0}', space=vmem, size = 0x8000, scoped, tag = 'input window, operand 1']
    #allocation4 [shape = 'u8[32768]{0}', space=vmem, size = 0x8000, scoped, tag = 'output window, operand 0']
    #allocation5 [shape = 's32[2]{0}', space=sflag, size = 0x8, scoped, tag = 'scoped memory for bottleneck1d_forward.7']
    %9 = vsyncpa [#allocation5], 0
    %s10 = scalar_lea.sflag [#allocation5], 1
    %11 = vsyncpa %s10, 0
    loop: start=0, step=1, limit=6
    $region2: #{bottleneck1d_forward.7} parent=1 // loop_pre_header
      _
    $region3: #{bottleneck1d_forward.7} parent=1 // loop_header
      %s13 = sphi 0, %s17
      %p14 = scmp.ge.s32.totalorder %s13, 6
      %s20 = sphi 0, %s32
      %s21 = sphi 0, %s28
      %s22 = sphi 0, %s20
      %s23 = sphi 0, %s21
      %s24 = sphi 0, %s22
      %s25 = sphi 0, %s23
      %s37 = sphi 0, %s39
      %s40 = sphi 0, %s37
      %s41 = sphi 0, %s40
      %s57 = sphi 0, %s41
      %s65 = sphi 0, %s67
      %s68 = sphi 0, %s65
      %s69 = sphi 0, %s68
      %s85 = sphi 0, %s69
      %s89 = sphi 0, %s89
      %s91 = sphi 0, %s89
      %s92 = sphi 0, %s91
      %s106 = sphi 0, %s92
      %s110 = sphi 0, %s110
      %s112 = sphi 0, %s110
      %s113 = sphi 0, %s112
      %s127 = sphi 0, %s113
      %s135 = sphi 0, %s137
      %s138 = sphi 0, %s135
      %s139 = sphi 0, %s138
      %s155 = sphi 0, %s139
    $region4: #{bottleneck1d_forward.7} parent=1 // loop_header_branch
      %16 = sbr.rel (%p14) target = $region8
    $region5: #{bottleneck1d_forward.7} parent=1 // loop_body
      %s18 = ssub.s32 %s13, 1
      %s19 = ssub.s32 %s13, 2
      %s26 = sadd.s32 1, %s21
      %p27 = scmp.ge.s32.totalorder %s26, 2
      %s28 = scalar_select %p27, 0, %s26
      %s29 = sadd.s32 1, %s20
      %s30 = scalar_select %p27, %s29, %s20
      %p31 = scmp.ge.s32.totalorder %s30, 2
      %s32 = scalar_select %p31, 0, %s30
      %s33 = ssub.s32 %s20, %s32
      %s34 = ssub.s32 %s21, %s28
      %s35 = sor.u32 %s33, %s34
      %p36 = scmp.eq.s32.totalorder %s35, 0
      %s38 = sadd.s32 %s37, 1
      %s39 = scalar_select %p36, %s37, %s38
      %p42 = pneg %p36
      %p43 = scmp.eq.s32.totalorder %s13, 3
      %p44 = por %p42, %p43
      %p45 = scmp.ne.s32.totalorder %s37, %s40
      %p46 = scmp.eq.s32.totalorder %s13, 0
      %p47 = por %p45, %p46
      %p48 = scmp.ne.s32.totalorder %s37, %s40
      %p49 = scmp.eq.s32.totalorder %s18, 3
      %p50 = por %p48, %p49
      %p51 = scmp.ne.s32.totalorder %s40, %s41
      %p52 = scmp.eq.s32.totalorder %s18, 0
      %p53 = por %p51, %p52
      %p54 = scmp.ne.s32.totalorder %s40, %s41
      %p55 = scmp.eq.s32.totalorder %s19, 3
      %p56 = por %p54, %p55
      %p58 = scmp.ne.s32.totalorder %s41, %s57
      %p59 = scmp.eq.s32.totalorder %s19, 0
      %p60 = por %p58, %p59
      %s61 = ssub.s32 %s20, %s32
      %s62 = ssub.s32 %s21, %s28
      %s63 = sor.u32 %s61, %s62
      %p64 = scmp.eq.s32.totalorder %s63, 0
      %s66 = sadd.s32 %s65, 1
      %s67 = scalar_select %p64, %s65, %s66
      %p70 = pneg %p64
      %p71 = scmp.eq.s32.totalorder %s13, 3
      %p72 = por %p70, %p71
      %p73 = scmp.ne.s32.totalorder %s65, %s68
      %p74 = scmp.eq.s32.totalorder %s13, 0
      %p75 = por %p73, %p74
      %p76 = scmp.ne.s32.totalorder %s65, %s68
      %p77 = scmp.eq.s32.totalorder %s18, 3
      %p78 = por %p76, %p77
      %p79 = scmp.ne.s32.totalorder %s68, %s69
      %p80 = scmp.eq.s32.totalorder %s18, 0
      %p81 = por %p79, %p80
      %p82 = scmp.ne.s32.totalorder %s68, %s69
      %p83 = scmp.eq.s32.totalorder %s19, 3
      %p84 = por %p82, %p83
      %p86 = scmp.ne.s32.totalorder %s69, %s85
      %p87 = scmp.eq.s32.totalorder %s19, 0
      %p88 = por %p86, %p87
      %s90 = sadd.s32 %s89, 1
      %p93 = scmp.eq.s32.totalorder %s13, 3
      %p94 = scmp.ne.s32.totalorder %s89, %s91
      %p95 = scmp.eq.s32.totalorder %s13, 0
      %p96 = por %p94, %p95
      %p97 = scmp.ne.s32.totalorder %s89, %s91
      %p98 = scmp.eq.s32.totalorder %s18, 3
      %p99 = por %p97, %p98
      %p100 = scmp.ne.s32.totalorder %s91, %s92
      %p101 = scmp.eq.s32.totalorder %s18, 0
      %p102 = por %p100, %p101
      %p103 = scmp.ne.s32.totalorder %s91, %s92
      %p104 = scmp.eq.s32.totalorder %s19, 3
      %p105 = por %p103, %p104
      %p107 = scmp.ne.s32.totalorder %s92, %s106
      %p108 = scmp.eq.s32.totalorder %s19, 0
      %p109 = por %p107, %p108
      %s111 = sadd.s32 %s110, 1
      %p114 = scmp.eq.s32.totalorder %s13, 3
      %p115 = scmp.ne.s32.totalorder %s110, %s112
      %p116 = scmp.eq.s32.totalorder %s13, 0
      %p117 = por %p115, %p116
      %p118 = scmp.ne.s32.totalorder %s110, %s112
      %p119 = scmp.eq.s32.totalorder %s18, 3
      %p120 = por %p118, %p119
      %p121 = scmp.ne.s32.totalorder %s112, %s113
      %p122 = scmp.eq.s32.totalorder %s18, 0
      %p123 = por %p121, %p122
      %p124 = scmp.ne.s32.totalorder %s112, %s113
      %p125 = scmp.eq.s32.totalorder %s19, 3
      %p126 = por %p124, %p125
      %p128 = scmp.ne.s32.totalorder %s113, %s127
      %p129 = scmp.eq.s32.totalorder %s19, 0
      %p130 = por %p128, %p129
      %s131 = ssub.s32 %s20, %s32
      %s132 = ssub.s32 %s21, %s28
      %s133 = sor.u32 %s131, %s132
      %p134 = scmp.eq.s32.totalorder %s133, 0
      %s136 = sadd.s32 %s135, 1
      %s137 = scalar_select %p134, %s135, %s136
      %p140 = pneg %p134
      %p141 = scmp.eq.s32.totalorder %s13, 3
      %p142 = por %p140, %p141
      %p143 = scmp.ne.s32.totalorder %s135, %s138
      %p144 = scmp.eq.s32.totalorder %s13, 0
      %p145 = por %p143, %p144
      %p146 = scmp.ne.s32.totalorder %s135, %s138
      %p147 = scmp.eq.s32.totalorder %s18, 3
      %p148 = por %p146, %p147
      %p149 = scmp.ne.s32.totalorder %s138, %s139
      %p150 = scmp.eq.s32.totalorder %s18, 0
      %p151 = por %p149, %p150
      %p152 = scmp.ne.s32.totalorder %s138, %s139
      %p153 = scmp.eq.s32.totalorder %s19, 3
      %p154 = por %p152, %p153
      %p156 = scmp.ne.s32.totalorder %s139, %s155
      %p157 = scmp.eq.s32.totalorder %s19, 0
      %p158 = por %p156, %p157
      %p159 = scmp.le.s32.totalorder 1, %s13
      %p160 = scmp.lt.s32.totalorder %s13, 5
      %p161 = pnand %p159, %p160
      %p162 = pneg %p161
      // Predicated region
      $region9: #{bottleneck1d_forward.7} parent=5 // pred_check
        _
      $region10: #{bottleneck1d_forward.7} parent=5 // pred_check_branch
        %164 = sbr.rel (%p161) target = $region12
      $region11: #{bottleneck1d_forward.7} parent=5 // pred_region
        %s165 = ssub.s32 %s13, 1
        // Predicated region
        $region13: #{bottleneck1d_forward.7} parent=11 // pred_check
          %p166 = pneg %p102
        $region14: #{bottleneck1d_forward.7} parent=11 // pred_check_branch
          %168 = sbr.rel (%p166) target = $region16
        $region15: #{bottleneck1d_forward.7} parent=11 // pred_region
          _
        $region16: #{bottleneck1d_forward.7} parent=11 // pred_fallthru
          _
        // Predicated region
        $region17: #{bottleneck1d_forward.7} parent=11 // pred_check
          %p169 = pneg %p123
        $region18: #{bottleneck1d_forward.7} parent=11 // pred_check_branch
          %171 = sbr.rel (%p169) target = $region20
        $region19: #{bottleneck1d_forward.7} parent=11 // pred_region
          _
        $region20: #{bottleneck1d_forward.7} parent=11 // pred_fallthru
          _
      $region12: #{bottleneck1d_forward.7} parent=5 // pred_fallthru
        _
      %p172 = scmp.lt.s32.totalorder %s13, 4
      // Predicated region
      $region21: #{bottleneck1d_forward.7} parent=5 // pred_check
        %p173 = pneg %p172
      $region22: #{bottleneck1d_forward.7} parent=5 // pred_check_branch
        %175 = sbr.rel (%p173) target = $region24
      $region23: #{bottleneck1d_forward.7} parent=5 // pred_region
        // Predicated region
        $region25: #{bottleneck1d_forward.7} parent=23 // pred_check
          %p176 = pneg %p47
        $region26: #{bottleneck1d_forward.7} parent=23 // pred_check_branch
          %178 = sbr.rel (%p176) target = $region28
        $region27: #{bottleneck1d_forward.7} parent=23 // pred_region
          %s179 = sand.u32 %s37, 1
          %s180 = sand.u32 %s37, 1
          %s181 = smul.addr %s180, 32
          %s182 = scalar_lea.vmem [#allocation2], %s181
          %s183 = smul.u32 4, %s20
          %s184 = smul.u32 2, %s21
          %s185 = smul.addr %s183, 4
          %s186 = sadd.s32 %s184, %s185
          %s187 = smul.addr %s186, 4
          %s188 = scalar_lea.vmem %s0, %s187
          // Predicated region
          $region29: #{bottleneck1d_forward.7} parent=27 // pred_check
            _
          $region30: #{bottleneck1d_forward.7} parent=27 // pred_check_branch
            %190 = sbr.rel (0) target = $region32
          $region31: #{bottleneck1d_forward.7} parent=27 // pred_region
            // Predicated region
            $region33: #{bottleneck1d_forward.7} parent=31 // pred_check
              _
            $region34: #{bottleneck1d_forward.7} parent=31 // pred_check_branch
              %192 = sbr.rel target = $region36
            $region35: #{bottleneck1d_forward.7} parent=31 // pred_region
              // Predicated region
              $region48: #{bottleneck1d_forward.7} parent=35 // pred_check
                _
              $region49: #{bottleneck1d_forward.7} parent=35 // pred_check_branch
                %222 = sbr.rel (0) target = $region51
              $region50: #{bottleneck1d_forward.7} parent=35 // pred_region
                loop: start=0, step=1, limit=1
                $region52: #{bottleneck1d_forward.7} parent=50 // loop_pre_header
                  _
                $region53: #{bottleneck1d_forward.7} parent=50 // loop_header
                  %s224 = sphi 0, %s228
                  %p225 = scmp.ge.s32.totalorder %s224, 1
                  %s229 = sphi %s188, %s188
                  %s230 = sphi %s182, %s182
                $region54: #{bottleneck1d_forward.7} parent=50 // loop_header_branch
                  %227 = sbr.rel (%p225) target = $region58
                $region55: #{bottleneck1d_forward.7} parent=50 // loop_body
                  _
                $region56: #{bottleneck1d_forward.7} parent=50 // loop_footer
                  %s228 = sadd.s32 1, %s224
                $region57: #{bottleneck1d_forward.7} parent=50 // loop_footer_branch
                  %223 = sbr.rel target = $region53
                $region58: #{bottleneck1d_forward.7} parent=50 // loop_exit
                  _
                %s232 = ssub.s32 16, 1
                loop: start=0, step=1, limit=1
                $region59: #{bottleneck1d_forward.7} parent=50 // loop_pre_header
                  _
                $region60: #{bottleneck1d_forward.7} parent=50 // loop_header
                  %s234 = sphi 0, %s238
                  %p235 = scmp.ge.s32.totalorder %s234, 1
                  %s239 = sphi %s188, %s188
                  %s240 = sphi %s182, %s182
                $region61: #{bottleneck1d_forward.7} parent=50 // loop_header_branch
                  %237 = sbr.rel (%p235) target = $region65
                $region62: #{bottleneck1d_forward.7} parent=50 // loop_body
                  %v241 = vld [vmem:[%s239] sm:%s232]
                  %242 = vst [vmem:[%s240] sm:%s232] %v241
                  %v243 = vld [vmem:[%s239 + $0x4] sm:%s232]
                  %244 = vst [vmem:[%s240 + $0x4] sm:%s232] %v243
                  %v245 = vld [vmem:[%s239 + $0x10] sm:%s232]
                  %246 = vst [vmem:[%s240 + $0x8] sm:%s232] %v245
                  %v247 = vld [vmem:[%s239 + $0x14] sm:%s232]
                  %248 = vst [vmem:[%s240 + $0xc] sm:%s232] %v247
                  %v249 = vld [vmem:[%s239 + $0x20] sm:%s232]
                  %250 = vst [vmem:[%s240 + $0x10] sm:%s232] %v249
                  %v251 = vld [vmem:[%s239 + $0x24] sm:%s232]
                  %252 = vst [vmem:[%s240 + $0x14] sm:%s232] %v251
                  %v253 = vld [vmem:[%s239 + $0x30] sm:%s232]
                  %254 = vst [vmem:[%s240 + $0x18] sm:%s232] %v253
                  %v255 = vld [vmem:[%s239 + $0x34] sm:%s232]
                  %256 = vst [vmem:[%s240 + $0x1c] sm:%s232] %v255
                $region63: #{bottleneck1d_forward.7} parent=50 // loop_footer
                  %s238 = sadd.s32 1, %s234
                $region64: #{bottleneck1d_forward.7} parent=50 // loop_footer_branch
                  %233 = sbr.rel target = $region60
                $region65: #{bottleneck1d_forward.7} parent=50 // loop_exit
                  _
              $region51: #{bottleneck1d_forward.7} parent=35 // pred_fallthru
                _
            $region36: #{bottleneck1d_forward.7} parent=31 // pred_fallthru
              _
            // Predicated region
            $region37: #{bottleneck1d_forward.7} parent=31 // pred_check
              _
            $region38: #{bottleneck1d_forward.7} parent=31 // pred_check_branch
              %194 = sbr.rel (0) target = $region40
            $region39: #{bottleneck1d_forward.7} parent=31 // pred_region
              %s196 = ssub.s32 16, 1
              loop: start=0, step=1, limit=1
              $region41: #{bottleneck1d_forward.7} parent=39 // loop_pre_header
                _
              $region42: #{bottleneck1d_forward.7} parent=39 // loop_header
                %s198 = sphi 0, %s202
                %p199 = scmp.ge.s32.totalorder %s198, 1
                %s203 = sphi %s188, %s188
                %s204 = sphi %s182, %s182
              $region43: #{bottleneck1d_forward.7} parent=39 // loop_header_branch
                %201 = sbr.rel (%p199) target = $region47
              $region44: #{bottleneck1d_forward.7} parent=39 // loop_body
                %v205 = vld [vmem:[%s203] sm:%s196]
                %206 = vst [vmem:[%s204] sm:%s196] %v205
                %v207 = vld [vmem:[%s203 + $0x4] sm:%s196]
                %208 = vst [vmem:[%s204 + $0x4] sm:%s196] %v207
                %v209 = vld [vmem:[%s203 + $0x10] sm:%s196]
                %210 = vst [vmem:[%s204 + $0x8] sm:%s196] %v209
                %v211 = vld [vmem:[%s203 + $0x14] sm:%s196]
                %212 = vst [vmem:[%s204 + $0xc] sm:%s196] %v211
                %v213 = vld [vmem:[%s203 + $0x20] sm:%s196]
                %214 = vst [vmem:[%s204 + $0x10] sm:%s196] %v213
                %v215 = vld [vmem:[%s203 + $0x24] sm:%s196]
                %216 = vst [vmem:[%s204 + $0x14] sm:%s196] %v215
                %v217 = vld [vmem:[%s203 + $0x30] sm:%s196]
                %218 = vst [vmem:[%s204 + $0x18] sm:%s196] %v217
                %v219 = vld [vmem:[%s203 + $0x34] sm:%s196]
                %220 = vst [vmem:[%s204 + $0x1c] sm:%s196] %v219
              $region45: #{bottleneck1d_forward.7} parent=39 // loop_footer
                %s202 = sadd.s32 1, %s198
              $region46: #{bottleneck1d_forward.7} parent=39 // loop_footer_branch
                %197 = sbr.rel target = $region42
              $region47: #{bottleneck1d_forward.7} parent=39 // loop_exit
                _
            $region40: #{bottleneck1d_forward.7} parent=31 // pred_fallthru
              _
          $region32: #{bottleneck1d_forward.7} parent=27 // pred_fallthru
            _
          %257 = vnop
        $region28: #{bottleneck1d_forward.7} parent=23 // pred_fallthru
          _
        // Predicated region
        $region66: #{bottleneck1d_forward.7} parent=23 // pred_check
          %p258 = pneg %p75
        $region67: #{bottleneck1d_forward.7} parent=23 // pred_check_branch
          %260 = sbr.rel (%p258) target = $region69
        $region68: #{bottleneck1d_forward.7} parent=23 // pred_region
          %s261 = sand.u32 %s65, 1
          %s262 = sand.u32 %s65, 1
          %s263 = smul.addr %s262, 32
          %s264 = scalar_lea.vmem [#allocation3], %s263
          %s265 = smul.u32 4, %s20
          %s266 = smul.u32 2, %s21
          %s267 = smul.addr %s265, 4
          %s268 = sadd.s32 %s266, %s267
          %s269 = smul.addr %s268, 4
          %s270 = scalar_lea.vmem %s1, %s269
          // Predicated region
          $region70: #{bottleneck1d_forward.7} parent=68 // pred_check
            _
          $region71: #{bottleneck1d_forward.7} parent=68 // pred_check_branch
            %272 = sbr.rel (0) target = $region73
          $region72: #{bottleneck1d_forward.7} parent=68 // pred_region
            // Predicated region
            $region74: #{bottleneck1d_forward.7} parent=72 // pred_check
              _
            $region75: #{bottleneck1d_forward.7} parent=72 // pred_check_branch
              %274 = sbr.rel target = $region77
            $region76: #{bottleneck1d_forward.7} parent=72 // pred_region
              // Predicated region
              $region89: #{bottleneck1d_forward.7} parent=76 // pred_check
                _
              $region90: #{bottleneck1d_forward.7} parent=76 // pred_check_branch
                %304 = sbr.rel (0) target = $region92
              $region91: #{bottleneck1d_forward.7} parent=76 // pred_region
                loop: start=0, step=1, limit=1
                $region93: #{bottleneck1d_forward.7} parent=91 // loop_pre_header
                  _
                $region94: #{bottleneck1d_forward.7} parent=91 // loop_header
                  %s306 = sphi 0, %s310
                  %p307 = scmp.ge.s32.totalorder %s306, 1
                  %s311 = sphi %s270, %s270
                  %s312 = sphi %s264, %s264
                $region95: #{bottleneck1d_forward.7} parent=91 // loop_header_branch
                  %309 = sbr.rel (%p307) target = $region99
                $region96: #{bottleneck1d_forward.7} parent=91 // loop_body
                  _
                $region97: #{bottleneck1d_forward.7} parent=91 // loop_footer
                  %s310 = sadd.s32 1, %s306
                $region98: #{bottleneck1d_forward.7} parent=91 // loop_footer_branch
                  %305 = sbr.rel target = $region94
                $region99: #{bottleneck1d_forward.7} parent=91 // loop_exit
                  _
                %s314 = ssub.s32 16, 1
                loop: start=0, step=1, limit=1
                $region100: #{bottleneck1d_forward.7} parent=91 // loop_pre_header
                  _
                $region101: #{bottleneck1d_forward.7} parent=91 // loop_header
                  %s316 = sphi 0, %s320
                  %p317 = scmp.ge.s32.totalorder %s316, 1
                  %s321 = sphi %s270, %s270
                  %s322 = sphi %s264, %s264
                $region102: #{bottleneck1d_forward.7} parent=91 // loop_header_branch
                  %319 = sbr.rel (%p317) target = $region106
                $region103: #{bottleneck1d_forward.7} parent=91 // loop_body
                  %v323 = vld [vmem:[%s321] sm:%s314]
                  %324 = vst [vmem:[%s322] sm:%s314] %v323
                  %v325 = vld [vmem:[%s321 + $0x4] sm:%s314]
                  %326 = vst [vmem:[%s322 + $0x4] sm:%s314] %v325
                  %v327 = vld [vmem:[%s321 + $0x10] sm:%s314]
                  %328 = vst [vmem:[%s322 + $0x8] sm:%s314] %v327
                  %v329 = vld [vmem:[%s321 + $0x14] sm:%s314]
                  %330 = vst [vmem:[%s322 + $0xc] sm:%s314] %v329
                  %v331 = vld [vmem:[%s321 + $0x20] sm:%s314]
                  %332 = vst [vmem:[%s322 + $0x10] sm:%s314] %v331
                  %v333 = vld [vmem:[%s321 + $0x24] sm:%s314]
                  %334 = vst [vmem:[%s322 + $0x14] sm:%s314] %v333
                  %v335 = vld [vmem:[%s321 + $0x30] sm:%s314]
                  %336 = vst [vmem:[%s322 + $0x18] sm:%s314] %v335
                  %v337 = vld [vmem:[%s321 + $0x34] sm:%s314]
                  %338 = vst [vmem:[%s322 + $0x1c] sm:%s314] %v337
                $region104: #{bottleneck1d_forward.7} parent=91 // loop_footer
                  %s320 = sadd.s32 1, %s316
                $region105: #{bottleneck1d_forward.7} parent=91 // loop_footer_branch
                  %315 = sbr.rel target = $region101
                $region106: #{bottleneck1d_forward.7} parent=91 // loop_exit
                  _
              $region92: #{bottleneck1d_forward.7} parent=76 // pred_fallthru
                _
            $region77: #{bottleneck1d_forward.7} parent=72 // pred_fallthru
              _
            // Predicated region
            $region78: #{bottleneck1d_forward.7} parent=72 // pred_check
              _
            $region79: #{bottleneck1d_forward.7} parent=72 // pred_check_branch
              %276 = sbr.rel (0) target = $region81
            $region80: #{bottleneck1d_forward.7} parent=72 // pred_region
              %s278 = ssub.s32 16, 1
              loop: start=0, step=1, limit=1
              $region82: #{bottleneck1d_forward.7} parent=80 // loop_pre_header
                _
              $region83: #{bottleneck1d_forward.7} parent=80 // loop_header
                %s280 = sphi 0, %s284
                %p281 = scmp.ge.s32.totalorder %s280, 1
                %s285 = sphi %s270, %s270
                %s286 = sphi %s264, %s264
              $region84: #{bottleneck1d_forward.7} parent=80 // loop_header_branch
                %283 = sbr.rel (%p281) target = $region88
              $region85: #{bottleneck1d_forward.7} parent=80 // loop_body
                %v287 = vld [vmem:[%s285] sm:%s278]
                %288 = vst [vmem:[%s286] sm:%s278] %v287
                %v289 = vld [vmem:[%s285 + $0x4] sm:%s278]
                %290 = vst [vmem:[%s286 + $0x4] sm:%s278] %v289
                %v291 = vld [vmem:[%s285 + $0x10] sm:%s278]
                %292 = vst [vmem:[%s286 + $0x8] sm:%s278] %v291
                %v293 = vld [vmem:[%s285 + $0x14] sm:%s278]
                %294 = vst [vmem:[%s286 + $0xc] sm:%s278] %v293
                %v295 = vld [vmem:[%s285 + $0x20] sm:%s278]
                %296 = vst [vmem:[%s286 + $0x10] sm:%s278] %v295
                %v297 = vld [vmem:[%s285 + $0x24] sm:%s278]
                %298 = vst [vmem:[%s286 + $0x14] sm:%s278] %v297
                %v299 = vld [vmem:[%s285 + $0x30] sm:%s278]
                %300 = vst [vmem:[%s286 + $0x18] sm:%s278] %v299
                %v301 = vld [vmem:[%s285 + $0x34] sm:%s278]
                %302 = vst [vmem:[%s286 + $0x1c] sm:%s278] %v301
              $region86: #{bottleneck1d_forward.7} parent=80 // loop_footer
                %s284 = sadd.s32 1, %s280
              $region87: #{bottleneck1d_forward.7} parent=80 // loop_footer_branch
                %279 = sbr.rel target = $region83
              $region88: #{bottleneck1d_forward.7} parent=80 // loop_exit
                _
            $region81: #{bottleneck1d_forward.7} parent=72 // pred_fallthru
              _
          $region73: #{bottleneck1d_forward.7} parent=68 // pred_fallthru
            _
          %339 = vnop
        $region69: #{bottleneck1d_forward.7} parent=23 // pred_fallthru
          _
      $region24: #{bottleneck1d_forward.7} parent=5 // pred_fallthru
        _
      %p340 = scmp.le.s32.totalorder 1, %s13
      %p341 = scmp.lt.s32.totalorder %s13, 5
      %p342 = pnand %p340, %p341
      %p343 = pneg %p342
      // Predicated region
      $region107: #{bottleneck1d_forward.7} parent=5 // pred_check
        _
      $region108: #{bottleneck1d_forward.7} parent=5 // pred_check_branch
        %345 = sbr.rel (%p342) target = $region110
      $region109: #{bottleneck1d_forward.7} parent=5 // pred_region
        %s346 = ssub.s32 %s13, 1
        %s347 = sand.u32 %s40, 1
        %s348 = sand.u32 %s40, 1
        %s349 = smul.addr %s348, 32
        %s350 = scalar_lea.vmem [#allocation2], %s349
        // Predicated region
        $region111: #{bottleneck1d_forward.7} parent=109 // pred_check
          %p351 = pneg %p53
        $region112: #{bottleneck1d_forward.7} parent=109 // pred_check_branch
          %353 = sbr.rel (%p351) target = $region114
        $region113: #{bottleneck1d_forward.7} parent=109 // pred_region
          _
        $region114: #{bottleneck1d_forward.7} parent=109 // pred_fallthru
          _
        %s354 = sand.u32 %s68, 1
        %s355 = sand.u32 %s68, 1
        %s356 = smul.addr %s355, 32
        %s357 = scalar_lea.vmem [#allocation3], %s356
        // Predicated region
        $region115: #{bottleneck1d_forward.7} parent=109 // pred_check
          %p358 = pneg %p81
        $region116: #{bottleneck1d_forward.7} parent=109 // pred_check_branch
          %360 = sbr.rel (%p358) target = $region118
        $region117: #{bottleneck1d_forward.7} parent=109 // pred_region
          _
        $region118: #{bottleneck1d_forward.7} parent=109 // pred_fallthru
          _
        %s361 = sand.u32 %s40, 1
        %s362 = sand.u32 %s40, 1
        %s363 = smul.addr %s362, 32
        %s364 = scalar_lea.vmem [#allocation2], %s363
        %p365 = pneg %p53
        %p366 = pneg %p50
        %s367 = sand.u32 %s68, 1
        %s368 = sand.u32 %s68, 1
        %s369 = smul.addr %s368, 32
        %s370 = scalar_lea.vmem [#allocation3], %s369
        %p371 = pneg %p81
        %p372 = pneg %p78
        %p373 = pneg %p102
        %p374 = pneg %p99
        %p375 = pneg %p123
        %p376 = pneg %p120
        %p377 = pneg %p151
        %p378 = pneg %p148
        %s379 = sand.u32 %s138, 1
        %s380 = scalar_lea.sflag [#allocation5], %s379
        %s381 = sand.u32 %s138, 1
        %s382 = smul.addr %s381, 32
        %s383 = scalar_lea.vmem [#allocation4], %s382
        %s384 = smul.u32 4, %s22
        %s385 = smul.u32 2, %s23
        %s386 = smul.u32 4, %s22
        %s387 = smul.u32 2, %s23
        %s388 = smul.u32 4, %s22
        %s389 = smul.u32 2, %s23
        %v390 = vld [vmem:[%s2] sm:$0x3]
        %v391 = vld [vmem:[%s350] sm:$0xf]
        %v392 = vld [vmem:[%s350 + $0x4] sm:$0xf]
        %v393 = vld [vmem:[%s350 + $0x8] sm:$0xf]
        %v394 = vld [vmem:[%s350 + $0xc] sm:$0xf]
        %v395 = vld [vmem:[%s350 + $0x10] sm:$0xf]
        %v396 = vld [vmem:[%s350 + $0x14] sm:$0xf]
        %v397 = vld [vmem:[%s350 + $0x18] sm:$0xf]
        %v398 = vld [vmem:[%s350 + $0x1c] sm:$0xf]
        %v399 = vunpack.c.l.bf16 %v391
        %v400 = vunpack.c.l.bf16 %v392
        %v401 = vunpack.c.l.bf16 %v393
        %v402 = vunpack.c.l.bf16 %v394
        %v403 = vunpack.c.l.bf16 %v395
        %v404 = vunpack.c.l.bf16 %v396
        %v405 = vunpack.c.l.bf16 %v397
        %v406 = vunpack.c.l.bf16 %v398
        %v407 = vlaneseq
        %v408 = vshrl.u32 %v407, 7
        %v409 = vsub.s32 0, %v408
        %v410 = vrot.slane %v390, %v409
        %v411 = vmul.f32 %v399, %v410
        %v412 = vmul.f32 %v400, %v410
        %v413 = vmul.f32 %v401, %v410
        %v414 = vmul.f32 %v402, %v410
        %v415 = vmul.f32 %v403, %v410
        %v416 = vmul.f32 %v404, %v410
        %v417 = vmul.f32 %v405, %v410
        %v418 = vmul.f32 %v406, %v410
        %v419 = vlaneseq
        %v420 = vshrl.u32 %v419, 7
        %v421 = vsub.s32 1, %v420
        %v422 = vrot.slane %v390, %v421
        %v423 = vadd.f32 %v411, %v422
        %v424 = vadd.f32 %v412, %v422
        %v425 = vadd.f32 %v413, %v422
        %v426 = vadd.f32 %v414, %v422
        %v427 = vadd.f32 %v415, %v422
        %v428 = vadd.f32 %v416, %v422
        %v429 = vadd.f32 %v417, %v422
        %v430 = vadd.f32 %v418, %v422
        %v431 = vld [vmem:[%s357] sm:$0xf]
        %v432 = vld [vmem:[%s357 + $0x4] sm:$0xf]
        %v433 = vld [vmem:[%s357 + $0x8] sm:$0xf]
        %v434 = vld [vmem:[%s357 + $0xc] sm:$0xf]
        %v435 = vld [vmem:[%s357 + $0x10] sm:$0xf]
        %v436 = vld [vmem:[%s357 + $0x14] sm:$0xf]
        %v437 = vld [vmem:[%s357 + $0x18] sm:$0xf]
        %v438 = vld [vmem:[%s357 + $0x1c] sm:$0xf]
        %v439 = vunpack.c.l.bf16 %v431
        %v440 = vunpack.c.l.bf16 %v432
        %v441 = vunpack.c.l.bf16 %v433
        %v442 = vunpack.c.l.bf16 %v434
        %v443 = vunpack.c.l.bf16 %v435
        %v444 = vunpack.c.l.bf16 %v436
        %v445 = vunpack.c.l.bf16 %v437
        %v446 = vunpack.c.l.bf16 %v438
        %v447 = vld [vmem:[%s3] sm:$0x3]
        %v448 = vlaneseq
        %v449 = vshrl.u32 %v448, 7
        %v450 = vsub.s32 0, %v449
        %v451 = vrot.slane %v447, %v450
        %v452 = vmul.f32 %v439, %v451
        %v453 = vmul.f32 %v440, %v451
        %v454 = vmul.f32 %v441, %v451
        %v455 = vmul.f32 %v442, %v451
        %v456 = vmul.f32 %v443, %v451
        %v457 = vmul.f32 %v444, %v451
        %v458 = vmul.f32 %v445, %v451
        %v459 = vmul.f32 %v446, %v451
        %v460 = vlaneseq
        %v461 = vshrl.u32 %v460, 7
        %v462 = vsub.s32 1, %v461
        %v463 = vrot.slane %v447, %v462
        %v464 = vadd.f32 %v452, %v463
        %v465 = vadd.f32 %v453, %v463
        %v466 = vadd.f32 %v454, %v463
        %v467 = vadd.f32 %v455, %v463
        %v468 = vadd.f32 %v456, %v463
        %v469 = vadd.f32 %v457, %v463
        %v470 = vadd.f32 %v458, %v463
        %v471 = vadd.f32 %v459, %v463
        %v472 = vadd.f32 %v423, %v464
        %v473 = vadd.f32 %v424, %v465
        %v474 = vadd.f32 %v425, %v466
        %v475 = vadd.f32 %v426, %v467
        %v476 = vadd.f32 %v427, %v468
        %v477 = vadd.f32 %v428, %v469
        %v478 = vadd.f32 %v429, %v470
        %v479 = vadd.f32 %v430, %v471
        %v480 = vmax.f32 %v472, 0.0
        %v481 = vmax.f32 %v473, 0.0
        %v482 = vmax.f32 %v474, 0.0
        %v483 = vmax.f32 %v475, 0.0
        %v484 = vmax.f32 %v476, 0.0
        %v485 = vmax.f32 %v477, 0.0
        %v486 = vmax.f32 %v478, 0.0
        %v487 = vmax.f32 %v479, 0.0
        %v488 = vpack.c.bf16 %v481, %v480
        %v489 = vpack.c.bf16 %v483, %v482
        %v490 = vpack.c.bf16 %v485, %v484
        %v491 = vpack.c.bf16 %v487, %v486
        %v496 = vunpack.c.l.b16 %v488
        %v497 = vunpack.c.h.b16 %v488
        %v498 = vunpack.c.l.b16 %v489
        %v499 = vunpack.c.h.b16 %v489
        %v500 = vunpack.c.l.b16 %v490
        %v501 = vunpack.c.h.b16 %v490
        %v502 = vunpack.c.l.b16 %v491
        %v503 = vunpack.c.h.b16 %v491
        %v504 = vpack.c.b16 %v496, %v496
        %v505 = vpack.c.b16 %v497, %v497
        %v506 = vpack.c.b16 %v498, %v498
        %v507 = vpack.c.b16 %v499, %v499
        %v508 = vpack.c.b16 %v500, %v500
        %v509 = vpack.c.b16 %v501, %v501
        %v510 = vpack.c.b16 %v502, %v502
        %v511 = vpack.c.b16 %v503, %v503
        %520 = vst [vmem:[%s383] sm:$0xf] %v504
        %521 = vst [vmem:[%s383 + $0x4] sm:$0xf] %v505
        %522 = vst [vmem:[%s383 + $0x8] sm:$0xf] %v506
        %523 = vst [vmem:[%s383 + $0xc] sm:$0xf] %v507
        %524 = vst [vmem:[%s383 + $0x10] sm:$0xf] %v508
        %525 = vst [vmem:[%s383 + $0x14] sm:$0xf] %v509
        %526 = vst [vmem:[%s383 + $0x18] sm:$0xf] %v510
        %527 = vst [vmem:[%s383 + $0x1c] sm:$0xf] %v511
        %s528 = sand.u32 %s138, 1
        %s529 = scalar_lea.sflag [#allocation5], %s528
        %s530 = sand.u32 %s138, 1
        %s531 = smul.addr %s530, 32
        %s532 = scalar_lea.vmem [#allocation4], %s531
        // Predicated region
        $region119: #{bottleneck1d_forward.7} parent=109 // pred_check
          %p533 = pneg %p148
        $region120: #{bottleneck1d_forward.7} parent=109 // pred_check_branch
          %535 = sbr.rel (%p533) target = $region122
        $region121: #{bottleneck1d_forward.7} parent=109 // pred_region
          #allocation7 [shape = 'u32[6]{0}', space=smem, size = 0x18, scoped, tag = 'DMA stride descriptor']
          %s536 = smul.u32 4, %s22
          %s537 = smul.u32 2, %s23
          %s539 = ssub.s32 512, 512
          %540 = vsyncadd %s529, %s539
          %s541 = smul.addr %s536, 4
          %s542 = sadd.s32 %s537, %s541
          %s543 = smul.addr %s542, 64
          %s544 = scalar_lea.hbm %s4, %s543
          %s546 = sshll.u32 1, 14
          %s547 = sxor.u32 4294967295, %s546
          %s550 = sshll.u32 7, 18
          %s551 = sxor.u32 4294967295, %s550
          %s552 = sand.u32 0, %s551
          %s554 = sor.u32 %s552, 0
          %s555 = sshll.u32 %s532, 4
          %s556 = int_to_ptr.vmem [resolvable:$true] %s555
          %562 = sst [smem:[#allocation7]] 128
          %s563 = scalar_lea.smem [#allocation7], 1
          %564 = sst [smem:[%s563]] 256
          %s565 = scalar_lea.smem [#allocation7], 2
          %566 = sst [smem:[%s565]] 2
          %s567 = scalar_lea.smem [#allocation7], 3
          %568 = sst [smem:[%s567]] 64
          %s569 = scalar_lea.smem [#allocation7], 4
          %570 = sst [smem:[%s569]] 64
          %s571 = scalar_lea.smem [#allocation7], 5
          %572 = sst [smem:[%s571]] 4
          %574 = dma.general %s556, 512, %s544, %s529, 131072, [#allocation7], %s554, 0
        $region122: #{bottleneck1d_forward.7} parent=109 // pred_fallthru
          _
      $region110: #{bottleneck1d_forward.7} parent=5 // pred_fallthru
        _
      %p575 = scmp.le.s32.totalorder 2, %s13
      // Predicated region
      $region123: #{bottleneck1d_forward.7} parent=5 // pred_check
        %p576 = pneg %p575
      $region124: #{bottleneck1d_forward.7} parent=5 // pred_check_branch
        %578 = sbr.rel (%p576) target = $region126
      $region125: #{bottleneck1d_forward.7} parent=5 // pred_region
        %s579 = ssub.s32 %s13, 2
        // Predicated region
        $region127: #{bottleneck1d_forward.7} parent=125 // pred_check
          %p580 = pneg %p154
        $region128: #{bottleneck1d_forward.7} parent=125 // pred_check_branch
          %582 = sbr.rel (%p580) target = $region130
        $region129: #{bottleneck1d_forward.7} parent=125 // pred_region
          %s583 = sand.u32 %s139, 1
          %s584 = scalar_lea.sflag [#allocation5], %s583
          %s585 = sand.u32 %s139, 1
          %s586 = smul.addr %s585, 32
          %s587 = scalar_lea.vmem [#allocation4], %s586
          %588 = dma.done %s584, 512
        $region130: #{bottleneck1d_forward.7} parent=125 // pred_fallthru
          _
      $region126: #{bottleneck1d_forward.7} parent=5 // pred_fallthru
        _
    $region6: #{bottleneck1d_forward.7} parent=1 // loop_footer
      %s17 = sadd.s32 1, %s13
    $region7: #{bottleneck1d_forward.7} parent=1 // loop_footer_branch
      %12 = sbr.rel target = $region3
    $region8: #{bottleneck1d_forward.7} parent=1 // loop_exit
      _
    %589 = vsyncpa [#allocation5], 1
    %s590 = scalar_lea.sflag [#allocation5], 1
    %591 = vsyncpa %s590, 1

// kernel: bottleneck1d_forward.5
$region0: #{bottleneck1d_forward.5}
  #allocation0 [shape = 'u32[]', space=smem, size = 0x4, offset = 0x4, fixed_abs, tag = 'smem constant byte address 0x4 - core index']
  #allocation1 [shape = 'u32[144,128]{1,0:T(1,128)}', space=vmem, size = 0x12000, scoped, tag = 'internal scratch']
  #allocation2 [shape = 'f32[4,1,128]{2,1,0:T(1,128)}', space=vmem, size = 0x800, scoped, tag = 'scratch operand']
  %s0 = inlined_call_operand.vmem [shape: bf16[8,64,128], index: 0, kind: input, shape index: {}]
  %s1 = inlined_call_operand.vmem [shape: bf16[3,128,128], index: 1, kind: input, shape index: {}]
  %s2 = inlined_call_operand.vmem [shape: f32[2,128], index: 2, kind: input, shape index: {}]
  %s3 = inlined_call_operand.vmem [shape: bf16[8,32,128], index: 3, kind: output, shape index: {0}]
  %s4 = inlined_call_operand.vmem [shape: f32[2,2,128], index: 4, kind: output, shape index: {1}]
  %5 = xla_tuple %s3, %s4
  %s6 = sld [smem:[#allocation0]]
  $region135: #{bottleneck1d_forward.5} parent=0
    _
  %s8 = ssub.s32 1, %s6
  %s9 = scalar_select 0, %s8, %s6
  $region1: #{bottleneck1d_forward.5} parent=0
    #allocation3 [shape = 'u8[65536]{0}', space=vmem, size = 0x10000, scoped, tag = 'input window, operand 0']
    #allocation4 [shape = 'u8[32768]{0}', space=vmem, size = 0x8000, scoped, tag = 'output window, operand 0']
    loop: start=0, step=1, limit=6
    $region2: #{bottleneck1d_forward.5} parent=1 // loop_pre_header
      _
    $region3: #{bottleneck1d_forward.5} parent=1 // loop_header
      %s11 = sphi 0, %s15
      %p12 = scmp.ge.s32.totalorder %s11, 6
      %s18 = sphi 0, %s30
      %s19 = sphi 0, %s26
      %s20 = sphi 0, %s18
      %s21 = sphi 0, %s19
      %s22 = sphi 0, %s20
      %s23 = sphi 0, %s21
      %s35 = sphi 0, %s37
      %s38 = sphi 0, %s35
      %s39 = sphi 0, %s38
      %s55 = sphi 0, %s39
      %s59 = sphi 0, %s59
      %s61 = sphi 0, %s59
      %s62 = sphi 0, %s61
      %s76 = sphi 0, %s62
      %s80 = sphi 0, %s80
      %s82 = sphi 0, %s80
      %s83 = sphi 0, %s82
      %s97 = sphi 0, %s83
      %s105 = sphi 0, %s107
      %s108 = sphi 0, %s105
      %s109 = sphi 0, %s108
      %s125 = sphi 0, %s109
      %s131 = sphi 0, %s133
      %s134 = sphi 0, %s131
      %s135 = sphi 0, %s134
      %s151 = sphi 0, %s135
    $region4: #{bottleneck1d_forward.5} parent=1 // loop_header_branch
      %14 = sbr.rel (%p12) target = $region8
    $region5: #{bottleneck1d_forward.5} parent=1 // loop_body
      %s16 = ssub.s32 %s11, 1
      %s17 = ssub.s32 %s11, 2
      %s24 = sadd.s32 1, %s19
      %p25 = scmp.ge.s32.totalorder %s24, 2
      %s26 = scalar_select %p25, 0, %s24
      %s27 = sadd.s32 1, %s18
      %s28 = scalar_select %p25, %s27, %s18
      %p29 = scmp.ge.s32.totalorder %s28, 2
      %s30 = scalar_select %p29, 0, %s28
      %s31 = ssub.s32 %s18, %s30
      %s32 = ssub.s32 %s19, %s26
      %s33 = sor.u32 %s31, %s32
      %p34 = scmp.eq.s32.totalorder %s33, 0
      %s36 = sadd.s32 %s35, 1
      %s37 = scalar_select %p34, %s35, %s36
      %p40 = pneg %p34
      %p41 = scmp.eq.s32.totalorder %s11, 3
      %p42 = por %p40, %p41
      %p43 = scmp.ne.s32.totalorder %s35, %s38
      %p44 = scmp.eq.s32.totalorder %s11, 0
      %p45 = por %p43, %p44
      %p46 = scmp.ne.s32.totalorder %s35, %s38
      %p47 = scmp.eq.s32.totalorder %s16, 3
      %p48 = por %p46, %p47
      %p49 = scmp.ne.s32.totalorder %s38, %s39
      %p50 = scmp.eq.s32.totalorder %s16, 0
      %p51 = por %p49, %p50
      %p52 = scmp.ne.s32.totalorder %s38, %s39
      %p53 = scmp.eq.s32.totalorder %s17, 3
      %p54 = por %p52, %p53
      %p56 = scmp.ne.s32.totalorder %s39, %s55
      %p57 = scmp.eq.s32.totalorder %s17, 0
      %p58 = por %p56, %p57
      %s60 = sadd.s32 %s59, 1
      %p63 = scmp.eq.s32.totalorder %s11, 3
      %p64 = scmp.ne.s32.totalorder %s59, %s61
      %p65 = scmp.eq.s32.totalorder %s11, 0
      %p66 = por %p64, %p65
      %p67 = scmp.ne.s32.totalorder %s59, %s61
      %p68 = scmp.eq.s32.totalorder %s16, 3
      %p69 = por %p67, %p68
      %p70 = scmp.ne.s32.totalorder %s61, %s62
      %p71 = scmp.eq.s32.totalorder %s16, 0
      %p72 = por %p70, %p71
      %p73 = scmp.ne.s32.totalorder %s61, %s62
      %p74 = scmp.eq.s32.totalorder %s17, 3
      %p75 = por %p73, %p74
      %p77 = scmp.ne.s32.totalorder %s62, %s76
      %p78 = scmp.eq.s32.totalorder %s17, 0
      %p79 = por %p77, %p78
      %s81 = sadd.s32 %s80, 1
      %p84 = scmp.eq.s32.totalorder %s11, 3
      %p85 = scmp.ne.s32.totalorder %s80, %s82
      %p86 = scmp.eq.s32.totalorder %s11, 0
      %p87 = por %p85, %p86
      %p88 = scmp.ne.s32.totalorder %s80, %s82
      %p89 = scmp.eq.s32.totalorder %s16, 3
      %p90 = por %p88, %p89
      %p91 = scmp.ne.s32.totalorder %s82, %s83
      %p92 = scmp.eq.s32.totalorder %s16, 0
      %p93 = por %p91, %p92
      %p94 = scmp.ne.s32.totalorder %s82, %s83
      %p95 = scmp.eq.s32.totalorder %s17, 3
      %p96 = por %p94, %p95
      %p98 = scmp.ne.s32.totalorder %s83, %s97
      %p99 = scmp.eq.s32.totalorder %s17, 0
      %p100 = por %p98, %p99
      %s101 = ssub.s32 %s18, %s30
      %s102 = ssub.s32 %s19, %s26
      %s103 = sor.u32 %s101, %s102
      %p104 = scmp.eq.s32.totalorder %s103, 0
      %s106 = sadd.s32 %s105, 1
      %s107 = scalar_select %p104, %s105, %s106
      %p110 = pneg %p104
      %p111 = scmp.eq.s32.totalorder %s11, 3
      %p112 = por %p110, %p111
      %p113 = scmp.ne.s32.totalorder %s105, %s108
      %p114 = scmp.eq.s32.totalorder %s11, 0
      %p115 = por %p113, %p114
      %p116 = scmp.ne.s32.totalorder %s105, %s108
      %p117 = scmp.eq.s32.totalorder %s16, 3
      %p118 = por %p116, %p117
      %p119 = scmp.ne.s32.totalorder %s108, %s109
      %p120 = scmp.eq.s32.totalorder %s16, 0
      %p121 = por %p119, %p120
      %p122 = scmp.ne.s32.totalorder %s108, %s109
      %p123 = scmp.eq.s32.totalorder %s17, 3
      %p124 = por %p122, %p123
      %p126 = scmp.ne.s32.totalorder %s109, %s125
      %p127 = scmp.eq.s32.totalorder %s17, 0
      %p128 = por %p126, %p127
      %s129 = ssub.s32 %s18, %s30
      %p130 = scmp.eq.s32.totalorder %s129, 0
      %s132 = sadd.s32 %s131, 1
      %s133 = scalar_select %p130, %s131, %s132
      %p136 = pneg %p130
      %p137 = scmp.eq.s32.totalorder %s11, 3
      %p138 = por %p136, %p137
      %p139 = scmp.ne.s32.totalorder %s131, %s134
      %p140 = scmp.eq.s32.totalorder %s11, 0
      %p141 = por %p139, %p140
      %p142 = scmp.ne.s32.totalorder %s131, %s134
      %p143 = scmp.eq.s32.totalorder %s16, 3
      %p144 = por %p142, %p143
      %p145 = scmp.ne.s32.totalorder %s134, %s135
      %p146 = scmp.eq.s32.totalorder %s16, 0
      %p147 = por %p145, %p146
      %p148 = scmp.ne.s32.totalorder %s134, %s135
      %p149 = scmp.eq.s32.totalorder %s17, 3
      %p150 = por %p148, %p149
      %p152 = scmp.ne.s32.totalorder %s135, %s151
      %p153 = scmp.eq.s32.totalorder %s17, 0
      %p154 = por %p152, %p153
      %p155 = scmp.le.s32.totalorder 1, %s11
      %p156 = scmp.lt.s32.totalorder %s11, 5
      %p157 = pnand %p155, %p156
      %p158 = pneg %p157
      // Predicated region
      $region9: #{bottleneck1d_forward.5} parent=5 // pred_check
        _
      $region10: #{bottleneck1d_forward.5} parent=5 // pred_check_branch
        %160 = sbr.rel (%p157) target = $region12
      $region11: #{bottleneck1d_forward.5} parent=5 // pred_region
        %s161 = ssub.s32 %s11, 1
        // Predicated region
        $region13: #{bottleneck1d_forward.5} parent=11 // pred_check
          %p162 = pneg %p72
        $region14: #{bottleneck1d_forward.5} parent=11 // pred_check_branch
          %164 = sbr.rel (%p162) target = $region16
        $region15: #{bottleneck1d_forward.5} parent=11 // pred_region
          _
        $region16: #{bottleneck1d_forward.5} parent=11 // pred_fallthru
          _
        // Predicated region
        $region17: #{bottleneck1d_forward.5} parent=11 // pred_check
          %p165 = pneg %p93
        $region18: #{bottleneck1d_forward.5} parent=11 // pred_check_branch
          %167 = sbr.rel (%p165) target = $region20
        $region19: #{bottleneck1d_forward.5} parent=11 // pred_region
          _
        $region20: #{bottleneck1d_forward.5} parent=11 // pred_fallthru
          _
      $region12: #{bottleneck1d_forward.5} parent=5 // pred_fallthru
        _
      %p168 = scmp.lt.s32.totalorder %s11, 4
      // Predicated region
      $region21: #{bottleneck1d_forward.5} parent=5 // pred_check
        %p169 = pneg %p168
      $region22: #{bottleneck1d_forward.5} parent=5 // pred_check_branch
        %171 = sbr.rel (%p169) target = $region24
      $region23: #{bottleneck1d_forward.5} parent=5 // pred_region
        // Predicated region
        $region25: #{bottleneck1d_forward.5} parent=23 // pred_check
          %p172 = pneg %p45
        $region26: #{bottleneck1d_forward.5} parent=23 // pred_check_branch
          %174 = sbr.rel (%p172) target = $region28
        $region27: #{bottleneck1d_forward.5} parent=23 // pred_region
          %s175 = sand.u32 %s35, 1
          %s176 = sand.u32 %s35, 1
          %s177 = smul.addr %s176, 64
          %s178 = scalar_lea.vmem [#allocation3], %s177
          %s179 = smul.u32 4, %s18
          %s180 = smul.u32 4, %s19
          %s181 = smul.addr %s179, 8
          %s182 = sadd.s32 %s180, %s181
          %s183 = smul.addr %s182, 4
          %s184 = scalar_lea.vmem %s0, %s183
          // Predicated region
          $region29: #{bottleneck1d_forward.5} parent=27 // pred_check
            _
          $region30: #{bottleneck1d_forward.5} parent=27 // pred_check_branch
            %186 = sbr.rel (0) target = $region32
          $region31: #{bottleneck1d_forward.5} parent=27 // pred_region
            // Predicated region
            $region33: #{bottleneck1d_forward.5} parent=31 // pred_check
              _
            $region34: #{bottleneck1d_forward.5} parent=31 // pred_check_branch
              %188 = sbr.rel target = $region36
            $region35: #{bottleneck1d_forward.5} parent=31 // pred_region
              // Predicated region
              $region48: #{bottleneck1d_forward.5} parent=35 // pred_check
                _
              $region49: #{bottleneck1d_forward.5} parent=35 // pred_check_branch
                %234 = sbr.rel (0) target = $region51
              $region50: #{bottleneck1d_forward.5} parent=35 // pred_region
                loop: start=0, step=1, limit=1
                $region52: #{bottleneck1d_forward.5} parent=50 // loop_pre_header
                  _
                $region53: #{bottleneck1d_forward.5} parent=50 // loop_header
                  %s236 = sphi 0, %s240
                  %p237 = scmp.ge.s32.totalorder %s236, 1
                  %s241 = sphi %s184, %s184
                  %s242 = sphi %s178, %s178
                $region54: #{bottleneck1d_forward.5} parent=50 // loop_header_branch
                  %239 = sbr.rel (%p237) target = $region58
                $region55: #{bottleneck1d_forward.5} parent=50 // loop_body
                  _
                $region56: #{bottleneck1d_forward.5} parent=50 // loop_footer
                  %s240 = sadd.s32 1, %s236
                $region57: #{bottleneck1d_forward.5} parent=50 // loop_footer_branch
                  %235 = sbr.rel target = $region53
                $region58: #{bottleneck1d_forward.5} parent=50 // loop_exit
                  _
                %s244 = ssub.s32 16, 1
                loop: start=0, step=1, limit=1
                $region59: #{bottleneck1d_forward.5} parent=50 // loop_pre_header
                  _
                $region60: #{bottleneck1d_forward.5} parent=50 // loop_header
                  %s246 = sphi 0, %s250
                  %p247 = scmp.ge.s32.totalorder %s246, 1
                  %s251 = sphi %s184, %s184
                  %s252 = sphi %s178, %s178
                $region61: #{bottleneck1d_forward.5} parent=50 // loop_header_branch
                  %249 = sbr.rel (%p247) target = $region65
                $region62: #{bottleneck1d_forward.5} parent=50 // loop_body
                  %v253 = vld [vmem:[%s251] sm:%s244]
                  %254 = vst [vmem:[%s252] sm:%s244] %v253
                  %v255 = vld [vmem:[%s251 + $0x4] sm:%s244]
                  %256 = vst [vmem:[%s252 + $0x4] sm:%s244] %v255
                  %v257 = vld [vmem:[%s251 + $0x8] sm:%s244]
                  %258 = vst [vmem:[%s252 + $0x8] sm:%s244] %v257
                  %v259 = vld [vmem:[%s251 + $0xc] sm:%s244]
                  %260 = vst [vmem:[%s252 + $0xc] sm:%s244] %v259
                  %v261 = vld [vmem:[%s251 + $0x20] sm:%s244]
                  %262 = vst [vmem:[%s252 + $0x10] sm:%s244] %v261
                  %v263 = vld [vmem:[%s251 + $0x24] sm:%s244]
                  %264 = vst [vmem:[%s252 + $0x14] sm:%s244] %v263
                  %v265 = vld [vmem:[%s251 + $0x28] sm:%s244]
                  %266 = vst [vmem:[%s252 + $0x18] sm:%s244] %v265
                  %v267 = vld [vmem:[%s251 + $0x2c] sm:%s244]
                  %268 = vst [vmem:[%s252 + $0x1c] sm:%s244] %v267
                  %v269 = vld [vmem:[%s251 + $0x40] sm:%s244]
                  %270 = vst [vmem:[%s252 + $0x20] sm:%s244] %v269
                  %v271 = vld [vmem:[%s251 + $0x44] sm:%s244]
                  %272 = vst [vmem:[%s252 + $0x24] sm:%s244] %v271
                  %v273 = vld [vmem:[%s251 + $0x48] sm:%s244]
                  %274 = vst [vmem:[%s252 + $0x28] sm:%s244] %v273
                  %v275 = vld [vmem:[%s251 + $0x4c] sm:%s244]
                  %276 = vst [vmem:[%s252 + $0x2c] sm:%s244] %v275
                  %v277 = vld [vmem:[%s251 + $0x60] sm:%s244]
                  %278 = vst [vmem:[%s252 + $0x30] sm:%s244] %v277
                  %v279 = vld [vmem:[%s251 + $0x64] sm:%s244]
                  %280 = vst [vmem:[%s252 + $0x34] sm:%s244] %v279
                  %v281 = vld [vmem:[%s251 + $0x68] sm:%s244]
                  %282 = vst [vmem:[%s252 + $0x38] sm:%s244] %v281
                  %v283 = vld [vmem:[%s251 + $0x6c] sm:%s244]
                  %284 = vst [vmem:[%s252 + $0x3c] sm:%s244] %v283
                $region63: #{bottleneck1d_forward.5} parent=50 // loop_footer
                  %s250 = sadd.s32 1, %s246
                $region64: #{bottleneck1d_forward.5} parent=50 // loop_footer_branch
                  %245 = sbr.rel target = $region60
                $region65: #{bottleneck1d_forward.5} parent=50 // loop_exit
                  _
              $region51: #{bottleneck1d_forward.5} parent=35 // pred_fallthru
                _
            $region36: #{bottleneck1d_forward.5} parent=31 // pred_fallthru
              _
            // Predicated region
            $region37: #{bottleneck1d_forward.5} parent=31 // pred_check
              _
            $region38: #{bottleneck1d_forward.5} parent=31 // pred_check_branch
              %190 = sbr.rel (0) target = $region40
            $region39: #{bottleneck1d_forward.5} parent=31 // pred_region
              %s192 = ssub.s32 16, 1
              loop: start=0, step=1, limit=1
              $region41: #{bottleneck1d_forward.5} parent=39 // loop_pre_header
                _
              $region42: #{bottleneck1d_forward.5} parent=39 // loop_header
                %s194 = sphi 0, %s198
                %p195 = scmp.ge.s32.totalorder %s194, 1
                %s199 = sphi %s184, %s184
                %s200 = sphi %s178, %s178
              $region43: #{bottleneck1d_forward.5} parent=39 // loop_header_branch
                %197 = sbr.rel (%p195) target = $region47
              $region44: #{bottleneck1d_forward.5} parent=39 // loop_body
                %v201 = vld [vmem:[%s199] sm:%s192]
                %202 = vst [vmem:[%s200] sm:%s192] %v201
                %v203 = vld [vmem:[%s199 + $0x4] sm:%s192]
                %204 = vst [vmem:[%s200 + $0x4] sm:%s192] %v203
                %v205 = vld [vmem:[%s199 + $0x8] sm:%s192]
                %206 = vst [vmem:[%s200 + $0x8] sm:%s192] %v205
                %v207 = vld [vmem:[%s199 + $0xc] sm:%s192]
                %208 = vst [vmem:[%s200 + $0xc] sm:%s192] %v207
                %v209 = vld [vmem:[%s199 + $0x20] sm:%s192]
                %210 = vst [vmem:[%s200 + $0x10] sm:%s192] %v209
                %v211 = vld [vmem:[%s199 + $0x24] sm:%s192]
                %212 = vst [vmem:[%s200 + $0x14] sm:%s192] %v211
                %v213 = vld [vmem:[%s199 + $0x28] sm:%s192]
                %214 = vst [vmem:[%s200 + $0x18] sm:%s192] %v213
                %v215 = vld [vmem:[%s199 + $0x2c] sm:%s192]
                %216 = vst [vmem:[%s200 + $0x1c] sm:%s192] %v215
                %v217 = vld [vmem:[%s199 + $0x40] sm:%s192]
                %218 = vst [vmem:[%s200 + $0x20] sm:%s192] %v217
                %v219 = vld [vmem:[%s199 + $0x44] sm:%s192]
                %220 = vst [vmem:[%s200 + $0x24] sm:%s192] %v219
                %v221 = vld [vmem:[%s199 + $0x48] sm:%s192]
                %222 = vst [vmem:[%s200 + $0x28] sm:%s192] %v221
                %v223 = vld [vmem:[%s199 + $0x4c] sm:%s192]
                %224 = vst [vmem:[%s200 + $0x2c] sm:%s192] %v223
                %v225 = vld [vmem:[%s199 + $0x60] sm:%s192]
                %226 = vst [vmem:[%s200 + $0x30] sm:%s192] %v225
                %v227 = vld [vmem:[%s199 + $0x64] sm:%s192]
                %228 = vst [vmem:[%s200 + $0x34] sm:%s192] %v227
                %v229 = vld [vmem:[%s199 + $0x68] sm:%s192]
                %230 = vst [vmem:[%s200 + $0x38] sm:%s192] %v229
                %v231 = vld [vmem:[%s199 + $0x6c] sm:%s192]
                %232 = vst [vmem:[%s200 + $0x3c] sm:%s192] %v231
              $region45: #{bottleneck1d_forward.5} parent=39 // loop_footer
                %s198 = sadd.s32 1, %s194
              $region46: #{bottleneck1d_forward.5} parent=39 // loop_footer_branch
                %193 = sbr.rel target = $region42
              $region47: #{bottleneck1d_forward.5} parent=39 // loop_exit
                _
            $region40: #{bottleneck1d_forward.5} parent=31 // pred_fallthru
              _
          $region32: #{bottleneck1d_forward.5} parent=27 // pred_fallthru
            _
          %285 = vnop
        $region28: #{bottleneck1d_forward.5} parent=23 // pred_fallthru
          _
      $region24: #{bottleneck1d_forward.5} parent=5 // pred_fallthru
        _
      %p286 = scmp.le.s32.totalorder 1, %s11
      %p287 = scmp.lt.s32.totalorder %s11, 5
      %p288 = pnand %p286, %p287
      %p289 = pneg %p288
      // Predicated region
      $region66: #{bottleneck1d_forward.5} parent=5 // pred_check
        _
      $region67: #{bottleneck1d_forward.5} parent=5 // pred_check_branch
        %291 = sbr.rel (%p288) target = $region69
      $region68: #{bottleneck1d_forward.5} parent=5 // pred_region
        %s292 = ssub.s32 %s11, 1
        %s293 = sand.u32 %s38, 1
        %s294 = sand.u32 %s38, 1
        %s295 = smul.addr %s294, 64
        %s296 = scalar_lea.vmem [#allocation3], %s295
        // Predicated region
        $region70: #{bottleneck1d_forward.5} parent=68 // pred_check
          %p297 = pneg %p51
        $region71: #{bottleneck1d_forward.5} parent=68 // pred_check_branch
          %299 = sbr.rel (%p297) target = $region73
        $region72: #{bottleneck1d_forward.5} parent=68 // pred_region
          _
        $region73: #{bottleneck1d_forward.5} parent=68 // pred_fallthru
          _
        %s300 = sand.u32 %s38, 1
        %s301 = sand.u32 %s38, 1
        %s302 = smul.addr %s301, 64
        %s303 = scalar_lea.vmem [#allocation3], %s302
        %p304 = pneg %p51
        %p305 = pneg %p48
        %p306 = pneg %p72
        %p307 = pneg %p69
        %p308 = pneg %p93
        %p309 = pneg %p90
        %p310 = pneg %p121
        %p311 = pneg %p118
        %s312 = sand.u32 %s108, 1
        %s313 = sand.u32 %s108, 1
        %s314 = smul.addr %s313, 32
        %s315 = scalar_lea.vmem [#allocation4], %s314
        %p316 = pneg %p147
        %p317 = pneg %p144
        %p318 = scmp.lt.s32.totalorder %s20, 1
        %s319 = scalar_select %p318, %s20, 1
        %s320 = smul.addr %s319, 2
        %s321 = scalar_lea.vmem %s4, %s320
        %s322 = smul.u32 4, %s20
        %s323 = smul.u32 4, %s21
        %s324 = smul.u32 4, %s20
        %s325 = smul.u32 2, %s21
        %p326 = scmp.lt.s32.totalorder %s20, 1
        %s327 = scalar_select %p326, %s20, 1
        %s328 = smul.addr %s327, 2
        %s329 = scalar_lea.vmem %s4, %s328
        %p331 = scmp.eq.s32.totalorder %s21, 0
        // Predicated region
        $region74: #{bottleneck1d_forward.5} parent=68 // pred_check
          %p332 = pneg %p331
        $region75: #{bottleneck1d_forward.5} parent=68 // pred_check_branch
          %334 = sbr.rel (%p332) target = $region77
        $region76: #{bottleneck1d_forward.5} parent=68 // pred_region
          %335 = vst [vmem:[%s329] sm:$0x3] 0.0
          %336 = vst [vmem:[#allocation2] sm:$0x1] 0.0
          %337 = vst [vmem:[#allocation2 + $0x1] sm:$0x1] 0.0
          %338 = vst [vmem:[#allocation2 + $0x2] sm:$0x1] 0.0
          %339 = vst [vmem:[#allocation2 + $0x3] sm:$0x1] 0.0
        $region77: #{bottleneck1d_forward.5} parent=68 // pred_fallthru
          _
        %v340 = vld [vmem:[%s2] sm:$0x3]
        %v341 = vld [vmem:[%s296] sm:$0xf]
        %v342 = vld [vmem:[%s296 + $0x4] sm:$0xf]
        %v343 = vld [vmem:[%s296 + $0x8] sm:$0xf]
        %v344 = vld [vmem:[%s296 + $0xc] sm:$0xf]
        %v345 = vld [vmem:[%s296 + $0x10] sm:$0xf]
        %v346 = vld [vmem:[%s296 + $0x14] sm:$0xf]
        %v347 = vld [vmem:[%s296 + $0x18] sm:$0xf]
        %v348 = vld [vmem:[%s296 + $0x1c] sm:$0xf]
        %v349 = vld [vmem:[%s296 + $0x20] sm:$0xf]
        %v350 = vld [vmem:[%s296 + $0x24] sm:$0xf]
        %v351 = vld [vmem:[%s296 + $0x28] sm:$0xf]
        %v352 = vld [vmem:[%s296 + $0x2c] sm:$0xf]
        %v353 = vld [vmem:[%s296 + $0x30] sm:$0xf]
        %v354 = vld [vmem:[%s296 + $0x34] sm:$0xf]
        %v355 = vld [vmem:[%s296 + $0x38] sm:$0xf]
        %v356 = vld [vmem:[%s296 + $0x3c] sm:$0xf]
        %v357 = vunpack.c.l.bf16 %v341
        %v358 = vunpack.c.l.bf16 %v342
        %v359 = vunpack.c.l.bf16 %v343
        %v360 = vunpack.c.l.bf16 %v344
        %v361 = vunpack.c.l.bf16 %v345
        %v362 = vunpack.c.l.bf16 %v346
        %v363 = vunpack.c.l.bf16 %v347
        %v364 = vunpack.c.l.bf16 %v348
        %v365 = vunpack.c.l.bf16 %v349
        %v366 = vunpack.c.l.bf16 %v350
        %v367 = vunpack.c.l.bf16 %v351
        %v368 = vunpack.c.l.bf16 %v352
        %v369 = vunpack.c.l.bf16 %v353
        %v370 = vunpack.c.l.bf16 %v354
        %v371 = vunpack.c.l.bf16 %v355
        %v372 = vunpack.c.l.bf16 %v356
        %v373 = vlaneseq
        %v374 = vshrl.u32 %v373, 7
        %v375 = vsub.s32 0, %v374
        %v376 = vrot.slane %v340, %v375
        %v377 = vmul.f32 %v357, %v376
        %v378 = vmul.f32 %v358, %v376
        %v379 = vmul.f32 %v359, %v376
        %v380 = vmul.f32 %v360, %v376
        %v381 = vmul.f32 %v361, %v376
        %v382 = vmul.f32 %v362, %v376
        %v383 = vmul.f32 %v363, %v376
        %v384 = vmul.f32 %v364, %v376
        %v385 = vmul.f32 %v365, %v376
        %v386 = vmul.f32 %v366, %v376
        %v387 = vmul.f32 %v367, %v376
        %v388 = vmul.f32 %v368, %v376
        %v389 = vmul.f32 %v369, %v376
        %v390 = vmul.f32 %v370, %v376
        %v391 = vmul.f32 %v371, %v376
        %v392 = vmul.f32 %v372, %v376
        %v393 = vlaneseq
        %v394 = vshrl.u32 %v393, 7
        %v395 = vsub.s32 1, %v394
        %v396 = vrot.slane %v340, %v395
        %v397 = vadd.f32 %v377, %v396
        %v398 = vadd.f32 %v378, %v396
        %v399 = vadd.f32 %v379, %v396
        %v400 = vadd.f32 %v380, %v396
        %v401 = vadd.f32 %v381, %v396
        %v402 = vadd.f32 %v382, %v396
        %v403 = vadd.f32 %v383, %v396
        %v404 = vadd.f32 %v384, %v396
        %v405 = vadd.f32 %v385, %v396
        %v406 = vadd.f32 %v386, %v396
        %v407 = vadd.f32 %v387, %v396
        %v408 = vadd.f32 %v388, %v396
        %v409 = vadd.f32 %v389, %v396
        %v410 = vadd.f32 %v390, %v396
        %v411 = vadd.f32 %v391, %v396
        %v412 = vadd.f32 %v392, %v396
        %v413 = vmax.f32 %v397, 0.0
        %v414 = vmax.f32 %v398, 0.0
        %v415 = vmax.f32 %v399, 0.0
        %v416 = vmax.f32 %v400, 0.0
        %v417 = vmax.f32 %v401, 0.0
        %v418 = vmax.f32 %v402, 0.0
        %v419 = vmax.f32 %v403, 0.0
        %v420 = vmax.f32 %v404, 0.0
        %v421 = vmax.f32 %v405, 0.0
        %v422 = vmax.f32 %v406, 0.0
        %v423 = vmax.f32 %v407, 0.0
        %v424 = vmax.f32 %v408, 0.0
        %v425 = vmax.f32 %v409, 0.0
        %v426 = vmax.f32 %v410, 0.0
        %v427 = vmax.f32 %v411, 0.0
        %v428 = vmax.f32 %v412, 0.0
        %v429 = vld [vmem:[#allocation2] sm:$0x1]
        %v430 = vld [vmem:[#allocation2 + $0x1] sm:$0x1]
        %v431 = vld [vmem:[#allocation2 + $0x2] sm:$0x1]
        %v432 = vld [vmem:[#allocation2 + $0x3] sm:$0x1]
        %v449 = vcombine.high %v413, %v413
        %v451 = vunpack.c.l.s4 1983009808
        %v452 = vunpack.c.0.s8 %v451
        %v453 = vlaneseq
        %v454 = vshrl.u32 %v453, 7
        %v455 = vsub.s32 %v452, %v454
        %v456 = vrot.slane %v413, %v455
        %v458 = vunpack.c.l.s4 1983009808
        %v459 = vunpack.c.0.s8 %v458
        %v460 = vlaneseq
        %v461 = vshrl.u32 %v460, 7
        %v462 = vsub.s32 %v459, %v461
        %v463 = vrot.slane %v449, %v462
        %v464 = vcombine.high %v456, %v456
        %v465 = vcombine.high %v463, %v463
        %v466 = vcombine.high %v414, %v414
        %v468 = vunpack.c.l.s4 1983009808
        %v469 = vunpack.c.0.s8 %v468
        %v470 = vlaneseq
        %v471 = vshrl.u32 %v470, 7
        %v472 = vsub.s32 %v469, %v471
        %v473 = vrot.slane %v414, %v472
        %v475 = vunpack.c.l.s4 1983009808
        %v476 = vunpack.c.0.s8 %v475
        %v477 = vlaneseq
        %v478 = vshrl.u32 %v477, 7
        %v479 = vsub.s32 %v476, %v478
        %v480 = vrot.slane %v466, %v479
        %v481 = vcombine.high %v473, %v473
        %v482 = vcombine.high %v480, %v480
        %v483 = vcombine.high %v415, %v415
        %v485 = vunpack.c.l.s4 1983009808
        %v486 = vunpack.c.0.s8 %v485
        %v487 = vlaneseq
        %v488 = vshrl.u32 %v487, 7
        %v489 = vsub.s32 %v486, %v488
        %v490 = vrot.slane %v415, %v489
        %v492 = vunpack.c.l.s4 1983009808
        %v493 = vunpack.c.0.s8 %v492
        %v494 = vlaneseq
        %v495 = vshrl.u32 %v494, 7
        %v496 = vsub.s32 %v493, %v495
        %v497 = vrot.slane %v483, %v496
        %v498 = vcombine.high %v490, %v490
        %v499 = vcombine.high %v497, %v497
        %v500 = vcombine.high %v416, %v416
        %v502 = vunpack.c.l.s4 1983009808
        %v503 = vunpack.c.0.s8 %v502
        %v504 = vlaneseq
        %v505 = vshrl.u32 %v504, 7
        %v506 = vsub.s32 %v503, %v505
        %v507 = vrot.slane %v416, %v506
        %v509 = vunpack.c.l.s4 1983009808
        %v510 = vunpack.c.0.s8 %v509
        %v511 = vlaneseq
        %v512 = vshrl.u32 %v511, 7
        %v513 = vsub.s32 %v510, %v512
        %v514 = vrot.slane %v500, %v513
        %v515 = vcombine.high %v507, %v507
        %v516 = vcombine.high %v514, %v514
        %v517 = vcombine.high %v417, %v417
        %v519 = vunpack.c.l.s4 1983009808
        %v520 = vunpack.c.0.s8 %v519
        %v521 = vlaneseq
        %v522 = vshrl.u32 %v521, 7
        %v523 = vsub.s32 %v520, %v522
        %v524 = vrot.slane %v417, %v523
        %v526 = vunpack.c.l.s4 1983009808
        %v527 = vunpack.c.0.s8 %v526
        %v528 = vlaneseq
        %v529 = vshrl.u32 %v528, 7
        %v530 = vsub.s32 %v527, %v529
        %v531 = vrot.slane %v517, %v530
        %v532 = vcombine.high %v524, %v524
        %v533 = vcombine.high %v531, %v531
        %v534 = vcombine.high %v418, %v418
        %v536 = vunpack.c.l.s4 1983009808
        %v537 = vunpack.c.0.s8 %v536
        %v538 = vlaneseq
        %v539 = vshrl.u32 %v538, 7
        %v540 = vsub.s32 %v537, %v539
        %v541 = vrot.slane %v418, %v540
        %v543 = vunpack.c.l.s4 1983009808
        %v544 = vunpack.c.0.s8 %v543
        %v545 = vlaneseq
        %v546 = vshrl.u32 %v545, 7
        %v547 = vsub.s32 %v544, %v546
        %v548 = vrot.slane %v534, %v547
        %v549 = vcombine.high %v541, %v541
        %v550 = vcombine.high %v548, %v548
        %v551 = vcombine.high %v419, %v419
        %v553 = vunpack.c.l.s4 1983009808
        %v554 = vunpack.c.0.s8 %v553
        %v555 = vlaneseq
        %v556 = vshrl.u32 %v555, 7
        %v557 = vsub.s32 %v554, %v556
        %v558 = vrot.slane %v419, %v557
        %v560 = vunpack.c.l.s4 1983009808
        %v561 = vunpack.c.0.s8 %v560
        %v562 = vlaneseq
        %v563 = vshrl.u32 %v562, 7
        %v564 = vsub.s32 %v561, %v563
        %v565 = vrot.slane %v551, %v564
        %v566 = vcombine.high %v558, %v558
        %v567 = vcombine.high %v565, %v565
        %v568 = vcombine.high %v420, %v420
        %v570 = vunpack.c.l.s4 1983009808
        %v571 = vunpack.c.0.s8 %v570
        %v572 = vlaneseq
        %v573 = vshrl.u32 %v572, 7
        %v574 = vsub.s32 %v571, %v573
        %v575 = vrot.slane %v420, %v574
        %v577 = vunpack.c.l.s4 1983009808
        %v578 = vunpack.c.0.s8 %v577
        %v579 = vlaneseq
        %v580 = vshrl.u32 %v579, 7
        %v581 = vsub.s32 %v578, %v580
        %v582 = vrot.slane %v568, %v581
        %v583 = vcombine.high %v575, %v575
        %v584 = vcombine.high %v582, %v582
        %v585 = vcombine.high %v421, %v421
        %v587 = vunpack.c.l.s4 1983009808
        %v588 = vunpack.c.0.s8 %v587
        %v589 = vlaneseq
        %v590 = vshrl.u32 %v589, 7
        %v591 = vsub.s32 %v588, %v590
        %v592 = vrot.slane %v421, %v591
        %v594 = vunpack.c.l.s4 1983009808
        %v595 = vunpack.c.0.s8 %v594
        %v596 = vlaneseq
        %v597 = vshrl.u32 %v596, 7
        %v598 = vsub.s32 %v595, %v597
        %v599 = vrot.slane %v585, %v598
        %v600 = vcombine.high %v592, %v592
        %v601 = vcombine.high %v599, %v599
        %v602 = vcombine.high %v422, %v422
        %v604 = vunpack.c.l.s4 1983009808
        %v605 = vunpack.c.0.s8 %v604
        %v606 = vlaneseq
        %v607 = vshrl.u32 %v606, 7
        %v608 = vsub.s32 %v605, %v607
        %v609 = vrot.slane %v422, %v608
        %v611 = vunpack.c.l.s4 1983009808
        %v612 = vunpack.c.0.s8 %v611
        %v613 = vlaneseq
        %v614 = vshrl.u32 %v613, 7
        %v615 = vsub.s32 %v612, %v614
        %v616 = vrot.slane %v602, %v615
        %v617 = vcombine.high %v609, %v609
        %v618 = vcombine.high %v616, %v616
        %v619 = vcombine.high %v423, %v423
        %v621 = vunpack.c.l.s4 1983009808
        %v622 = vunpack.c.0.s8 %v621
        %v623 = vlaneseq
        %v624 = vshrl.u32 %v623, 7
        %v625 = vsub.s32 %v622, %v624
        %v626 = vrot.slane %v423, %v625
        %v628 = vunpack.c.l.s4 1983009808
        %v629 = vunpack.c.0.s8 %v628
        %v630 = vlaneseq
        %v631 = vshrl.u32 %v630, 7
        %v632 = vsub.s32 %v629, %v631
        %v633 = vrot.slane %v619, %v632
        %v634 = vcombine.high %v626, %v626
        %v635 = vcombine.high %v633, %v633
        %v636 = vcombine.high %v424, %v424
        %v638 = vunpack.c.l.s4 1983009808
        %v639 = vunpack.c.0.s8 %v638
        %v640 = vlaneseq
        %v641 = vshrl.u32 %v640, 7
        %v642 = vsub.s32 %v639, %v641
        %v643 = vrot.slane %v424, %v642
        %v645 = vunpack.c.l.s4 1983009808
        %v646 = vunpack.c.0.s8 %v645
        %v647 = vlaneseq
        %v648 = vshrl.u32 %v647, 7
        %v649 = vsub.s32 %v646, %v648
        %v650 = vrot.slane %v636, %v649
        %v651 = vcombine.high %v643, %v643
        %v652 = vcombine.high %v650, %v650
        %v653 = vcombine.high %v425, %v425
        %v655 = vunpack.c.l.s4 1983009808
        %v656 = vunpack.c.0.s8 %v655
        %v657 = vlaneseq
        %v658 = vshrl.u32 %v657, 7
        %v659 = vsub.s32 %v656, %v658
        %v660 = vrot.slane %v425, %v659
        %v662 = vunpack.c.l.s4 1983009808
        %v663 = vunpack.c.0.s8 %v662
        %v664 = vlaneseq
        %v665 = vshrl.u32 %v664, 7
        %v666 = vsub.s32 %v663, %v665
        %v667 = vrot.slane %v653, %v666
        %v668 = vcombine.high %v660, %v660
        %v669 = vcombine.high %v667, %v667
        %v670 = vcombine.high %v426, %v426
        %v672 = vunpack.c.l.s4 1983009808
        %v673 = vunpack.c.0.s8 %v672
        %v674 = vlaneseq
        %v675 = vshrl.u32 %v674, 7
        %v676 = vsub.s32 %v673, %v675
        %v677 = vrot.slane %v426, %v676
        %v679 = vunpack.c.l.s4 1983009808
        %v680 = vunpack.c.0.s8 %v679
        %v681 = vlaneseq
        %v682 = vshrl.u32 %v681, 7
        %v683 = vsub.s32 %v680, %v682
        %v684 = vrot.slane %v670, %v683
        %v685 = vcombine.high %v677, %v677
        %v686 = vcombine.high %v684, %v684
        %v687 = vcombine.high %v427, %v427
        %v689 = vunpack.c.l.s4 1983009808
        %v690 = vunpack.c.0.s8 %v689
        %v691 = vlaneseq
        %v692 = vshrl.u32 %v691, 7
        %v693 = vsub.s32 %v690, %v692
        %v694 = vrot.slane %v427, %v693
        %v696 = vunpack.c.l.s4 1983009808
        %v697 = vunpack.c.0.s8 %v696
        %v698 = vlaneseq
        %v699 = vshrl.u32 %v698, 7
        %v700 = vsub.s32 %v697, %v699
        %v701 = vrot.slane %v687, %v700
        %v702 = vcombine.high %v694, %v694
        %v703 = vcombine.high %v701, %v701
        %v704 = vcombine.high %v428, %v428
        %v706 = vunpack.c.l.s4 1983009808
        %v707 = vunpack.c.0.s8 %v706
        %v708 = vlaneseq
        %v709 = vshrl.u32 %v708, 7
        %v710 = vsub.s32 %v707, %v709
        %v711 = vrot.slane %v428, %v710
        %v713 = vunpack.c.l.s4 1983009808
        %v714 = vunpack.c.0.s8 %v713
        %v715 = vlaneseq
        %v716 = vshrl.u32 %v715, 7
        %v717 = vsub.s32 %v714, %v716
        %v718 = vrot.slane %v704, %v717
        %v719 = vcombine.high %v711, %v711
        %v720 = vcombine.high %v718, %v718
        %v785 = vlaneseq
        %v786 = vshrl.u32 %v785, 7
        %v787 = vsub.s32 1, %v786
        %v788 = vrot.slane %v456, %v787
        %v789 = vlaneseq
        %v790 = vshrl.u32 %v789, 7
        %v791 = vsub.s32 1, %v790
        %v792 = vrot.slane %v464, %v791
        %v793 = vlaneseq
        %v794 = vshrl.u32 %v793, 7
        %v795 = vsub.s32 1, %v794
        %v796 = vrot.slane %v463, %v795
        %v797 = vlaneseq
        %v798 = vshrl.u32 %v797, 7
        %v799 = vsub.s32 1, %v798
        %v800 = vrot.slane %v465, %v799
        %v801 = vlaneseq
        %v802 = vshrl.u32 %v801, 7
        %v803 = vsub.s32 1, %v802
        %v804 = vrot.slane %v473, %v803
        %v805 = vlaneseq
        %v806 = vshrl.u32 %v805, 7
        %v807 = vsub.s32 1, %v806
        %v808 = vrot.slane %v481, %v807
        %v809 = vlaneseq
        %v810 = vshrl.u32 %v809, 7
        %v811 = vsub.s32 1, %v810
        %v812 = vrot.slane %v480, %v811
        %v813 = vlaneseq
        %v814 = vshrl.u32 %v813, 7
        %v815 = vsub.s32 1, %v814
        %v816 = vrot.slane %v482, %v815
        %v817 = vlaneseq
        %v818 = vshrl.u32 %v817, 7
        %v819 = vsub.s32 1, %v818
        %v820 = vrot.slane %v490, %v819
        %v821 = vlaneseq
        %v822 = vshrl.u32 %v821, 7
        %v823 = vsub.s32 1, %v822
        %v824 = vrot.slane %v498, %v823
        %v825 = vlaneseq
        %v826 = vshrl.u32 %v825, 7
        %v827 = vsub.s32 1, %v826
        %v828 = vrot.slane %v497, %v827
        %v829 = vlaneseq
        %v830 = vshrl.u32 %v829, 7
        %v831 = vsub.s32 1, %v830
        %v832 = vrot.slane %v499, %v831
        %v833 = vlaneseq
        %v834 = vshrl.u32 %v833, 7
        %v835 = vsub.s32 1, %v834
        %v836 = vrot.slane %v507, %v835
        %v837 = vlaneseq
        %v838 = vshrl.u32 %v837, 7
        %v839 = vsub.s32 1, %v838
        %v840 = vrot.slane %v515, %v839
        %v841 = vlaneseq
        %v842 = vshrl.u32 %v841, 7
        %v843 = vsub.s32 1, %v842
        %v844 = vrot.slane %v514, %v843
        %v845 = vlaneseq
        %v846 = vshrl.u32 %v845, 7
        %v847 = vsub.s32 1, %v846
        %v848 = vrot.slane %v524, %v847
        %v849 = vlaneseq
        %v850 = vshrl.u32 %v849, 7
        %v851 = vsub.s32 1, %v850
        %v852 = vrot.slane %v532, %v851
        %v853 = vlaneseq
        %v854 = vshrl.u32 %v853, 7
        %v855 = vsub.s32 1, %v854
        %v856 = vrot.slane %v531, %v855
        %v857 = vlaneseq
        %v858 = vshrl.u32 %v857, 7
        %v859 = vsub.s32 1, %v858
        %v860 = vrot.slane %v533, %v859
        %v861 = vlaneseq
        %v862 = vshrl.u32 %v861, 7
        %v863 = vsub.s32 1, %v862
        %v864 = vrot.slane %v541, %v863
        %v865 = vlaneseq
        %v866 = vshrl.u32 %v865, 7
        %v867 = vsub.s32 1, %v866
        %v868 = vrot.slane %v549, %v867
        %v869 = vlaneseq
        %v870 = vshrl.u32 %v869, 7
        %v871 = vsub.s32 1, %v870
        %v872 = vrot.slane %v548, %v871
        %v873 = vlaneseq
        %v874 = vshrl.u32 %v873, 7
        %v875 = vsub.s32 1, %v874
        %v876 = vrot.slane %v550, %v875
        %v877 = vlaneseq
        %v878 = vshrl.u32 %v877, 7
        %v879 = vsub.s32 1, %v878
        %v880 = vrot.slane %v558, %v879
        %v881 = vlaneseq
        %v882 = vshrl.u32 %v881, 7
        %v883 = vsub.s32 1, %v882
        %v884 = vrot.slane %v566, %v883
        %v885 = vlaneseq
        %v886 = vshrl.u32 %v885, 7
        %v887 = vsub.s32 1, %v886
        %v888 = vrot.slane %v565, %v887
        %v889 = vlaneseq
        %v890 = vshrl.u32 %v889, 7
        %v891 = vsub.s32 1, %v890
        %v892 = vrot.slane %v567, %v891
        %v893 = vlaneseq
        %v894 = vshrl.u32 %v893, 7
        %v895 = vsub.s32 1, %v894
        %v896 = vrot.slane %v575, %v895
        %v897 = vlaneseq
        %v898 = vshrl.u32 %v897, 7
        %v899 = vsub.s32 1, %v898
        %v900 = vrot.slane %v583, %v899
        %v901 = vlaneseq
        %v902 = vshrl.u32 %v901, 7
        %v903 = vsub.s32 1, %v902
        %v904 = vrot.slane %v582, %v903
        %v905 = vlaneseq
        %v906 = vshrl.u32 %v905, 7
        %v907 = vsub.s32 1, %v906
        %v908 = vrot.slane %v592, %v907
        %v909 = vlaneseq
        %v910 = vshrl.u32 %v909, 7
        %v911 = vsub.s32 1, %v910
        %v912 = vrot.slane %v600, %v911
        %v913 = vlaneseq
        %v914 = vshrl.u32 %v913, 7
        %v915 = vsub.s32 1, %v914
        %v916 = vrot.slane %v599, %v915
        %v917 = vlaneseq
        %v918 = vshrl.u32 %v917, 7
        %v919 = vsub.s32 1, %v918
        %v920 = vrot.slane %v601, %v919
        %v921 = vlaneseq
        %v922 = vshrl.u32 %v921, 7
        %v923 = vsub.s32 1, %v922
        %v924 = vrot.slane %v609, %v923
        %v925 = vlaneseq
        %v926 = vshrl.u32 %v925, 7
        %v927 = vsub.s32 1, %v926
        %v928 = vrot.slane %v617, %v927
        %v929 = vlaneseq
        %v930 = vshrl.u32 %v929, 7
        %v931 = vsub.s32 1, %v930
        %v932 = vrot.slane %v616, %v931
        %v933 = vlaneseq
        %v934 = vshrl.u32 %v933, 7
        %v935 = vsub.s32 1, %v934
        %v936 = vrot.slane %v618, %v935
        %v937 = vlaneseq
        %v938 = vshrl.u32 %v937, 7
        %v939 = vsub.s32 1, %v938
        %v940 = vrot.slane %v626, %v939
        %v941 = vlaneseq
        %v942 = vshrl.u32 %v941, 7
        %v943 = vsub.s32 1, %v942
        %v944 = vrot.slane %v634, %v943
        %v945 = vlaneseq
        %v946 = vshrl.u32 %v945, 7
        %v947 = vsub.s32 1, %v946
        %v948 = vrot.slane %v633, %v947
        %v949 = vlaneseq
        %v950 = vshrl.u32 %v949, 7
        %v951 = vsub.s32 1, %v950
        %v952 = vrot.slane %v635, %v951
        %v953 = vlaneseq
        %v954 = vshrl.u32 %v953, 7
        %v955 = vsub.s32 1, %v954
        %v956 = vrot.slane %v643, %v955
        %v957 = vlaneseq
        %v958 = vshrl.u32 %v957, 7
        %v959 = vsub.s32 1, %v958
        %v960 = vrot.slane %v651, %v959
        %v961 = vlaneseq
        %v962 = vshrl.u32 %v961, 7
        %v963 = vsub.s32 1, %v962
        %v964 = vrot.slane %v650, %v963
        %v965 = vlaneseq
        %v966 = vshrl.u32 %v965, 7
        %v967 = vsub.s32 1, %v966
        %v968 = vrot.slane %v660, %v967
        %v969 = vlaneseq
        %v970 = vshrl.u32 %v969, 7
        %v971 = vsub.s32 1, %v970
        %v972 = vrot.slane %v668, %v971
        %v973 = vlaneseq
        %v974 = vshrl.u32 %v973, 7
        %v975 = vsub.s32 1, %v974
        %v976 = vrot.slane %v667, %v975
        %v977 = vlaneseq
        %v978 = vshrl.u32 %v977, 7
        %v979 = vsub.s32 1, %v978
        %v980 = vrot.slane %v669, %v979
        %v981 = vlaneseq
        %v982 = vshrl.u32 %v981, 7
        %v983 = vsub.s32 1, %v982
        %v984 = vrot.slane %v677, %v983
        %v985 = vlaneseq
        %v986 = vshrl.u32 %v985, 7
        %v987 = vsub.s32 1, %v986
        %v988 = vrot.slane %v685, %v987
        %v989 = vlaneseq
        %v990 = vshrl.u32 %v989, 7
        %v991 = vsub.s32 1, %v990
        %v992 = vrot.slane %v684, %v991
        %v993 = vlaneseq
        %v994 = vshrl.u32 %v993, 7
        %v995 = vsub.s32 1, %v994
        %v996 = vrot.slane %v686, %v995
        %v997 = vlaneseq
        %v998 = vshrl.u32 %v997, 7
        %v999 = vsub.s32 1, %v998
        %v1000 = vrot.slane %v694, %v999
        %v1001 = vlaneseq
        %v1002 = vshrl.u32 %v1001, 7
        %v1003 = vsub.s32 1, %v1002
        %v1004 = vrot.slane %v702, %v1003
        %v1005 = vlaneseq
        %v1006 = vshrl.u32 %v1005, 7
        %v1007 = vsub.s32 1, %v1006
        %v1008 = vrot.slane %v701, %v1007
        %v1009 = vlaneseq
        %v1010 = vshrl.u32 %v1009, 7
        %v1011 = vsub.s32 1, %v1010
        %v1012 = vrot.slane %v703, %v1011
        %v1013 = vlaneseq
        %v1014 = vshrl.u32 %v1013, 7
        %v1015 = vsub.s32 1, %v1014
        %v1016 = vrot.slane %v711, %v1015
        %v1017 = vlaneseq
        %v1018 = vshrl.u32 %v1017, 7
        %v1019 = vsub.s32 1, %v1018
        %v1020 = vrot.slane %v719, %v1019
        %v1021 = vlaneseq
        %v1022 = vshrl.u32 %v1021, 7
        %v1023 = vsub.s32 1, %v1022
        %v1024 = vrot.slane %v718, %v1023
        %vm1025 = vcmask 1042434
        %v1026 = vsel %vm1025, %v792, %v788
        %vm1027 = vcmask 1043459
        %v1028 = vsel %vm1027, %v796, %v1026
        %vm1029 = vcmask 1044484
        %v1030 = vsel %vm1029, %v800, %v1028
        %vm1031 = vcmask 1045509
        %v1032 = vsel %vm1031, %v804, %v1030
        %vm1033 = vcmask 1046534
        %v1034 = vsel %vm1033, %v808, %v1032
        %vm1035 = vcmask 1047559
        %v1036 = vsel %vm1035, %v812, %v1034
        %vm1037 = vcmask 1041409
        %v1038 = vsel %vm1037, %v820, %v816
        %v1039 = vsel %vm1025, %v824, %v1038
        %v1040 = vsel %vm1027, %v828, %v1039
        %v1041 = vsel %vm1029, %v832, %v1040
        %v1042 = vsel %vm1031, %v836, %v1041
        %v1043 = vsel %vm1033, %v840, %v1042
        %v1044 = vsel %vm1035, %v844, %v1043
        %v1045 = vsel %vm1025, %v852, %v848
        %v1046 = vsel %vm1027, %v856, %v1045
        %v1047 = vsel %vm1029, %v860, %v1046
        %v1048 = vsel %vm1031, %v864, %v1047
        %v1049 = vsel %vm1033, %v868, %v1048
        %v1050 = vsel %vm1035, %v872, %v1049
        %v1051 = vsel %vm1037, %v880, %v876
        %v1052 = vsel %vm1025, %v884, %v1051
        %v1053 = vsel %vm1027, %v888, %v1052
        %v1054 = vsel %vm1029, %v892, %v1053
        %v1055 = vsel %vm1031, %v896, %v1054
        %v1056 = vsel %vm1033, %v900, %v1055
        %v1057 = vsel %vm1035, %v904, %v1056
        %v1058 = vsel %vm1025, %v912, %v908
        %v1059 = vsel %vm1027, %v916, %v1058
        %v1060 = vsel %vm1029, %v920, %v1059
        %v1061 = vsel %vm1031, %v924, %v1060
        %v1062 = vsel %vm1033, %v928, %v1061
        %v1063 = vsel %vm1035, %v932, %v1062
        %v1064 = vsel %vm1037, %v940, %v936
        %v1065 = vsel %vm1025, %v944, %v1064
        %v1066 = vsel %vm1027, %v948, %v1065
        %v1067 = vsel %vm1029, %v952, %v1066
        %v1068 = vsel %vm1031, %v956, %v1067
        %v1069 = vsel %vm1033, %v960, %v1068
        %v1070 = vsel %vm1035, %v964, %v1069
        %v1071 = vsel %vm1025, %v972, %v968
        %v1072 = vsel %vm1027, %v976, %v1071
        %v1073 = vsel %vm1029, %v980, %v1072
        %v1074 = vsel %vm1031, %v984, %v1073
        %v1075 = vsel %vm1033, %v988, %v1074
        %v1076 = vsel %vm1035, %v992, %v1075
        %v1077 = vsel %vm1037, %v1000, %v996
        %v1078 = vsel %vm1025, %v1004, %v1077
        %v1079 = vsel %vm1027, %v1008, %v1078
        %v1080 = vsel %vm1029, %v1012, %v1079
        %v1081 = vsel %vm1031, %v1016, %v1080
        %v1082 = vsel %vm1033, %v1020, %v1081
        %v1083 = vsel %vm1035, %v1024, %v1082
        %vm1092 = vcmask 1040384
        %v1093 = vsel %vm1092, %v429, %v1036
        %v1094 = vsel %vm1092, %v430, %v1050
        %v1095 = vsel %vm1092, %v431, %v1063
        %v1096 = vsel %vm1092, %v432, %v1076
        %1097 = vst [vmem:[#allocation2 - $0x7] sm:$0x80] %v416
        %1098 = vst [vmem:[#allocation2 - $0x6] sm:$0x80] %v420
        %1099 = vst [vmem:[#allocation2 - $0x5] sm:$0x80] %v424
        %1100 = vst [vmem:[#allocation2 - $0x4] sm:$0x80] %v428
        %v1101 = vpack.c.bf16 %v1044, %v1093
        %v1102 = vpack.c.bf16 %v1057, %v1094
        %v1103 = vpack.c.bf16 %v1070, %v1095
        %v1104 = vpack.c.bf16 %v1083, %v1096
        %v1105 = vld [vmem:[%s1] sm:$0xf]
        %v1106 = vld [vmem:[%s1 + $0x4] sm:$0xf]
        %v1107 = vld [vmem:[%s1 + $0x8] sm:$0xf]
        %v1108 = vld [vmem:[%s1 + $0xc] sm:$0xf]
        %v1109 = vld [vmem:[%s1 + $0x10] sm:$0xf]
        %v1110 = vld [vmem:[%s1 + $0x14] sm:$0xf]
        %v1111 = vld [vmem:[%s1 + $0x18] sm:$0xf]
        %v1112 = vld [vmem:[%s1 + $0x1c] sm:$0xf]
        %v1113 = vld [vmem:[%s1 + $0x20] sm:$0xf]
        %v1114 = vld [vmem:[%s1 + $0x24] sm:$0xf]
        %v1115 = vld [vmem:[%s1 + $0x28] sm:$0xf]
        %v1116 = vld [vmem:[%s1 + $0x2c] sm:$0xf]
        %v1117 = vld [vmem:[%s1 + $0x30] sm:$0xf]
        %v1118 = vld [vmem:[%s1 + $0x34] sm:$0xf]
        %v1119 = vld [vmem:[%s1 + $0x38] sm:$0xf]
        %v1120 = vld [vmem:[%s1 + $0x3c] sm:$0xf]
        %v1121 = vpack.c.bf16 %v456, %v456
        %v1122 = vpack.c.bf16 %v464, %v464
        %v1123 = vpack.c.bf16 %v463, %v463
        %v1124 = vpack.c.bf16 %v465, %v465
        %v1125 = vpack.c.bf16 %v473, %v473
        %v1126 = vpack.c.bf16 %v481, %v481
        %v1127 = vpack.c.bf16 %v480, %v480
        %v1128 = vpack.c.bf16 %v482, %v482
        %v1129 = vpack.c.bf16 %v490, %v490
        %v1130 = vpack.c.bf16 %v498, %v498
        %v1131 = vpack.c.bf16 %v497, %v497
        %v1132 = vpack.c.bf16 %v499, %v499
        %v1133 = vpack.c.bf16 %v507, %v507
        %v1134 = vpack.c.bf16 %v515, %v515
        %v1135 = vpack.c.bf16 %v514, %v514
        %v1136 = vpack.c.bf16 %v516, %v516
        %v1137 = vpack.c.bf16 %v524, %v524
        %v1138 = vpack.c.bf16 %v532, %v532
        %v1139 = vpack.c.bf16 %v531, %v531
        %v1140 = vpack.c.bf16 %v533, %v533
        %v1141 = vpack.c.bf16 %v541, %v541
        %v1142 = vpack.c.bf16 %v549, %v549
        %v1143 = vpack.c.bf16 %v548, %v548
        %v1144 = vpack.c.bf16 %v550, %v550
        %v1145 = vpack.c.bf16 %v558, %v558
        %v1146 = vpack.c.bf16 %v566, %v566
        %v1147 = vpack.c.bf16 %v565, %v565
        %v1148 = vpack.c.bf16 %v567, %v567
        %v1149 = vpack.c.bf16 %v575, %v575
        %v1150 = vpack.c.bf16 %v583, %v583
        %v1151 = vpack.c.bf16 %v582, %v582
        %v1152 = vpack.c.bf16 %v584, %v584
        %v1153 = vpack.c.bf16 %v592, %v592
        %v1154 = vpack.c.bf16 %v600, %v600
        %v1155 = vpack.c.bf16 %v599, %v599
        %v1156 = vpack.c.bf16 %v601, %v601
        %v1157 = vpack.c.bf16 %v609, %v609
        %v1158 = vpack.c.bf16 %v617, %v617
        %v1159 = vpack.c.bf16 %v616, %v616
        %v1160 = vpack.c.bf16 %v618, %v618
        %v1161 = vpack.c.bf16 %v626, %v626
        %v1162 = vpack.c.bf16 %v634, %v634
        %v1163 = vpack.c.bf16 %v633, %v633
        %v1164 = vpack.c.bf16 %v635, %v635
        %v1165 = vpack.c.bf16 %v643, %v643
        %v1166 = vpack.c.bf16 %v651, %v651
        %v1167 = vpack.c.bf16 %v650, %v650
        %v1168 = vpack.c.bf16 %v652, %v652
        %v1169 = vpack.c.bf16 %v660, %v660
        %v1170 = vpack.c.bf16 %v668, %v668
        %v1171 = vpack.c.bf16 %v667, %v667
        %v1172 = vpack.c.bf16 %v669, %v669
        %v1173 = vpack.c.bf16 %v677, %v677
        %v1174 = vpack.c.bf16 %v685, %v685
        %v1175 = vpack.c.bf16 %v684, %v684
        %v1176 = vpack.c.bf16 %v686, %v686
        %v1177 = vpack.c.bf16 %v694, %v694
        %v1178 = vpack.c.bf16 %v702, %v702
        %v1179 = vpack.c.bf16 %v701, %v701
        %v1180 = vpack.c.bf16 %v703, %v703
        %v1181 = vpack.c.bf16 %v711, %v711
        %v1182 = vpack.c.bf16 %v719, %v719
        %v1183 = vpack.c.bf16 %v718, %v718
        %v1184 = vpack.c.bf16 %v720, %v720
        %s1185 = scalar_lea.vmem %s1, 64
        %v1186 = vld [vmem:[%s1185] sm:$0xf]
        %v1187 = vld [vmem:[%s1185 + $0x4] sm:$0xf]
        %v1188 = vld [vmem:[%s1185 + $0x8] sm:$0xf]
        %v1189 = vld [vmem:[%s1185 + $0xc] sm:$0xf]
        %v1190 = vld [vmem:[%s1185 + $0x10] sm:$0xf]
        %v1191 = vld [vmem:[%s1185 + $0x14] sm:$0xf]
        %v1192 = vld [vmem:[%s1185 + $0x18] sm:$0xf]
        %v1193 = vld [vmem:[%s1185 + $0x1c] sm:$0xf]
        %v1194 = vld [vmem:[%s1185 + $0x20] sm:$0xf]
        %v1195 = vld [vmem:[%s1185 + $0x24] sm:$0xf]
        %v1196 = vld [vmem:[%s1185 + $0x28] sm:$0xf]
        %v1197 = vld [vmem:[%s1185 + $0x2c] sm:$0xf]
        %v1198 = vld [vmem:[%s1185 + $0x30] sm:$0xf]
        %v1199 = vld [vmem:[%s1185 + $0x34] sm:$0xf]
        %v1200 = vld [vmem:[%s1185 + $0x38] sm:$0xf]
        %v1201 = vld [vmem:[%s1185 + $0x3c] sm:$0xf]
        %v1266 = vunpack.c.l.b16 %v1121
        %v1267 = vunpack.c.l.b16 %v1122
        %v1268 = vunpack.c.l.b16 %v1123
        %v1269 = vunpack.c.l.b16 %v1124
        %v1270 = vunpack.c.l.b16 %v1125
        %v1271 = vunpack.c.l.b16 %v1126
        %v1272 = vunpack.c.l.b16 %v1127
        %v1273 = vunpack.c.l.b16 %v1128
        %v1274 = vunpack.c.l.b16 %v1129
        %v1275 = vunpack.c.l.b16 %v1130
        %v1276 = vunpack.c.l.b16 %v1131
        %v1277 = vunpack.c.l.b16 %v1132
        %v1278 = vunpack.c.l.b16 %v1133
        %v1279 = vunpack.c.l.b16 %v1134
        %v1280 = vunpack.c.l.b16 %v1135
        %v1281 = vunpack.c.l.b16 %v1136
        %v1282 = vunpack.c.l.b16 %v1137
        %v1283 = vunpack.c.l.b16 %v1138
        %v1284 = vunpack.c.l.b16 %v1139
        %v1285 = vunpack.c.l.b16 %v1140
        %v1286 = vunpack.c.l.b16 %v1141
        %v1287 = vunpack.c.l.b16 %v1142
        %v1288 = vunpack.c.l.b16 %v1143
        %v1289 = vunpack.c.l.b16 %v1144
        %v1290 = vunpack.c.l.b16 %v1145
        %v1291 = vunpack.c.l.b16 %v1146
        %v1292 = vunpack.c.l.b16 %v1147
        %v1293 = vunpack.c.l.b16 %v1148
        %v1294 = vunpack.c.l.b16 %v1149
        %v1295 = vunpack.c.l.b16 %v1150
        %v1296 = vunpack.c.l.b16 %v1151
        %v1297 = vunpack.c.l.b16 %v1152
        %v1298 = vunpack.c.l.b16 %v1153
        %v1299 = vunpack.c.l.b16 %v1154
        %v1300 = vunpack.c.l.b16 %v1155
        %v1301 = vunpack.c.l.b16 %v1156
        %v1302 = vunpack.c.l.b16 %v1157
        %v1303 = vunpack.c.l.b16 %v1158
        %v1304 = vunpack.c.l.b16 %v1159
        %v1305 = vunpack.c.l.b16 %v1160
        %v1306 = vunpack.c.l.b16 %v1161
        %v1307 = vunpack.c.l.b16 %v1162
        %v1308 = vunpack.c.l.b16 %v1163
        %v1309 = vunpack.c.l.b16 %v1164
        %v1310 = vunpack.c.l.b16 %v1165
        %v1311 = vunpack.c.l.b16 %v1166
        %v1312 = vunpack.c.l.b16 %v1167
        %v1313 = vunpack.c.l.b16 %v1168
        %v1314 = vunpack.c.l.b16 %v1169
        %v1315 = vunpack.c.l.b16 %v1170
        %v1316 = vunpack.c.l.b16 %v1171
        %v1317 = vunpack.c.l.b16 %v1172
        %v1318 = vunpack.c.l.b16 %v1173
        %v1319 = vunpack.c.l.b16 %v1174
        %v1320 = vunpack.c.l.b16 %v1175
        %v1321 = vunpack.c.l.b16 %v1176
        %v1322 = vunpack.c.l.b16 %v1177
        %v1323 = vunpack.c.l.b16 %v1178
        %v1324 = vunpack.c.l.b16 %v1179
        %v1325 = vunpack.c.l.b16 %v1180
        %v1326 = vunpack.c.l.b16 %v1181
        %v1327 = vunpack.c.l.b16 %v1182
        %v1328 = vunpack.c.l.b16 %v1183
        %v1329 = vunpack.c.l.b16 %v1184
        %v1330 = vrot.slane %v1267, 7
        %v1331 = vsel %vm1037, %v1330, %v1266
        %v1332 = vrot.slane %v1268, 6
        %v1333 = vsel %vm1025, %v1332, %v1331
        %v1334 = vrot.slane %v1269, 5
        %v1335 = vsel %vm1027, %v1334, %v1333
        %v1336 = vrot.slane %v1270, 4
        %v1337 = vsel %vm1029, %v1336, %v1335
        %v1338 = vrot.slane %v1271, 3
        %v1339 = vsel %vm1031, %v1338, %v1337
        %v1340 = vrot.slane %v1272, 2
        %v1341 = vsel %vm1033, %v1340, %v1339
        %v1342 = vrot.slane %v1273, 1
        %v1343 = vsel %vm1035, %v1342, %v1341
        %v1344 = vrot.slane %v1275, 7
        %v1345 = vsel %vm1037, %v1344, %v1274
        %v1346 = vrot.slane %v1276, 6
        %v1347 = vsel %vm1025, %v1346, %v1345
        %v1348 = vrot.slane %v1277, 5
        %v1349 = vsel %vm1027, %v1348, %v1347
        %v1350 = vrot.slane %v1278, 4
        %v1351 = vsel %vm1029, %v1350, %v1349
        %v1352 = vrot.slane %v1279, 3
        %v1353 = vsel %vm1031, %v1352, %v1351
        %v1354 = vrot.slane %v1280, 2
        %v1355 = vsel %vm1033, %v1354, %v1353
        %v1356 = vrot.slane %v1281, 1
        %v1357 = vsel %vm1035, %v1356, %v1355
        %v1358 = vrot.slane %v1283, 7
        %v1359 = vsel %vm1037, %v1358, %v1282
        %v1360 = vrot.slane %v1284, 6
        %v1361 = vsel %vm1025, %v1360, %v1359
        %v1362 = vrot.slane %v1285, 5
        %v1363 = vsel %vm1027, %v1362, %v1361
        %v1364 = vrot.slane %v1286, 4
        %v1365 = vsel %vm1029, %v1364, %v1363
        %v1366 = vrot.slane %v1287, 3
        %v1367 = vsel %vm1031, %v1366, %v1365
        %v1368 = vrot.slane %v1288, 2
        %v1369 = vsel %vm1033, %v1368, %v1367
        %v1370 = vrot.slane %v1289, 1
        %v1371 = vsel %vm1035, %v1370, %v1369
        %v1372 = vrot.slane %v1291, 7
        %v1373 = vsel %vm1037, %v1372, %v1290
        %v1374 = vrot.slane %v1292, 6
        %v1375 = vsel %vm1025, %v1374, %v1373
        %v1376 = vrot.slane %v1293, 5
        %v1377 = vsel %vm1027, %v1376, %v1375
        %v1378 = vrot.slane %v1294, 4
        %v1379 = vsel %vm1029, %v1378, %v1377
        %v1380 = vrot.slane %v1295, 3
        %v1381 = vsel %vm1031, %v1380, %v1379
        %v1382 = vrot.slane %v1296, 2
        %v1383 = vsel %vm1033, %v1382, %v1381
        %v1384 = vrot.slane %v1297, 1
        %v1385 = vsel %vm1035, %v1384, %v1383
        %v1386 = vrot.slane %v1299, 7
        %v1387 = vsel %vm1037, %v1386, %v1298
        %v1388 = vrot.slane %v1300, 6
        %v1389 = vsel %vm1025, %v1388, %v1387
        %v1390 = vrot.slane %v1301, 5
        %v1391 = vsel %vm1027, %v1390, %v1389
        %v1392 = vrot.slane %v1302, 4
        %v1393 = vsel %vm1029, %v1392, %v1391
        %v1394 = vrot.slane %v1303, 3
        %v1395 = vsel %vm1031, %v1394, %v1393
        %v1396 = vrot.slane %v1304, 2
        %v1397 = vsel %vm1033, %v1396, %v1395
        %v1398 = vrot.slane %v1305, 1
        %v1399 = vsel %vm1035, %v1398, %v1397
        %v1400 = vrot.slane %v1307, 7
        %v1401 = vsel %vm1037, %v1400, %v1306
        %v1402 = vrot.slane %v1308, 6
        %v1403 = vsel %vm1025, %v1402, %v1401
        %v1404 = vrot.slane %v1309, 5
        %v1405 = vsel %vm1027, %v1404, %v1403
        %v1406 = vrot.slane %v1310, 4
        %v1407 = vsel %vm1029, %v1406, %v1405
        %v1408 = vrot.slane %v1311, 3
        %v1409 = vsel %vm1031, %v1408, %v1407
        %v1410 = vrot.slane %v1312, 2
        %v1411 = vsel %vm1033, %v1410, %v1409
        %v1412 = vrot.slane %v1313, 1
        %v1413 = vsel %vm1035, %v1412, %v1411
        %v1414 = vrot.slane %v1315, 7
        %v1415 = vsel %vm1037, %v1414, %v1314
        %v1416 = vrot.slane %v1316, 6
        %v1417 = vsel %vm1025, %v1416, %v1415
        %v1418 = vrot.slane %v1317, 5
        %v1419 = vsel %vm1027, %v1418, %v1417
        %v1420 = vrot.slane %v1318, 4
        %v1421 = vsel %vm1029, %v1420, %v1419
        %v1422 = vrot.slane %v1319, 3
        %v1423 = vsel %vm1031, %v1422, %v1421
        %v1424 = vrot.slane %v1320, 2
        %v1425 = vsel %vm1033, %v1424, %v1423
        %v1426 = vrot.slane %v1321, 1
        %v1427 = vsel %vm1035, %v1426, %v1425
        %v1428 = vrot.slane %v1323, 7
        %v1429 = vsel %vm1037, %v1428, %v1322
        %v1430 = vrot.slane %v1324, 6
        %v1431 = vsel %vm1025, %v1430, %v1429
        %v1432 = vrot.slane %v1325, 5
        %v1433 = vsel %vm1027, %v1432, %v1431
        %v1434 = vrot.slane %v1326, 4
        %v1435 = vsel %vm1029, %v1434, %v1433
        %v1436 = vrot.slane %v1327, 3
        %v1437 = vsel %vm1031, %v1436, %v1435
        %v1438 = vrot.slane %v1328, 2
        %v1439 = vsel %vm1033, %v1438, %v1437
        %v1440 = vrot.slane %v1329, 1
        %v1441 = vsel %vm1035, %v1440, %v1439
        %v1442 = vpack.c.b16 %v1357, %v1343
        %v1443 = vpack.c.b16 %v1385, %v1371
        %v1444 = vpack.c.b16 %v1413, %v1399
        %v1445 = vpack.c.b16 %v1441, %v1427
        %v1466 = vunpack.c.l.b16 %v1186
        %v1467 = vunpack.c.l.b16 %v1187
        %v1468 = vunpack.c.l.b16 %v1188
        %v1469 = vunpack.c.l.b16 %v1189
        %v1470 = vunpack.c.l.b16 %v1190
        %v1471 = vunpack.c.l.b16 %v1191
        %v1472 = vunpack.c.l.b16 %v1192
        %v1473 = vunpack.c.l.b16 %v1193
        %v1474 = vunpack.c.l.b16 %v1194
        %v1475 = vunpack.c.l.b16 %v1195
        %v1476 = vunpack.c.l.b16 %v1196
        %v1477 = vunpack.c.l.b16 %v1197
        %v1478 = vunpack.c.l.b16 %v1198
        %v1479 = vunpack.c.l.b16 %v1199
        %v1480 = vunpack.c.l.b16 %v1200
        %v1481 = vunpack.c.l.b16 %v1201
        %v1482 = vpack.c.b16 %v1467, %v1466
        %v1483 = vpack.c.b16 %v1469, %v1468
        %v1484 = vpack.c.b16 %v1471, %v1470
        %v1485 = vpack.c.b16 %v1473, %v1472
        %v1486 = vpack.c.b16 %v1475, %v1474
        %v1487 = vpack.c.b16 %v1477, %v1476
        %v1488 = vpack.c.b16 %v1479, %v1478
        %v1489 = vpack.c.b16 %v1481, %v1480
        %1498 = vmatprep.subr.bf16.mxu0 0
        %1499 = vmatpush1.bf16.msra.mxu0 %v1489
        %1500 = vmatprep.subr.bf16.mxu0 0
        %1501 = vmatpush1.bf16.msra.mxu0 %v1488
        %1502 = vmatprep.subr.bf16.mxu0 0
        %1503 = vmatpush1.bf16.msra.mxu0 %v1487
        %1504 = vmatprep.subr.bf16.mxu0 0
        %1505 = vmatpush1.bf16.msra.mxu0 %v1486
        %1506 = vmatprep.subr.bf16.mxu0 0
        %1507 = vmatpush1.bf16.msra.mxu0 %v1485
        %1508 = vmatprep.subr.bf16.mxu0 0
        %1509 = vmatpush1.bf16.msra.mxu0 %v1484
        %1510 = vmatprep.subr.bf16.mxu0 0
        %1511 = vmatpush1.bf16.msra.mxu0 %v1483
        %1512 = vmatprep.subr.bf16.mxu0 0
        %1513 = vmatpush1.bf16.msra.mxu0 %v1482
        %1514 = vmatprep.subr.bf16.mxu0 0
        %1515 = vmatpush2.bf16.msra.mxu0 0
        %1516 = vmatprep.subr.bf16.mxu0 0
        %1517 = vmatpush2.bf16.msra.mxu0 0
        %1518 = vmatprep.subr.bf16.mxu0 0
        %1519 = vmatpush2.bf16.msra.mxu0 0
        %1520 = vmatprep.subr.bf16.mxu0 0
        %1521 = vmatpush2.bf16.msra.mxu0 0
        %1522 = vmatprep.subr.bf16.mxu0 0
        %1523 = vmatpush2.bf16.msra.mxu0 0
        %1524 = vmatprep.subr.bf16.mxu0 0
        %1525 = vmatpush2.bf16.msra.mxu0 0
        %1526 = vmatprep.subr.bf16.mxu0 0
        %1527 = vmatpush2.bf16.msra.mxu0 0
        %1528 = vmatprep.subr.bf16.mxu0 0
        %1529 = vmatpush2.bf16.msra.mxu0 0
        %1530 = vmatprep.mubr.bf16.mxu0 0
        %1531 = vmatmul.mubr.bf16.gmra.mxu0 %v1442
        %v1532 = vpop.f32.mrf.mxu0
        %v1533 = vadd.f32 0.0, %v1532
        %v1534 = vpop.f32.mrf.mxu0
        %v1535 = vpop.f32.mrf.mxu0
        %v1536 = vadd.f32 0.0, %v1535
        %v1537 = vpop.f32.mrf.mxu0
        %1538 = vmatprep.mubr.bf16.mxu0 0
        %1539 = vmatmul.mubr.bf16.gmra.mxu0 %v1443
        %v1540 = vpop.f32.mrf.mxu0
        %v1541 = vadd.f32 0.0, %v1540
        %v1542 = vpop.f32.mrf.mxu0
        %v1543 = vpop.f32.mrf.mxu0
        %v1544 = vadd.f32 0.0, %v1543
        %v1545 = vpop.f32.mrf.mxu0
        %1546 = vmatprep.mubr.bf16.mxu0 0
        %1547 = vmatmul.mubr.bf16.gmra.mxu0 %v1444
        %v1548 = vpop.f32.mrf.mxu0
        %v1549 = vadd.f32 0.0, %v1548
        %v1550 = vpop.f32.mrf.mxu0
        %v1551 = vpop.f32.mrf.mxu0
        %v1552 = vadd.f32 0.0, %v1551
        %v1553 = vpop.f32.mrf.mxu0
        %1554 = vmatprep.mubr.bf16.mxu0 0
        %1555 = vmatmul.mubr.bf16.gmra.mxu0 %v1445
        %v1556 = vpop.f32.mrf.mxu0
        %v1557 = vadd.f32 0.0, %v1556
        %v1558 = vpop.f32.mrf.mxu0
        %v1559 = vpop.f32.mrf.mxu0
        %v1560 = vadd.f32 0.0, %v1559
        %v1561 = vpop.f32.mrf.mxu0
        %1562 = vdwg.mxu0
        %v1579 = vunpack.c.l.b16 %v1105
        %v1580 = vunpack.c.l.b16 %v1106
        %v1581 = vunpack.c.l.b16 %v1107
        %v1582 = vunpack.c.l.b16 %v1108
        %v1583 = vunpack.c.l.b16 %v1109
        %v1584 = vunpack.c.l.b16 %v1110
        %v1585 = vunpack.c.l.b16 %v1111
        %v1586 = vunpack.c.l.b16 %v1112
        %v1587 = vunpack.c.l.b16 %v1113
        %v1588 = vunpack.c.l.b16 %v1114
        %v1589 = vunpack.c.l.b16 %v1115
        %v1590 = vunpack.c.l.b16 %v1116
        %v1591 = vunpack.c.l.b16 %v1117
        %v1592 = vunpack.c.l.b16 %v1118
        %v1593 = vunpack.c.l.b16 %v1119
        %v1594 = vunpack.c.l.b16 %v1120
        %v1595 = vpack.c.b16 %v1580, %v1579
        %v1596 = vpack.c.b16 %v1582, %v1581
        %v1597 = vpack.c.b16 %v1584, %v1583
        %v1598 = vpack.c.b16 %v1586, %v1585
        %v1599 = vpack.c.b16 %v1588, %v1587
        %v1600 = vpack.c.b16 %v1590, %v1589
        %v1601 = vpack.c.b16 %v1592, %v1591
        %v1602 = vpack.c.b16 %v1594, %v1593
        %1611 = vmatprep.subr.bf16.mxu0 0
        %1612 = vmatpush1.bf16.msra.mxu0 %v1602
        %1613 = vmatprep.subr.bf16.mxu0 0
        %1614 = vmatpush1.bf16.msra.mxu0 %v1601
        %1615 = vmatprep.subr.bf16.mxu0 0
        %1616 = vmatpush1.bf16.msra.mxu0 %v1600
        %1617 = vmatprep.subr.bf16.mxu0 0
        %1618 = vmatpush1.bf16.msra.mxu0 %v1599
        %1619 = vmatprep.subr.bf16.mxu0 0
        %1620 = vmatpush1.bf16.msra.mxu0 %v1598
        %1621 = vmatprep.subr.bf16.mxu0 0
        %1622 = vmatpush1.bf16.msra.mxu0 %v1597
        %1623 = vmatprep.subr.bf16.mxu0 0
        %1624 = vmatpush1.bf16.msra.mxu0 %v1596
        %1625 = vmatprep.subr.bf16.mxu0 0
        %1626 = vmatpush1.bf16.msra.mxu0 %v1595
        %1627 = vmatprep.subr.bf16.mxu0 0
        %1628 = vmatpush2.bf16.msra.mxu0 0
        %1629 = vmatprep.subr.bf16.mxu0 0
        %1630 = vmatpush2.bf16.msra.mxu0 0
        %1631 = vmatprep.subr.bf16.mxu0 0
        %1632 = vmatpush2.bf16.msra.mxu0 0
        %1633 = vmatprep.subr.bf16.mxu0 0
        %1634 = vmatpush2.bf16.msra.mxu0 0
        %1635 = vmatprep.subr.bf16.mxu0 0
        %1636 = vmatpush2.bf16.msra.mxu0 0
        %1637 = vmatprep.subr.bf16.mxu0 0
        %1638 = vmatpush2.bf16.msra.mxu0 0
        %1639 = vmatprep.subr.bf16.mxu0 0
        %1640 = vmatpush2.bf16.msra.mxu0 0
        %1641 = vmatprep.subr.bf16.mxu0 0
        %1642 = vmatpush2.bf16.msra.mxu0 0
        %1643 = vmatprep.mubr.bf16.mxu0 0
        %1644 = vmatmul.mubr.bf16.gmra.mxu0 %v1101
        %v1645 = vpop.f32.mrf.mxu0
        %v1646 = vadd.f32 %v1533, %v1645
        %v1647 = vpop.f32.mrf.mxu0
        %v1648 = vpop.f32.mrf.mxu0
        %v1649 = vadd.f32 %v1536, %v1648
        %v1650 = vpop.f32.mrf.mxu0
        %1651 = vmatprep.mubr.bf16.mxu0 0
        %1652 = vmatmul.mubr.bf16.gmra.mxu0 %v1102
        %v1653 = vpop.f32.mrf.mxu0
        %v1654 = vadd.f32 %v1541, %v1653
        %v1655 = vpop.f32.mrf.mxu0
        %v1656 = vpop.f32.mrf.mxu0
        %v1657 = vadd.f32 %v1544, %v1656
        %v1658 = vpop.f32.mrf.mxu0
        %1659 = vmatprep.mubr.bf16.mxu0 0
        %1660 = vmatmul.mubr.bf16.gmra.mxu0 %v1103
        %v1661 = vpop.f32.mrf.mxu0
        %v1662 = vadd.f32 %v1549, %v1661
        %v1663 = vpop.f32.mrf.mxu0
        %v1664 = vpop.f32.mrf.mxu0
        %v1665 = vadd.f32 %v1552, %v1664
        %v1666 = vpop.f32.mrf.mxu0
        %1667 = vmatprep.mubr.bf16.mxu0 0
        %1668 = vmatmul.mubr.bf16.gmra.mxu0 %v1104
        %v1669 = vpop.f32.mrf.mxu0
        %v1670 = vadd.f32 %v1557, %v1669
        %v1671 = vpop.f32.mrf.mxu0
        %v1672 = vpop.f32.mrf.mxu0
        %v1673 = vadd.f32 %v1560, %v1672
        %v1674 = vpop.f32.mrf.mxu0
        %1675 = vdwg.mxu0
        %s1676 = scalar_lea.vmem %s1, 128
        %v1677 = vld [vmem:[%s1676] sm:$0xf]
        %v1678 = vld [vmem:[%s1676 + $0x4] sm:$0xf]
        %v1679 = vld [vmem:[%s1676 + $0x8] sm:$0xf]
        %v1680 = vld [vmem:[%s1676 + $0xc] sm:$0xf]
        %v1681 = vld [vmem:[%s1676 + $0x10] sm:$0xf]
        %v1682 = vld [vmem:[%s1676 + $0x14] sm:$0xf]
        %v1683 = vld [vmem:[%s1676 + $0x18] sm:$0xf]
        %v1684 = vld [vmem:[%s1676 + $0x1c] sm:$0xf]
        %v1685 = vld [vmem:[%s1676 + $0x20] sm:$0xf]
        %v1686 = vld [vmem:[%s1676 + $0x24] sm:$0xf]
        %v1687 = vld [vmem:[%s1676 + $0x28] sm:$0xf]
        %v1688 = vld [vmem:[%s1676 + $0x2c] sm:$0xf]
        %v1689 = vld [vmem:[%s1676 + $0x30] sm:$0xf]
        %v1690 = vld [vmem:[%s1676 + $0x34] sm:$0xf]
        %v1691 = vld [vmem:[%s1676 + $0x38] sm:$0xf]
        %v1692 = vld [vmem:[%s1676 + $0x3c] sm:$0xf]
        %v1693 = vrot.slane %v1266, 1
        %v1694 = vsel %vm1037, %v1267, %v1693
        %v1695 = vrot.slane %v1268, 7
        %v1696 = vsel %vm1025, %v1695, %v1694
        %v1697 = vrot.slane %v1269, 6
        %v1698 = vsel %vm1027, %v1697, %v1696
        %v1699 = vrot.slane %v1270, 5
        %v1700 = vsel %vm1029, %v1699, %v1698
        %v1701 = vrot.slane %v1271, 4
        %v1702 = vsel %vm1031, %v1701, %v1700
        %v1703 = vrot.slane %v1272, 3
        %v1704 = vsel %vm1033, %v1703, %v1702
        %v1705 = vrot.slane %v1273, 2
        %v1706 = vsel %vm1035, %v1705, %v1704
        %v1707 = vrot.slane %v1274, 1
        %v1708 = vsel %vm1037, %v1275, %v1707
        %v1709 = vrot.slane %v1276, 7
        %v1710 = vsel %vm1025, %v1709, %v1708
        %v1711 = vrot.slane %v1277, 6
        %v1712 = vsel %vm1027, %v1711, %v1710
        %v1713 = vrot.slane %v1278, 5
        %v1714 = vsel %vm1029, %v1713, %v1712
        %v1715 = vrot.slane %v1279, 4
        %v1716 = vsel %vm1031, %v1715, %v1714
        %v1717 = vrot.slane %v1280, 3
        %v1718 = vsel %vm1033, %v1717, %v1716
        %v1719 = vrot.slane %v1281, 2
        %v1720 = vsel %vm1035, %v1719, %v1718
        %v1721 = vrot.slane %v1282, 1
        %v1722 = vsel %vm1037, %v1283, %v1721
        %v1723 = vrot.slane %v1284, 7
        %v1724 = vsel %vm1025, %v1723, %v1722
        %v1725 = vrot.slane %v1285, 6
        %v1726 = vsel %vm1027, %v1725, %v1724
        %v1727 = vrot.slane %v1286, 5
        %v1728 = vsel %vm1029, %v1727, %v1726
        %v1729 = vrot.slane %v1287, 4
        %v1730 = vsel %vm1031, %v1729, %v1728
        %v1731 = vrot.slane %v1288, 3
        %v1732 = vsel %vm1033, %v1731, %v1730
        %v1733 = vrot.slane %v1289, 2
        %v1734 = vsel %vm1035, %v1733, %v1732
        %v1735 = vrot.slane %v1290, 1
        %v1736 = vsel %vm1037, %v1291, %v1735
        %v1737 = vrot.slane %v1292, 7
        %v1738 = vsel %vm1025, %v1737, %v1736
        %v1739 = vrot.slane %v1293, 6
        %v1740 = vsel %vm1027, %v1739, %v1738
        %v1741 = vrot.slane %v1294, 5
        %v1742 = vsel %vm1029, %v1741, %v1740
        %v1743 = vrot.slane %v1295, 4
        %v1744 = vsel %vm1031, %v1743, %v1742
        %v1745 = vrot.slane %v1296, 3
        %v1746 = vsel %vm1033, %v1745, %v1744
        %v1747 = vrot.slane %v1297, 2
        %v1748 = vsel %vm1035, %v1747, %v1746
        %v1749 = vrot.slane %v1298, 1
        %v1750 = vsel %vm1037, %v1299, %v1749
        %v1751 = vrot.slane %v1300, 7
        %v1752 = vsel %vm1025, %v1751, %v1750
        %v1753 = vrot.slane %v1301, 6
        %v1754 = vsel %vm1027, %v1753, %v1752
        %v1755 = vrot.slane %v1302, 5
        %v1756 = vsel %vm1029, %v1755, %v1754
        %v1757 = vrot.slane %v1303, 4
        %v1758 = vsel %vm1031, %v1757, %v1756
        %v1759 = vrot.slane %v1304, 3
        %v1760 = vsel %vm1033, %v1759, %v1758
        %v1761 = vrot.slane %v1305, 2
        %v1762 = vsel %vm1035, %v1761, %v1760
        %v1763 = vrot.slane %v1306, 1
        %v1764 = vsel %vm1037, %v1307, %v1763
        %v1765 = vrot.slane %v1308, 7
        %v1766 = vsel %vm1025, %v1765, %v1764
        %v1767 = vrot.slane %v1309, 6
        %v1768 = vsel %vm1027, %v1767, %v1766
        %v1769 = vrot.slane %v1310, 5
        %v1770 = vsel %vm1029, %v1769, %v1768
        %v1771 = vrot.slane %v1311, 4
        %v1772 = vsel %vm1031, %v1771, %v1770
        %v1773 = vrot.slane %v1312, 3
        %v1774 = vsel %vm1033, %v1773, %v1772
        %v1775 = vrot.slane %v1313, 2
        %v1776 = vsel %vm1035, %v1775, %v1774
        %v1777 = vrot.slane %v1314, 1
        %v1778 = vsel %vm1037, %v1315, %v1777
        %v1779 = vrot.slane %v1316, 7
        %v1780 = vsel %vm1025, %v1779, %v1778
        %v1781 = vrot.slane %v1317, 6
        %v1782 = vsel %vm1027, %v1781, %v1780
        %v1783 = vrot.slane %v1318, 5
        %v1784 = vsel %vm1029, %v1783, %v1782
        %v1785 = vrot.slane %v1319, 4
        %v1786 = vsel %vm1031, %v1785, %v1784
        %v1787 = vrot.slane %v1320, 3
        %v1788 = vsel %vm1033, %v1787, %v1786
        %v1789 = vrot.slane %v1321, 2
        %v1790 = vsel %vm1035, %v1789, %v1788
        %v1791 = vrot.slane %v1322, 1
        %v1792 = vsel %vm1037, %v1323, %v1791
        %v1793 = vrot.slane %v1324, 7
        %v1794 = vsel %vm1025, %v1793, %v1792
        %v1795 = vrot.slane %v1325, 6
        %v1796 = vsel %vm1027, %v1795, %v1794
        %v1797 = vrot.slane %v1326, 5
        %v1798 = vsel %vm1029, %v1797, %v1796
        %v1799 = vrot.slane %v1327, 4
        %v1800 = vsel %vm1031, %v1799, %v1798
        %v1801 = vrot.slane %v1328, 3
        %v1802 = vsel %vm1033, %v1801, %v1800
        %v1803 = vrot.slane %v1329, 2
        %v1804 = vsel %vm1035, %v1803, %v1802
        %v1805 = vpack.c.b16 %v1720, %v1706
        %v1806 = vpack.c.b16 %v1748, %v1734
        %v1807 = vpack.c.b16 %v1776, %v1762
        %v1808 = vpack.c.b16 %v1804, %v1790
        %v1829 = vunpack.c.l.b16 %v1677
        %v1830 = vunpack.c.l.b16 %v1678
        %v1831 = vunpack.c.l.b16 %v1679
        %v1832 = vunpack.c.l.b16 %v1680
        %v1833 = vunpack.c.l.b16 %v1681
        %v1834 = vunpack.c.l.b16 %v1682
        %v1835 = vunpack.c.l.b16 %v1683
        %v1836 = vunpack.c.l.b16 %v1684
        %v1837 = vunpack.c.l.b16 %v1685
        %v1838 = vunpack.c.l.b16 %v1686
        %v1839 = vunpack.c.l.b16 %v1687
        %v1840 = vunpack.c.l.b16 %v1688
        %v1841 = vunpack.c.l.b16 %v1689
        %v1842 = vunpack.c.l.b16 %v1690
        %v1843 = vunpack.c.l.b16 %v1691
        %v1844 = vunpack.c.l.b16 %v1692
        %v1845 = vpack.c.b16 %v1830, %v1829
        %v1846 = vpack.c.b16 %v1832, %v1831
        %v1847 = vpack.c.b16 %v1834, %v1833
        %v1848 = vpack.c.b16 %v1836, %v1835
        %v1849 = vpack.c.b16 %v1838, %v1837
        %v1850 = vpack.c.b16 %v1840, %v1839
        %v1851 = vpack.c.b16 %v1842, %v1841
        %v1852 = vpack.c.b16 %v1844, %v1843
        %1861 = vmatprep.subr.bf16.mxu0 0
        %1862 = vmatpush1.bf16.msra.mxu0 %v1852
        %1863 = vmatprep.subr.bf16.mxu0 0
        %1864 = vmatpush1.bf16.msra.mxu0 %v1851
        %1865 = vmatprep.subr.bf16.mxu0 0
        %1866 = vmatpush1.bf16.msra.mxu0 %v1850
        %1867 = vmatprep.subr.bf16.mxu0 0
        %1868 = vmatpush1.bf16.msra.mxu0 %v1849
        %1869 = vmatprep.subr.bf16.mxu0 0
        %1870 = vmatpush1.bf16.msra.mxu0 %v1848
        %1871 = vmatprep.subr.bf16.mxu0 0
        %1872 = vmatpush1.bf16.msra.mxu0 %v1847
        %1873 = vmatprep.subr.bf16.mxu0 0
        %1874 = vmatpush1.bf16.msra.mxu0 %v1846
        %1875 = vmatprep.subr.bf16.mxu0 0
        %1876 = vmatpush1.bf16.msra.mxu0 %v1845
        %1877 = vmatprep.subr.bf16.mxu0 0
        %1878 = vmatpush2.bf16.msra.mxu0 0
        %1879 = vmatprep.subr.bf16.mxu0 0
        %1880 = vmatpush2.bf16.msra.mxu0 0
        %1881 = vmatprep.subr.bf16.mxu0 0
        %1882 = vmatpush2.bf16.msra.mxu0 0
        %1883 = vmatprep.subr.bf16.mxu0 0
        %1884 = vmatpush2.bf16.msra.mxu0 0
        %1885 = vmatprep.subr.bf16.mxu0 0
        %1886 = vmatpush2.bf16.msra.mxu0 0
        %1887 = vmatprep.subr.bf16.mxu0 0
        %1888 = vmatpush2.bf16.msra.mxu0 0
        %1889 = vmatprep.subr.bf16.mxu0 0
        %1890 = vmatpush2.bf16.msra.mxu0 0
        %1891 = vmatprep.subr.bf16.mxu0 0
        %1892 = vmatpush2.bf16.msra.mxu0 0
        %1893 = vmatprep.mubr.bf16.mxu0 0
        %1894 = vmatmul.mubr.bf16.gmra.mxu0 %v1805
        %v1895 = vpop.f32.mrf.mxu0
        %v1896 = vadd.f32 0.0, %v1895
        %v1897 = vpop.f32.mrf.mxu0
        %v1898 = vpop.f32.mrf.mxu0
        %v1899 = vadd.f32 0.0, %v1898
        %v1900 = vpop.f32.mrf.mxu0
        %1901 = vmatprep.mubr.bf16.mxu0 0
        %1902 = vmatmul.mubr.bf16.gmra.mxu0 %v1806
        %v1903 = vpop.f32.mrf.mxu0
        %v1904 = vadd.f32 0.0, %v1903
        %v1905 = vpop.f32.mrf.mxu0
        %v1906 = vpop.f32.mrf.mxu0
        %v1907 = vadd.f32 0.0, %v1906
        %v1908 = vpop.f32.mrf.mxu0
        %1909 = vmatprep.mubr.bf16.mxu0 0
        %1910 = vmatmul.mubr.bf16.gmra.mxu0 %v1807
        %v1911 = vpop.f32.mrf.mxu0
        %v1912 = vadd.f32 0.0, %v1911
        %v1913 = vpop.f32.mrf.mxu0
        %v1914 = vpop.f32.mrf.mxu0
        %v1915 = vadd.f32 0.0, %v1914
        %v1916 = vpop.f32.mrf.mxu0
        %1917 = vmatprep.mubr.bf16.mxu0 0
        %1918 = vmatmul.mubr.bf16.gmra.mxu0 %v1808
        %v1919 = vpop.f32.mrf.mxu0
        %v1920 = vadd.f32 0.0, %v1919
        %v1921 = vpop.f32.mrf.mxu0
        %v1922 = vpop.f32.mrf.mxu0
        %v1923 = vadd.f32 0.0, %v1922
        %v1924 = vpop.f32.mrf.mxu0
        %1925 = vdwg.mxu0
        %v1926 = vadd.f32 %v1646, %v1896
        %v1927 = vadd.f32 %v1649, %v1899
        %v1928 = vadd.f32 %v1654, %v1904
        %v1929 = vadd.f32 %v1657, %v1907
        %v1930 = vadd.f32 %v1662, %v1912
        %v1931 = vadd.f32 %v1665, %v1915
        %v1932 = vadd.f32 %v1670, %v1920
        %v1933 = vadd.f32 %v1673, %v1923
        %v1934 = vpack.c.bf16 %v1927, %v1926
        %v1935 = vpack.c.bf16 %v1929, %v1928
        %v1936 = vpack.c.bf16 %v1931, %v1930
        %v1937 = vpack.c.bf16 %v1933, %v1932
        %v1942 = vunpack.c.l.b16 %v1934
        %v1943 = vunpack.c.h.b16 %v1934
        %v1944 = vunpack.c.l.b16 %v1935
        %v1945 = vunpack.c.h.b16 %v1935
        %v1946 = vunpack.c.l.b16 %v1936
        %v1947 = vunpack.c.h.b16 %v1936
        %v1948 = vunpack.c.l.b16 %v1937
        %v1949 = vunpack.c.h.b16 %v1937
        %v1950 = vpack.c.b16 %v1942, %v1942
        %v1951 = vpack.c.b16 %v1943, %v1943
        %v1952 = vpack.c.b16 %v1944, %v1944
        %v1953 = vpack.c.b16 %v1945, %v1945
        %v1954 = vpack.c.b16 %v1946, %v1946
        %v1955 = vpack.c.b16 %v1947, %v1947
        %v1956 = vpack.c.b16 %v1948, %v1948
        %v1957 = vpack.c.b16 %v1949, %v1949
        %1966 = vst [vmem:[%s315] sm:$0xf] %v1950
        %1967 = vst [vmem:[%s315 + $0x4] sm:$0xf] %v1951
        %1968 = vst [vmem:[%s315 + $0x8] sm:$0xf] %v1952
        %1969 = vst [vmem:[%s315 + $0xc] sm:$0xf] %v1953
        %1970 = vst [vmem:[%s315 + $0x10] sm:$0xf] %v1954
        %1971 = vst [vmem:[%s315 + $0x14] sm:$0xf] %v1955
        %1972 = vst [vmem:[%s315 + $0x18] sm:$0xf] %v1956
        %1973 = vst [vmem:[%s315 + $0x1c] sm:$0xf] %v1957
        %v1974 = vld [vmem:[%s329] sm:$0x3]
        %v1975 = vadd.f32 %v1926, %v1927
        %v1976 = vadd.f32 %v1975, %v1928
        %v1977 = vadd.f32 %v1976, %v1929
        %v1978 = vadd.f32 %v1977, %v1930
        %v1979 = vadd.f32 %v1978, %v1931
        %v1980 = vadd.f32 %v1979, %v1932
        %v1981 = vadd.f32 %v1980, %v1933
        %v1982 = vrot.slane %v1981, 4
        %v1983 = vadd.f32 %v1981, %v1982
        %v1984 = vrot.slane %v1983, 2
        %v1985 = vadd.f32 %v1983, %v1984
        %v1986 = vrot.slane %v1985, 1
        %v1987 = vadd.f32 %v1985, %v1986
        %v1988 = vmul.f32 %v1926, %v1926
        %v1989 = vmul.f32 %v1927, %v1927
        %v1990 = vmul.f32 %v1928, %v1928
        %v1991 = vmul.f32 %v1929, %v1929
        %v1992 = vmul.f32 %v1930, %v1930
        %v1993 = vmul.f32 %v1931, %v1931
        %v1994 = vmul.f32 %v1932, %v1932
        %v1995 = vmul.f32 %v1933, %v1933
        %v1996 = vadd.f32 %v1988, %v1989
        %v1997 = vadd.f32 %v1996, %v1990
        %v1998 = vadd.f32 %v1997, %v1991
        %v1999 = vadd.f32 %v1998, %v1992
        %v2000 = vadd.f32 %v1999, %v1993
        %v2001 = vadd.f32 %v2000, %v1994
        %v2002 = vadd.f32 %v2001, %v1995
        %v2003 = vrot.slane %v2002, 4
        %v2004 = vadd.f32 %v2002, %v2003
        %v2005 = vrot.slane %v2004, 2
        %v2006 = vadd.f32 %v2004, %v2005
        %v2007 = vrot.slane %v2006, 1
        %v2008 = vadd.f32 %v2006, %v2007
        %v2009 = vsel %vm1092, %v1987, %v2008
        %v2010 = vadd.f32 %v1974, %v2009
        %2011 = vst [vmem:[%s329] sm:$0x3] %v2010
        %s2012 = sand.u32 %s108, 1
        %s2013 = sand.u32 %s108, 1
        %s2014 = smul.addr %s2013, 32
        %s2015 = scalar_lea.vmem [#allocation4], %s2014
        %p2016 = scmp.lt.s32.totalorder %s20, 1
        %s2017 = scalar_select %p2016, %s20, 1
        %s2018 = smul.addr %s2017, 2
        %s2019 = scalar_lea.vmem %s4, %s2018
        // Predicated region
        $region78: #{bottleneck1d_forward.5} parent=68 // pred_check
          %p2020 = pneg %p118
        $region79: #{bottleneck1d_forward.5} parent=68 // pred_check_branch
          %2022 = sbr.rel (%p2020) target = $region81
        $region80: #{bottleneck1d_forward.5} parent=68 // pred_region
          %s2023 = smul.u32 4, %s20
          %s2024 = smul.u32 2, %s21
          %s2025 = smul.addr %s2023, 4
          %s2026 = sadd.s32 %s2024, %s2025
          %s2027 = smul.addr %s2026, 4
          %s2028 = scalar_lea.vmem %s3, %s2027
          // Predicated region
          $region82: #{bottleneck1d_forward.5} parent=80 // pred_check
            _
          $region83: #{bottleneck1d_forward.5} parent=80 // pred_check_branch
            %2030 = sbr.rel (0) target = $region85
          $region84: #{bottleneck1d_forward.5} parent=80 // pred_region
            // Predicated region
            $region86: #{bottleneck1d_forward.5} parent=84 // pred_check
              _
            $region87: #{bottleneck1d_forward.5} parent=84 // pred_check_branch
              %2032 = sbr.rel target = $region89
            $region88: #{bottleneck1d_forward.5} parent=84 // pred_region
              // Predicated region
              $region101: #{bottleneck1d_forward.5} parent=88 // pred_check
                _
              $region102: #{bottleneck1d_forward.5} parent=88 // pred_check_branch
                %2062 = sbr.rel (0) target = $region104
              $region103: #{bottleneck1d_forward.5} parent=88 // pred_region
                loop: start=0, step=1, limit=1
                $region105: #{bottleneck1d_forward.5} parent=103 // loop_pre_header
                  _
                $region106: #{bottleneck1d_forward.5} parent=103 // loop_header
                  %s2064 = sphi 0, %s2068
                  %p2065 = scmp.ge.s32.totalorder %s2064, 1
                  %s2069 = sphi %s2015, %s2015
                  %s2070 = sphi %s2028, %s2028
                $region107: #{bottleneck1d_forward.5} parent=103 // loop_header_branch
                  %2067 = sbr.rel (%p2065) target = $region111
                $region108: #{bottleneck1d_forward.5} parent=103 // loop_body
                  _
                $region109: #{bottleneck1d_forward.5} parent=103 // loop_footer
                  %s2068 = sadd.s32 1, %s2064
                $region110: #{bottleneck1d_forward.5} parent=103 // loop_footer_branch
                  %2063 = sbr.rel target = $region106
                $region111: #{bottleneck1d_forward.5} parent=103 // loop_exit
                  _
                %s2072 = ssub.s32 16, 1
                loop: start=0, step=1, limit=1
                $region112: #{bottleneck1d_forward.5} parent=103 // loop_pre_header
                  _
                $region113: #{bottleneck1d_forward.5} parent=103 // loop_header
                  %s2074 = sphi 0, %s2078
                  %p2075 = scmp.ge.s32.totalorder %s2074, 1
                  %s2079 = sphi %s2015, %s2015
                  %s2080 = sphi %s2028, %s2028
                $region114: #{bottleneck1d_forward.5} parent=103 // loop_header_branch
                  %2077 = sbr.rel (%p2075) target = $region118
                $region115: #{bottleneck1d_forward.5} parent=103 // loop_body
                  %v2081 = vld [vmem:[%s2079] sm:%s2072]
                  %2082 = vst [vmem:[%s2080] sm:%s2072] %v2081
                  %v2083 = vld [vmem:[%s2079 + $0x4] sm:%s2072]
                  %2084 = vst [vmem:[%s2080 + $0x4] sm:%s2072] %v2083
                  %v2085 = vld [vmem:[%s2079 + $0x8] sm:%s2072]
                  %2086 = vst [vmem:[%s2080 + $0x10] sm:%s2072] %v2085
                  %v2087 = vld [vmem:[%s2079 + $0xc] sm:%s2072]
                  %2088 = vst [vmem:[%s2080 + $0x14] sm:%s2072] %v2087
                  %v2089 = vld [vmem:[%s2079 + $0x10] sm:%s2072]
                  %2090 = vst [vmem:[%s2080 + $0x20] sm:%s2072] %v2089
                  %v2091 = vld [vmem:[%s2079 + $0x14] sm:%s2072]
                  %2092 = vst [vmem:[%s2080 + $0x24] sm:%s2072] %v2091
                  %v2093 = vld [vmem:[%s2079 + $0x18] sm:%s2072]
                  %2094 = vst [vmem:[%s2080 + $0x30] sm:%s2072] %v2093
                  %v2095 = vld [vmem:[%s2079 + $0x1c] sm:%s2072]
                  %2096 = vst [vmem:[%s2080 + $0x34] sm:%s2072] %v2095
                $region116: #{bottleneck1d_forward.5} parent=103 // loop_footer
                  %s2078 = sadd.s32 1, %s2074
                $region117: #{bottleneck1d_forward.5} parent=103 // loop_footer_branch
                  %2073 = sbr.rel target = $region113
                $region118: #{bottleneck1d_forward.5} parent=103 // loop_exit
                  _
              $region104: #{bottleneck1d_forward.5} parent=88 // pred_fallthru
                _
            $region89: #{bottleneck1d_forward.5} parent=84 // pred_fallthru
              _
            // Predicated region
            $region90: #{bottleneck1d_forward.5} parent=84 // pred_check
              _
            $region91: #{bottleneck1d_forward.5} parent=84 // pred_check_branch
              %2034 = sbr.rel (0) target = $region93
            $region92: #{bottleneck1d_forward.5} parent=84 // pred_region
              %s2036 = ssub.s32 16, 1
              loop: start=0, step=1, limit=1
              $region94: #{bottleneck1d_forward.5} parent=92 // loop_pre_header
                _
              $region95: #{bottleneck1d_forward.5} parent=92 // loop_header
                %s2038 = sphi 0, %s2042
                %p2039 = scmp.ge.s32.totalorder %s2038, 1
                %s2043 = sphi %s2015, %s2015
                %s2044 = sphi %s2028, %s2028
              $region96: #{bottleneck1d_forward.5} parent=92 // loop_header_branch
                %2041 = sbr.rel (%p2039) target = $region100
              $region97: #{bottleneck1d_forward.5} parent=92 // loop_body
                %v2045 = vld [vmem:[%s2043] sm:%s2036]
                %2046 = vst [vmem:[%s2044] sm:%s2036] %v2045
                %v2047 = vld [vmem:[%s2043 + $0x4] sm:%s2036]
                %2048 = vst [vmem:[%s2044 + $0x4] sm:%s2036] %v2047
                %v2049 = vld [vmem:[%s2043 + $0x8] sm:%s2036]
                %2050 = vst [vmem:[%s2044 + $0x10] sm:%s2036] %v2049
                %v2051 = vld [vmem:[%s2043 + $0xc] sm:%s2036]
                %2052 = vst [vmem:[%s2044 + $0x14] sm:%s2036] %v2051
                %v2053 = vld [vmem:[%s2043 + $0x10] sm:%s2036]
                %2054 = vst [vmem:[%s2044 + $0x20] sm:%s2036] %v2053
                %v2055 = vld [vmem:[%s2043 + $0x14] sm:%s2036]
                %2056 = vst [vmem:[%s2044 + $0x24] sm:%s2036] %v2055
                %v2057 = vld [vmem:[%s2043 + $0x18] sm:%s2036]
                %2058 = vst [vmem:[%s2044 + $0x30] sm:%s2036] %v2057
                %v2059 = vld [vmem:[%s2043 + $0x1c] sm:%s2036]
                %2060 = vst [vmem:[%s2044 + $0x34] sm:%s2036] %v2059
              $region98: #{bottleneck1d_forward.5} parent=92 // loop_footer
                %s2042 = sadd.s32 1, %s2038
              $region99: #{bottleneck1d_forward.5} parent=92 // loop_footer_branch
                %2037 = sbr.rel target = $region95
              $region100: #{bottleneck1d_forward.5} parent=92 // loop_exit
                _
            $region93: #{bottleneck1d_forward.5} parent=84 // pred_fallthru
              _
          $region85: #{bottleneck1d_forward.5} parent=80 // pred_fallthru
            _
          %2097 = vnop
        $region81: #{bottleneck1d_forward.5} parent=68 // pred_fallthru
          _
        // Predicated region
        $region119: #{bottleneck1d_forward.5} parent=68 // pred_check
          %p2098 = pneg %p144
        $region120: #{bottleneck1d_forward.5} parent=68 // pred_check_branch
          %2100 = sbr.rel (%p2098) target = $region122
        $region121: #{bottleneck1d_forward.5} parent=68 // pred_region
          _
        $region122: #{bottleneck1d_forward.5} parent=68 // pred_fallthru
          _
      $region69: #{bottleneck1d_forward.5} parent=5 // pred_fallthru
        _
      %p2101 = scmp.le.s32.totalorder 2, %s11
      // Predicated region
      $region123: #{bottleneck1d_forward.5} parent=5 // pred_check
        %p2102 = pneg %p2101
      $region124: #{bottleneck1d_forward.5} parent=5 // pred_check_branch
        %2104 = sbr.rel (%p2102) target = $region126
      $region125: #{bottleneck1d_forward.5} parent=5 // pred_region
        %s2105 = ssub.s32 %s11, 2
        // Predicated region
        $region127: #{bottleneck1d_forward.5} parent=125 // pred_check
          %p2106 = pneg %p124
        $region128: #{bottleneck1d_forward.5} parent=125 // pred_check_branch
          %2108 = sbr.rel (%p2106) target = $region130
        $region129: #{bottleneck1d_forward.5} parent=125 // pred_region
          %s2109 = sand.u32 %s109, 1
          %s2110 = sand.u32 %s109, 1
          %s2111 = smul.addr %s2110, 32
          %s2112 = scalar_lea.vmem [#allocation4], %s2111
        $region130: #{bottleneck1d_forward.5} parent=125 // pred_fallthru
          _
        // Predicated region
        $region131: #{bottleneck1d_forward.5} parent=125 // pred_check
          %p2113 = pneg %p150
        $region132: #{bottleneck1d_forward.5} parent=125 // pred_check_branch
          %2115 = sbr.rel (%p2113) target = $region134
        $region133: #{bottleneck1d_forward.5} parent=125 // pred_region
          %p2116 = scmp.lt.s32.totalorder %s22, 1
          %s2117 = scalar_select %p2116, %s22, 1
          %s2118 = smul.addr %s2117, 2
          %s2119 = scalar_lea.vmem %s4, %s2118
        $region134: #{bottleneck1d_forward.5} parent=125 // pred_fallthru
          _
      $region126: #{bottleneck1d_forward.5} parent=5 // pred_fallthru
        _
    $region6: #{bottleneck1d_forward.5} parent=1 // loop_footer
      %s15 = sadd.s32 1, %s11
    $region7: #{bottleneck1d_forward.5} parent=1 // loop_footer_branch
      %10 = sbr.rel target = $region3
    $region8: #{bottleneck1d_forward.5} parent=1 // loop_exit
      _

// kernel: bottleneck1d_forward.4
$region0: #{bottleneck1d_forward.4}
  #allocation0 [shape = 'u32[]', space=smem, size = 0x4, offset = 0x4, fixed_abs, tag = 'smem constant byte address 0x4 - core index']
  #allocation1 [shape = 'u32[144,128]{1,0:T(1,128)}', space=vmem, size = 0x12000, scoped, tag = 'internal scratch']
  %s0 = inlined_call_operand.vmem [shape: bf16[8,64,64], index: 0, kind: input, shape index: {}]
  %s1 = inlined_call_operand.vmem [shape: bf16[64,128], index: 1, kind: input, shape index: {}]
  %s2 = inlined_call_operand.vmem [shape: bf16[64,128], index: 2, kind: input, shape index: {}]
  %s3 = inlined_call_operand.vmem [shape: bf16[8,64,128], index: 3, kind: output, shape index: {0}]
  %s4 = inlined_call_operand.vmem [shape: f32[2,2,128], index: 4, kind: output, shape index: {1}]
  %s5 = inlined_call_operand.vmem [shape: bf16[8,32,128], index: 5, kind: output, shape index: {2}]
  %s6 = inlined_call_operand.vmem [shape: f32[2,2,128], index: 6, kind: output, shape index: {3}]
  %7 = xla_tuple %s3, %s4, %s5, %s6
  %s8 = sld [smem:[#allocation0]]
  $region188: #{bottleneck1d_forward.4} parent=0
    _
  %s10 = ssub.s32 1, %s8
  %s11 = scalar_select 0, %s10, %s8
  $region1: #{bottleneck1d_forward.4} parent=0
    #allocation2 [shape = 'u8[65536]{0}', space=vmem, size = 0x10000, scoped, tag = 'input window, operand 0']
    #allocation3 [shape = 'u8[65536]{0}', space=vmem, size = 0x10000, scoped, tag = 'output window, operand 0']
    #allocation4 [shape = 'u8[32768]{0}', space=vmem, size = 0x8000, scoped, tag = 'output window, operand 2']
    loop: start=0, step=1, limit=6
    $region2: #{bottleneck1d_forward.4} parent=1 // loop_pre_header
      _
    $region3: #{bottleneck1d_forward.4} parent=1 // loop_header
      %s13 = sphi 0, %s17
      %p14 = scmp.ge.s32.totalorder %s13, 6
      %s20 = sphi 0, %s32
      %s21 = sphi 0, %s28
      %s22 = sphi 0, %s20
      %s23 = sphi 0, %s21
      %s24 = sphi 0, %s22
      %s25 = sphi 0, %s23
      %s37 = sphi 0, %s39
      %s40 = sphi 0, %s37
      %s41 = sphi 0, %s40
      %s57 = sphi 0, %s41
      %s61 = sphi 0, %s61
      %s63 = sphi 0, %s61
      %s64 = sphi 0, %s63
      %s78 = sphi 0, %s64
      %s82 = sphi 0, %s82
      %s84 = sphi 0, %s82
      %s85 = sphi 0, %s84
      %s99 = sphi 0, %s85
      %s107 = sphi 0, %s109
      %s110 = sphi 0, %s107
      %s111 = sphi 0, %s110
      %s127 = sphi 0, %s111
      %s133 = sphi 0, %s135
      %s136 = sphi 0, %s133
      %s137 = sphi 0, %s136
      %s153 = sphi 0, %s137
      %s161 = sphi 0, %s163
      %s164 = sphi 0, %s161
      %s165 = sphi 0, %s164
      %s181 = sphi 0, %s165
      %s187 = sphi 0, %s189
      %s190 = sphi 0, %s187
      %s191 = sphi 0, %s190
      %s207 = sphi 0, %s191
    $region4: #{bottleneck1d_forward.4} parent=1 // loop_header_branch
      %16 = sbr.rel (%p14) target = $region8
    $region5: #{bottleneck1d_forward.4} parent=1 // loop_body
      %s18 = ssub.s32 %s13, 1
      %s19 = ssub.s32 %s13, 2
      %s26 = sadd.s32 1, %s21
      %p27 = scmp.ge.s32.totalorder %s26, 2
      %s28 = scalar_select %p27, 0, %s26
      %s29 = sadd.s32 1, %s20
      %s30 = scalar_select %p27, %s29, %s20
      %p31 = scmp.ge.s32.totalorder %s30, 2
      %s32 = scalar_select %p31, 0, %s30
      %s33 = ssub.s32 %s20, %s32
      %s34 = ssub.s32 %s21, %s28
      %s35 = sor.u32 %s33, %s34
      %p36 = scmp.eq.s32.totalorder %s35, 0
      %s38 = sadd.s32 %s37, 1
      %s39 = scalar_select %p36, %s37, %s38
      %p42 = pneg %p36
      %p43 = scmp.eq.s32.totalorder %s13, 3
      %p44 = por %p42, %p43
      %p45 = scmp.ne.s32.totalorder %s37, %s40
      %p46 = scmp.eq.s32.totalorder %s13, 0
      %p47 = por %p45, %p46
      %p48 = scmp.ne.s32.totalorder %s37, %s40
      %p49 = scmp.eq.s32.totalorder %s18, 3
      %p50 = por %p48, %p49
      %p51 = scmp.ne.s32.totalorder %s40, %s41
      %p52 = scmp.eq.s32.totalorder %s18, 0
      %p53 = por %p51, %p52
      %p54 = scmp.ne.s32.totalorder %s40, %s41
      %p55 = scmp.eq.s32.totalorder %s19, 3
      %p56 = por %p54, %p55
      %p58 = scmp.ne.s32.totalorder %s41, %s57
      %p59 = scmp.eq.s32.totalorder %s19, 0
      %p60 = por %p58, %p59
      %s62 = sadd.s32 %s61, 1
      %p65 = scmp.eq.s32.totalorder %s13, 3
      %p66 = scmp.ne.s32.totalorder %s61, %s63
      %p67 = scmp.eq.s32.totalorder %s13, 0
      %p68 = por %p66, %p67
      %p69 = scmp.ne.s32.totalorder %s61, %s63
      %p70 = scmp.eq.s32.totalorder %s18, 3
      %p71 = por %p69, %p70
      %p72 = scmp.ne.s32.totalorder %s63, %s64
      %p73 = scmp.eq.s32.totalorder %s18, 0
      %p74 = por %p72, %p73
      %p75 = scmp.ne.s32.totalorder %s63, %s64
      %p76 = scmp.eq.s32.totalorder %s19, 3
      %p77 = por %p75, %p76
      %p79 = scmp.ne.s32.totalorder %s64, %s78
      %p80 = scmp.eq.s32.totalorder %s19, 0
      %p81 = por %p79, %p80
      %s83 = sadd.s32 %s82, 1
      %p86 = scmp.eq.s32.totalorder %s13, 3
      %p87 = scmp.ne.s32.totalorder %s82, %s84
      %p88 = scmp.eq.s32.totalorder %s13, 0
      %p89 = por %p87, %p88
      %p90 = scmp.ne.s32.totalorder %s82, %s84
      %p91 = scmp.eq.s32.totalorder %s18, 3
      %p92 = por %p90, %p91
      %p93 = scmp.ne.s32.totalorder %s84, %s85
      %p94 = scmp.eq.s32.totalorder %s18, 0
      %p95 = por %p93, %p94
      %p96 = scmp.ne.s32.totalorder %s84, %s85
      %p97 = scmp.eq.s32.totalorder %s19, 3
      %p98 = por %p96, %p97
      %p100 = scmp.ne.s32.totalorder %s85, %s99
      %p101 = scmp.eq.s32.totalorder %s19, 0
      %p102 = por %p100, %p101
      %s103 = ssub.s32 %s20, %s32
      %s104 = ssub.s32 %s21, %s28
      %s105 = sor.u32 %s103, %s104
      %p106 = scmp.eq.s32.totalorder %s105, 0
      %s108 = sadd.s32 %s107, 1
      %s109 = scalar_select %p106, %s107, %s108
      %p112 = pneg %p106
      %p113 = scmp.eq.s32.totalorder %s13, 3
      %p114 = por %p112, %p113
      %p115 = scmp.ne.s32.totalorder %s107, %s110
      %p116 = scmp.eq.s32.totalorder %s13, 0
      %p117 = por %p115, %p116
      %p118 = scmp.ne.s32.totalorder %s107, %s110
      %p119 = scmp.eq.s32.totalorder %s18, 3
      %p120 = por %p118, %p119
      %p121 = scmp.ne.s32.totalorder %s110, %s111
      %p122 = scmp.eq.s32.totalorder %s18, 0
      %p123 = por %p121, %p122
      %p124 = scmp.ne.s32.totalorder %s110, %s111
      %p125 = scmp.eq.s32.totalorder %s19, 3
      %p126 = por %p124, %p125
      %p128 = scmp.ne.s32.totalorder %s111, %s127
      %p129 = scmp.eq.s32.totalorder %s19, 0
      %p130 = por %p128, %p129
      %s131 = ssub.s32 %s20, %s32
      %p132 = scmp.eq.s32.totalorder %s131, 0
      %s134 = sadd.s32 %s133, 1
      %s135 = scalar_select %p132, %s133, %s134
      %p138 = pneg %p132
      %p139 = scmp.eq.s32.totalorder %s13, 3
      %p140 = por %p138, %p139
      %p141 = scmp.ne.s32.totalorder %s133, %s136
      %p142 = scmp.eq.s32.totalorder %s13, 0
      %p143 = por %p141, %p142
      %p144 = scmp.ne.s32.totalorder %s133, %s136
      %p145 = scmp.eq.s32.totalorder %s18, 3
      %p146 = por %p144, %p145
      %p147 = scmp.ne.s32.totalorder %s136, %s137
      %p148 = scmp.eq.s32.totalorder %s18, 0
      %p149 = por %p147, %p148
      %p150 = scmp.ne.s32.totalorder %s136, %s137
      %p151 = scmp.eq.s32.totalorder %s19, 3
      %p152 = por %p150, %p151
      %p154 = scmp.ne.s32.totalorder %s137, %s153
      %p155 = scmp.eq.s32.totalorder %s19, 0
      %p156 = por %p154, %p155
      %s157 = ssub.s32 %s20, %s32
      %s158 = ssub.s32 %s21, %s28
      %s159 = sor.u32 %s157, %s158
      %p160 = scmp.eq.s32.totalorder %s159, 0
      %s162 = sadd.s32 %s161, 1
      %s163 = scalar_select %p160, %s161, %s162
      %p166 = pneg %p160
      %p167 = scmp.eq.s32.totalorder %s13, 3
      %p168 = por %p166, %p167
      %p169 = scmp.ne.s32.totalorder %s161, %s164
      %p170 = scmp.eq.s32.totalorder %s13, 0
      %p171 = por %p169, %p170
      %p172 = scmp.ne.s32.totalorder %s161, %s164
      %p173 = scmp.eq.s32.totalorder %s18, 3
      %p174 = por %p172, %p173
      %p175 = scmp.ne.s32.totalorder %s164, %s165
      %p176 = scmp.eq.s32.totalorder %s18, 0
      %p177 = por %p175, %p176
      %p178 = scmp.ne.s32.totalorder %s164, %s165
      %p179 = scmp.eq.s32.totalorder %s19, 3
      %p180 = por %p178, %p179
      %p182 = scmp.ne.s32.totalorder %s165, %s181
      %p183 = scmp.eq.s32.totalorder %s19, 0
      %p184 = por %p182, %p183
      %s185 = ssub.s32 %s20, %s32
      %p186 = scmp.eq.s32.totalorder %s185, 0
      %s188 = sadd.s32 %s187, 1
      %s189 = scalar_select %p186, %s187, %s188
      %p192 = pneg %p186
      %p193 = scmp.eq.s32.totalorder %s13, 3
      %p194 = por %p192, %p193
      %p195 = scmp.ne.s32.totalorder %s187, %s190
      %p196 = scmp.eq.s32.totalorder %s13, 0
      %p197 = por %p195, %p196
      %p198 = scmp.ne.s32.totalorder %s187, %s190
      %p199 = scmp.eq.s32.totalorder %s18, 3
      %p200 = por %p198, %p199
      %p201 = scmp.ne.s32.totalorder %s190, %s191
      %p202 = scmp.eq.s32.totalorder %s18, 0
      %p203 = por %p201, %p202
      %p204 = scmp.ne.s32.totalorder %s190, %s191
      %p205 = scmp.eq.s32.totalorder %s19, 3
      %p206 = por %p204, %p205
      %p208 = scmp.ne.s32.totalorder %s191, %s207
      %p209 = scmp.eq.s32.totalorder %s19, 0
      %p210 = por %p208, %p209
      %p211 = scmp.le.s32.totalorder 1, %s13
      %p212 = scmp.lt.s32.totalorder %s13, 5
      %p213 = pnand %p211, %p212
      %p214 = pneg %p213
      // Predicated region
      $region9: #{bottleneck1d_forward.4} parent=5 // pred_check
        _
      $region10: #{bottleneck1d_forward.4} parent=5 // pred_check_branch
        %216 = sbr.rel (%p213) target = $region12
      $region11: #{bottleneck1d_forward.4} parent=5 // pred_region
        %s217 = ssub.s32 %s13, 1
        // Predicated region
        $region13: #{bottleneck1d_forward.4} parent=11 // pred_check
          %p218 = pneg %p74
        $region14: #{bottleneck1d_forward.4} parent=11 // pred_check_branch
          %220 = sbr.rel (%p218) target = $region16
        $region15: #{bottleneck1d_forward.4} parent=11 // pred_region
          _
        $region16: #{bottleneck1d_forward.4} parent=11 // pred_fallthru
          _
        // Predicated region
        $region17: #{bottleneck1d_forward.4} parent=11 // pred_check
          %p221 = pneg %p95
        $region18: #{bottleneck1d_forward.4} parent=11 // pred_check_branch
          %223 = sbr.rel (%p221) target = $region20
        $region19: #{bottleneck1d_forward.4} parent=11 // pred_region
          _
        $region20: #{bottleneck1d_forward.4} parent=11 // pred_fallthru
          _
      $region12: #{bottleneck1d_forward.4} parent=5 // pred_fallthru
        _
      %p224 = scmp.lt.s32.totalorder %s13, 4
      // Predicated region
      $region21: #{bottleneck1d_forward.4} parent=5 // pred_check
        %p225 = pneg %p224
      $region22: #{bottleneck1d_forward.4} parent=5 // pred_check_branch
        %227 = sbr.rel (%p225) target = $region24
      $region23: #{bottleneck1d_forward.4} parent=5 // pred_region
        // Predicated region
        $region25: #{bottleneck1d_forward.4} parent=23 // pred_check
          %p228 = pneg %p47
        $region26: #{bottleneck1d_forward.4} parent=23 // pred_check_branch
          %230 = sbr.rel (%p228) target = $region28
        $region27: #{bottleneck1d_forward.4} parent=23 // pred_region
          %s231 = sand.u32 %s37, 1
          %s232 = sand.u32 %s37, 1
          %s233 = smul.addr %s232, 64
          %s234 = scalar_lea.vmem [#allocation2], %s233
          %s235 = smul.u32 4, %s20
          %s236 = smul.u32 4, %s21
          %s237 = smul.addr %s235, 8
          %s238 = sadd.s32 %s236, %s237
          %s239 = smul.addr %s238, 4
          %s240 = scalar_lea.vmem %s0, %s239
          // Predicated region
          $region29: #{bottleneck1d_forward.4} parent=27 // pred_check
            _
          $region30: #{bottleneck1d_forward.4} parent=27 // pred_check_branch
            %242 = sbr.rel (0) target = $region32
          $region31: #{bottleneck1d_forward.4} parent=27 // pred_region
            // Predicated region
            $region33: #{bottleneck1d_forward.4} parent=31 // pred_check
              _
            $region34: #{bottleneck1d_forward.4} parent=31 // pred_check_branch
              %244 = sbr.rel target = $region36
            $region35: #{bottleneck1d_forward.4} parent=31 // pred_region
              // Predicated region
              $region48: #{bottleneck1d_forward.4} parent=35 // pred_check
                _
              $region49: #{bottleneck1d_forward.4} parent=35 // pred_check_branch
                %290 = sbr.rel (0) target = $region51
              $region50: #{bottleneck1d_forward.4} parent=35 // pred_region
                loop: start=0, step=1, limit=1
                $region52: #{bottleneck1d_forward.4} parent=50 // loop_pre_header
                  _
                $region53: #{bottleneck1d_forward.4} parent=50 // loop_header
                  %s292 = sphi 0, %s296
                  %p293 = scmp.ge.s32.totalorder %s292, 1
                  %s297 = sphi %s240, %s240
                  %s298 = sphi %s234, %s234
                $region54: #{bottleneck1d_forward.4} parent=50 // loop_header_branch
                  %295 = sbr.rel (%p293) target = $region58
                $region55: #{bottleneck1d_forward.4} parent=50 // loop_body
                  _
                $region56: #{bottleneck1d_forward.4} parent=50 // loop_footer
                  %s296 = sadd.s32 1, %s292
                $region57: #{bottleneck1d_forward.4} parent=50 // loop_footer_branch
                  %291 = sbr.rel target = $region53
                $region58: #{bottleneck1d_forward.4} parent=50 // loop_exit
                  _
                %s300 = ssub.s32 16, 1
                loop: start=0, step=1, limit=1
                $region59: #{bottleneck1d_forward.4} parent=50 // loop_pre_header
                  _
                $region60: #{bottleneck1d_forward.4} parent=50 // loop_header
                  %s302 = sphi 0, %s306
                  %p303 = scmp.ge.s32.totalorder %s302, 1
                  %s307 = sphi %s240, %s240
                  %s308 = sphi %s234, %s234
                $region61: #{bottleneck1d_forward.4} parent=50 // loop_header_branch
                  %305 = sbr.rel (%p303) target = $region65
                $region62: #{bottleneck1d_forward.4} parent=50 // loop_body
                  %v309 = vld [vmem:[%s307] sm:%s300]
                  %310 = vst [vmem:[%s308] sm:%s300] %v309
                  %v311 = vld [vmem:[%s307 + $0x4] sm:%s300]
                  %312 = vst [vmem:[%s308 + $0x4] sm:%s300] %v311
                  %v313 = vld [vmem:[%s307 + $0x8] sm:%s300]
                  %314 = vst [vmem:[%s308 + $0x8] sm:%s300] %v313
                  %v315 = vld [vmem:[%s307 + $0xc] sm:%s300]
                  %316 = vst [vmem:[%s308 + $0xc] sm:%s300] %v315
                  %v317 = vld [vmem:[%s307 + $0x20] sm:%s300]
                  %318 = vst [vmem:[%s308 + $0x10] sm:%s300] %v317
                  %v319 = vld [vmem:[%s307 + $0x24] sm:%s300]
                  %320 = vst [vmem:[%s308 + $0x14] sm:%s300] %v319
                  %v321 = vld [vmem:[%s307 + $0x28] sm:%s300]
                  %322 = vst [vmem:[%s308 + $0x18] sm:%s300] %v321
                  %v323 = vld [vmem:[%s307 + $0x2c] sm:%s300]
                  %324 = vst [vmem:[%s308 + $0x1c] sm:%s300] %v323
                  %v325 = vld [vmem:[%s307 + $0x40] sm:%s300]
                  %326 = vst [vmem:[%s308 + $0x20] sm:%s300] %v325
                  %v327 = vld [vmem:[%s307 + $0x44] sm:%s300]
                  %328 = vst [vmem:[%s308 + $0x24] sm:%s300] %v327
                  %v329 = vld [vmem:[%s307 + $0x48] sm:%s300]
                  %330 = vst [vmem:[%s308 + $0x28] sm:%s300] %v329
                  %v331 = vld [vmem:[%s307 + $0x4c] sm:%s300]
                  %332 = vst [vmem:[%s308 + $0x2c] sm:%s300] %v331
                  %v333 = vld [vmem:[%s307 + $0x60] sm:%s300]
                  %334 = vst [vmem:[%s308 + $0x30] sm:%s300] %v333
                  %v335 = vld [vmem:[%s307 + $0x64] sm:%s300]
                  %336 = vst [vmem:[%s308 + $0x34] sm:%s300] %v335
                  %v337 = vld [vmem:[%s307 + $0x68] sm:%s300]
                  %338 = vst [vmem:[%s308 + $0x38] sm:%s300] %v337
                  %v339 = vld [vmem:[%s307 + $0x6c] sm:%s300]
                  %340 = vst [vmem:[%s308 + $0x3c] sm:%s300] %v339
                $region63: #{bottleneck1d_forward.4} parent=50 // loop_footer
                  %s306 = sadd.s32 1, %s302
                $region64: #{bottleneck1d_forward.4} parent=50 // loop_footer_branch
                  %301 = sbr.rel target = $region60
                $region65: #{bottleneck1d_forward.4} parent=50 // loop_exit
                  _
              $region51: #{bottleneck1d_forward.4} parent=35 // pred_fallthru
                _
            $region36: #{bottleneck1d_forward.4} parent=31 // pred_fallthru
              _
            // Predicated region
            $region37: #{bottleneck1d_forward.4} parent=31 // pred_check
              _
            $region38: #{bottleneck1d_forward.4} parent=31 // pred_check_branch
              %246 = sbr.rel (0) target = $region40
            $region39: #{bottleneck1d_forward.4} parent=31 // pred_region
              %s248 = ssub.s32 16, 1
              loop: start=0, step=1, limit=1
              $region41: #{bottleneck1d_forward.4} parent=39 // loop_pre_header
                _
              $region42: #{bottleneck1d_forward.4} parent=39 // loop_header
                %s250 = sphi 0, %s254
                %p251 = scmp.ge.s32.totalorder %s250, 1
                %s255 = sphi %s240, %s240
                %s256 = sphi %s234, %s234
              $region43: #{bottleneck1d_forward.4} parent=39 // loop_header_branch
                %253 = sbr.rel (%p251) target = $region47
              $region44: #{bottleneck1d_forward.4} parent=39 // loop_body
                %v257 = vld [vmem:[%s255] sm:%s248]
                %258 = vst [vmem:[%s256] sm:%s248] %v257
                %v259 = vld [vmem:[%s255 + $0x4] sm:%s248]
                %260 = vst [vmem:[%s256 + $0x4] sm:%s248] %v259
                %v261 = vld [vmem:[%s255 + $0x8] sm:%s248]
                %262 = vst [vmem:[%s256 + $0x8] sm:%s248] %v261
                %v263 = vld [vmem:[%s255 + $0xc] sm:%s248]
                %264 = vst [vmem:[%s256 + $0xc] sm:%s248] %v263
                %v265 = vld [vmem:[%s255 + $0x20] sm:%s248]
                %266 = vst [vmem:[%s256 + $0x10] sm:%s248] %v265
                %v267 = vld [vmem:[%s255 + $0x24] sm:%s248]
                %268 = vst [vmem:[%s256 + $0x14] sm:%s248] %v267
                %v269 = vld [vmem:[%s255 + $0x28] sm:%s248]
                %270 = vst [vmem:[%s256 + $0x18] sm:%s248] %v269
                %v271 = vld [vmem:[%s255 + $0x2c] sm:%s248]
                %272 = vst [vmem:[%s256 + $0x1c] sm:%s248] %v271
                %v273 = vld [vmem:[%s255 + $0x40] sm:%s248]
                %274 = vst [vmem:[%s256 + $0x20] sm:%s248] %v273
                %v275 = vld [vmem:[%s255 + $0x44] sm:%s248]
                %276 = vst [vmem:[%s256 + $0x24] sm:%s248] %v275
                %v277 = vld [vmem:[%s255 + $0x48] sm:%s248]
                %278 = vst [vmem:[%s256 + $0x28] sm:%s248] %v277
                %v279 = vld [vmem:[%s255 + $0x4c] sm:%s248]
                %280 = vst [vmem:[%s256 + $0x2c] sm:%s248] %v279
                %v281 = vld [vmem:[%s255 + $0x60] sm:%s248]
                %282 = vst [vmem:[%s256 + $0x30] sm:%s248] %v281
                %v283 = vld [vmem:[%s255 + $0x64] sm:%s248]
                %284 = vst [vmem:[%s256 + $0x34] sm:%s248] %v283
                %v285 = vld [vmem:[%s255 + $0x68] sm:%s248]
                %286 = vst [vmem:[%s256 + $0x38] sm:%s248] %v285
                %v287 = vld [vmem:[%s255 + $0x6c] sm:%s248]
                %288 = vst [vmem:[%s256 + $0x3c] sm:%s248] %v287
              $region45: #{bottleneck1d_forward.4} parent=39 // loop_footer
                %s254 = sadd.s32 1, %s250
              $region46: #{bottleneck1d_forward.4} parent=39 // loop_footer_branch
                %249 = sbr.rel target = $region42
              $region47: #{bottleneck1d_forward.4} parent=39 // loop_exit
                _
            $region40: #{bottleneck1d_forward.4} parent=31 // pred_fallthru
              _
          $region32: #{bottleneck1d_forward.4} parent=27 // pred_fallthru
            _
          %341 = vnop
        $region28: #{bottleneck1d_forward.4} parent=23 // pred_fallthru
          _
      $region24: #{bottleneck1d_forward.4} parent=5 // pred_fallthru
        _
      %p342 = scmp.le.s32.totalorder 1, %s13
      %p343 = scmp.lt.s32.totalorder %s13, 5
      %p344 = pnand %p342, %p343
      %p345 = pneg %p344
      // Predicated region
      $region66: #{bottleneck1d_forward.4} parent=5 // pred_check
        _
      $region67: #{bottleneck1d_forward.4} parent=5 // pred_check_branch
        %347 = sbr.rel (%p344) target = $region69
      $region68: #{bottleneck1d_forward.4} parent=5 // pred_region
        %s348 = ssub.s32 %s13, 1
        %s349 = sand.u32 %s40, 1
        %s350 = sand.u32 %s40, 1
        %s351 = smul.addr %s350, 64
        %s352 = scalar_lea.vmem [#allocation2], %s351
        // Predicated region
        $region70: #{bottleneck1d_forward.4} parent=68 // pred_check
          %p353 = pneg %p53
        $region71: #{bottleneck1d_forward.4} parent=68 // pred_check_branch
          %355 = sbr.rel (%p353) target = $region73
        $region72: #{bottleneck1d_forward.4} parent=68 // pred_region
          _
        $region73: #{bottleneck1d_forward.4} parent=68 // pred_fallthru
          _
        %s356 = sand.u32 %s40, 1
        %s357 = sand.u32 %s40, 1
        %s358 = smul.addr %s357, 64
        %s359 = scalar_lea.vmem [#allocation2], %s358
        %p360 = pneg %p53
        %p361 = pneg %p50
        %p362 = pneg %p74
        %p363 = pneg %p71
        %p364 = pneg %p95
        %p365 = pneg %p92
        %p366 = pneg %p123
        %p367 = pneg %p120
        %s368 = sand.u32 %s110, 1
        %s369 = sand.u32 %s110, 1
        %s370 = smul.addr %s369, 64
        %s371 = scalar_lea.vmem [#allocation3], %s370
        %p372 = pneg %p149
        %p373 = pneg %p146
        %p374 = scmp.lt.s32.totalorder %s22, 1
        %s375 = scalar_select %p374, %s22, 1
        %s376 = smul.addr %s375, 2
        %s377 = scalar_lea.vmem %s4, %s376
        %p378 = pneg %p177
        %p379 = pneg %p174
        %s380 = sand.u32 %s164, 1
        %s381 = sand.u32 %s164, 1
        %s382 = smul.addr %s381, 32
        %s383 = scalar_lea.vmem [#allocation4], %s382
        %p384 = pneg %p203
        %p385 = pneg %p200
        %p386 = scmp.lt.s32.totalorder %s22, 1
        %s387 = scalar_select %p386, %s22, 1
        %s388 = smul.addr %s387, 2
        %s389 = scalar_lea.vmem %s6, %s388
        %s390 = smul.u32 4, %s22
        %s391 = smul.u32 4, %s23
        %s392 = smul.u32 4, %s22
        %s393 = smul.u32 4, %s23
        %p394 = scmp.lt.s32.totalorder %s22, 1
        %s395 = scalar_select %p394, %s22, 1
        %s396 = smul.addr %s395, 2
        %s397 = scalar_lea.vmem %s4, %s396
        %s398 = smul.u32 4, %s22
        %s399 = smul.u32 2, %s23
        %p400 = scmp.lt.s32.totalorder %s22, 1
        %s401 = scalar_select %p400, %s22, 1
        %s402 = smul.addr %s401, 2
        %s403 = scalar_lea.vmem %s6, %s402
        %p405 = scmp.eq.s32.totalorder %s23, 0
        // Predicated region
        $region74: #{bottleneck1d_forward.4} parent=68 // pred_check
          %p406 = pneg %p405
        $region75: #{bottleneck1d_forward.4} parent=68 // pred_check_branch
          %408 = sbr.rel (%p406) target = $region77
        $region76: #{bottleneck1d_forward.4} parent=68 // pred_region
          %409 = vst [vmem:[%s397] sm:$0x3] 0.0
          %410 = vst [vmem:[%s403] sm:$0x3] 0.0
        $region77: #{bottleneck1d_forward.4} parent=68 // pred_fallthru
          _
        %v411 = vld [vmem:[%s352] sm:$0xf]
        %v412 = vld [vmem:[%s352 + $0x4] sm:$0xf]
        %v413 = vld [vmem:[%s352 + $0x8] sm:$0xf]
        %v414 = vld [vmem:[%s352 + $0xc] sm:$0xf]
        %v415 = vld [vmem:[%s352 + $0x10] sm:$0xf]
        %v416 = vld [vmem:[%s352 + $0x14] sm:$0xf]
        %v417 = vld [vmem:[%s352 + $0x18] sm:$0xf]
        %v418 = vld [vmem:[%s352 + $0x1c] sm:$0xf]
        %v419 = vld [vmem:[%s352 + $0x20] sm:$0xf]
        %v420 = vld [vmem:[%s352 + $0x24] sm:$0xf]
        %v421 = vld [vmem:[%s352 + $0x28] sm:$0xf]
        %v422 = vld [vmem:[%s352 + $0x2c] sm:$0xf]
        %v423 = vld [vmem:[%s352 + $0x30] sm:$0xf]
        %v424 = vld [vmem:[%s352 + $0x34] sm:$0xf]
        %v425 = vld [vmem:[%s352 + $0x38] sm:$0xf]
        %v426 = vld [vmem:[%s352 + $0x3c] sm:$0xf]
        %v427 = vld [vmem:[%s1] sm:$0xf]
        %v428 = vld [vmem:[%s1 + $0x4] sm:$0xf]
        %v429 = vld [vmem:[%s1 + $0x8] sm:$0xf]
        %v430 = vld [vmem:[%s1 + $0xc] sm:$0xf]
        %v431 = vld [vmem:[%s1 + $0x10] sm:$0xf]
        %v432 = vld [vmem:[%s1 + $0x14] sm:$0xf]
        %v433 = vld [vmem:[%s1 + $0x18] sm:$0xf]
        %v434 = vld [vmem:[%s1 + $0x1c] sm:$0xf]
        %v451 = vunpack.c.l.b16 %v411
        %v452 = vunpack.c.l.b16 %v412
        %v453 = vunpack.c.l.b16 %v413
        %v454 = vunpack.c.l.b16 %v414
        %v455 = vunpack.c.l.b16 %v415
        %v456 = vunpack.c.l.b16 %v416
        %v457 = vunpack.c.l.b16 %v417
        %v458 = vunpack.c.l.b16 %v418
        %v459 = vunpack.c.l.b16 %v419
        %v460 = vunpack.c.l.b16 %v420
        %v461 = vunpack.c.l.b16 %v421
        %v462 = vunpack.c.l.b16 %v422
        %v463 = vunpack.c.l.b16 %v423
        %v464 = vunpack.c.l.b16 %v424
        %v465 = vunpack.c.l.b16 %v425
        %v466 = vunpack.c.l.b16 %v426
        %v467 = vpack.c.b16 %v452, %v451
        %v468 = vpack.c.b16 %v454, %v453
        %v469 = vpack.c.b16 %v456, %v455
        %v470 = vpack.c.b16 %v458, %v457
        %v471 = vpack.c.b16 %v460, %v459
        %v472 = vpack.c.b16 %v462, %v461
        %v473 = vpack.c.b16 %v464, %v463
        %v474 = vpack.c.b16 %v466, %v465
        %v483 = vunpack.c.l.b16 %v427
        %v484 = vunpack.c.l.b16 %v428
        %v485 = vunpack.c.l.b16 %v429
        %v486 = vunpack.c.l.b16 %v430
        %v487 = vunpack.c.l.b16 %v431
        %v488 = vunpack.c.l.b16 %v432
        %v489 = vunpack.c.l.b16 %v433
        %v490 = vunpack.c.l.b16 %v434
        %v491 = vpack.c.b16 %v484, %v483
        %v492 = vpack.c.b16 %v486, %v485
        %v493 = vpack.c.b16 %v488, %v487
        %v494 = vpack.c.b16 %v490, %v489
        %vm499 = vcmask 523264
        %v501 = vsel %vm499, %v467, 0
        %v504 = vsel %vm499, %v468, 0
        %v507 = vsel %vm499, %v469, 0
        %v510 = vsel %vm499, %v470, 0
        %v513 = vsel %vm499, %v471, 0
        %v516 = vsel %vm499, %v472, 0
        %v519 = vsel %vm499, %v473, 0
        %v522 = vsel %vm499, %v474, 0
        %524 = vmatprep.subr.bf16.mxu0 0
        %525 = vmatpush1.bf16.msra.mxu0 0
        %526 = vmatprep.subr.bf16.mxu0 0
        %527 = vmatpush1.bf16.msra.mxu0 0
        %528 = vmatprep.subr.bf16.mxu0 0
        %529 = vmatpush1.bf16.msra.mxu0 0
        %530 = vmatprep.subr.bf16.mxu0 0
        %531 = vmatpush1.bf16.msra.mxu0 0
        %532 = vmatprep.subr.bf16.mxu0 0
        %533 = vmatpush1.bf16.msra.mxu0 %v494
        %534 = vmatprep.subr.bf16.mxu0 0
        %535 = vmatpush1.bf16.msra.mxu0 %v493
        %536 = vmatprep.subr.bf16.mxu0 0
        %537 = vmatpush1.bf16.msra.mxu0 %v492
        %538 = vmatprep.subr.bf16.mxu0 0
        %539 = vmatpush1.bf16.msra.mxu0 %v491
        %540 = vmatprep.subr.bf16.mxu0 0
        %541 = vmatpush2.bf16.msra.mxu0 0
        %542 = vmatprep.subr.bf16.mxu0 0
        %543 = vmatpush2.bf16.msra.mxu0 0
        %544 = vmatprep.subr.bf16.mxu0 0
        %545 = vmatpush2.bf16.msra.mxu0 0
        %546 = vmatprep.subr.bf16.mxu0 0
        %547 = vmatpush2.bf16.msra.mxu0 0
        %548 = vmatprep.subr.bf16.mxu0 0
        %549 = vmatpush2.bf16.msra.mxu0 0
        %550 = vmatprep.subr.bf16.mxu0 0
        %551 = vmatpush2.bf16.msra.mxu0 0
        %552 = vmatprep.subr.bf16.mxu0 0
        %553 = vmatpush2.bf16.msra.mxu0 0
        %554 = vmatprep.subr.bf16.mxu0 0
        %555 = vmatpush2.bf16.msra.mxu0 0
        %556 = vmatprep.mubr.bf16.mxu0 0
        %557 = vmatmul.mubr.bf16.gmra.mxu0 %v501
        %v558 = vpop.f32.mrf.mxu0
        %v559 = vadd.f32 0.0, %v558
        %v560 = vpop.f32.mrf.mxu0
        %v561 = vpop.f32.mrf.mxu0
        %v562 = vadd.f32 0.0, %v561
        %v563 = vpop.f32.mrf.mxu0
        %564 = vmatprep.mubr.bf16.mxu0 0
        %565 = vmatmul.mubr.bf16.gmra.mxu0 %v504
        %v566 = vpop.f32.mrf.mxu0
        %v567 = vadd.f32 0.0, %v566
        %v568 = vpop.f32.mrf.mxu0
        %v569 = vpop.f32.mrf.mxu0
        %v570 = vadd.f32 0.0, %v569
        %v571 = vpop.f32.mrf.mxu0
        %572 = vmatprep.mubr.bf16.mxu0 0
        %573 = vmatmul.mubr.bf16.gmra.mxu0 %v507
        %v574 = vpop.f32.mrf.mxu0
        %v575 = vadd.f32 0.0, %v574
        %v576 = vpop.f32.mrf.mxu0
        %v577 = vpop.f32.mrf.mxu0
        %v578 = vadd.f32 0.0, %v577
        %v579 = vpop.f32.mrf.mxu0
        %580 = vmatprep.mubr.bf16.mxu0 0
        %581 = vmatmul.mubr.bf16.gmra.mxu0 %v510
        %v582 = vpop.f32.mrf.mxu0
        %v583 = vadd.f32 0.0, %v582
        %v584 = vpop.f32.mrf.mxu0
        %v585 = vpop.f32.mrf.mxu0
        %v586 = vadd.f32 0.0, %v585
        %v587 = vpop.f32.mrf.mxu0
        %588 = vmatprep.mubr.bf16.mxu0 0
        %589 = vmatmul.mubr.bf16.gmra.mxu0 %v513
        %v590 = vpop.f32.mrf.mxu0
        %v591 = vadd.f32 0.0, %v590
        %v592 = vpop.f32.mrf.mxu0
        %v593 = vpop.f32.mrf.mxu0
        %v594 = vadd.f32 0.0, %v593
        %v595 = vpop.f32.mrf.mxu0
        %596 = vmatprep.mubr.bf16.mxu0 0
        %597 = vmatmul.mubr.bf16.gmra.mxu0 %v516
        %v598 = vpop.f32.mrf.mxu0
        %v599 = vadd.f32 0.0, %v598
        %v600 = vpop.f32.mrf.mxu0
        %v601 = vpop.f32.mrf.mxu0
        %v602 = vadd.f32 0.0, %v601
        %v603 = vpop.f32.mrf.mxu0
        %604 = vmatprep.mubr.bf16.mxu0 0
        %605 = vmatmul.mubr.bf16.gmra.mxu0 %v519
        %v606 = vpop.f32.mrf.mxu0
        %v607 = vadd.f32 0.0, %v606
        %v608 = vpop.f32.mrf.mxu0
        %v609 = vpop.f32.mrf.mxu0
        %v610 = vadd.f32 0.0, %v609
        %v611 = vpop.f32.mrf.mxu0
        %612 = vmatprep.mubr.bf16.mxu0 0
        %613 = vmatmul.mubr.bf16.gmra.mxu0 %v522
        %v614 = vpop.f32.mrf.mxu0
        %v615 = vadd.f32 0.0, %v614
        %v616 = vpop.f32.mrf.mxu0
        %v617 = vpop.f32.mrf.mxu0
        %v618 = vadd.f32 0.0, %v617
        %v619 = vpop.f32.mrf.mxu0
        %620 = vdwg.mxu0
        %v621 = vpack.c.bf16 %v562, %v559
        %v622 = vpack.c.bf16 %v570, %v567
        %v623 = vpack.c.bf16 %v578, %v575
        %v624 = vpack.c.bf16 %v586, %v583
        %v625 = vpack.c.bf16 %v594, %v591
        %v626 = vpack.c.bf16 %v602, %v599
        %v627 = vpack.c.bf16 %v610, %v607
        %v628 = vpack.c.bf16 %v618, %v615
        %v637 = vunpack.c.l.b16 %v621
        %v638 = vunpack.c.h.b16 %v621
        %v639 = vunpack.c.l.b16 %v622
        %v640 = vunpack.c.h.b16 %v622
        %v641 = vunpack.c.l.b16 %v623
        %v642 = vunpack.c.h.b16 %v623
        %v643 = vunpack.c.l.b16 %v624
        %v644 = vunpack.c.h.b16 %v624
        %v645 = vunpack.c.l.b16 %v625
        %v646 = vunpack.c.h.b16 %v625
        %v647 = vunpack.c.l.b16 %v626
        %v648 = vunpack.c.h.b16 %v626
        %v649 = vunpack.c.l.b16 %v627
        %v650 = vunpack.c.h.b16 %v627
        %v651 = vunpack.c.l.b16 %v628
        %v652 = vunpack.c.h.b16 %v628
        %v653 = vpack.c.b16 %v637, %v637
        %v654 = vpack.c.b16 %v638, %v638
        %v655 = vpack.c.b16 %v639, %v639
        %v656 = vpack.c.b16 %v640, %v640
        %v657 = vpack.c.b16 %v641, %v641
        %v658 = vpack.c.b16 %v642, %v642
        %v659 = vpack.c.b16 %v643, %v643
        %v660 = vpack.c.b16 %v644, %v644
        %v661 = vpack.c.b16 %v645, %v645
        %v662 = vpack.c.b16 %v646, %v646
        %v663 = vpack.c.b16 %v647, %v647
        %v664 = vpack.c.b16 %v648, %v648
        %v665 = vpack.c.b16 %v649, %v649
        %v666 = vpack.c.b16 %v650, %v650
        %v667 = vpack.c.b16 %v651, %v651
        %v668 = vpack.c.b16 %v652, %v652
        %685 = vst [vmem:[%s371] sm:$0xf] %v653
        %686 = vst [vmem:[%s371 + $0x4] sm:$0xf] %v654
        %687 = vst [vmem:[%s371 + $0x8] sm:$0xf] %v655
        %688 = vst [vmem:[%s371 + $0xc] sm:$0xf] %v656
        %689 = vst [vmem:[%s371 + $0x10] sm:$0xf] %v657
        %690 = vst [vmem:[%s371 + $0x14] sm:$0xf] %v658
        %691 = vst [vmem:[%s371 + $0x18] sm:$0xf] %v659
        %692 = vst [vmem:[%s371 + $0x1c] sm:$0xf] %v660
        %693 = vst [vmem:[%s371 + $0x20] sm:$0xf] %v661
        %694 = vst [vmem:[%s371 + $0x24] sm:$0xf] %v662
        %695 = vst [vmem:[%s371 + $0x28] sm:$0xf] %v663
        %696 = vst [vmem:[%s371 + $0x2c] sm:$0xf] %v664
        %697 = vst [vmem:[%s371 + $0x30] sm:$0xf] %v665
        %698 = vst [vmem:[%s371 + $0x34] sm:$0xf] %v666
        %699 = vst [vmem:[%s371 + $0x38] sm:$0xf] %v667
        %700 = vst [vmem:[%s371 + $0x3c] sm:$0xf] %v668
        %v701 = vld [vmem:[%s397] sm:$0x3]
        %v702 = vadd.f32 %v559, %v562
        %v703 = vadd.f32 %v702, %v567
        %v704 = vadd.f32 %v703, %v570
        %v705 = vadd.f32 %v704, %v575
        %v706 = vadd.f32 %v705, %v578
        %v707 = vadd.f32 %v706, %v583
        %v708 = vadd.f32 %v707, %v586
        %v709 = vadd.f32 %v708, %v591
        %v710 = vadd.f32 %v709, %v594
        %v711 = vadd.f32 %v710, %v599
        %v712 = vadd.f32 %v711, %v602
        %v713 = vadd.f32 %v712, %v607
        %v714 = vadd.f32 %v713, %v610
        %v715 = vadd.f32 %v714, %v615
        %v716 = vadd.f32 %v715, %v618
        %v717 = vrot.slane %v716, 4
        %v718 = vadd.f32 %v716, %v717
        %v719 = vrot.slane %v718, 2
        %v720 = vadd.f32 %v718, %v719
        %v721 = vrot.slane %v720, 1
        %v722 = vadd.f32 %v720, %v721
        %v723 = vmul.f32 %v559, %v559
        %v724 = vmul.f32 %v562, %v562
        %v725 = vmul.f32 %v567, %v567
        %v726 = vmul.f32 %v570, %v570
        %v727 = vmul.f32 %v575, %v575
        %v728 = vmul.f32 %v578, %v578
        %v729 = vmul.f32 %v583, %v583
        %v730 = vmul.f32 %v586, %v586
        %v731 = vmul.f32 %v591, %v591
        %v732 = vmul.f32 %v594, %v594
        %v733 = vmul.f32 %v599, %v599
        %v734 = vmul.f32 %v602, %v602
        %v735 = vmul.f32 %v607, %v607
        %v736 = vmul.f32 %v610, %v610
        %v737 = vmul.f32 %v615, %v615
        %v738 = vmul.f32 %v618, %v618
        %v739 = vadd.f32 %v723, %v724
        %v740 = vadd.f32 %v739, %v725
        %v741 = vadd.f32 %v740, %v726
        %v742 = vadd.f32 %v741, %v727
        %v743 = vadd.f32 %v742, %v728
        %v744 = vadd.f32 %v743, %v729
        %v745 = vadd.f32 %v744, %v730
        %v746 = vadd.f32 %v745, %v731
        %v747 = vadd.f32 %v746, %v732
        %v748 = vadd.f32 %v747, %v733
        %v749 = vadd.f32 %v748, %v734
        %v750 = vadd.f32 %v749, %v735
        %v751 = vadd.f32 %v750, %v736
        %v752 = vadd.f32 %v751, %v737
        %v753 = vadd.f32 %v752, %v738
        %v754 = vrot.slane %v753, 4
        %v755 = vadd.f32 %v753, %v754
        %v756 = vrot.slane %v755, 2
        %v757 = vadd.f32 %v755, %v756
        %v758 = vrot.slane %v757, 1
        %v759 = vadd.f32 %v757, %v758
        %vm760 = vcmask 1040384
        %v761 = vsel %vm760, %v722, %v759
        %v762 = vadd.f32 %v701, %v761
        %763 = vst [vmem:[%s397] sm:$0x3] %v762
        %v765 = vunpack.c.l.s4 1966171168
        %v766 = vunpack.c.0.s8 %v765
        %v767 = vlaneseq
        %v768 = vshrl.u32 %v767, 7
        %v769 = vsub.s32 %v766, %v768
        %v770 = vrot.slane %v411, %v769
        %v771 = vcombine.high %v770, %v770
        %v773 = vunpack.c.l.s4 1966171168
        %v774 = vunpack.c.0.s8 %v773
        %v775 = vlaneseq
        %v776 = vshrl.u32 %v775, 7
        %v777 = vsub.s32 %v774, %v776
        %v778 = vrot.slane %v770, %v777
        %v780 = vunpack.c.l.s4 1966171168
        %v781 = vunpack.c.0.s8 %v780
        %v782 = vlaneseq
        %v783 = vshrl.u32 %v782, 7
        %v784 = vsub.s32 %v781, %v783
        %v785 = vrot.slane %v771, %v784
        %v786 = vcombine.high %v778, %v778
        %v787 = vcombine.high %v785, %v785
        %v789 = vunpack.c.l.s4 1966171168
        %v790 = vunpack.c.0.s8 %v789
        %v791 = vlaneseq
        %v792 = vshrl.u32 %v791, 7
        %v793 = vsub.s32 %v790, %v792
        %v794 = vrot.slane %v412, %v793
        %v795 = vcombine.high %v794, %v794
        %v797 = vunpack.c.l.s4 1966171168
        %v798 = vunpack.c.0.s8 %v797
        %v799 = vlaneseq
        %v800 = vshrl.u32 %v799, 7
        %v801 = vsub.s32 %v798, %v800
        %v802 = vrot.slane %v794, %v801
        %v804 = vunpack.c.l.s4 1966171168
        %v805 = vunpack.c.0.s8 %v804
        %v806 = vlaneseq
        %v807 = vshrl.u32 %v806, 7
        %v808 = vsub.s32 %v805, %v807
        %v809 = vrot.slane %v795, %v808
        %v810 = vcombine.high %v802, %v802
        %v811 = vcombine.high %v809, %v809
        %v813 = vunpack.c.l.s4 1966171168
        %v814 = vunpack.c.0.s8 %v813
        %v815 = vlaneseq
        %v816 = vshrl.u32 %v815, 7
        %v817 = vsub.s32 %v814, %v816
        %v818 = vrot.slane %v413, %v817
        %v819 = vcombine.high %v818, %v818
        %v821 = vunpack.c.l.s4 1966171168
        %v822 = vunpack.c.0.s8 %v821
        %v823 = vlaneseq
        %v824 = vshrl.u32 %v823, 7
        %v825 = vsub.s32 %v822, %v824
        %v826 = vrot.slane %v818, %v825
        %v828 = vunpack.c.l.s4 1966171168
        %v829 = vunpack.c.0.s8 %v828
        %v830 = vlaneseq
        %v831 = vshrl.u32 %v830, 7
        %v832 = vsub.s32 %v829, %v831
        %v833 = vrot.slane %v819, %v832
        %v834 = vcombine.high %v826, %v826
        %v835 = vcombine.high %v833, %v833
        %v837 = vunpack.c.l.s4 1966171168
        %v838 = vunpack.c.0.s8 %v837
        %v839 = vlaneseq
        %v840 = vshrl.u32 %v839, 7
        %v841 = vsub.s32 %v838, %v840
        %v842 = vrot.slane %v414, %v841
        %v843 = vcombine.high %v842, %v842
        %v845 = vunpack.c.l.s4 1966171168
        %v846 = vunpack.c.0.s8 %v845
        %v847 = vlaneseq
        %v848 = vshrl.u32 %v847, 7
        %v849 = vsub.s32 %v846, %v848
        %v850 = vrot.slane %v842, %v849
        %v852 = vunpack.c.l.s4 1966171168
        %v853 = vunpack.c.0.s8 %v852
        %v854 = vlaneseq
        %v855 = vshrl.u32 %v854, 7
        %v856 = vsub.s32 %v853, %v855
        %v857 = vrot.slane %v843, %v856
        %v858 = vcombine.high %v850, %v850
        %v859 = vcombine.high %v857, %v857
        %v861 = vunpack.c.l.s4 1966171168
        %v862 = vunpack.c.0.s8 %v861
        %v863 = vlaneseq
        %v864 = vshrl.u32 %v863, 7
        %v865 = vsub.s32 %v862, %v864
        %v866 = vrot.slane %v415, %v865
        %v867 = vcombine.high %v866, %v866
        %v869 = vunpack.c.l.s4 1966171168
        %v870 = vunpack.c.0.s8 %v869
        %v871 = vlaneseq
        %v872 = vshrl.u32 %v871, 7
        %v873 = vsub.s32 %v870, %v872
        %v874 = vrot.slane %v866, %v873
        %v876 = vunpack.c.l.s4 1966171168
        %v877 = vunpack.c.0.s8 %v876
        %v878 = vlaneseq
        %v879 = vshrl.u32 %v878, 7
        %v880 = vsub.s32 %v877, %v879
        %v881 = vrot.slane %v867, %v880
        %v882 = vcombine.high %v874, %v874
        %v883 = vcombine.high %v881, %v881
        %v885 = vunpack.c.l.s4 1966171168
        %v886 = vunpack.c.0.s8 %v885
        %v887 = vlaneseq
        %v888 = vshrl.u32 %v887, 7
        %v889 = vsub.s32 %v886, %v888
        %v890 = vrot.slane %v416, %v889
        %v891 = vcombine.high %v890, %v890
        %v893 = vunpack.c.l.s4 1966171168
        %v894 = vunpack.c.0.s8 %v893
        %v895 = vlaneseq
        %v896 = vshrl.u32 %v895, 7
        %v897 = vsub.s32 %v894, %v896
        %v898 = vrot.slane %v890, %v897
        %v900 = vunpack.c.l.s4 1966171168
        %v901 = vunpack.c.0.s8 %v900
        %v902 = vlaneseq
        %v903 = vshrl.u32 %v902, 7
        %v904 = vsub.s32 %v901, %v903
        %v905 = vrot.slane %v891, %v904
        %v906 = vcombine.high %v898, %v898
        %v907 = vcombine.high %v905, %v905
        %v909 = vunpack.c.l.s4 1966171168
        %v910 = vunpack.c.0.s8 %v909
        %v911 = vlaneseq
        %v912 = vshrl.u32 %v911, 7
        %v913 = vsub.s32 %v910, %v912
        %v914 = vrot.slane %v417, %v913
        %v915 = vcombine.high %v914, %v914
        %v917 = vunpack.c.l.s4 1966171168
        %v918 = vunpack.c.0.s8 %v917
        %v919 = vlaneseq
        %v920 = vshrl.u32 %v919, 7
        %v921 = vsub.s32 %v918, %v920
        %v922 = vrot.slane %v914, %v921
        %v924 = vunpack.c.l.s4 1966171168
        %v925 = vunpack.c.0.s8 %v924
        %v926 = vlaneseq
        %v927 = vshrl.u32 %v926, 7
        %v928 = vsub.s32 %v925, %v927
        %v929 = vrot.slane %v915, %v928
        %v930 = vcombine.high %v922, %v922
        %v931 = vcombine.high %v929, %v929
        %v933 = vunpack.c.l.s4 1966171168
        %v934 = vunpack.c.0.s8 %v933
        %v935 = vlaneseq
        %v936 = vshrl.u32 %v935, 7
        %v937 = vsub.s32 %v934, %v936
        %v938 = vrot.slane %v418, %v937
        %v939 = vcombine.high %v938, %v938
        %v941 = vunpack.c.l.s4 1966171168
        %v942 = vunpack.c.0.s8 %v941
        %v943 = vlaneseq
        %v944 = vshrl.u32 %v943, 7
        %v945 = vsub.s32 %v942, %v944
        %v946 = vrot.slane %v938, %v945
        %v948 = vunpack.c.l.s4 1966171168
        %v949 = vunpack.c.0.s8 %v948
        %v950 = vlaneseq
        %v951 = vshrl.u32 %v950, 7
        %v952 = vsub.s32 %v949, %v951
        %v953 = vrot.slane %v939, %v952
        %v954 = vcombine.high %v946, %v946
        %v955 = vcombine.high %v953, %v953
        %v957 = vunpack.c.l.s4 1966171168
        %v958 = vunpack.c.0.s8 %v957
        %v959 = vlaneseq
        %v960 = vshrl.u32 %v959, 7
        %v961 = vsub.s32 %v958, %v960
        %v962 = vrot.slane %v419, %v961
        %v963 = vcombine.high %v962, %v962
        %v965 = vunpack.c.l.s4 1966171168
        %v966 = vunpack.c.0.s8 %v965
        %v967 = vlaneseq
        %v968 = vshrl.u32 %v967, 7
        %v969 = vsub.s32 %v966, %v968
        %v970 = vrot.slane %v962, %v969
        %v972 = vunpack.c.l.s4 1966171168
        %v973 = vunpack.c.0.s8 %v972
        %v974 = vlaneseq
        %v975 = vshrl.u32 %v974, 7
        %v976 = vsub.s32 %v973, %v975
        %v977 = vrot.slane %v963, %v976
        %v978 = vcombine.high %v970, %v970
        %v979 = vcombine.high %v977, %v977
        %v981 = vunpack.c.l.s4 1966171168
        %v982 = vunpack.c.0.s8 %v981
        %v983 = vlaneseq
        %v984 = vshrl.u32 %v983, 7
        %v985 = vsub.s32 %v982, %v984
        %v986 = vrot.slane %v420, %v985
        %v987 = vcombine.high %v986, %v986
        %v989 = vunpack.c.l.s4 1966171168
        %v990 = vunpack.c.0.s8 %v989
        %v991 = vlaneseq
        %v992 = vshrl.u32 %v991, 7
        %v993 = vsub.s32 %v990, %v992
        %v994 = vrot.slane %v986, %v993
        %v996 = vunpack.c.l.s4 1966171168
        %v997 = vunpack.c.0.s8 %v996
        %v998 = vlaneseq
        %v999 = vshrl.u32 %v998, 7
        %v1000 = vsub.s32 %v997, %v999
        %v1001 = vrot.slane %v987, %v1000
        %v1002 = vcombine.high %v994, %v994
        %v1003 = vcombine.high %v1001, %v1001
        %v1005 = vunpack.c.l.s4 1966171168
        %v1006 = vunpack.c.0.s8 %v1005
        %v1007 = vlaneseq
        %v1008 = vshrl.u32 %v1007, 7
        %v1009 = vsub.s32 %v1006, %v1008
        %v1010 = vrot.slane %v421, %v1009
        %v1011 = vcombine.high %v1010, %v1010
        %v1013 = vunpack.c.l.s4 1966171168
        %v1014 = vunpack.c.0.s8 %v1013
        %v1015 = vlaneseq
        %v1016 = vshrl.u32 %v1015, 7
        %v1017 = vsub.s32 %v1014, %v1016
        %v1018 = vrot.slane %v1010, %v1017
        %v1020 = vunpack.c.l.s4 1966171168
        %v1021 = vunpack.c.0.s8 %v1020
        %v1022 = vlaneseq
        %v1023 = vshrl.u32 %v1022, 7
        %v1024 = vsub.s32 %v1021, %v1023
        %v1025 = vrot.slane %v1011, %v1024
        %v1026 = vcombine.high %v1018, %v1018
        %v1027 = vcombine.high %v1025, %v1025
        %v1029 = vunpack.c.l.s4 1966171168
        %v1030 = vunpack.c.0.s8 %v1029
        %v1031 = vlaneseq
        %v1032 = vshrl.u32 %v1031, 7
        %v1033 = vsub.s32 %v1030, %v1032
        %v1034 = vrot.slane %v422, %v1033
        %v1035 = vcombine.high %v1034, %v1034
        %v1037 = vunpack.c.l.s4 1966171168
        %v1038 = vunpack.c.0.s8 %v1037
        %v1039 = vlaneseq
        %v1040 = vshrl.u32 %v1039, 7
        %v1041 = vsub.s32 %v1038, %v1040
        %v1042 = vrot.slane %v1034, %v1041
        %v1044 = vunpack.c.l.s4 1966171168
        %v1045 = vunpack.c.0.s8 %v1044
        %v1046 = vlaneseq
        %v1047 = vshrl.u32 %v1046, 7
        %v1048 = vsub.s32 %v1045, %v1047
        %v1049 = vrot.slane %v1035, %v1048
        %v1050 = vcombine.high %v1042, %v1042
        %v1051 = vcombine.high %v1049, %v1049
        %v1053 = vunpack.c.l.s4 1966171168
        %v1054 = vunpack.c.0.s8 %v1053
        %v1055 = vlaneseq
        %v1056 = vshrl.u32 %v1055, 7
        %v1057 = vsub.s32 %v1054, %v1056
        %v1058 = vrot.slane %v423, %v1057
        %v1059 = vcombine.high %v1058, %v1058
        %v1061 = vunpack.c.l.s4 1966171168
        %v1062 = vunpack.c.0.s8 %v1061
        %v1063 = vlaneseq
        %v1064 = vshrl.u32 %v1063, 7
        %v1065 = vsub.s32 %v1062, %v1064
        %v1066 = vrot.slane %v1058, %v1065
        %v1068 = vunpack.c.l.s4 1966171168
        %v1069 = vunpack.c.0.s8 %v1068
        %v1070 = vlaneseq
        %v1071 = vshrl.u32 %v1070, 7
        %v1072 = vsub.s32 %v1069, %v1071
        %v1073 = vrot.slane %v1059, %v1072
        %v1074 = vcombine.high %v1066, %v1066
        %v1075 = vcombine.high %v1073, %v1073
        %v1077 = vunpack.c.l.s4 1966171168
        %v1078 = vunpack.c.0.s8 %v1077
        %v1079 = vlaneseq
        %v1080 = vshrl.u32 %v1079, 7
        %v1081 = vsub.s32 %v1078, %v1080
        %v1082 = vrot.slane %v424, %v1081
        %v1083 = vcombine.high %v1082, %v1082
        %v1085 = vunpack.c.l.s4 1966171168
        %v1086 = vunpack.c.0.s8 %v1085
        %v1087 = vlaneseq
        %v1088 = vshrl.u32 %v1087, 7
        %v1089 = vsub.s32 %v1086, %v1088
        %v1090 = vrot.slane %v1082, %v1089
        %v1092 = vunpack.c.l.s4 1966171168
        %v1093 = vunpack.c.0.s8 %v1092
        %v1094 = vlaneseq
        %v1095 = vshrl.u32 %v1094, 7
        %v1096 = vsub.s32 %v1093, %v1095
        %v1097 = vrot.slane %v1083, %v1096
        %v1098 = vcombine.high %v1090, %v1090
        %v1099 = vcombine.high %v1097, %v1097
        %v1101 = vunpack.c.l.s4 1966171168
        %v1102 = vunpack.c.0.s8 %v1101
        %v1103 = vlaneseq
        %v1104 = vshrl.u32 %v1103, 7
        %v1105 = vsub.s32 %v1102, %v1104
        %v1106 = vrot.slane %v425, %v1105
        %v1107 = vcombine.high %v1106, %v1106
        %v1109 = vunpack.c.l.s4 1966171168
        %v1110 = vunpack.c.0.s8 %v1109
        %v1111 = vlaneseq
        %v1112 = vshrl.u32 %v1111, 7
        %v1113 = vsub.s32 %v1110, %v1112
        %v1114 = vrot.slane %v1106, %v1113
        %v1116 = vunpack.c.l.s4 1966171168
        %v1117 = vunpack.c.0.s8 %v1116
        %v1118 = vlaneseq
        %v1119 = vshrl.u32 %v1118, 7
        %v1120 = vsub.s32 %v1117, %v1119
        %v1121 = vrot.slane %v1107, %v1120
        %v1122 = vcombine.high %v1114, %v1114
        %v1123 = vcombine.high %v1121, %v1121
        %v1125 = vunpack.c.l.s4 1966171168
        %v1126 = vunpack.c.0.s8 %v1125
        %v1127 = vlaneseq
        %v1128 = vshrl.u32 %v1127, 7
        %v1129 = vsub.s32 %v1126, %v1128
        %v1130 = vrot.slane %v426, %v1129
        %v1131 = vcombine.high %v1130, %v1130
        %v1133 = vunpack.c.l.s4 1966171168
        %v1134 = vunpack.c.0.s8 %v1133
        %v1135 = vlaneseq
        %v1136 = vshrl.u32 %v1135, 7
        %v1137 = vsub.s32 %v1134, %v1136
        %v1138 = vrot.slane %v1130, %v1137
        %v1140 = vunpack.c.l.s4 1966171168
        %v1141 = vunpack.c.0.s8 %v1140
        %v1142 = vlaneseq
        %v1143 = vshrl.u32 %v1142, 7
        %v1144 = vsub.s32 %v1141, %v1143
        %v1145 = vrot.slane %v1131, %v1144
        %v1146 = vcombine.high %v1138, %v1138
        %v1147 = vcombine.high %v1145, %v1145
        %v1148 = vld [vmem:[%s2] sm:$0xf]
        %v1149 = vld [vmem:[%s2 + $0x4] sm:$0xf]
        %v1150 = vld [vmem:[%s2 + $0x8] sm:$0xf]
        %v1151 = vld [vmem:[%s2 + $0xc] sm:$0xf]
        %v1152 = vld [vmem:[%s2 + $0x10] sm:$0xf]
        %v1153 = vld [vmem:[%s2 + $0x14] sm:$0xf]
        %v1154 = vld [vmem:[%s2 + $0x18] sm:$0xf]
        %v1155 = vld [vmem:[%s2 + $0x1c] sm:$0xf]
        %v1157 = vunpack.c.l.s4 1966171168
        %v1158 = vunpack.c.0.s8 %v1157
        %v1159 = vlaneseq
        %v1160 = vshrl.u32 %v1159, 7
        %v1161 = vsub.s32 %v1158, %v1160
        %v1162 = vrot.slane %v778, %v1161
        %v1164 = vunpack.c.l.s4 1966171168
        %v1165 = vunpack.c.0.s8 %v1164
        %v1166 = vlaneseq
        %v1167 = vshrl.u32 %v1166, 7
        %v1168 = vsub.s32 %v1165, %v1167
        %v1169 = vrot.slane %v1162, %v1168
        %v1171 = vunpack.c.l.s4 1966171168
        %v1172 = vunpack.c.0.s8 %v1171
        %v1173 = vlaneseq
        %v1174 = vshrl.u32 %v1173, 7
        %v1175 = vsub.s32 %v1172, %v1174
        %v1176 = vrot.slane %v785, %v1175
        %v1178 = vunpack.c.l.s4 1966171168
        %v1179 = vunpack.c.0.s8 %v1178
        %v1180 = vlaneseq
        %v1181 = vshrl.u32 %v1180, 7
        %v1182 = vsub.s32 %v1179, %v1181
        %v1183 = vrot.slane %v1176, %v1182
        %v1185 = vunpack.c.l.s4 1966171168
        %v1186 = vunpack.c.0.s8 %v1185
        %v1187 = vlaneseq
        %v1188 = vshrl.u32 %v1187, 7
        %v1189 = vsub.s32 %v1186, %v1188
        %v1190 = vrot.slane %v786, %v1189
        %v1192 = vunpack.c.l.s4 1966171168
        %v1193 = vunpack.c.0.s8 %v1192
        %v1194 = vlaneseq
        %v1195 = vshrl.u32 %v1194, 7
        %v1196 = vsub.s32 %v1193, %v1195
        %v1197 = vrot.slane %v1190, %v1196
        %v1199 = vunpack.c.l.s4 1966171168
        %v1200 = vunpack.c.0.s8 %v1199
        %v1201 = vlaneseq
        %v1202 = vshrl.u32 %v1201, 7
        %v1203 = vsub.s32 %v1200, %v1202
        %v1204 = vrot.slane %v787, %v1203
        %v1206 = vunpack.c.l.s4 1966171168
        %v1207 = vunpack.c.0.s8 %v1206
        %v1208 = vlaneseq
        %v1209 = vshrl.u32 %v1208, 7
        %v1210 = vsub.s32 %v1207, %v1209
        %v1211 = vrot.slane %v1204, %v1210
        %v1213 = vunpack.c.l.s4 1966171168
        %v1214 = vunpack.c.0.s8 %v1213
        %v1215 = vlaneseq
        %v1216 = vshrl.u32 %v1215, 7
        %v1217 = vsub.s32 %v1214, %v1216
        %v1218 = vrot.slane %v802, %v1217
        %v1220 = vunpack.c.l.s4 1966171168
        %v1221 = vunpack.c.0.s8 %v1220
        %v1222 = vlaneseq
        %v1223 = vshrl.u32 %v1222, 7
        %v1224 = vsub.s32 %v1221, %v1223
        %v1225 = vrot.slane %v1218, %v1224
        %v1227 = vunpack.c.l.s4 1966171168
        %v1228 = vunpack.c.0.s8 %v1227
        %v1229 = vlaneseq
        %v1230 = vshrl.u32 %v1229, 7
        %v1231 = vsub.s32 %v1228, %v1230
        %v1232 = vrot.slane %v809, %v1231
        %v1234 = vunpack.c.l.s4 1966171168
        %v1235 = vunpack.c.0.s8 %v1234
        %v1236 = vlaneseq
        %v1237 = vshrl.u32 %v1236, 7
        %v1238 = vsub.s32 %v1235, %v1237
        %v1239 = vrot.slane %v1232, %v1238
        %v1241 = vunpack.c.l.s4 1966171168
        %v1242 = vunpack.c.0.s8 %v1241
        %v1243 = vlaneseq
        %v1244 = vshrl.u32 %v1243, 7
        %v1245 = vsub.s32 %v1242, %v1244
        %v1246 = vrot.slane %v810, %v1245
        %v1248 = vunpack.c.l.s4 1966171168
        %v1249 = vunpack.c.0.s8 %v1248
        %v1250 = vlaneseq
        %v1251 = vshrl.u32 %v1250, 7
        %v1252 = vsub.s32 %v1249, %v1251
        %v1253 = vrot.slane %v1246, %v1252
        %v1255 = vunpack.c.l.s4 1966171168
        %v1256 = vunpack.c.0.s8 %v1255
        %v1257 = vlaneseq
        %v1258 = vshrl.u32 %v1257, 7
        %v1259 = vsub.s32 %v1256, %v1258
        %v1260 = vrot.slane %v811, %v1259
        %v1262 = vunpack.c.l.s4 1966171168
        %v1263 = vunpack.c.0.s8 %v1262
        %v1264 = vlaneseq
        %v1265 = vshrl.u32 %v1264, 7
        %v1266 = vsub.s32 %v1263, %v1265
        %v1267 = vrot.slane %v1260, %v1266
        %v1269 = vunpack.c.l.s4 1966171168
        %v1270 = vunpack.c.0.s8 %v1269
        %v1271 = vlaneseq
        %v1272 = vshrl.u32 %v1271, 7
        %v1273 = vsub.s32 %v1270, %v1272
        %v1274 = vrot.slane %v826, %v1273
        %v1276 = vunpack.c.l.s4 1966171168
        %v1277 = vunpack.c.0.s8 %v1276
        %v1278 = vlaneseq
        %v1279 = vshrl.u32 %v1278, 7
        %v1280 = vsub.s32 %v1277, %v1279
        %v1281 = vrot.slane %v1274, %v1280
        %v1283 = vunpack.c.l.s4 1966171168
        %v1284 = vunpack.c.0.s8 %v1283
        %v1285 = vlaneseq
        %v1286 = vshrl.u32 %v1285, 7
        %v1287 = vsub.s32 %v1284, %v1286
        %v1288 = vrot.slane %v833, %v1287
        %v1290 = vunpack.c.l.s4 1966171168
        %v1291 = vunpack.c.0.s8 %v1290
        %v1292 = vlaneseq
        %v1293 = vshrl.u32 %v1292, 7
        %v1294 = vsub.s32 %v1291, %v1293
        %v1295 = vrot.slane %v1288, %v1294
        %v1297 = vunpack.c.l.s4 1966171168
        %v1298 = vunpack.c.0.s8 %v1297
        %v1299 = vlaneseq
        %v1300 = vshrl.u32 %v1299, 7
        %v1301 = vsub.s32 %v1298, %v1300
        %v1302 = vrot.slane %v834, %v1301
        %v1304 = vunpack.c.l.s4 1966171168
        %v1305 = vunpack.c.0.s8 %v1304
        %v1306 = vlaneseq
        %v1307 = vshrl.u32 %v1306, 7
        %v1308 = vsub.s32 %v1305, %v1307
        %v1309 = vrot.slane %v1302, %v1308
        %v1311 = vunpack.c.l.s4 1966171168
        %v1312 = vunpack.c.0.s8 %v1311
        %v1313 = vlaneseq
        %v1314 = vshrl.u32 %v1313, 7
        %v1315 = vsub.s32 %v1312, %v1314
        %v1316 = vrot.slane %v835, %v1315
        %v1318 = vunpack.c.l.s4 1966171168
        %v1319 = vunpack.c.0.s8 %v1318
        %v1320 = vlaneseq
        %v1321 = vshrl.u32 %v1320, 7
        %v1322 = vsub.s32 %v1319, %v1321
        %v1323 = vrot.slane %v1316, %v1322
        %v1325 = vunpack.c.l.s4 1966171168
        %v1326 = vunpack.c.0.s8 %v1325
        %v1327 = vlaneseq
        %v1328 = vshrl.u32 %v1327, 7
        %v1329 = vsub.s32 %v1326, %v1328
        %v1330 = vrot.slane %v850, %v1329
        %v1332 = vunpack.c.l.s4 1966171168
        %v1333 = vunpack.c.0.s8 %v1332
        %v1334 = vlaneseq
        %v1335 = vshrl.u32 %v1334, 7
        %v1336 = vsub.s32 %v1333, %v1335
        %v1337 = vrot.slane %v1330, %v1336
        %v1339 = vunpack.c.l.s4 1966171168
        %v1340 = vunpack.c.0.s8 %v1339
        %v1341 = vlaneseq
        %v1342 = vshrl.u32 %v1341, 7
        %v1343 = vsub.s32 %v1340, %v1342
        %v1344 = vrot.slane %v857, %v1343
        %v1346 = vunpack.c.l.s4 1966171168
        %v1347 = vunpack.c.0.s8 %v1346
        %v1348 = vlaneseq
        %v1349 = vshrl.u32 %v1348, 7
        %v1350 = vsub.s32 %v1347, %v1349
        %v1351 = vrot.slane %v1344, %v1350
        %v1353 = vunpack.c.l.s4 1966171168
        %v1354 = vunpack.c.0.s8 %v1353
        %v1355 = vlaneseq
        %v1356 = vshrl.u32 %v1355, 7
        %v1357 = vsub.s32 %v1354, %v1356
        %v1358 = vrot.slane %v858, %v1357
        %v1360 = vunpack.c.l.s4 1966171168
        %v1361 = vunpack.c.0.s8 %v1360
        %v1362 = vlaneseq
        %v1363 = vshrl.u32 %v1362, 7
        %v1364 = vsub.s32 %v1361, %v1363
        %v1365 = vrot.slane %v1358, %v1364
        %v1367 = vunpack.c.l.s4 1966171168
        %v1368 = vunpack.c.0.s8 %v1367
        %v1369 = vlaneseq
        %v1370 = vshrl.u32 %v1369, 7
        %v1371 = vsub.s32 %v1368, %v1370
        %v1372 = vrot.slane %v859, %v1371
        %v1374 = vunpack.c.l.s4 1966171168
        %v1375 = vunpack.c.0.s8 %v1374
        %v1376 = vlaneseq
        %v1377 = vshrl.u32 %v1376, 7
        %v1378 = vsub.s32 %v1375, %v1377
        %v1379 = vrot.slane %v1372, %v1378
        %v1381 = vunpack.c.l.s4 1966171168
        %v1382 = vunpack.c.0.s8 %v1381
        %v1383 = vlaneseq
        %v1384 = vshrl.u32 %v1383, 7
        %v1385 = vsub.s32 %v1382, %v1384
        %v1386 = vrot.slane %v874, %v1385
        %v1388 = vunpack.c.l.s4 1966171168
        %v1389 = vunpack.c.0.s8 %v1388
        %v1390 = vlaneseq
        %v1391 = vshrl.u32 %v1390, 7
        %v1392 = vsub.s32 %v1389, %v1391
        %v1393 = vrot.slane %v1386, %v1392
        %v1395 = vunpack.c.l.s4 1966171168
        %v1396 = vunpack.c.0.s8 %v1395
        %v1397 = vlaneseq
        %v1398 = vshrl.u32 %v1397, 7
        %v1399 = vsub.s32 %v1396, %v1398
        %v1400 = vrot.slane %v881, %v1399
        %v1402 = vunpack.c.l.s4 1966171168
        %v1403 = vunpack.c.0.s8 %v1402
        %v1404 = vlaneseq
        %v1405 = vshrl.u32 %v1404, 7
        %v1406 = vsub.s32 %v1403, %v1405
        %v1407 = vrot.slane %v1400, %v1406
        %v1409 = vunpack.c.l.s4 1966171168
        %v1410 = vunpack.c.0.s8 %v1409
        %v1411 = vlaneseq
        %v1412 = vshrl.u32 %v1411, 7
        %v1413 = vsub.s32 %v1410, %v1412
        %v1414 = vrot.slane %v882, %v1413
        %v1416 = vunpack.c.l.s4 1966171168
        %v1417 = vunpack.c.0.s8 %v1416
        %v1418 = vlaneseq
        %v1419 = vshrl.u32 %v1418, 7
        %v1420 = vsub.s32 %v1417, %v1419
        %v1421 = vrot.slane %v1414, %v1420
        %v1423 = vunpack.c.l.s4 1966171168
        %v1424 = vunpack.c.0.s8 %v1423
        %v1425 = vlaneseq
        %v1426 = vshrl.u32 %v1425, 7
        %v1427 = vsub.s32 %v1424, %v1426
        %v1428 = vrot.slane %v883, %v1427
        %v1430 = vunpack.c.l.s4 1966171168
        %v1431 = vunpack.c.0.s8 %v1430
        %v1432 = vlaneseq
        %v1433 = vshrl.u32 %v1432, 7
        %v1434 = vsub.s32 %v1431, %v1433
        %v1435 = vrot.slane %v1428, %v1434
        %v1437 = vunpack.c.l.s4 1966171168
        %v1438 = vunpack.c.0.s8 %v1437
        %v1439 = vlaneseq
        %v1440 = vshrl.u32 %v1439, 7
        %v1441 = vsub.s32 %v1438, %v1440
        %v1442 = vrot.slane %v898, %v1441
        %v1444 = vunpack.c.l.s4 1966171168
        %v1445 = vunpack.c.0.s8 %v1444
        %v1446 = vlaneseq
        %v1447 = vshrl.u32 %v1446, 7
        %v1448 = vsub.s32 %v1445, %v1447
        %v1449 = vrot.slane %v1442, %v1448
        %v1451 = vunpack.c.l.s4 1966171168
        %v1452 = vunpack.c.0.s8 %v1451
        %v1453 = vlaneseq
        %v1454 = vshrl.u32 %v1453, 7
        %v1455 = vsub.s32 %v1452, %v1454
        %v1456 = vrot.slane %v905, %v1455
        %v1458 = vunpack.c.l.s4 1966171168
        %v1459 = vunpack.c.0.s8 %v1458
        %v1460 = vlaneseq
        %v1461 = vshrl.u32 %v1460, 7
        %v1462 = vsub.s32 %v1459, %v1461
        %v1463 = vrot.slane %v1456, %v1462
        %v1465 = vunpack.c.l.s4 1966171168
        %v1466 = vunpack.c.0.s8 %v1465
        %v1467 = vlaneseq
        %v1468 = vshrl.u32 %v1467, 7
        %v1469 = vsub.s32 %v1466, %v1468
        %v1470 = vrot.slane %v906, %v1469
        %v1472 = vunpack.c.l.s4 1966171168
        %v1473 = vunpack.c.0.s8 %v1472
        %v1474 = vlaneseq
        %v1475 = vshrl.u32 %v1474, 7
        %v1476 = vsub.s32 %v1473, %v1475
        %v1477 = vrot.slane %v1470, %v1476
        %v1479 = vunpack.c.l.s4 1966171168
        %v1480 = vunpack.c.0.s8 %v1479
        %v1481 = vlaneseq
        %v1482 = vshrl.u32 %v1481, 7
        %v1483 = vsub.s32 %v1480, %v1482
        %v1484 = vrot.slane %v907, %v1483
        %v1486 = vunpack.c.l.s4 1966171168
        %v1487 = vunpack.c.0.s8 %v1486
        %v1488 = vlaneseq
        %v1489 = vshrl.u32 %v1488, 7
        %v1490 = vsub.s32 %v1487, %v1489
        %v1491 = vrot.slane %v1484, %v1490
        %v1493 = vunpack.c.l.s4 1966171168
        %v1494 = vunpack.c.0.s8 %v1493
        %v1495 = vlaneseq
        %v1496 = vshrl.u32 %v1495, 7
        %v1497 = vsub.s32 %v1494, %v1496
        %v1498 = vrot.slane %v922, %v1497
        %v1500 = vunpack.c.l.s4 1966171168
        %v1501 = vunpack.c.0.s8 %v1500
        %v1502 = vlaneseq
        %v1503 = vshrl.u32 %v1502, 7
        %v1504 = vsub.s32 %v1501, %v1503
        %v1505 = vrot.slane %v1498, %v1504
        %v1507 = vunpack.c.l.s4 1966171168
        %v1508 = vunpack.c.0.s8 %v1507
        %v1509 = vlaneseq
        %v1510 = vshrl.u32 %v1509, 7
        %v1511 = vsub.s32 %v1508, %v1510
        %v1512 = vrot.slane %v929, %v1511
        %v1514 = vunpack.c.l.s4 1966171168
        %v1515 = vunpack.c.0.s8 %v1514
        %v1516 = vlaneseq
        %v1517 = vshrl.u32 %v1516, 7
        %v1518 = vsub.s32 %v1515, %v1517
        %v1519 = vrot.slane %v1512, %v1518
        %v1521 = vunpack.c.l.s4 1966171168
        %v1522 = vunpack.c.0.s8 %v1521
        %v1523 = vlaneseq
        %v1524 = vshrl.u32 %v1523, 7
        %v1525 = vsub.s32 %v1522, %v1524
        %v1526 = vrot.slane %v930, %v1525
        %v1528 = vunpack.c.l.s4 1966171168
        %v1529 = vunpack.c.0.s8 %v1528
        %v1530 = vlaneseq
        %v1531 = vshrl.u32 %v1530, 7
        %v1532 = vsub.s32 %v1529, %v1531
        %v1533 = vrot.slane %v1526, %v1532
        %v1535 = vunpack.c.l.s4 1966171168
        %v1536 = vunpack.c.0.s8 %v1535
        %v1537 = vlaneseq
        %v1538 = vshrl.u32 %v1537, 7
        %v1539 = vsub.s32 %v1536, %v1538
        %v1540 = vrot.slane %v931, %v1539
        %v1542 = vunpack.c.l.s4 1966171168
        %v1543 = vunpack.c.0.s8 %v1542
        %v1544 = vlaneseq
        %v1545 = vshrl.u32 %v1544, 7
        %v1546 = vsub.s32 %v1543, %v1545
        %v1547 = vrot.slane %v1540, %v1546
        %v1549 = vunpack.c.l.s4 1966171168
        %v1550 = vunpack.c.0.s8 %v1549
        %v1551 = vlaneseq
        %v1552 = vshrl.u32 %v1551, 7
        %v1553 = vsub.s32 %v1550, %v1552
        %v1554 = vrot.slane %v946, %v1553
        %v1556 = vunpack.c.l.s4 1966171168
        %v1557 = vunpack.c.0.s8 %v1556
        %v1558 = vlaneseq
        %v1559 = vshrl.u32 %v1558, 7
        %v1560 = vsub.s32 %v1557, %v1559
        %v1561 = vrot.slane %v1554, %v1560
        %v1563 = vunpack.c.l.s4 1966171168
        %v1564 = vunpack.c.0.s8 %v1563
        %v1565 = vlaneseq
        %v1566 = vshrl.u32 %v1565, 7
        %v1567 = vsub.s32 %v1564, %v1566
        %v1568 = vrot.slane %v953, %v1567
        %v1570 = vunpack.c.l.s4 1966171168
        %v1571 = vunpack.c.0.s8 %v1570
        %v1572 = vlaneseq
        %v1573 = vshrl.u32 %v1572, 7
        %v1574 = vsub.s32 %v1571, %v1573
        %v1575 = vrot.slane %v1568, %v1574
        %v1577 = vunpack.c.l.s4 1966171168
        %v1578 = vunpack.c.0.s8 %v1577
        %v1579 = vlaneseq
        %v1580 = vshrl.u32 %v1579, 7
        %v1581 = vsub.s32 %v1578, %v1580
        %v1582 = vrot.slane %v954, %v1581
        %v1584 = vunpack.c.l.s4 1966171168
        %v1585 = vunpack.c.0.s8 %v1584
        %v1586 = vlaneseq
        %v1587 = vshrl.u32 %v1586, 7
        %v1588 = vsub.s32 %v1585, %v1587
        %v1589 = vrot.slane %v1582, %v1588
        %v1591 = vunpack.c.l.s4 1966171168
        %v1592 = vunpack.c.0.s8 %v1591
        %v1593 = vlaneseq
        %v1594 = vshrl.u32 %v1593, 7
        %v1595 = vsub.s32 %v1592, %v1594
        %v1596 = vrot.slane %v955, %v1595
        %v1598 = vunpack.c.l.s4 1966171168
        %v1599 = vunpack.c.0.s8 %v1598
        %v1600 = vlaneseq
        %v1601 = vshrl.u32 %v1600, 7
        %v1602 = vsub.s32 %v1599, %v1601
        %v1603 = vrot.slane %v1596, %v1602
        %v1605 = vunpack.c.l.s4 1966171168
        %v1606 = vunpack.c.0.s8 %v1605
        %v1607 = vlaneseq
        %v1608 = vshrl.u32 %v1607, 7
        %v1609 = vsub.s32 %v1606, %v1608
        %v1610 = vrot.slane %v970, %v1609
        %v1612 = vunpack.c.l.s4 1966171168
        %v1613 = vunpack.c.0.s8 %v1612
        %v1614 = vlaneseq
        %v1615 = vshrl.u32 %v1614, 7
        %v1616 = vsub.s32 %v1613, %v1615
        %v1617 = vrot.slane %v1610, %v1616
        %v1619 = vunpack.c.l.s4 1966171168
        %v1620 = vunpack.c.0.s8 %v1619
        %v1621 = vlaneseq
        %v1622 = vshrl.u32 %v1621, 7
        %v1623 = vsub.s32 %v1620, %v1622
        %v1624 = vrot.slane %v977, %v1623
        %v1626 = vunpack.c.l.s4 1966171168
        %v1627 = vunpack.c.0.s8 %v1626
        %v1628 = vlaneseq
        %v1629 = vshrl.u32 %v1628, 7
        %v1630 = vsub.s32 %v1627, %v1629
        %v1631 = vrot.slane %v1624, %v1630
        %v1633 = vunpack.c.l.s4 1966171168
        %v1634 = vunpack.c.0.s8 %v1633
        %v1635 = vlaneseq
        %v1636 = vshrl.u32 %v1635, 7
        %v1637 = vsub.s32 %v1634, %v1636
        %v1638 = vrot.slane %v978, %v1637
        %v1640 = vunpack.c.l.s4 1966171168
        %v1641 = vunpack.c.0.s8 %v1640
        %v1642 = vlaneseq
        %v1643 = vshrl.u32 %v1642, 7
        %v1644 = vsub.s32 %v1641, %v1643
        %v1645 = vrot.slane %v1638, %v1644
        %v1647 = vunpack.c.l.s4 1966171168
        %v1648 = vunpack.c.0.s8 %v1647
        %v1649 = vlaneseq
        %v1650 = vshrl.u32 %v1649, 7
        %v1651 = vsub.s32 %v1648, %v1650
        %v1652 = vrot.slane %v979, %v1651
        %v1654 = vunpack.c.l.s4 1966171168
        %v1655 = vunpack.c.0.s8 %v1654
        %v1656 = vlaneseq
        %v1657 = vshrl.u32 %v1656, 7
        %v1658 = vsub.s32 %v1655, %v1657
        %v1659 = vrot.slane %v1652, %v1658
        %v1661 = vunpack.c.l.s4 1966171168
        %v1662 = vunpack.c.0.s8 %v1661
        %v1663 = vlaneseq
        %v1664 = vshrl.u32 %v1663, 7
        %v1665 = vsub.s32 %v1662, %v1664
        %v1666 = vrot.slane %v994, %v1665
        %v1668 = vunpack.c.l.s4 1966171168
        %v1669 = vunpack.c.0.s8 %v1668
        %v1670 = vlaneseq
        %v1671 = vshrl.u32 %v1670, 7
        %v1672 = vsub.s32 %v1669, %v1671
        %v1673 = vrot.slane %v1666, %v1672
        %v1675 = vunpack.c.l.s4 1966171168
        %v1676 = vunpack.c.0.s8 %v1675
        %v1677 = vlaneseq
        %v1678 = vshrl.u32 %v1677, 7
        %v1679 = vsub.s32 %v1676, %v1678
        %v1680 = vrot.slane %v1001, %v1679
        %v1682 = vunpack.c.l.s4 1966171168
        %v1683 = vunpack.c.0.s8 %v1682
        %v1684 = vlaneseq
        %v1685 = vshrl.u32 %v1684, 7
        %v1686 = vsub.s32 %v1683, %v1685
        %v1687 = vrot.slane %v1680, %v1686
        %v1689 = vunpack.c.l.s4 1966171168
        %v1690 = vunpack.c.0.s8 %v1689
        %v1691 = vlaneseq
        %v1692 = vshrl.u32 %v1691, 7
        %v1693 = vsub.s32 %v1690, %v1692
        %v1694 = vrot.slane %v1002, %v1693
        %v1696 = vunpack.c.l.s4 1966171168
        %v1697 = vunpack.c.0.s8 %v1696
        %v1698 = vlaneseq
        %v1699 = vshrl.u32 %v1698, 7
        %v1700 = vsub.s32 %v1697, %v1699
        %v1701 = vrot.slane %v1694, %v1700
        %v1703 = vunpack.c.l.s4 1966171168
        %v1704 = vunpack.c.0.s8 %v1703
        %v1705 = vlaneseq
        %v1706 = vshrl.u32 %v1705, 7
        %v1707 = vsub.s32 %v1704, %v1706
        %v1708 = vrot.slane %v1003, %v1707
        %v1710 = vunpack.c.l.s4 1966171168
        %v1711 = vunpack.c.0.s8 %v1710
        %v1712 = vlaneseq
        %v1713 = vshrl.u32 %v1712, 7
        %v1714 = vsub.s32 %v1711, %v1713
        %v1715 = vrot.slane %v1708, %v1714
        %v1717 = vunpack.c.l.s4 1966171168
        %v1718 = vunpack.c.0.s8 %v1717
        %v1719 = vlaneseq
        %v1720 = vshrl.u32 %v1719, 7
        %v1721 = vsub.s32 %v1718, %v1720
        %v1722 = vrot.slane %v1018, %v1721
        %v1724 = vunpack.c.l.s4 1966171168
        %v1725 = vunpack.c.0.s8 %v1724
        %v1726 = vlaneseq
        %v1727 = vshrl.u32 %v1726, 7
        %v1728 = vsub.s32 %v1725, %v1727
        %v1729 = vrot.slane %v1722, %v1728
        %v1731 = vunpack.c.l.s4 1966171168
        %v1732 = vunpack.c.0.s8 %v1731
        %v1733 = vlaneseq
        %v1734 = vshrl.u32 %v1733, 7
        %v1735 = vsub.s32 %v1732, %v1734
        %v1736 = vrot.slane %v1025, %v1735
        %v1738 = vunpack.c.l.s4 1966171168
        %v1739 = vunpack.c.0.s8 %v1738
        %v1740 = vlaneseq
        %v1741 = vshrl.u32 %v1740, 7
        %v1742 = vsub.s32 %v1739, %v1741
        %v1743 = vrot.slane %v1736, %v1742
        %v1745 = vunpack.c.l.s4 1966171168
        %v1746 = vunpack.c.0.s8 %v1745
        %v1747 = vlaneseq
        %v1748 = vshrl.u32 %v1747, 7
        %v1749 = vsub.s32 %v1746, %v1748
        %v1750 = vrot.slane %v1026, %v1749
        %v1752 = vunpack.c.l.s4 1966171168
        %v1753 = vunpack.c.0.s8 %v1752
        %v1754 = vlaneseq
        %v1755 = vshrl.u32 %v1754, 7
        %v1756 = vsub.s32 %v1753, %v1755
        %v1757 = vrot.slane %v1750, %v1756
        %v1759 = vunpack.c.l.s4 1966171168
        %v1760 = vunpack.c.0.s8 %v1759
        %v1761 = vlaneseq
        %v1762 = vshrl.u32 %v1761, 7
        %v1763 = vsub.s32 %v1760, %v1762
        %v1764 = vrot.slane %v1027, %v1763
        %v1766 = vunpack.c.l.s4 1966171168
        %v1767 = vunpack.c.0.s8 %v1766
        %v1768 = vlaneseq
        %v1769 = vshrl.u32 %v1768, 7
        %v1770 = vsub.s32 %v1767, %v1769
        %v1771 = vrot.slane %v1764, %v1770
        %v1773 = vunpack.c.l.s4 1966171168
        %v1774 = vunpack.c.0.s8 %v1773
        %v1775 = vlaneseq
        %v1776 = vshrl.u32 %v1775, 7
        %v1777 = vsub.s32 %v1774, %v1776
        %v1778 = vrot.slane %v1042, %v1777
        %v1780 = vunpack.c.l.s4 1966171168
        %v1781 = vunpack.c.0.s8 %v1780
        %v1782 = vlaneseq
        %v1783 = vshrl.u32 %v1782, 7
        %v1784 = vsub.s32 %v1781, %v1783
        %v1785 = vrot.slane %v1778, %v1784
        %v1787 = vunpack.c.l.s4 1966171168
        %v1788 = vunpack.c.0.s8 %v1787
        %v1789 = vlaneseq
        %v1790 = vshrl.u32 %v1789, 7
        %v1791 = vsub.s32 %v1788, %v1790
        %v1792 = vrot.slane %v1049, %v1791
        %v1794 = vunpack.c.l.s4 1966171168
        %v1795 = vunpack.c.0.s8 %v1794
        %v1796 = vlaneseq
        %v1797 = vshrl.u32 %v1796, 7
        %v1798 = vsub.s32 %v1795, %v1797
        %v1799 = vrot.slane %v1792, %v1798
        %v1801 = vunpack.c.l.s4 1966171168
        %v1802 = vunpack.c.0.s8 %v1801
        %v1803 = vlaneseq
        %v1804 = vshrl.u32 %v1803, 7
        %v1805 = vsub.s32 %v1802, %v1804
        %v1806 = vrot.slane %v1050, %v1805
        %v1808 = vunpack.c.l.s4 1966171168
        %v1809 = vunpack.c.0.s8 %v1808
        %v1810 = vlaneseq
        %v1811 = vshrl.u32 %v1810, 7
        %v1812 = vsub.s32 %v1809, %v1811
        %v1813 = vrot.slane %v1806, %v1812
        %v1815 = vunpack.c.l.s4 1966171168
        %v1816 = vunpack.c.0.s8 %v1815
        %v1817 = vlaneseq
        %v1818 = vshrl.u32 %v1817, 7
        %v1819 = vsub.s32 %v1816, %v1818
        %v1820 = vrot.slane %v1051, %v1819
        %v1822 = vunpack.c.l.s4 1966171168
        %v1823 = vunpack.c.0.s8 %v1822
        %v1824 = vlaneseq
        %v1825 = vshrl.u32 %v1824, 7
        %v1826 = vsub.s32 %v1823, %v1825
        %v1827 = vrot.slane %v1820, %v1826
        %v1829 = vunpack.c.l.s4 1966171168
        %v1830 = vunpack.c.0.s8 %v1829
        %v1831 = vlaneseq
        %v1832 = vshrl.u32 %v1831, 7
        %v1833 = vsub.s32 %v1830, %v1832
        %v1834 = vrot.slane %v1066, %v1833
        %v1836 = vunpack.c.l.s4 1966171168
        %v1837 = vunpack.c.0.s8 %v1836
        %v1838 = vlaneseq
        %v1839 = vshrl.u32 %v1838, 7
        %v1840 = vsub.s32 %v1837, %v1839
        %v1841 = vrot.slane %v1834, %v1840
        %v1843 = vunpack.c.l.s4 1966171168
        %v1844 = vunpack.c.0.s8 %v1843
        %v1845 = vlaneseq
        %v1846 = vshrl.u32 %v1845, 7
        %v1847 = vsub.s32 %v1844, %v1846
        %v1848 = vrot.slane %v1073, %v1847
        %v1850 = vunpack.c.l.s4 1966171168
        %v1851 = vunpack.c.0.s8 %v1850
        %v1852 = vlaneseq
        %v1853 = vshrl.u32 %v1852, 7
        %v1854 = vsub.s32 %v1851, %v1853
        %v1855 = vrot.slane %v1848, %v1854
        %v1857 = vunpack.c.l.s4 1966171168
        %v1858 = vunpack.c.0.s8 %v1857
        %v1859 = vlaneseq
        %v1860 = vshrl.u32 %v1859, 7
        %v1861 = vsub.s32 %v1858, %v1860
        %v1862 = vrot.slane %v1074, %v1861
        %v1864 = vunpack.c.l.s4 1966171168
        %v1865 = vunpack.c.0.s8 %v1864
        %v1866 = vlaneseq
        %v1867 = vshrl.u32 %v1866, 7
        %v1868 = vsub.s32 %v1865, %v1867
        %v1869 = vrot.slane %v1862, %v1868
        %v1871 = vunpack.c.l.s4 1966171168
        %v1872 = vunpack.c.0.s8 %v1871
        %v1873 = vlaneseq
        %v1874 = vshrl.u32 %v1873, 7
        %v1875 = vsub.s32 %v1872, %v1874
        %v1876 = vrot.slane %v1075, %v1875
        %v1878 = vunpack.c.l.s4 1966171168
        %v1879 = vunpack.c.0.s8 %v1878
        %v1880 = vlaneseq
        %v1881 = vshrl.u32 %v1880, 7
        %v1882 = vsub.s32 %v1879, %v1881
        %v1883 = vrot.slane %v1876, %v1882
        %v1885 = vunpack.c.l.s4 1966171168
        %v1886 = vunpack.c.0.s8 %v1885
        %v1887 = vlaneseq
        %v1888 = vshrl.u32 %v1887, 7
        %v1889 = vsub.s32 %v1886, %v1888
        %v1890 = vrot.slane %v1090, %v1889
        %v1892 = vunpack.c.l.s4 1966171168
        %v1893 = vunpack.c.0.s8 %v1892
        %v1894 = vlaneseq
        %v1895 = vshrl.u32 %v1894, 7
        %v1896 = vsub.s32 %v1893, %v1895
        %v1897 = vrot.slane %v1890, %v1896
        %v1899 = vunpack.c.l.s4 1966171168
        %v1900 = vunpack.c.0.s8 %v1899
        %v1901 = vlaneseq
        %v1902 = vshrl.u32 %v1901, 7
        %v1903 = vsub.s32 %v1900, %v1902
        %v1904 = vrot.slane %v1097, %v1903
        %v1906 = vunpack.c.l.s4 1966171168
        %v1907 = vunpack.c.0.s8 %v1906
        %v1908 = vlaneseq
        %v1909 = vshrl.u32 %v1908, 7
        %v1910 = vsub.s32 %v1907, %v1909
        %v1911 = vrot.slane %v1904, %v1910
        %v1913 = vunpack.c.l.s4 1966171168
        %v1914 = vunpack.c.0.s8 %v1913
        %v1915 = vlaneseq
        %v1916 = vshrl.u32 %v1915, 7
        %v1917 = vsub.s32 %v1914, %v1916
        %v1918 = vrot.slane %v1098, %v1917
        %v1920 = vunpack.c.l.s4 1966171168
        %v1921 = vunpack.c.0.s8 %v1920
        %v1922 = vlaneseq
        %v1923 = vshrl.u32 %v1922, 7
        %v1924 = vsub.s32 %v1921, %v1923
        %v1925 = vrot.slane %v1918, %v1924
        %v1927 = vunpack.c.l.s4 1966171168
        %v1928 = vunpack.c.0.s8 %v1927
        %v1929 = vlaneseq
        %v1930 = vshrl.u32 %v1929, 7
        %v1931 = vsub.s32 %v1928, %v1930
        %v1932 = vrot.slane %v1099, %v1931
        %v1934 = vunpack.c.l.s4 1966171168
        %v1935 = vunpack.c.0.s8 %v1934
        %v1936 = vlaneseq
        %v1937 = vshrl.u32 %v1936, 7
        %v1938 = vsub.s32 %v1935, %v1937
        %v1939 = vrot.slane %v1932, %v1938
        %v1941 = vunpack.c.l.s4 1966171168
        %v1942 = vunpack.c.0.s8 %v1941
        %v1943 = vlaneseq
        %v1944 = vshrl.u32 %v1943, 7
        %v1945 = vsub.s32 %v1942, %v1944
        %v1946 = vrot.slane %v1114, %v1945
        %v1948 = vunpack.c.l.s4 1966171168
        %v1949 = vunpack.c.0.s8 %v1948
        %v1950 = vlaneseq
        %v1951 = vshrl.u32 %v1950, 7
        %v1952 = vsub.s32 %v1949, %v1951
        %v1953 = vrot.slane %v1946, %v1952
        %v1955 = vunpack.c.l.s4 1966171168
        %v1956 = vunpack.c.0.s8 %v1955
        %v1957 = vlaneseq
        %v1958 = vshrl.u32 %v1957, 7
        %v1959 = vsub.s32 %v1956, %v1958
        %v1960 = vrot.slane %v1121, %v1959
        %v1962 = vunpack.c.l.s4 1966171168
        %v1963 = vunpack.c.0.s8 %v1962
        %v1964 = vlaneseq
        %v1965 = vshrl.u32 %v1964, 7
        %v1966 = vsub.s32 %v1963, %v1965
        %v1967 = vrot.slane %v1960, %v1966
        %v1969 = vunpack.c.l.s4 1966171168
        %v1970 = vunpack.c.0.s8 %v1969
        %v1971 = vlaneseq
        %v1972 = vshrl.u32 %v1971, 7
        %v1973 = vsub.s32 %v1970, %v1972
        %v1974 = vrot.slane %v1122, %v1973
        %v1976 = vunpack.c.l.s4 1966171168
        %v1977 = vunpack.c.0.s8 %v1976
        %v1978 = vlaneseq
        %v1979 = vshrl.u32 %v1978, 7
        %v1980 = vsub.s32 %v1977, %v1979
        %v1981 = vrot.slane %v1974, %v1980
        %v1983 = vunpack.c.l.s4 1966171168
        %v1984 = vunpack.c.0.s8 %v1983
        %v1985 = vlaneseq
        %v1986 = vshrl.u32 %v1985, 7
        %v1987 = vsub.s32 %v1984, %v1986
        %v1988 = vrot.slane %v1123, %v1987
        %v1990 = vunpack.c.l.s4 1966171168
        %v1991 = vunpack.c.0.s8 %v1990
        %v1992 = vlaneseq
        %v1993 = vshrl.u32 %v1992, 7
        %v1994 = vsub.s32 %v1991, %v1993
        %v1995 = vrot.slane %v1988, %v1994
        %v1997 = vunpack.c.l.s4 1966171168
        %v1998 = vunpack.c.0.s8 %v1997
        %v1999 = vlaneseq
        %v2000 = vshrl.u32 %v1999, 7
        %v2001 = vsub.s32 %v1998, %v2000
        %v2002 = vrot.slane %v1138, %v2001
        %v2004 = vunpack.c.l.s4 1966171168
        %v2005 = vunpack.c.0.s8 %v2004
        %v2006 = vlaneseq
        %v2007 = vshrl.u32 %v2006, 7
        %v2008 = vsub.s32 %v2005, %v2007
        %v2009 = vrot.slane %v2002, %v2008
        %v2011 = vunpack.c.l.s4 1966171168
        %v2012 = vunpack.c.0.s8 %v2011
        %v2013 = vlaneseq
        %v2014 = vshrl.u32 %v2013, 7
        %v2015 = vsub.s32 %v2012, %v2014
        %v2016 = vrot.slane %v1145, %v2015
        %v2018 = vunpack.c.l.s4 1966171168
        %v2019 = vunpack.c.0.s8 %v2018
        %v2020 = vlaneseq
        %v2021 = vshrl.u32 %v2020, 7
        %v2022 = vsub.s32 %v2019, %v2021
        %v2023 = vrot.slane %v2016, %v2022
        %v2025 = vunpack.c.l.s4 1966171168
        %v2026 = vunpack.c.0.s8 %v2025
        %v2027 = vlaneseq
        %v2028 = vshrl.u32 %v2027, 7
        %v2029 = vsub.s32 %v2026, %v2028
        %v2030 = vrot.slane %v1146, %v2029
        %v2032 = vunpack.c.l.s4 1966171168
        %v2033 = vunpack.c.0.s8 %v2032
        %v2034 = vlaneseq
        %v2035 = vshrl.u32 %v2034, 7
        %v2036 = vsub.s32 %v2033, %v2035
        %v2037 = vrot.slane %v2030, %v2036
        %v2039 = vunpack.c.l.s4 1966171168
        %v2040 = vunpack.c.0.s8 %v2039
        %v2041 = vlaneseq
        %v2042 = vshrl.u32 %v2041, 7
        %v2043 = vsub.s32 %v2040, %v2042
        %v2044 = vrot.slane %v1147, %v2043
        %v2046 = vunpack.c.l.s4 1966171168
        %v2047 = vunpack.c.0.s8 %v2046
        %v2048 = vlaneseq
        %v2049 = vshrl.u32 %v2048, 7
        %v2050 = vsub.s32 %v2047, %v2049
        %v2051 = vrot.slane %v2044, %v2050
        %v2052 = vunpack.c.l.b16 %v1169
        %v2053 = vunpack.c.l.b16 %v1183
        %v2054 = vunpack.c.l.b16 %v1197
        %v2055 = vunpack.c.l.b16 %v1211
        %v2056 = vunpack.c.l.b16 %v1225
        %v2057 = vunpack.c.l.b16 %v1239
        %v2058 = vunpack.c.l.b16 %v1253
        %v2059 = vunpack.c.l.b16 %v1267
        %v2060 = vunpack.c.l.b16 %v1281
        %v2061 = vunpack.c.l.b16 %v1295
        %v2062 = vunpack.c.l.b16 %v1309
        %v2063 = vunpack.c.l.b16 %v1323
        %v2064 = vunpack.c.l.b16 %v1337
        %v2065 = vunpack.c.l.b16 %v1351
        %v2066 = vunpack.c.l.b16 %v1365
        %v2067 = vunpack.c.l.b16 %v1379
        %v2068 = vunpack.c.l.b16 %v1393
        %v2069 = vunpack.c.l.b16 %v1407
        %v2070 = vunpack.c.l.b16 %v1421
        %v2071 = vunpack.c.l.b16 %v1435
        %v2072 = vunpack.c.l.b16 %v1449
        %v2073 = vunpack.c.l.b16 %v1463
        %v2074 = vunpack.c.l.b16 %v1477
        %v2075 = vunpack.c.l.b16 %v1491
        %v2076 = vunpack.c.l.b16 %v1505
        %v2077 = vunpack.c.l.b16 %v1519
        %v2078 = vunpack.c.l.b16 %v1533
        %v2079 = vunpack.c.l.b16 %v1547
        %v2080 = vunpack.c.l.b16 %v1561
        %v2081 = vunpack.c.l.b16 %v1575
        %v2082 = vunpack.c.l.b16 %v1589
        %v2083 = vunpack.c.l.b16 %v1603
        %v2084 = vunpack.c.l.b16 %v1617
        %v2085 = vunpack.c.l.b16 %v1631
        %v2086 = vunpack.c.l.b16 %v1645
        %v2087 = vunpack.c.l.b16 %v1659
        %v2088 = vunpack.c.l.b16 %v1673
        %v2089 = vunpack.c.l.b16 %v1687
        %v2090 = vunpack.c.l.b16 %v1701
        %v2091 = vunpack.c.l.b16 %v1715
        %v2092 = vunpack.c.l.b16 %v1729
        %v2093 = vunpack.c.l.b16 %v1743
        %v2094 = vunpack.c.l.b16 %v1757
        %v2095 = vunpack.c.l.b16 %v1771
        %v2096 = vunpack.c.l.b16 %v1785
        %v2097 = vunpack.c.l.b16 %v1799
        %v2098 = vunpack.c.l.b16 %v1813
        %v2099 = vunpack.c.l.b16 %v1827
        %v2100 = vunpack.c.l.b16 %v1841
        %v2101 = vunpack.c.l.b16 %v1855
        %v2102 = vunpack.c.l.b16 %v1869
        %v2103 = vunpack.c.l.b16 %v1883
        %v2104 = vunpack.c.l.b16 %v1897
        %v2105 = vunpack.c.l.b16 %v1911
        %v2106 = vunpack.c.l.b16 %v1925
        %v2107 = vunpack.c.l.b16 %v1939
        %v2108 = vunpack.c.l.b16 %v1953
        %v2109 = vunpack.c.l.b16 %v1967
        %v2110 = vunpack.c.l.b16 %v1981
        %v2111 = vunpack.c.l.b16 %v1995
        %v2112 = vunpack.c.l.b16 %v2009
        %v2113 = vunpack.c.l.b16 %v2023
        %v2114 = vunpack.c.l.b16 %v2037
        %v2115 = vunpack.c.l.b16 %v2051
        %v2116 = vrot.slane %v2053, 7
        %vm2117 = vcmask 1041409
        %v2118 = vsel %vm2117, %v2116, %v2052
        %v2119 = vrot.slane %v2054, 6
        %vm2120 = vcmask 1042434
        %v2121 = vsel %vm2120, %v2119, %v2118
        %v2122 = vrot.slane %v2055, 5
        %vm2123 = vcmask 1043459
        %v2124 = vsel %vm2123, %v2122, %v2121
        %v2125 = vrot.slane %v2056, 4
        %vm2126 = vcmask 1044484
        %v2127 = vsel %vm2126, %v2125, %v2124
        %v2128 = vrot.slane %v2057, 3
        %vm2129 = vcmask 1045509
        %v2130 = vsel %vm2129, %v2128, %v2127
        %v2131 = vrot.slane %v2058, 2
        %vm2132 = vcmask 1046534
        %v2133 = vsel %vm2132, %v2131, %v2130
        %v2134 = vrot.slane %v2059, 1
        %vm2135 = vcmask 1047559
        %v2136 = vsel %vm2135, %v2134, %v2133
        %v2137 = vrot.slane %v2061, 7
        %v2138 = vsel %vm2117, %v2137, %v2060
        %v2139 = vrot.slane %v2062, 6
        %v2140 = vsel %vm2120, %v2139, %v2138
        %v2141 = vrot.slane %v2063, 5
        %v2142 = vsel %vm2123, %v2141, %v2140
        %v2143 = vrot.slane %v2064, 4
        %v2144 = vsel %vm2126, %v2143, %v2142
        %v2145 = vrot.slane %v2065, 3
        %v2146 = vsel %vm2129, %v2145, %v2144
        %v2147 = vrot.slane %v2066, 2
        %v2148 = vsel %vm2132, %v2147, %v2146
        %v2149 = vrot.slane %v2067, 1
        %v2150 = vsel %vm2135, %v2149, %v2148
        %v2151 = vrot.slane %v2069, 7
        %v2152 = vsel %vm2117, %v2151, %v2068
        %v2153 = vrot.slane %v2070, 6
        %v2154 = vsel %vm2120, %v2153, %v2152
        %v2155 = vrot.slane %v2071, 5
        %v2156 = vsel %vm2123, %v2155, %v2154
        %v2157 = vrot.slane %v2072, 4
        %v2158 = vsel %vm2126, %v2157, %v2156
        %v2159 = vrot.slane %v2073, 3
        %v2160 = vsel %vm2129, %v2159, %v2158
        %v2161 = vrot.slane %v2074, 2
        %v2162 = vsel %vm2132, %v2161, %v2160
        %v2163 = vrot.slane %v2075, 1
        %v2164 = vsel %vm2135, %v2163, %v2162
        %v2165 = vrot.slane %v2077, 7
        %v2166 = vsel %vm2117, %v2165, %v2076
        %v2167 = vrot.slane %v2078, 6
        %v2168 = vsel %vm2120, %v2167, %v2166
        %v2169 = vrot.slane %v2079, 5
        %v2170 = vsel %vm2123, %v2169, %v2168
        %v2171 = vrot.slane %v2080, 4
        %v2172 = vsel %vm2126, %v2171, %v2170
        %v2173 = vrot.slane %v2081, 3
        %v2174 = vsel %vm2129, %v2173, %v2172
        %v2175 = vrot.slane %v2082, 2
        %v2176 = vsel %vm2132, %v2175, %v2174
        %v2177 = vrot.slane %v2083, 1
        %v2178 = vsel %vm2135, %v2177, %v2176
        %v2179 = vrot.slane %v2085, 7
        %v2180 = vsel %vm2117, %v2179, %v2084
        %v2181 = vrot.slane %v2086, 6
        %v2182 = vsel %vm2120, %v2181, %v2180
        %v2183 = vrot.slane %v2087, 5
        %v2184 = vsel %vm2123, %v2183, %v2182
        %v2185 = vrot.slane %v2088, 4
        %v2186 = vsel %vm2126, %v2185, %v2184
        %v2187 = vrot.slane %v2089, 3
        %v2188 = vsel %vm2129, %v2187, %v2186
        %v2189 = vrot.slane %v2090, 2
        %v2190 = vsel %vm2132, %v2189, %v2188
        %v2191 = vrot.slane %v2091, 1
        %v2192 = vsel %vm2135, %v2191, %v2190
        %v2193 = vrot.slane %v2093, 7
        %v2194 = vsel %vm2117, %v2193, %v2092
        %v2195 = vrot.slane %v2094, 6
        %v2196 = vsel %vm2120, %v2195, %v2194
        %v2197 = vrot.slane %v2095, 5
        %v2198 = vsel %vm2123, %v2197, %v2196
        %v2199 = vrot.slane %v2096, 4
        %v2200 = vsel %vm2126, %v2199, %v2198
        %v2201 = vrot.slane %v2097, 3
        %v2202 = vsel %vm2129, %v2201, %v2200
        %v2203 = vrot.slane %v2098, 2
        %v2204 = vsel %vm2132, %v2203, %v2202
        %v2205 = vrot.slane %v2099, 1
        %v2206 = vsel %vm2135, %v2205, %v2204
        %v2207 = vrot.slane %v2101, 7
        %v2208 = vsel %vm2117, %v2207, %v2100
        %v2209 = vrot.slane %v2102, 6
        %v2210 = vsel %vm2120, %v2209, %v2208
        %v2211 = vrot.slane %v2103, 5
        %v2212 = vsel %vm2123, %v2211, %v2210
        %v2213 = vrot.slane %v2104, 4
        %v2214 = vsel %vm2126, %v2213, %v2212
        %v2215 = vrot.slane %v2105, 3
        %v2216 = vsel %vm2129, %v2215, %v2214
        %v2217 = vrot.slane %v2106, 2
        %v2218 = vsel %vm2132, %v2217, %v2216
        %v2219 = vrot.slane %v2107, 1
        %v2220 = vsel %vm2135, %v2219, %v2218
        %v2221 = vrot.slane %v2109, 7
        %v2222 = vsel %vm2117, %v2221, %v2108
        %v2223 = vrot.slane %v2110, 6
        %v2224 = vsel %vm2120, %v2223, %v2222
        %v2225 = vrot.slane %v2111, 5
        %v2226 = vsel %vm2123, %v2225, %v2224
        %v2227 = vrot.slane %v2112, 4
        %v2228 = vsel %vm2126, %v2227, %v2226
        %v2229 = vrot.slane %v2113, 3
        %v2230 = vsel %vm2129, %v2229, %v2228
        %v2231 = vrot.slane %v2114, 2
        %v2232 = vsel %vm2132, %v2231, %v2230
        %v2233 = vrot.slane %v2115, 1
        %v2234 = vsel %vm2135, %v2233, %v2232
        %v2235 = vpack.c.b16 %v2150, %v2136
        %v2236 = vpack.c.b16 %v2178, %v2164
        %v2237 = vpack.c.b16 %v2206, %v2192
        %v2238 = vpack.c.b16 %v2234, %v2220
        %v2247 = vunpack.c.l.b16 %v1148
        %v2248 = vunpack.c.l.b16 %v1149
        %v2249 = vunpack.c.l.b16 %v1150
        %v2250 = vunpack.c.l.b16 %v1151
        %v2251 = vunpack.c.l.b16 %v1152
        %v2252 = vunpack.c.l.b16 %v1153
        %v2253 = vunpack.c.l.b16 %v1154
        %v2254 = vunpack.c.l.b16 %v1155
        %v2255 = vpack.c.b16 %v2248, %v2247
        %v2256 = vpack.c.b16 %v2250, %v2249
        %v2257 = vpack.c.b16 %v2252, %v2251
        %v2258 = vpack.c.b16 %v2254, %v2253
        %v2264 = vsel %vm499, %v2235, 0
        %v2267 = vsel %vm499, %v2236, 0
        %v2270 = vsel %vm499, %v2237, 0
        %v2273 = vsel %vm499, %v2238, 0
        %2275 = vmatprep.subr.bf16.mxu0 0
        %2276 = vmatpush1.bf16.msra.mxu0 0
        %2277 = vmatprep.subr.bf16.mxu0 0
        %2278 = vmatpush1.bf16.msra.mxu0 0
        %2279 = vmatprep.subr.bf16.mxu0 0
        %2280 = vmatpush1.bf16.msra.mxu0 0
        %2281 = vmatprep.subr.bf16.mxu0 0
        %2282 = vmatpush1.bf16.msra.mxu0 0
        %2283 = vmatprep.subr.bf16.mxu0 0
        %2284 = vmatpush1.bf16.msra.mxu0 %v2258
        %2285 = vmatprep.subr.bf16.mxu0 0
        %2286 = vmatpush1.bf16.msra.mxu0 %v2257
        %2287 = vmatprep.subr.bf16.mxu0 0
        %2288 = vmatpush1.bf16.msra.mxu0 %v2256
        %2289 = vmatprep.subr.bf16.mxu0 0
        %2290 = vmatpush1.bf16.msra.mxu0 %v2255
        %2291 = vmatprep.subr.bf16.mxu0 0
        %2292 = vmatpush2.bf16.msra.mxu0 0
        %2293 = vmatprep.subr.bf16.mxu0 0
        %2294 = vmatpush2.bf16.msra.mxu0 0
        %2295 = vmatprep.subr.bf16.mxu0 0
        %2296 = vmatpush2.bf16.msra.mxu0 0
        %2297 = vmatprep.subr.bf16.mxu0 0
        %2298 = vmatpush2.bf16.msra.mxu0 0
        %2299 = vmatprep.subr.bf16.mxu0 0
        %2300 = vmatpush2.bf16.msra.mxu0 0
        %2301 = vmatprep.subr.bf16.mxu0 0
        %2302 = vmatpush2.bf16.msra.mxu0 0
        %2303 = vmatprep.subr.bf16.mxu0 0
        %2304 = vmatpush2.bf16.msra.mxu0 0
        %2305 = vmatprep.subr.bf16.mxu0 0
        %2306 = vmatpush2.bf16.msra.mxu0 0
        %2307 = vmatprep.mubr.bf16.mxu0 0
        %2308 = vmatmul.mubr.bf16.gmra.mxu0 %v2264
        %v2309 = vpop.f32.mrf.mxu0
        %v2310 = vadd.f32 0.0, %v2309
        %v2311 = vpop.f32.mrf.mxu0
        %v2312 = vpop.f32.mrf.mxu0
        %v2313 = vadd.f32 0.0, %v2312
        %v2314 = vpop.f32.mrf.mxu0
        %2315 = vmatprep.mubr.bf16.mxu0 0
        %2316 = vmatmul.mubr.bf16.gmra.mxu0 %v2267
        %v2317 = vpop.f32.mrf.mxu0
        %v2318 = vadd.f32 0.0, %v2317
        %v2319 = vpop.f32.mrf.mxu0
        %v2320 = vpop.f32.mrf.mxu0
        %v2321 = vadd.f32 0.0, %v2320
        %v2322 = vpop.f32.mrf.mxu0
        %2323 = vmatprep.mubr.bf16.mxu0 0
        %2324 = vmatmul.mubr.bf16.gmra.mxu0 %v2270
        %v2325 = vpop.f32.mrf.mxu0
        %v2326 = vadd.f32 0.0, %v2325
        %v2327 = vpop.f32.mrf.mxu0
        %v2328 = vpop.f32.mrf.mxu0
        %v2329 = vadd.f32 0.0, %v2328
        %v2330 = vpop.f32.mrf.mxu0
        %2331 = vmatprep.mubr.bf16.mxu0 0
        %2332 = vmatmul.mubr.bf16.gmra.mxu0 %v2273
        %v2333 = vpop.f32.mrf.mxu0
        %v2334 = vadd.f32 0.0, %v2333
        %v2335 = vpop.f32.mrf.mxu0
        %v2336 = vpop.f32.mrf.mxu0
        %v2337 = vadd.f32 0.0, %v2336
        %v2338 = vpop.f32.mrf.mxu0
        %2339 = vdwg.mxu0
        %v2340 = vpack.c.bf16 %v2313, %v2310
        %v2341 = vpack.c.bf16 %v2321, %v2318
        %v2342 = vpack.c.bf16 %v2329, %v2326
        %v2343 = vpack.c.bf16 %v2337, %v2334
        %v2348 = vunpack.c.l.b16 %v2340
        %v2349 = vunpack.c.h.b16 %v2340
        %v2350 = vunpack.c.l.b16 %v2341
        %v2351 = vunpack.c.h.b16 %v2341
        %v2352 = vunpack.c.l.b16 %v2342
        %v2353 = vunpack.c.h.b16 %v2342
        %v2354 = vunpack.c.l.b16 %v2343
        %v2355 = vunpack.c.h.b16 %v2343
        %v2356 = vpack.c.b16 %v2348, %v2348
        %v2357 = vpack.c.b16 %v2349, %v2349
        %v2358 = vpack.c.b16 %v2350, %v2350
        %v2359 = vpack.c.b16 %v2351, %v2351
        %v2360 = vpack.c.b16 %v2352, %v2352
        %v2361 = vpack.c.b16 %v2353, %v2353
        %v2362 = vpack.c.b16 %v2354, %v2354
        %v2363 = vpack.c.b16 %v2355, %v2355
        %2372 = vst [vmem:[%s383] sm:$0xf] %v2356
        %2373 = vst [vmem:[%s383 + $0x4] sm:$0xf] %v2357
        %2374 = vst [vmem:[%s383 + $0x8] sm:$0xf] %v2358
        %2375 = vst [vmem:[%s383 + $0xc] sm:$0xf] %v2359
        %2376 = vst [vmem:[%s383 + $0x10] sm:$0xf] %v2360
        %2377 = vst [vmem:[%s383 + $0x14] sm:$0xf] %v2361
        %2378 = vst [vmem:[%s383 + $0x18] sm:$0xf] %v2362
        %2379 = vst [vmem:[%s383 + $0x1c] sm:$0xf] %v2363
        %v2380 = vld [vmem:[%s403] sm:$0x3]
        %v2381 = vadd.f32 %v2310, %v2313
        %v2382 = vadd.f32 %v2381, %v2318
        %v2383 = vadd.f32 %v2382, %v2321
        %v2384 = vadd.f32 %v2383, %v2326
        %v2385 = vadd.f32 %v2384, %v2329
        %v2386 = vadd.f32 %v2385, %v2334
        %v2387 = vadd.f32 %v2386, %v2337
        %v2388 = vrot.slane %v2387, 4
        %v2389 = vadd.f32 %v2387, %v2388
        %v2390 = vrot.slane %v2389, 2
        %v2391 = vadd.f32 %v2389, %v2390
        %v2392 = vrot.slane %v2391, 1
        %v2393 = vadd.f32 %v2391, %v2392
        %v2394 = vmul.f32 %v2310, %v2310
        %v2395 = vmul.f32 %v2313, %v2313
        %v2396 = vmul.f32 %v2318, %v2318
        %v2397 = vmul.f32 %v2321, %v2321
        %v2398 = vmul.f32 %v2326, %v2326
        %v2399 = vmul.f32 %v2329, %v2329
        %v2400 = vmul.f32 %v2334, %v2334
        %v2401 = vmul.f32 %v2337, %v2337
        %v2402 = vadd.f32 %v2394, %v2395
        %v2403 = vadd.f32 %v2402, %v2396
        %v2404 = vadd.f32 %v2403, %v2397
        %v2405 = vadd.f32 %v2404, %v2398
        %v2406 = vadd.f32 %v2405, %v2399
        %v2407 = vadd.f32 %v2406, %v2400
        %v2408 = vadd.f32 %v2407, %v2401
        %v2409 = vrot.slane %v2408, 4
        %v2410 = vadd.f32 %v2408, %v2409
        %v2411 = vrot.slane %v2410, 2
        %v2412 = vadd.f32 %v2410, %v2411
        %v2413 = vrot.slane %v2412, 1
        %v2414 = vadd.f32 %v2412, %v2413
        %v2415 = vsel %vm760, %v2393, %v2414
        %v2416 = vadd.f32 %v2380, %v2415
        %2417 = vst [vmem:[%s403] sm:$0x3] %v2416
        %s2418 = sand.u32 %s110, 1
        %s2419 = sand.u32 %s110, 1
        %s2420 = smul.addr %s2419, 64
        %s2421 = scalar_lea.vmem [#allocation3], %s2420
        %p2422 = scmp.lt.s32.totalorder %s22, 1
        %s2423 = scalar_select %p2422, %s22, 1
        %s2424 = smul.addr %s2423, 2
        %s2425 = scalar_lea.vmem %s4, %s2424
        %s2426 = sand.u32 %s164, 1
        %s2427 = sand.u32 %s164, 1
        %s2428 = smul.addr %s2427, 32
        %s2429 = scalar_lea.vmem [#allocation4], %s2428
        %p2430 = scmp.lt.s32.totalorder %s22, 1
        %s2431 = scalar_select %p2430, %s22, 1
        %s2432 = smul.addr %s2431, 2
        %s2433 = scalar_lea.vmem %s6, %s2432
        // Predicated region
        $region78: #{bottleneck1d_forward.4} parent=68 // pred_check
          %p2434 = pneg %p120
        $region79: #{bottleneck1d_forward.4} parent=68 // pred_check_branch
          %2436 = sbr.rel (%p2434) target = $region81
        $region80: #{bottleneck1d_forward.4} parent=68 // pred_region
          %s2437 = smul.u32 4, %s22
          %s2438 = smul.u32 4, %s23
          %s2439 = smul.addr %s2437, 8
          %s2440 = sadd.s32 %s2438, %s2439
          %s2441 = smul.addr %s2440, 4
          %s2442 = scalar_lea.vmem %s3, %s2441
          // Predicated region
          $region82: #{bottleneck1d_forward.4} parent=80 // pred_check
            _
          $region83: #{bottleneck1d_forward.4} parent=80 // pred_check_branch
            %2444 = sbr.rel (0) target = $region85
          $region84: #{bottleneck1d_forward.4} parent=80 // pred_region
            // Predicated region
            $region86: #{bottleneck1d_forward.4} parent=84 // pred_check
              _
            $region87: #{bottleneck1d_forward.4} parent=84 // pred_check_branch
              %2446 = sbr.rel target = $region89
            $region88: #{bottleneck1d_forward.4} parent=84 // pred_region
              // Predicated region
              $region101: #{bottleneck1d_forward.4} parent=88 // pred_check
                _
              $region102: #{bottleneck1d_forward.4} parent=88 // pred_check_branch
                %2492 = sbr.rel (0) target = $region104
              $region103: #{bottleneck1d_forward.4} parent=88 // pred_region
                loop: start=0, step=1, limit=1
                $region105: #{bottleneck1d_forward.4} parent=103 // loop_pre_header
                  _
                $region106: #{bottleneck1d_forward.4} parent=103 // loop_header
                  %s2494 = sphi 0, %s2498
                  %p2495 = scmp.ge.s32.totalorder %s2494, 1
                  %s2499 = sphi %s2421, %s2421
                  %s2500 = sphi %s2442, %s2442
                $region107: #{bottleneck1d_forward.4} parent=103 // loop_header_branch
                  %2497 = sbr.rel (%p2495) target = $region111
                $region108: #{bottleneck1d_forward.4} parent=103 // loop_body
                  _
                $region109: #{bottleneck1d_forward.4} parent=103 // loop_footer
                  %s2498 = sadd.s32 1, %s2494
                $region110: #{bottleneck1d_forward.4} parent=103 // loop_footer_branch
                  %2493 = sbr.rel target = $region106
                $region111: #{bottleneck1d_forward.4} parent=103 // loop_exit
                  _
                %s2502 = ssub.s32 16, 1
                loop: start=0, step=1, limit=1
                $region112: #{bottleneck1d_forward.4} parent=103 // loop_pre_header
                  _
                $region113: #{bottleneck1d_forward.4} parent=103 // loop_header
                  %s2504 = sphi 0, %s2508
                  %p2505 = scmp.ge.s32.totalorder %s2504, 1
                  %s2509 = sphi %s2421, %s2421
                  %s2510 = sphi %s2442, %s2442
                $region114: #{bottleneck1d_forward.4} parent=103 // loop_header_branch
                  %2507 = sbr.rel (%p2505) target = $region118
                $region115: #{bottleneck1d_forward.4} parent=103 // loop_body
                  %v2511 = vld [vmem:[%s2509] sm:%s2502]
                  %2512 = vst [vmem:[%s2510] sm:%s2502] %v2511
                  %v2513 = vld [vmem:[%s2509 + $0x4] sm:%s2502]
                  %2514 = vst [vmem:[%s2510 + $0x4] sm:%s2502] %v2513
                  %v2515 = vld [vmem:[%s2509 + $0x8] sm:%s2502]
                  %2516 = vst [vmem:[%s2510 + $0x8] sm:%s2502] %v2515
                  %v2517 = vld [vmem:[%s2509 + $0xc] sm:%s2502]
                  %2518 = vst [vmem:[%s2510 + $0xc] sm:%s2502] %v2517
                  %v2519 = vld [vmem:[%s2509 + $0x10] sm:%s2502]
                  %2520 = vst [vmem:[%s2510 + $0x20] sm:%s2502] %v2519
                  %v2521 = vld [vmem:[%s2509 + $0x14] sm:%s2502]
                  %2522 = vst [vmem:[%s2510 + $0x24] sm:%s2502] %v2521
                  %v2523 = vld [vmem:[%s2509 + $0x18] sm:%s2502]
                  %2524 = vst [vmem:[%s2510 + $0x28] sm:%s2502] %v2523
                  %v2525 = vld [vmem:[%s2509 + $0x1c] sm:%s2502]
                  %2526 = vst [vmem:[%s2510 + $0x2c] sm:%s2502] %v2525
                  %v2527 = vld [vmem:[%s2509 + $0x20] sm:%s2502]
                  %2528 = vst [vmem:[%s2510 + $0x40] sm:%s2502] %v2527
                  %v2529 = vld [vmem:[%s2509 + $0x24] sm:%s2502]
                  %2530 = vst [vmem:[%s2510 + $0x44] sm:%s2502] %v2529
                  %v2531 = vld [vmem:[%s2509 + $0x28] sm:%s2502]
                  %2532 = vst [vmem:[%s2510 + $0x48] sm:%s2502] %v2531
                  %v2533 = vld [vmem:[%s2509 + $0x2c] sm:%s2502]
                  %2534 = vst [vmem:[%s2510 + $0x4c] sm:%s2502] %v2533
                  %v2535 = vld [vmem:[%s2509 + $0x30] sm:%s2502]
                  %2536 = vst [vmem:[%s2510 + $0x60] sm:%s2502] %v2535
                  %v2537 = vld [vmem:[%s2509 + $0x34] sm:%s2502]
                  %2538 = vst [vmem:[%s2510 + $0x64] sm:%s2502] %v2537
                  %v2539 = vld [vmem:[%s2509 + $0x38] sm:%s2502]
                  %2540 = vst [vmem:[%s2510 + $0x68] sm:%s2502] %v2539
                  %v2541 = vld [vmem:[%s2509 + $0x3c] sm:%s2502]
                  %2542 = vst [vmem:[%s2510 + $0x6c] sm:%s2502] %v2541
                $region116: #{bottleneck1d_forward.4} parent=103 // loop_footer
                  %s2508 = sadd.s32 1, %s2504
                $region117: #{bottleneck1d_forward.4} parent=103 // loop_footer_branch
                  %2503 = sbr.rel target = $region113
                $region118: #{bottleneck1d_forward.4} parent=103 // loop_exit
                  _
              $region104: #{bottleneck1d_forward.4} parent=88 // pred_fallthru
                _
            $region89: #{bottleneck1d_forward.4} parent=84 // pred_fallthru
              _
            // Predicated region
            $region90: #{bottleneck1d_forward.4} parent=84 // pred_check
              _
            $region91: #{bottleneck1d_forward.4} parent=84 // pred_check_branch
              %2448 = sbr.rel (0) target = $region93
            $region92: #{bottleneck1d_forward.4} parent=84 // pred_region
              %s2450 = ssub.s32 16, 1
              loop: start=0, step=1, limit=1
              $region94: #{bottleneck1d_forward.4} parent=92 // loop_pre_header
                _
              $region95: #{bottleneck1d_forward.4} parent=92 // loop_header
                %s2452 = sphi 0, %s2456
                %p2453 = scmp.ge.s32.totalorder %s2452, 1
                %s2457 = sphi %s2421, %s2421
                %s2458 = sphi %s2442, %s2442
              $region96: #{bottleneck1d_forward.4} parent=92 // loop_header_branch
                %2455 = sbr.rel (%p2453) target = $region100
              $region97: #{bottleneck1d_forward.4} parent=92 // loop_body
                %v2459 = vld [vmem:[%s2457] sm:%s2450]
                %2460 = vst [vmem:[%s2458] sm:%s2450] %v2459
                %v2461 = vld [vmem:[%s2457 + $0x4] sm:%s2450]
                %2462 = vst [vmem:[%s2458 + $0x4] sm:%s2450] %v2461
                %v2463 = vld [vmem:[%s2457 + $0x8] sm:%s2450]
                %2464 = vst [vmem:[%s2458 + $0x8] sm:%s2450] %v2463
                %v2465 = vld [vmem:[%s2457 + $0xc] sm:%s2450]
                %2466 = vst [vmem:[%s2458 + $0xc] sm:%s2450] %v2465
                %v2467 = vld [vmem:[%s2457 + $0x10] sm:%s2450]
                %2468 = vst [vmem:[%s2458 + $0x20] sm:%s2450] %v2467
                %v2469 = vld [vmem:[%s2457 + $0x14] sm:%s2450]
                %2470 = vst [vmem:[%s2458 + $0x24] sm:%s2450] %v2469
                %v2471 = vld [vmem:[%s2457 + $0x18] sm:%s2450]
                %2472 = vst [vmem:[%s2458 + $0x28] sm:%s2450] %v2471
                %v2473 = vld [vmem:[%s2457 + $0x1c] sm:%s2450]
                %2474 = vst [vmem:[%s2458 + $0x2c] sm:%s2450] %v2473
                %v2475 = vld [vmem:[%s2457 + $0x20] sm:%s2450]
                %2476 = vst [vmem:[%s2458 + $0x40] sm:%s2450] %v2475
                %v2477 = vld [vmem:[%s2457 + $0x24] sm:%s2450]
                %2478 = vst [vmem:[%s2458 + $0x44] sm:%s2450] %v2477
                %v2479 = vld [vmem:[%s2457 + $0x28] sm:%s2450]
                %2480 = vst [vmem:[%s2458 + $0x48] sm:%s2450] %v2479
                %v2481 = vld [vmem:[%s2457 + $0x2c] sm:%s2450]
                %2482 = vst [vmem:[%s2458 + $0x4c] sm:%s2450] %v2481
                %v2483 = vld [vmem:[%s2457 + $0x30] sm:%s2450]
                %2484 = vst [vmem:[%s2458 + $0x60] sm:%s2450] %v2483
                %v2485 = vld [vmem:[%s2457 + $0x34] sm:%s2450]
                %2486 = vst [vmem:[%s2458 + $0x64] sm:%s2450] %v2485
                %v2487 = vld [vmem:[%s2457 + $0x38] sm:%s2450]
                %2488 = vst [vmem:[%s2458 + $0x68] sm:%s2450] %v2487
                %v2489 = vld [vmem:[%s2457 + $0x3c] sm:%s2450]
                %2490 = vst [vmem:[%s2458 + $0x6c] sm:%s2450] %v2489
              $region98: #{bottleneck1d_forward.4} parent=92 // loop_footer
                %s2456 = sadd.s32 1, %s2452
              $region99: #{bottleneck1d_forward.4} parent=92 // loop_footer_branch
                %2451 = sbr.rel target = $region95
              $region100: #{bottleneck1d_forward.4} parent=92 // loop_exit
                _
            $region93: #{bottleneck1d_forward.4} parent=84 // pred_fallthru
              _
          $region85: #{bottleneck1d_forward.4} parent=80 // pred_fallthru
            _
          %2543 = vnop
        $region81: #{bottleneck1d_forward.4} parent=68 // pred_fallthru
          _
        // Predicated region
        $region119: #{bottleneck1d_forward.4} parent=68 // pred_check
          %p2544 = pneg %p146
        $region120: #{bottleneck1d_forward.4} parent=68 // pred_check_branch
          %2546 = sbr.rel (%p2544) target = $region122
        $region121: #{bottleneck1d_forward.4} parent=68 // pred_region
          _
        $region122: #{bottleneck1d_forward.4} parent=68 // pred_fallthru
          _
        // Predicated region
        $region123: #{bottleneck1d_forward.4} parent=68 // pred_check
          %p2547 = pneg %p174
        $region124: #{bottleneck1d_forward.4} parent=68 // pred_check_branch
          %2549 = sbr.rel (%p2547) target = $region126
        $region125: #{bottleneck1d_forward.4} parent=68 // pred_region
          %s2550 = smul.u32 4, %s22
          %s2551 = smul.u32 2, %s23
          %s2552 = smul.addr %s2550, 4
          %s2553 = sadd.s32 %s2551, %s2552
          %s2554 = smul.addr %s2553, 4
          %s2555 = scalar_lea.vmem %s5, %s2554
          // Predicated region
          $region127: #{bottleneck1d_forward.4} parent=125 // pred_check
            _
          $region128: #{bottleneck1d_forward.4} parent=125 // pred_check_branch
            %2557 = sbr.rel (0) target = $region130
          $region129: #{bottleneck1d_forward.4} parent=125 // pred_region
            // Predicated region
            $region131: #{bottleneck1d_forward.4} parent=129 // pred_check
              _
            $region132: #{bottleneck1d_forward.4} parent=129 // pred_check_branch
              %2559 = sbr.rel target = $region134
            $region133: #{bottleneck1d_forward.4} parent=129 // pred_region
              // Predicated region
              $region146: #{bottleneck1d_forward.4} parent=133 // pred_check
                _
              $region147: #{bottleneck1d_forward.4} parent=133 // pred_check_branch
                %2589 = sbr.rel (0) target = $region149
              $region148: #{bottleneck1d_forward.4} parent=133 // pred_region
                loop: start=0, step=1, limit=1
                $region150: #{bottleneck1d_forward.4} parent=148 // loop_pre_header
                  _
                $region151: #{bottleneck1d_forward.4} parent=148 // loop_header
                  %s2591 = sphi 0, %s2595
                  %p2592 = scmp.ge.s32.totalorder %s2591, 1
                  %s2596 = sphi %s2429, %s2429
                  %s2597 = sphi %s2555, %s2555
                $region152: #{bottleneck1d_forward.4} parent=148 // loop_header_branch
                  %2594 = sbr.rel (%p2592) target = $region156
                $region153: #{bottleneck1d_forward.4} parent=148 // loop_body
                  _
                $region154: #{bottleneck1d_forward.4} parent=148 // loop_footer
                  %s2595 = sadd.s32 1, %s2591
                $region155: #{bottleneck1d_forward.4} parent=148 // loop_footer_branch
                  %2590 = sbr.rel target = $region151
                $region156: #{bottleneck1d_forward.4} parent=148 // loop_exit
                  _
                %s2599 = ssub.s32 16, 1
                loop: start=0, step=1, limit=1
                $region157: #{bottleneck1d_forward.4} parent=148 // loop_pre_header
                  _
                $region158: #{bottleneck1d_forward.4} parent=148 // loop_header
                  %s2601 = sphi 0, %s2605
                  %p2602 = scmp.ge.s32.totalorder %s2601, 1
                  %s2606 = sphi %s2429, %s2429
                  %s2607 = sphi %s2555, %s2555
                $region159: #{bottleneck1d_forward.4} parent=148 // loop_header_branch
                  %2604 = sbr.rel (%p2602) target = $region163
                $region160: #{bottleneck1d_forward.4} parent=148 // loop_body
                  %v2608 = vld [vmem:[%s2606] sm:%s2599]
                  %2609 = vst [vmem:[%s2607] sm:%s2599] %v2608
                  %v2610 = vld [vmem:[%s2606 + $0x4] sm:%s2599]
                  %2611 = vst [vmem:[%s2607 + $0x4] sm:%s2599] %v2610
                  %v2612 = vld [vmem:[%s2606 + $0x8] sm:%s2599]
                  %2613 = vst [vmem:[%s2607 + $0x10] sm:%s2599] %v2612
                  %v2614 = vld [vmem:[%s2606 + $0xc] sm:%s2599]
                  %2615 = vst [vmem:[%s2607 + $0x14] sm:%s2599] %v2614
                  %v2616 = vld [vmem:[%s2606 + $0x10] sm:%s2599]
                  %2617 = vst [vmem:[%s2607 + $0x20] sm:%s2599] %v2616
                  %v2618 = vld [vmem:[%s2606 + $0x14] sm:%s2599]
                  %2619 = vst [vmem:[%s2607 + $0x24] sm:%s2599] %v2618
                  %v2620 = vld [vmem:[%s2606 + $0x18] sm:%s2599]
                  %2621 = vst [vmem:[%s2607 + $0x30] sm:%s2599] %v2620
                  %v2622 = vld [vmem:[%s2606 + $0x1c] sm:%s2599]
                  %2623 = vst [vmem:[%s2607 + $0x34] sm:%s2599] %v2622
                $region161: #{bottleneck1d_forward.4} parent=148 // loop_footer
                  %s2605 = sadd.s32 1, %s2601
                $region162: #{bottleneck1d_forward.4} parent=148 // loop_footer_branch
                  %2600 = sbr.rel target = $region158
                $region163: #{bottleneck1d_forward.4} parent=148 // loop_exit
                  _
              $region149: #{bottleneck1d_forward.4} parent=133 // pred_fallthru
                _
            $region134: #{bottleneck1d_forward.4} parent=129 // pred_fallthru
              _
            // Predicated region
            $region135: #{bottleneck1d_forward.4} parent=129 // pred_check
              _
            $region136: #{bottleneck1d_forward.4} parent=129 // pred_check_branch
              %2561 = sbr.rel (0) target = $region138
            $region137: #{bottleneck1d_forward.4} parent=129 // pred_region
              %s2563 = ssub.s32 16, 1
              loop: start=0, step=1, limit=1
              $region139: #{bottleneck1d_forward.4} parent=137 // loop_pre_header
                _
              $region140: #{bottleneck1d_forward.4} parent=137 // loop_header
                %s2565 = sphi 0, %s2569
                %p2566 = scmp.ge.s32.totalorder %s2565, 1
                %s2570 = sphi %s2429, %s2429
                %s2571 = sphi %s2555, %s2555
              $region141: #{bottleneck1d_forward.4} parent=137 // loop_header_branch
                %2568 = sbr.rel (%p2566) target = $region145
              $region142: #{bottleneck1d_forward.4} parent=137 // loop_body
                %v2572 = vld [vmem:[%s2570] sm:%s2563]
                %2573 = vst [vmem:[%s2571] sm:%s2563] %v2572
                %v2574 = vld [vmem:[%s2570 + $0x4] sm:%s2563]
                %2575 = vst [vmem:[%s2571 + $0x4] sm:%s2563] %v2574
                %v2576 = vld [vmem:[%s2570 + $0x8] sm:%s2563]
                %2577 = vst [vmem:[%s2571 + $0x10] sm:%s2563] %v2576
                %v2578 = vld [vmem:[%s2570 + $0xc] sm:%s2563]
                %2579 = vst [vmem:[%s2571 + $0x14] sm:%s2563] %v2578
                %v2580 = vld [vmem:[%s2570 + $0x10] sm:%s2563]
                %2581 = vst [vmem:[%s2571 + $0x20] sm:%s2563] %v2580
                %v2582 = vld [vmem:[%s2570 + $0x14] sm:%s2563]
                %2583 = vst [vmem:[%s2571 + $0x24] sm:%s2563] %v2582
                %v2584 = vld [vmem:[%s2570 + $0x18] sm:%s2563]
                %2585 = vst [vmem:[%s2571 + $0x30] sm:%s2563] %v2584
                %v2586 = vld [vmem:[%s2570 + $0x1c] sm:%s2563]
                %2587 = vst [vmem:[%s2571 + $0x34] sm:%s2563] %v2586
              $region143: #{bottleneck1d_forward.4} parent=137 // loop_footer
                %s2569 = sadd.s32 1, %s2565
              $region144: #{bottleneck1d_forward.4} parent=137 // loop_footer_branch
                %2564 = sbr.rel target = $region140
              $region145: #{bottleneck1d_forward.4} parent=137 // loop_exit
                _
            $region138: #{bottleneck1d_forward.4} parent=129 // pred_fallthru
              _
          $region130: #{bottleneck1d_forward.4} parent=125 // pred_fallthru
            _
          %2624 = vnop
        $region126: #{bottleneck1d_forward.4} parent=68 // pred_fallthru
          _
        // Predicated region
        $region164: #{bottleneck1d_forward.4} parent=68 // pred_check
          %p2625 = pneg %p200
        $region165: #{bottleneck1d_forward.4} parent=68 // pred_check_branch
          %2627 = sbr.rel (%p2625) target = $region167
        $region166: #{bottleneck1d_forward.4} parent=68 // pred_region
          _
        $region167: #{bottleneck1d_forward.4} parent=68 // pred_fallthru
          _
      $region69: #{bottleneck1d_forward.4} parent=5 // pred_fallthru
        _
      %p2628 = scmp.le.s32.totalorder 2, %s13
      // Predicated region
      $region168: #{bottleneck1d_forward.4} parent=5 // pred_check
        %p2629 = pneg %p2628
      $region169: #{bottleneck1d_forward.4} parent=5 // pred_check_branch
        %2631 = sbr.rel (%p2629) target = $region171
      $region170: #{bottleneck1d_forward.4} parent=5 // pred_region
        %s2632 = ssub.s32 %s13, 2
        // Predicated region
        $region172: #{bottleneck1d_forward.4} parent=170 // pred_check
          %p2633 = pneg %p126
        $region173: #{bottleneck1d_forward.4} parent=170 // pred_check_branch
          %2635 = sbr.rel (%p2633) target = $region175
        $region174: #{bottleneck1d_forward.4} parent=170 // pred_region
          %s2636 = sand.u32 %s111, 1
          %s2637 = sand.u32 %s111, 1
          %s2638 = smul.addr %s2637, 64
          %s2639 = scalar_lea.vmem [#allocation3], %s2638
        $region175: #{bottleneck1d_forward.4} parent=170 // pred_fallthru
          _
        // Predicated region
        $region176: #{bottleneck1d_forward.4} parent=170 // pred_check
          %p2640 = pneg %p152
        $region177: #{bottleneck1d_forward.4} parent=170 // pred_check_branch
          %2642 = sbr.rel (%p2640) target = $region179
        $region178: #{bottleneck1d_forward.4} parent=170 // pred_region
          %p2643 = scmp.lt.s32.totalorder %s24, 1
          %s2644 = scalar_select %p2643, %s24, 1
          %s2645 = smul.addr %s2644, 2
          %s2646 = scalar_lea.vmem %s4, %s2645
        $region179: #{bottleneck1d_forward.4} parent=170 // pred_fallthru
          _
        // Predicated region
        $region180: #{bottleneck1d_forward.4} parent=170 // pred_check
          %p2647 = pneg %p180
        $region181: #{bottleneck1d_forward.4} parent=170 // pred_check_branch
          %2649 = sbr.rel (%p2647) target = $region183
        $region182: #{bottleneck1d_forward.4} parent=170 // pred_region
          %s2650 = sand.u32 %s165, 1
          %s2651 = sand.u32 %s165, 1
          %s2652 = smul.addr %s2651, 32
          %s2653 = scalar_lea.vmem [#allocation4], %s2652
        $region183: #{bottleneck1d_forward.4} parent=170 // pred_fallthru
          _
        // Predicated region
        $region184: #{bottleneck1d_forward.4} parent=170 // pred_check
          %p2654 = pneg %p206
        $region185: #{bottleneck1d_forward.4} parent=170 // pred_check_branch
          %2656 = sbr.rel (%p2654) target = $region187
        $region186: #{bottleneck1d_forward.4} parent=170 // pred_region
          %p2657 = scmp.lt.s32.totalorder %s24, 1
          %s2658 = scalar_select %p2657, %s24, 1
          %s2659 = smul.addr %s2658, 2
          %s2660 = scalar_lea.vmem %s6, %s2659
        $region187: #{bottleneck1d_forward.4} parent=170 // pred_fallthru
          _
      $region171: #{bottleneck1d_forward.4} parent=5 // pred_fallthru
        _
    $region6: #{bottleneck1d_forward.4} parent=1 // loop_footer
      %s17 = sadd.s32 1, %s13
    $region7: #{bottleneck1d_forward.4} parent=1 // loop_footer_branch
      %12 = sbr.rel target = $region3
    $region8: #{bottleneck1d_forward.4} parent=1 // loop_exit
      _

</llo_original>
